<compile_context>
chip_gen: v7x
topology: tpu7x:2x2x1
jax: 0.10.0
libtpu: 0.0.40
codegen_flags: <defaults>
</compile_context>

<pallas_src>
import functools
import math

import jax
import jax.numpy as jnp
from jax import lax
from jax.experimental import pallas as pl
from jax.experimental.pallas import tpu as pltpu

EPS = 1e-5  # nn.InstanceNorm1d default


# ------------------------------------------------ fused encoder-layer kernel
def _encoder_layer_kernel(x_ref, wqkv_ref, wc_ref, bc_ref,
                          w1_ref, bff1_ref, w2_ref, bff2_ref,
                          g1_ref, bn1_ref, g2_ref, bn2_ref,
                          out_ref, mh_ref, *, head_num, qkv_dim):
    hd = head_num * qkv_dim
    x = x_ref[0]                                                     # (N, E)

    # ---- stacked q/k/v projection: one full-width (N,E)@(E,3*HD) matmul ----
    qkv = jnp.dot(x, wqkv_ref[...], preferred_element_type=jnp.float32)
    q = qkv[:, :hd]                 # 1/sqrt(d) already folded into Wq columns
    k = qkv[:, hd:2 * hd]
    v = qkv[:, 2 * hd:]

    # ---- per-head scaled dot-product attention (unrolled; N is small) ------
    head_outs = []
    for h in range(head_num):
        sl = slice(h * qkv_dim, (h + 1) * qkv_dim)
        qh, kh, vh = q[:, sl], k[:, sl], v[:, sl]
        s = lax.dot_general(qh, kh, (((1,), (1,)), ((), ())),
                            preferred_element_type=jnp.float32)     # (N, N)
        s = s - jnp.max(s, axis=-1, keepdims=True)
        p = jnp.exp(s)
        p = p * pl.reciprocal(jnp.sum(p, axis=-1, keepdims=True), approx=True)
        head_outs.append(jnp.dot(p, vh, preferred_element_type=jnp.float32))
    attn = jnp.concatenate(head_outs, axis=-1)                      # (N, HD)

    # ---- multi_head_combine: single full-width (N,HD)@(HD,E) matmul --------
    mh = jnp.dot(attn, wc_ref[...], preferred_element_type=jnp.float32) \
        + bc_ref[...]
    mh_ref[0] = mh

    # ---- residual add + InstanceNorm1d (single-pass stats, affine folded) --
    def add_norm(a, b, gamma, beta):
        y = a + b
        inv_n = 1.0 / y.shape[0]
        mean = jnp.sum(y, axis=0, keepdims=True) * inv_n             # (1, E)
        ex2 = jnp.sum(y * y, axis=0, keepdims=True) * inv_n
        var = ex2 - mean * mean                                      # biased
        scale = lax.rsqrt(var + EPS) * gamma
        return (y - mean) * scale + beta

    out1 = add_norm(x, mh, g1_ref[...], bn1_ref[...])

    # ---- feed forward: W2(relu(W1 x + b1)) + b2 -----------------------------
    hdn = jnp.dot(out1, w1_ref[...],
                  preferred_element_type=jnp.float32) + bff1_ref[...]
    hdn = jnp.maximum(hdn, 0.0)
    ff = jnp.dot(hdn, w2_ref[...],
                 preferred_element_type=jnp.float32) + bff2_ref[...]

    out_ref[0] = add_norm(out1, ff, g2_ref[...], bn2_ref[...])


def encoder_layer_forward(lp, x, head_num, qkv_dim):
    """One EncoderLayer forward, fully fused into a single pallas_call."""
    B, N, E = x.shape
    HD = head_num * qkv_dim
    FF = lp["w1"].shape[1]

    kernel = functools.partial(_encoder_layer_kernel,
                               head_num=head_num, qkv_dim=qkv_dim)
    out3, mh = pl.pallas_call(
        kernel,
        out_shape=(jax.ShapeDtypeStruct((B, N, E), jnp.float32),
                   jax.ShapeDtypeStruct((B, N, E), jnp.float32)),
        grid=(B,),
        in_specs=[
            pl.BlockSpec((1, N, E), lambda b: (b, 0, 0)),      # x
            pl.BlockSpec((E, 3 * HD), lambda b: (0, 0)),       # Wq|Wk|Wv
            pl.BlockSpec((HD, E), lambda b: (0, 0)),           # combine W
            pl.BlockSpec((1, E), lambda b: (0, 0)),            # combine b
            pl.BlockSpec((E, FF), lambda b: (0, 0)),           # ff W1
            pl.BlockSpec((1, FF), lambda b: (0, 0)),           # ff b1
            pl.BlockSpec((FF, E), lambda b: (0, 0)),           # ff W2
            pl.BlockSpec((1, E), lambda b: (0, 0)),            # ff b2
            pl.BlockSpec((1, E), lambda b: (0, 0)),            # norm1 gamma
            pl.BlockSpec((1, E), lambda b: (0, 0)),            # norm1 beta
            pl.BlockSpec((1, E), lambda b: (0, 0)),            # norm2 gamma
            pl.BlockSpec((1, E), lambda b: (0, 0)),            # norm2 beta
        ],
        out_specs=(pl.BlockSpec((1, N, E), lambda b: (b, 0, 0)),
                   pl.BlockSpec((1, N, E), lambda b: (b, 0, 0))),
        compiler_params=pltpu.CompilerParams(
            dimension_semantics=("parallel",)),
    )(x, lp["wqkv"], lp["wc"], lp["bc"].reshape(1, E),
      lp["w1"], lp["bff1"].reshape(1, FF), lp["w2"], lp["bff2"].reshape(1, E),
      lp["g1"].reshape(1, E), lp["b1"].reshape(1, E),
      lp["g2"].reshape(1, E), lp["b2"].reshape(1, E))
    return out3, mh


def vrp_encoder_forward(params, depot_xy, node_xy_demand_TW, head_num, qkv_dim,
                        embedded_prompt=None):
    # Embedding linears are trivially small (K=2/3) -> plain jnp, XLA fuses.
    emb_depot = depot_xy @ params["embed_depot"]["w"] + params["embed_depot"]["b"]
    emb_node = (node_xy_demand_TW @ params["embed_node"]["w"]
                + params["embed_node"]["b"])
    out = jnp.concatenate([emb_depot, emb_node], axis=1)

    out_prompt = None
    for n, lp in enumerate(params["layers"]):
        if embedded_prompt is not None:
            out = jnp.concatenate([out, embedded_prompt[:, :, n, :]], axis=1)
            out, out_prompt = encoder_layer_forward(lp, out, head_num, qkv_dim)
        elif n < 1:
            out, out_prompt = encoder_layer_forward(lp, out, head_num, qkv_dim)
        else:
            out, out_prompt_layer = encoder_layer_forward(lp, out, head_num,
                                                          qkv_dim)
            out_prompt = jnp.concatenate([out_prompt, out_prompt_layer], axis=2)
    return out, out_prompt


# ------------------------------------------------------ pure-JAX reference ---
def _ref_heads(qkv, head_num):
    B, N, HD = qkv.shape
    return qkv.reshape(B, N, head_num, HD // head_num).transpose(0, 2, 1, 3)


def _ref_instance_norm(x, gamma, beta):
    mean = jnp.mean(x, axis=1, keepdims=True)
    var = jnp.mean((x - mean) ** 2, axis=1, keepdims=True)
    return (x - mean) / jnp.sqrt(var + EPS) * gamma + beta


def reference_encoder(params, depot_xy, node_xy_demand_TW, head_num, qkv_dim):
    mm = functools.partial(jnp.einsum, precision=lax.Precision.HIGHEST)
    ed = mm("bnk,ke->bne", depot_xy, params["embed_depot"]["w"]) + params["embed_depot"]["b"]
    en = mm("bnk,ke->bne", node_xy_demand_TW, params["embed_node"]["w"]) + params["embed_node"]["b"]
    out = jnp.concatenate([ed, en], axis=1)
    out_prompt = None
    for n, lp in enumerate(params["layers"]):
        x = out
        q = _ref_heads(mm("bne,ef->bnf", x, lp["wq"]), head_num)
        k = _ref_heads(mm("bne,ef->bnf", x, lp["wk"]), head_num)
        v = _ref_heads(mm("bne,ef->bnf", x, lp["wv"]), head_num)
        score = mm("bhnd,bhmd->bhnm", q, k) / jnp.sqrt(jnp.float32(qkv_dim))
        w = jax.nn.softmax(score, axis=-1)
        oc = mm("bhnm,bhmd->bhnd", w, v).transpose(0, 2, 1, 3)
        oc = oc.reshape(x.shape[0], x.shape[1], -1)
        mh = mm("bnf,fe->bne", oc, lp["wc"]) + lp["bc"]
        out1 = _ref_instance_norm(x + mh, lp["g1"], lp["b1"])
        hid = jax.nn.relu(mm("bne,ef->bnf", out1, lp["w1"]) + lp["bff1"])
        ff = mm("bnf,fe->bne", hid, lp["w2"]) + lp["bff2"]
        out = _ref_instance_norm(out1 + ff, lp["g2"], lp["b2"])
        out_prompt = mh if n == 0 else jnp.concatenate([out_prompt, mh], axis=2)
    return out, out_prompt


# ----------------------------------------------------------- param init -----
def _init_linear(key, fan_in, fan_out, bias=True):
    kw, kb = jax.random.split(key)
    lim = 1.0 / math.sqrt(fan_in)
    w = jax.random.uniform(kw, (fan_in, fan_out), jnp.float32, -lim, lim)
    if not bias:
        return w, None
    b = jax.random.uniform(kb, (fan_out,), jnp.float32, -lim, lim)
    return w, b


def make_params(key, embedding_dim, head_num, qkv_dim, ff_hidden_dim, layer_num):
    """Builds reference-layout params and (hoisted, once) fused kernel layouts."""
    E, HD, FF = embedding_dim, head_num * qkv_dim, ff_hidden_dim
    inv_sqrt_d = 1.0 / math.sqrt(qkv_dim)
    keys = jax.random.split(key, 2 + layer_num)
    wd, bd = _init_linear(keys[0], 2, E)
    wn, bn = _init_linear(keys[1], 3, E)
    params = {"embed_depot": {"w": wd, "b": bd},
              "embed_node": {"w": wn, "b": bn},
              "layers": []}
    for li in range(layer_num):
        ks = jax.random.split(keys[2 + li], 10)
        wq, _ = _init_linear(ks[0], E, HD, bias=False)
        wk, _ = _init_linear(ks[1], E, HD, bias=False)
        wv, _ = _init_linear(ks[2], E, HD, bias=False)
        wc, bc = _init_linear(ks[3], HD, E)
        w1, bff1 = _init_linear(ks[4], E, FF)
        w2, bff2 = _init_linear(ks[5], FF, E)
        g1 = 1.0 + 0.1 * jax.random.normal(ks[6], (E,), jnp.float32)
        b1 = 0.05 * jax.random.normal(ks[7], (E,), jnp.float32)
        g2 = 1.0 + 0.1 * jax.random.normal(ks[8], (E,), jnp.float32)
        b2 = 0.05 * jax.random.normal(ks[9], (E,), jnp.float32)
        # Hoisted kernel layout: stacked QKV with 1/sqrt(d) folded into Wq.
        wqkv = jnp.concatenate([wq * inv_sqrt_d, wk, wv], axis=1)    # (E, 3HD)
        params["layers"].append(dict(wq=wq, wk=wk, wv=wv, wqkv=wqkv,
                                     wc=wc, bc=bc,
                                     w1=w1, bff1=bff1, w2=w2, bff2=bff2,
                                     g1=g1, b1=b1, g2=g2, b2=b2))
    return params


if __name__ == "__main__":
    # Small shapes consistent with the module: batch=2, 1 depot + 20 nodes = 21
    # positions, embedding_dim=128 (= head_num * qkv_dim, lane-dense), 8 heads
    # of qkv_dim 16, ff_hidden_dim 512, 2 encoder layers, embedded_prompt=None.
    B, NODES, E, H, D, FF, L = 2, 20, 128, 8, 16, 512, 2
    key = jax.random.PRNGKey(0)
    kp, kd, kn = jax.random.split(key, 3)

    params = make_params(kp, E, H, D, FF, L)
    depot_xy = jax.random.uniform(kd, (B, 1, 2), jnp.float32)
    node_xy_demand_TW = jax.random.uniform(kn, (B, NODES, 3), jnp.float32)

    fwd = jax.jit(functools.partial(vrp_encoder_forward, head_num=H, qkv_dim=D))
    out, out_prompt = fwd(params, depot_xy, node_xy_demand_TW)
    out = jax.block_until_ready(out)
    out_prompt = jax.block_until_ready(out_prompt)

    ref_out, ref_prompt = reference_encoder(params, depot_xy, node_xy_demand_TW,
                                            H, D)

    N = 1 + NODES
    assert out.shape == (B, N, E)
    assert out_prompt.shape == (B, N, L * E)
    assert jnp.allclose(out, ref_out, atol=2e-2, rtol=2e-2), \
        float(jnp.max(jnp.abs(out - ref_out)))
    assert jnp.allclose(out_prompt, ref_prompt, atol=2e-2, rtol=2e-2), \
        float(jnp.max(jnp.abs(out_prompt - ref_prompt)))
    print("KERNEL_OK")
</pallas_src>

<mosaic_0001>
module attributes {stable_mosaic.version = 11 : i64} {
  func.func @_encoder_layer_kernel(%arg0: i32, %arg1: memref<1x21x128xf32, #tpu.memory_space<vmem>>, %arg2: memref<128x384xf32, #tpu.memory_space<vmem>>, %arg3: memref<128x128xf32, #tpu.memory_space<vmem>>, %arg4: memref<1x128xf32, #tpu.memory_space<vmem>>, %arg5: memref<128x512xf32, #tpu.memory_space<vmem>>, %arg6: memref<1x512xf32, #tpu.memory_space<vmem>>, %arg7: memref<512x128xf32, #tpu.memory_space<vmem>>, %arg8: memref<1x128xf32, #tpu.memory_space<vmem>>, %arg9: memref<1x128xf32, #tpu.memory_space<vmem>>, %arg10: memref<1x128xf32, #tpu.memory_space<vmem>>, %arg11: memref<1x128xf32, #tpu.memory_space<vmem>>, %arg12: memref<1x128xf32, #tpu.memory_space<vmem>>, %arg13: memref<1x21x128xf32, #tpu.memory_space<vmem>>, %arg14: memref<1x21x128xf32, #tpu.memory_space<vmem>>) attributes {dimension_semantics = [#tpu.dimension_semantics<parallel>], iteration_bounds = array<i64: 2>, scalar_prefetch = 0 : i64, scratch_operands = 0 : i64, tpu.core_type = #tpu.core_type<tc>, window_params = [{transform_indices = @transform_0, window_bounds = array<i64: 1, 21, 128>}, {pipeline_mode = #tpu.pipeline_mode<synchronous>, transform_indices = @transform_1, window_bounds = array<i64: 128, 384>}, {pipeline_mode = #tpu.pipeline_mode<synchronous>, transform_indices = @transform_2, window_bounds = array<i64: 128, 128>}, {pipeline_mode = #tpu.pipeline_mode<synchronous>, transform_indices = @transform_3, window_bounds = array<i64: 1, 128>}, {pipeline_mode = #tpu.pipeline_mode<synchronous>, transform_indices = @transform_4, window_bounds = array<i64: 128, 512>}, {pipeline_mode = #tpu.pipeline_mode<synchronous>, transform_indices = @transform_5, window_bounds = array<i64: 1, 512>}, {pipeline_mode = #tpu.pipeline_mode<synchronous>, transform_indices = @transform_6, window_bounds = array<i64: 512, 128>}, {pipeline_mode = #tpu.pipeline_mode<synchronous>, transform_indices = @transform_7, window_bounds = array<i64: 1, 128>}, {pipeline_mode = #tpu.pipeline_mode<synchronous>, transform_indices = @transform_8, window_bounds = array<i64: 1, 128>}, {pipeline_mode = #tpu.pipeline_mode<synchronous>, transform_indices = @transform_9, window_bounds = array<i64: 1, 128>}, {pipeline_mode = #tpu.pipeline_mode<synchronous>, transform_indices = @transform_10, window_bounds = array<i64: 1, 128>}, {pipeline_mode = #tpu.pipeline_mode<synchronous>, transform_indices = @transform_11, window_bounds = array<i64: 1, 128>}, {transform_indices = @transform_12, window_bounds = array<i64: 1, 21, 128>}, {transform_indices = @transform_13, window_bounds = array<i64: 1, 21, 128>}]} {
    %c0 = arith.constant 0 : index
    %c0_0 = arith.constant 0 : index
    %c0_1 = arith.constant 0 : index
    %0 = vector.load %arg1[%c0, %c0_0, %c0_1] : memref<1x21x128xf32, #tpu.memory_space<vmem>>, vector<1x21x128xf32>
    %1 = vector.shape_cast %0 : vector<1x21x128xf32> to vector<21x128xf32>
    %c0_2 = arith.constant 0 : index
    %c0_3 = arith.constant 0 : index
    %2 = vector.load %arg2[%c0_2, %c0_3] : memref<128x384xf32, #tpu.memory_space<vmem>>, vector<128x384xf32>
    %cst = arith.constant dense<0.000000e+00> : vector<21x384xf32>
    %3 = tpu.matmul %1, %2, %cst {dimension_numbers = #tpu.dot_dimension_numbers<[1], [0], [0], [1], [0, 0, 1, 1], [], []>} : vector<21x128xf32>, vector<128x384xf32>, vector<21x384xf32> -> vector<21x384xf32>
    %4 = vector.extract_strided_slice %3 {offsets = [0, 0], sizes = [21, 128], strides = [1, 1]} : vector<21x384xf32> to vector<21x128xf32>
    %5 = vector.extract_strided_slice %3 {offsets = [0, 128], sizes = [21, 128], strides = [1, 1]} : vector<21x384xf32> to vector<21x128xf32>
    %6 = vector.extract_strided_slice %3 {offsets = [0, 256], sizes = [21, 128], strides = [1, 1]} : vector<21x384xf32> to vector<21x128xf32>
    %7 = vector.extract_strided_slice %4 {offsets = [0, 0], sizes = [21, 16], strides = [1, 1]} : vector<21x128xf32> to vector<21x16xf32>
    %8 = vector.extract_strided_slice %5 {offsets = [0, 0], sizes = [21, 16], strides = [1, 1]} : vector<21x128xf32> to vector<21x16xf32>
    %9 = vector.extract_strided_slice %6 {offsets = [0, 0], sizes = [21, 16], strides = [1, 1]} : vector<21x128xf32> to vector<21x16xf32>
    %cst_4 = arith.constant dense<0.000000e+00> : vector<21x21xf32>
    %10 = tpu.matmul %7, %8, %cst_4 {dimension_numbers = #tpu.dot_dimension_numbers<[1], [1], [0], [0], [0, 0, 1, 0], [], []>} : vector<21x16xf32>, vector<21x16xf32>, vector<21x21xf32> -> vector<21x21xf32>
    %cst_5 = arith.constant dense<0xFF800000> : vector<21xf32>
    %11 = vector.multi_reduction <maximumf>, %10, %cst_5 [1] : vector<21x21xf32> to vector<21xf32>
    %12 = vector.shape_cast %11 : vector<21xf32> to vector<21x1xf32>
    %13 = vector.broadcast %12 : vector<21x1xf32> to vector<21x21xf32>
    %14 = arith.subf %10, %13 : vector<21x21xf32>
    %15 = math.exp %14 : vector<21x21xf32>
    %cst_6 = arith.constant dense<0.000000e+00> : vector<21xf32>
    %16 = vector.multi_reduction <add>, %15, %cst_6 [1] : vector<21x21xf32> to vector<21xf32>
    %17 = vector.shape_cast %16 : vector<21xf32> to vector<21x1xf32>
    %18 = tpu.reciprocal %17 {approx = true} : vector<21x1xf32> -> vector<21x1xf32>
    %19 = vector.broadcast %18 : vector<21x1xf32> to vector<21x21xf32>
    %20 = arith.mulf %15, %19 : vector<21x21xf32>
    %cst_7 = arith.constant dense<0.000000e+00> : vector<21x16xf32>
    %21 = tpu.matmul %20, %9, %cst_7 {dimension_numbers = #tpu.dot_dimension_numbers<[1], [0], [0], [1], [0, 0, 1, 1], [], []>} : vector<21x21xf32>, vector<21x16xf32>, vector<21x16xf32> -> vector<21x16xf32>
    %22 = vector.extract_strided_slice %4 {offsets = [0, 16], sizes = [21, 16], strides = [1, 1]} : vector<21x128xf32> to vector<21x16xf32>
    %23 = vector.extract_strided_slice %5 {offsets = [0, 16], sizes = [21, 16], strides = [1, 1]} : vector<21x128xf32> to vector<21x16xf32>
    %24 = vector.extract_strided_slice %6 {offsets = [0, 16], sizes = [21, 16], strides = [1, 1]} : vector<21x128xf32> to vector<21x16xf32>
    %cst_8 = arith.constant dense<0.000000e+00> : vector<21x21xf32>
    %25 = tpu.matmul %22, %23, %cst_8 {dimension_numbers = #tpu.dot_dimension_numbers<[1], [1], [0], [0], [0, 0, 1, 0], [], []>} : vector<21x16xf32>, vector<21x16xf32>, vector<21x21xf32> -> vector<21x21xf32>
    %cst_9 = arith.constant dense<0xFF800000> : vector<21xf32>
    %26 = vector.multi_reduction <maximumf>, %25, %cst_9 [1] : vector<21x21xf32> to vector<21xf32>
    %27 = vector.shape_cast %26 : vector<21xf32> to vector<21x1xf32>
    %28 = vector.broadcast %27 : vector<21x1xf32> to vector<21x21xf32>
    %29 = arith.subf %25, %28 : vector<21x21xf32>
    %30 = math.exp %29 : vector<21x21xf32>
    %cst_10 = arith.constant dense<0.000000e+00> : vector<21xf32>
    %31 = vector.multi_reduction <add>, %30, %cst_10 [1] : vector<21x21xf32> to vector<21xf32>
    %32 = vector.shape_cast %31 : vector<21xf32> to vector<21x1xf32>
    %33 = tpu.reciprocal %32 {approx = true} : vector<21x1xf32> -> vector<21x1xf32>
    %34 = vector.broadcast %33 : vector<21x1xf32> to vector<21x21xf32>
    %35 = arith.mulf %30, %34 : vector<21x21xf32>
    %cst_11 = arith.constant dense<0.000000e+00> : vector<21x16xf32>
    %36 = tpu.matmul %35, %24, %cst_11 {dimension_numbers = #tpu.dot_dimension_numbers<[1], [0], [0], [1], [0, 0, 1, 1], [], []>} : vector<21x21xf32>, vector<21x16xf32>, vector<21x16xf32> -> vector<21x16xf32>
    %37 = vector.extract_strided_slice %4 {offsets = [0, 32], sizes = [21, 16], strides = [1, 1]} : vector<21x128xf32> to vector<21x16xf32>
    %38 = vector.extract_strided_slice %5 {offsets = [0, 32], sizes = [21, 16], strides = [1, 1]} : vector<21x128xf32> to vector<21x16xf32>
    %39 = vector.extract_strided_slice %6 {offsets = [0, 32], sizes = [21, 16], strides = [1, 1]} : vector<21x128xf32> to vector<21x16xf32>
    %cst_12 = arith.constant dense<0.000000e+00> : vector<21x21xf32>
    %40 = tpu.matmul %37, %38, %cst_12 {dimension_numbers = #tpu.dot_dimension_numbers<[1], [1], [0], [0], [0, 0, 1, 0], [], []>} : vector<21x16xf32>, vector<21x16xf32>, vector<21x21xf32> -> vector<21x21xf32>
    %cst_13 = arith.constant dense<0xFF800000> : vector<21xf32>
    %41 = vector.multi_reduction <maximumf>, %40, %cst_13 [1] : vector<21x21xf32> to vector<21xf32>
    %42 = vector.shape_cast %41 : vector<21xf32> to vector<21x1xf32>
    %43 = vector.broadcast %42 : vector<21x1xf32> to vector<21x21xf32>
    %44 = arith.subf %40, %43 : vector<21x21xf32>
    %45 = math.exp %44 : vector<21x21xf32>
    %cst_14 = arith.constant dense<0.000000e+00> : vector<21xf32>
    %46 = vector.multi_reduction <add>, %45, %cst_14 [1] : vector<21x21xf32> to vector<21xf32>
    %47 = vector.shape_cast %46 : vector<21xf32> to vector<21x1xf32>
    %48 = tpu.reciprocal %47 {approx = true} : vector<21x1xf32> -> vector<21x1xf32>
    %49 = vector.broadcast %48 : vector<21x1xf32> to vector<21x21xf32>
    %50 = arith.mulf %45, %49 : vector<21x21xf32>
    %cst_15 = arith.constant dense<0.000000e+00> : vector<21x16xf32>
    %51 = tpu.matmul %50, %39, %cst_15 {dimension_numbers = #tpu.dot_dimension_numbers<[1], [0], [0], [1], [0, 0, 1, 1], [], []>} : vector<21x21xf32>, vector<21x16xf32>, vector<21x16xf32> -> vector<21x16xf32>
    %52 = vector.extract_strided_slice %4 {offsets = [0, 48], sizes = [21, 16], strides = [1, 1]} : vector<21x128xf32> to vector<21x16xf32>
    %53 = vector.extract_strided_slice %5 {offsets = [0, 48], sizes = [21, 16], strides = [1, 1]} : vector<21x128xf32> to vector<21x16xf32>
    %54 = vector.extract_strided_slice %6 {offsets = [0, 48], sizes = [21, 16], strides = [1, 1]} : vector<21x128xf32> to vector<21x16xf32>
    %cst_16 = arith.constant dense<0.000000e+00> : vector<21x21xf32>
    %55 = tpu.matmul %52, %53, %cst_16 {dimension_numbers = #tpu.dot_dimension_numbers<[1], [1], [0], [0], [0, 0, 1, 0], [], []>} : vector<21x16xf32>, vector<21x16xf32>, vector<21x21xf32> -> vector<21x21xf32>
    %cst_17 = arith.constant dense<0xFF800000> : vector<21xf32>
    %56 = vector.multi_reduction <maximumf>, %55, %cst_17 [1] : vector<21x21xf32> to vector<21xf32>
    %57 = vector.shape_cast %56 : vector<21xf32> to vector<21x1xf32>
    %58 = vector.broadcast %57 : vector<21x1xf32> to vector<21x21xf32>
    %59 = arith.subf %55, %58 : vector<21x21xf32>
    %60 = math.exp %59 : vector<21x21xf32>
    %cst_18 = arith.constant dense<0.000000e+00> : vector<21xf32>
    %61 = vector.multi_reduction <add>, %60, %cst_18 [1] : vector<21x21xf32> to vector<21xf32>
    %62 = vector.shape_cast %61 : vector<21xf32> to vector<21x1xf32>
    %63 = tpu.reciprocal %62 {approx = true} : vector<21x1xf32> -> vector<21x1xf32>
    %64 = vector.broadcast %63 : vector<21x1xf32> to vector<21x21xf32>
    %65 = arith.mulf %60, %64 : vector<21x21xf32>
    %cst_19 = arith.constant dense<0.000000e+00> : vector<21x16xf32>
    %66 = tpu.matmul %65, %54, %cst_19 {dimension_numbers = #tpu.dot_dimension_numbers<[1], [0], [0], [1], [0, 0, 1, 1], [], []>} : vector<21x21xf32>, vector<21x16xf32>, vector<21x16xf32> -> vector<21x16xf32>
    %67 = vector.extract_strided_slice %4 {offsets = [0, 64], sizes = [21, 16], strides = [1, 1]} : vector<21x128xf32> to vector<21x16xf32>
    %68 = vector.extract_strided_slice %5 {offsets = [0, 64], sizes = [21, 16], strides = [1, 1]} : vector<21x128xf32> to vector<21x16xf32>
    %69 = vector.extract_strided_slice %6 {offsets = [0, 64], sizes = [21, 16], strides = [1, 1]} : vector<21x128xf32> to vector<21x16xf32>
    %cst_20 = arith.constant dense<0.000000e+00> : vector<21x21xf32>
    %70 = tpu.matmul %67, %68, %cst_20 {dimension_numbers = #tpu.dot_dimension_numbers<[1], [1], [0], [0], [0, 0, 1, 0], [], []>} : vector<21x16xf32>, vector<21x16xf32>, vector<21x21xf32> -> vector<21x21xf32>
    %cst_21 = arith.constant dense<0xFF800000> : vector<21xf32>
    %71 = vector.multi_reduction <maximumf>, %70, %cst_21 [1] : vector<21x21xf32> to vector<21xf32>
    %72 = vector.shape_cast %71 : vector<21xf32> to vector<21x1xf32>
    %73 = vector.broadcast %72 : vector<21x1xf32> to vector<21x21xf32>
    %74 = arith.subf %70, %73 : vector<21x21xf32>
    %75 = math.exp %74 : vector<21x21xf32>
    %cst_22 = arith.constant dense<0.000000e+00> : vector<21xf32>
    %76 = vector.multi_reduction <add>, %75, %cst_22 [1] : vector<21x21xf32> to vector<21xf32>
    %77 = vector.shape_cast %76 : vector<21xf32> to vector<21x1xf32>
    %78 = tpu.reciprocal %77 {approx = true} : vector<21x1xf32> -> vector<21x1xf32>
    %79 = vector.broadcast %78 : vector<21x1xf32> to vector<21x21xf32>
    %80 = arith.mulf %75, %79 : vector<21x21xf32>
    %cst_23 = arith.constant dense<0.000000e+00> : vector<21x16xf32>
    %81 = tpu.matmul %80, %69, %cst_23 {dimension_numbers = #tpu.dot_dimension_numbers<[1], [0], [0], [1], [0, 0, 1, 1], [], []>} : vector<21x21xf32>, vector<21x16xf32>, vector<21x16xf32> -> vector<21x16xf32>
    %82 = vector.extract_strided_slice %4 {offsets = [0, 80], sizes = [21, 16], strides = [1, 1]} : vector<21x128xf32> to vector<21x16xf32>
    %83 = vector.extract_strided_slice %5 {offsets = [0, 80], sizes = [21, 16], strides = [1, 1]} : vector<21x128xf32> to vector<21x16xf32>
    %84 = vector.extract_strided_slice %6 {offsets = [0, 80], sizes = [21, 16], strides = [1, 1]} : vector<21x128xf32> to vector<21x16xf32>
    %cst_24 = arith.constant dense<0.000000e+00> : vector<21x21xf32>
    %85 = tpu.matmul %82, %83, %cst_24 {dimension_numbers = #tpu.dot_dimension_numbers<[1], [1], [0], [0], [0, 0, 1, 0], [], []>} : vector<21x16xf32>, vector<21x16xf32>, vector<21x21xf32> -> vector<21x21xf32>
    %cst_25 = arith.constant dense<0xFF800000> : vector<21xf32>
    %86 = vector.multi_reduction <maximumf>, %85, %cst_25 [1] : vector<21x21xf32> to vector<21xf32>
    %87 = vector.shape_cast %86 : vector<21xf32> to vector<21x1xf32>
    %88 = vector.broadcast %87 : vector<21x1xf32> to vector<21x21xf32>
    %89 = arith.subf %85, %88 : vector<21x21xf32>
    %90 = math.exp %89 : vector<21x21xf32>
    %cst_26 = arith.constant dense<0.000000e+00> : vector<21xf32>
    %91 = vector.multi_reduction <add>, %90, %cst_26 [1] : vector<21x21xf32> to vector<21xf32>
    %92 = vector.shape_cast %91 : vector<21xf32> to vector<21x1xf32>
    %93 = tpu.reciprocal %92 {approx = true} : vector<21x1xf32> -> vector<21x1xf32>
    %94 = vector.broadcast %93 : vector<21x1xf32> to vector<21x21xf32>
    %95 = arith.mulf %90, %94 : vector<21x21xf32>
    %cst_27 = arith.constant dense<0.000000e+00> : vector<21x16xf32>
    %96 = tpu.matmul %95, %84, %cst_27 {dimension_numbers = #tpu.dot_dimension_numbers<[1], [0], [0], [1], [0, 0, 1, 1], [], []>} : vector<21x21xf32>, vector<21x16xf32>, vector<21x16xf32> -> vector<21x16xf32>
    %97 = vector.extract_strided_slice %4 {offsets = [0, 96], sizes = [21, 16], strides = [1, 1]} : vector<21x128xf32> to vector<21x16xf32>
    %98 = vector.extract_strided_slice %5 {offsets = [0, 96], sizes = [21, 16], strides = [1, 1]} : vector<21x128xf32> to vector<21x16xf32>
    %99 = vector.extract_strided_slice %6 {offsets = [0, 96], sizes = [21, 16], strides = [1, 1]} : vector<21x128xf32> to vector<21x16xf32>
    %cst_28 = arith.constant dense<0.000000e+00> : vector<21x21xf32>
    %100 = tpu.matmul %97, %98, %cst_28 {dimension_numbers = #tpu.dot_dimension_numbers<[1], [1], [0], [0], [0, 0, 1, 0], [], []>} : vector<21x16xf32>, vector<21x16xf32>, vector<21x21xf32> -> vector<21x21xf32>
    %cst_29 = arith.constant dense<0xFF800000> : vector<21xf32>
    %101 = vector.multi_reduction <maximumf>, %100, %cst_29 [1] : vector<21x21xf32> to vector<21xf32>
    %102 = vector.shape_cast %101 : vector<21xf32> to vector<21x1xf32>
    %103 = vector.broadcast %102 : vector<21x1xf32> to vector<21x21xf32>
    %104 = arith.subf %100, %103 : vector<21x21xf32>
    %105 = math.exp %104 : vector<21x21xf32>
    %cst_30 = arith.constant dense<0.000000e+00> : vector<21xf32>
    %106 = vector.multi_reduction <add>, %105, %cst_30 [1] : vector<21x21xf32> to vector<21xf32>
    %107 = vector.shape_cast %106 : vector<21xf32> to vector<21x1xf32>
    %108 = tpu.reciprocal %107 {approx = true} : vector<21x1xf32> -> vector<21x1xf32>
    %109 = vector.broadcast %108 : vector<21x1xf32> to vector<21x21xf32>
    %110 = arith.mulf %105, %109 : vector<21x21xf32>
    %cst_31 = arith.constant dense<0.000000e+00> : vector<21x16xf32>
    %111 = tpu.matmul %110, %99, %cst_31 {dimension_numbers = #tpu.dot_dimension_numbers<[1], [0], [0], [1], [0, 0, 1, 1], [], []>} : vector<21x21xf32>, vector<21x16xf32>, vector<21x16xf32> -> vector<21x16xf32>
    %112 = vector.extract_strided_slice %4 {offsets = [0, 112], sizes = [21, 16], strides = [1, 1]} : vector<21x128xf32> to vector<21x16xf32>
    %113 = vector.extract_strided_slice %5 {offsets = [0, 112], sizes = [21, 16], strides = [1, 1]} : vector<21x128xf32> to vector<21x16xf32>
    %114 = vector.extract_strided_slice %6 {offsets = [0, 112], sizes = [21, 16], strides = [1, 1]} : vector<21x128xf32> to vector<21x16xf32>
    %cst_32 = arith.constant dense<0.000000e+00> : vector<21x21xf32>
    %115 = tpu.matmul %112, %113, %cst_32 {dimension_numbers = #tpu.dot_dimension_numbers<[1], [1], [0], [0], [0, 0, 1, 0], [], []>} : vector<21x16xf32>, vector<21x16xf32>, vector<21x21xf32> -> vector<21x21xf32>
    %cst_33 = arith.constant dense<0xFF800000> : vector<21xf32>
    %116 = vector.multi_reduction <maximumf>, %115, %cst_33 [1] : vector<21x21xf32> to vector<21xf32>
    %117 = vector.shape_cast %116 : vector<21xf32> to vector<21x1xf32>
    %118 = vector.broadcast %117 : vector<21x1xf32> to vector<21x21xf32>
    %119 = arith.subf %115, %118 : vector<21x21xf32>
    %120 = math.exp %119 : vector<21x21xf32>
    %cst_34 = arith.constant dense<0.000000e+00> : vector<21xf32>
    %121 = vector.multi_reduction <add>, %120, %cst_34 [1] : vector<21x21xf32> to vector<21xf32>
    %122 = vector.shape_cast %121 : vector<21xf32> to vector<21x1xf32>
    %123 = tpu.reciprocal %122 {approx = true} : vector<21x1xf32> -> vector<21x1xf32>
    %124 = vector.broadcast %123 : vector<21x1xf32> to vector<21x21xf32>
    %125 = arith.mulf %120, %124 : vector<21x21xf32>
    %cst_35 = arith.constant dense<0.000000e+00> : vector<21x16xf32>
    %126 = tpu.matmul %125, %114, %cst_35 {dimension_numbers = #tpu.dot_dimension_numbers<[1], [0], [0], [1], [0, 0, 1, 1], [], []>} : vector<21x21xf32>, vector<21x16xf32>, vector<21x16xf32> -> vector<21x16xf32>
    %127 = tpu.concatenate %21, %36, %51, %66, %81, %96, %111, %126 in 1 : vector<21x16xf32>, vector<21x16xf32>, vector<21x16xf32>, vector<21x16xf32>, vector<21x16xf32>, vector<21x16xf32>, vector<21x16xf32>, vector<21x16xf32> -> vector<21x128xf32>
    %c0_36 = arith.constant 0 : index
    %c0_37 = arith.constant 0 : index
    %128 = vector.load %arg3[%c0_36, %c0_37] : memref<128x128xf32, #tpu.memory_space<vmem>>, vector<128x128xf32>
    %cst_38 = arith.constant dense<0.000000e+00> : vector<21x128xf32>
    %129 = tpu.matmul %127, %128, %cst_38 {dimension_numbers = #tpu.dot_dimension_numbers<[1], [0], [0], [1], [0, 0, 1, 1], [], []>} : vector<21x128xf32>, vector<128x128xf32>, vector<21x128xf32> -> vector<21x128xf32>
    %c0_39 = arith.constant 0 : index
    %c0_40 = arith.constant 0 : index
    %130 = vector.load %arg4[%c0_39, %c0_40] : memref<1x128xf32, #tpu.memory_space<vmem>>, vector<1x128xf32>
    %131 = vector.broadcast %130 : vector<1x128xf32> to vector<21x128xf32>
    %132 = arith.addf %129, %131 : vector<21x128xf32>
    %c0_41 = arith.constant 0 : index
    %c0_42 = arith.constant 0 : index
    %c0_43 = arith.constant 0 : index
    %133 = vector.load %arg14[%c0_41, %c0_42, %c0_43] : memref<1x21x128xf32, #tpu.memory_space<vmem>>, vector<1x21x128xf32>
    %134 = vector.shape_cast %133 : vector<1x21x128xf32> to vector<21x128xf32>
    %135 = vector.shape_cast %132 : vector<21x128xf32> to vector<1x21x128xf32>
    tpu.vector_store %arg14[%c0_41, %c0_42, %c0_43], %135 {strides = array<i32>} : memref<1x21x128xf32, #tpu.memory_space<vmem>>, vector<1x21x128xf32>,
    %c0_44 = arith.constant 0 : index
    %c0_45 = arith.constant 0 : index
    %136 = vector.load %arg9[%c0_44, %c0_45] : memref<1x128xf32, #tpu.memory_space<vmem>>, vector<1x128xf32>
    %c0_46 = arith.constant 0 : index
    %c0_47 = arith.constant 0 : index
    %137 = vector.load %arg10[%c0_46, %c0_47] : memref<1x128xf32, #tpu.memory_space<vmem>>, vector<1x128xf32>
    %138 = arith.addf %1, %132 : vector<21x128xf32>
    %cst_48 = arith.constant dense<0.000000e+00> : vector<128xf32>
    %139 = vector.multi_reduction <add>, %138, %cst_48 [0] : vector<21x128xf32> to vector<128xf32>
    %140 = vector.shape_cast %139 : vector<128xf32> to vector<1x128xf32>
    %cst_49 = arith.constant 0.0476190485 : f32
    %141 = vector.broadcast %cst_49 : f32 to vector<1x128xf32>
    %142 = arith.mulf %140, %141 : vector<1x128xf32>
    %143 = arith.mulf %138, %138 : vector<21x128xf32>
    %cst_50 = arith.constant dense<0.000000e+00> : vector<128xf32>
    %144 = vector.multi_reduction <add>, %143, %cst_50 [0] : vector<21x128xf32> to vector<128xf32>
    %145 = vector.shape_cast %144 : vector<128xf32> to vector<1x128xf32>
    %cst_51 = arith.constant 0.0476190485 : f32
    %146 = vector.broadcast %cst_51 : f32 to vector<1x128xf32>
    %147 = arith.mulf %145, %146 : vector<1x128xf32>
    %148 = arith.mulf %142, %142 : vector<1x128xf32>
    %149 = arith.subf %147, %148 : vector<1x128xf32>
    %cst_52 = arith.constant 9.99999974E-6 : f32
    %150 = vector.broadcast %cst_52 : f32 to vector<1x128xf32>
    %151 = arith.addf %149, %150 : vector<1x128xf32>
    %152 = math.rsqrt %151 : vector<1x128xf32>
    %153 = arith.mulf %152, %136 : vector<1x128xf32>
    %154 = vector.broadcast %142 : vector<1x128xf32> to vector<21x128xf32>
    %155 = arith.subf %138, %154 : vector<21x128xf32>
    %156 = vector.broadcast %153 : vector<1x128xf32> to vector<21x128xf32>
    %157 = arith.mulf %155, %156 : vector<21x128xf32>
    %158 = vector.broadcast %137 : vector<1x128xf32> to vector<21x128xf32>
    %159 = arith.addf %157, %158 : vector<21x128xf32>
    %c0_53 = arith.constant 0 : index
    %c0_54 = arith.constant 0 : index
    %160 = vector.load %arg5[%c0_53, %c0_54] : memref<128x512xf32, #tpu.memory_space<vmem>>, vector<128x512xf32>
    %cst_55 = arith.constant dense<0.000000e+00> : vector<21x512xf32>
    %161 = tpu.matmul %159, %160, %cst_55 {dimension_numbers = #tpu.dot_dimension_numbers<[1], [0], [0], [1], [0, 0, 1, 1], [], []>} : vector<21x128xf32>, vector<128x512xf32>, vector<21x512xf32> -> vector<21x512xf32>
    %c0_56 = arith.constant 0 : index
    %c0_57 = arith.constant 0 : index
    %162 = vector.load %arg6[%c0_56, %c0_57] : memref<1x512xf32, #tpu.memory_space<vmem>>, vector<1x512xf32>
    %163 = vector.broadcast %162 : vector<1x512xf32> to vector<21x512xf32>
    %164 = arith.addf %161, %163 : vector<21x512xf32>
    %cst_58 = arith.constant 0.000000e+00 : f32
    %165 = vector.broadcast %cst_58 : f32 to vector<21x512xf32>
    %166 = arith.maximumf %164, %165 : vector<21x512xf32>
    %c0_59 = arith.constant 0 : index
    %c0_60 = arith.constant 0 : index
    %167 = vector.load %arg7[%c0_59, %c0_60] : memref<512x128xf32, #tpu.memory_space<vmem>>, vector<512x128xf32>
    %cst_61 = arith.constant dense<0.000000e+00> : vector<21x128xf32>
    %168 = tpu.matmul %166, %167, %cst_61 {dimension_numbers = #tpu.dot_dimension_numbers<[1], [0], [0], [1], [0, 0, 1, 1], [], []>} : vector<21x512xf32>, vector<512x128xf32>, vector<21x128xf32> -> vector<21x128xf32>
    %c0_62 = arith.constant 0 : index
    %c0_63 = arith.constant 0 : index
    %169 = vector.load %arg8[%c0_62, %c0_63] : memref<1x128xf32, #tpu.memory_space<vmem>>, vector<1x128xf32>
    %170 = vector.broadcast %169 : vector<1x128xf32> to vector<21x128xf32>
    %171 = arith.addf %168, %170 : vector<21x128xf32>
    %c0_64 = arith.constant 0 : index
    %c0_65 = arith.constant 0 : index
    %172 = vector.load %arg11[%c0_64, %c0_65] : memref<1x128xf32, #tpu.memory_space<vmem>>, vector<1x128xf32>
    %c0_66 = arith.constant 0 : index
    %c0_67 = arith.constant 0 : index
    %173 = vector.load %arg12[%c0_66, %c0_67] : memref<1x128xf32, #tpu.memory_space<vmem>>, vector<1x128xf32>
    %174 = arith.addf %159, %171 : vector<21x128xf32>
    %cst_68 = arith.constant dense<0.000000e+00> : vector<128xf32>
    %175 = vector.multi_reduction <add>, %174, %cst_68 [0] : vector<21x128xf32> to vector<128xf32>
    %176 = vector.shape_cast %175 : vector<128xf32> to vector<1x128xf32>
    %cst_69 = arith.constant 0.0476190485 : f32
    %177 = vector.broadcast %cst_69 : f32 to vector<1x128xf32>
    %178 = arith.mulf %176, %177 : vector<1x128xf32>
    %179 = arith.mulf %174, %174 : vector<21x128xf32>
    %cst_70 = arith.constant dense<0.000000e+00> : vector<128xf32>
    %180 = vector.multi_reduction <add>, %179, %cst_70 [0] : vector<21x128xf32> to vector<128xf32>
    %181 = vector.shape_cast %180 : vector<128xf32> to vector<1x128xf32>
    %cst_71 = arith.constant 0.0476190485 : f32
    %182 = vector.broadcast %cst_71 : f32 to vector<1x128xf32>
    %183 = arith.mulf %181, %182 : vector<1x128xf32>
    %184 = arith.mulf %178, %178 : vector<1x128xf32>
    %185 = arith.subf %183, %184 : vector<1x128xf32>
    %cst_72 = arith.constant 9.99999974E-6 : f32
    %186 = vector.broadcast %cst_72 : f32 to vector<1x128xf32>
    %187 = arith.addf %185, %186 : vector<1x128xf32>
    %188 = math.rsqrt %187 : vector<1x128xf32>
    %189 = arith.mulf %188, %172 : vector<1x128xf32>
    %190 = vector.broadcast %178 : vector<1x128xf32> to vector<21x128xf32>
    %191 = arith.subf %174, %190 : vector<21x128xf32>
    %192 = vector.broadcast %189 : vector<1x128xf32> to vector<21x128xf32>
    %193 = arith.mulf %191, %192 : vector<21x128xf32>
    %194 = vector.broadcast %173 : vector<1x128xf32> to vector<21x128xf32>
    %195 = arith.addf %193, %194 : vector<21x128xf32>
    %c0_73 = arith.constant 0 : index
    %c0_74 = arith.constant 0 : index
    %c0_75 = arith.constant 0 : index
    %196 = vector.load %arg13[%c0_73, %c0_74, %c0_75] : memref<1x21x128xf32, #tpu.memory_space<vmem>>, vector<1x21x128xf32>
    %197 = vector.shape_cast %196 : vector<1x21x128xf32> to vector<21x128xf32>
    %198 = vector.shape_cast %195 : vector<21x128xf32> to vector<1x21x128xf32>
    tpu.vector_store %arg13[%c0_73, %c0_74, %c0_75], %198 {strides = array<i32>} : memref<1x21x128xf32, #tpu.memory_space<vmem>>, vector<1x21x128xf32>,
    return
  }
  func.func @transform_0(%arg0: i32) -> (i32, i32, i32) {
    %c0_i32 = arith.constant 0 : i32
    %c0_i32_0 = arith.constant 0 : i32
    %c0_i32_1 = arith.constant 0 : i32
    return %arg0, %c0_i32, %c0_i32_0 : i32, i32, i32
  }
  func.func @transform_1(%arg0: i32) -> (i32, i32) {
    %c0_i32 = arith.constant 0 : i32
    %c0_i32_0 = arith.constant 0 : i32
    %c0_i32_1 = arith.constant 0 : i32
    return %c0_i32, %c0_i32_0 : i32, i32
  }
  func.func @transform_2(%arg0: i32) -> (i32, i32) {
    %c0_i32 = arith.constant 0 : i32
    %c0_i32_0 = arith.constant 0 : i32
    %c0_i32_1 = arith.constant 0 : i32
    return %c0_i32, %c0_i32_0 : i32, i32
  }
  func.func @transform_3(%arg0: i32) -> (i32, i32) {
    %c0_i32 = arith.constant 0 : i32
    %c0_i32_0 = arith.constant 0 : i32
    %c0_i32_1 = arith.constant 0 : i32
    return %c0_i32, %c0_i32_0 : i32, i32
  }
  func.func @transform_4(%arg0: i32) -> (i32, i32) {
    %c0_i32 = arith.constant 0 : i32
    %c0_i32_0 = arith.constant 0 : i32
    %c0_i32_1 = arith.constant 0 : i32
    return %c0_i32, %c0_i32_0 : i32, i32
  }
  func.func @transform_5(%arg0: i32) -> (i32, i32) {
    %c0_i32 = arith.constant 0 : i32
    %c0_i32_0 = arith.constant 0 : i32
    %c0_i32_1 = arith.constant 0 : i32
    return %c0_i32, %c0_i32_0 : i32, i32
  }
  func.func @transform_6(%arg0: i32) -> (i32, i32) {
    %c0_i32 = arith.constant 0 : i32
    %c0_i32_0 = arith.constant 0 : i32
    %c0_i32_1 = arith.constant 0 : i32
    return %c0_i32, %c0_i32_0 : i32, i32
  }
  func.func @transform_7(%arg0: i32) -> (i32, i32) {
    %c0_i32 = arith.constant 0 : i32
    %c0_i32_0 = arith.constant 0 : i32
    %c0_i32_1 = arith.constant 0 : i32
    return %c0_i32, %c0_i32_0 : i32, i32
  }
  func.func @transform_8(%arg0: i32) -> (i32, i32) {
    %c0_i32 = arith.constant 0 : i32
    %c0_i32_0 = arith.constant 0 : i32
    %c0_i32_1 = arith.constant 0 : i32
    return %c0_i32, %c0_i32_0 : i32, i32
  }
  func.func @transform_9(%arg0: i32) -> (i32, i32) {
    %c0_i32 = arith.constant 0 : i32
    %c0_i32_0 = arith.constant 0 : i32
    %c0_i32_1 = arith.constant 0 : i32
    return %c0_i32, %c0_i32_0 : i32, i32
  }
  func.func @transform_10(%arg0: i32) -> (i32, i32) {
    %c0_i32 = arith.constant 0 : i32
    %c0_i32_0 = arith.constant 0 : i32
    %c0_i32_1 = arith.constant 0 : i32
    return %c0_i32, %c0_i32_0 : i32, i32
  }
  func.func @transform_11(%arg0: i32) -> (i32, i32) {
    %c0_i32 = arith.constant 0 : i32
    %c0_i32_0 = arith.constant 0 : i32
    %c0_i32_1 = arith.constant 0 : i32
    return %c0_i32, %c0_i32_0 : i32, i32
  }
  func.func @transform_12(%arg0: i32) -> (i32, i32, i32) {
    %c0_i32 = arith.constant 0 : i32
    %c0_i32_0 = arith.constant 0 : i32
    %c0_i32_1 = arith.constant 0 : i32
    return %arg0, %c0_i32, %c0_i32_0 : i32, i32, i32
  }
  func.func @transform_13(%arg0: i32) -> (i32, i32, i32) {
    %c0_i32 = arith.constant 0 : i32
    %c0_i32_0 = arith.constant 0 : i32
    %c0_i32_1 = arith.constant 0 : i32
    return %arg0, %c0_i32, %c0_i32_0 : i32, i32, i32
  }
}

module attributes {stable_mosaic.version = 11 : i64} {
  func.func @_encoder_layer_kernel(%arg0: i32, %arg1: memref<1x21x128xf32, #tpu.memory_space<vmem>>, %arg2: memref<128x384xf32, #tpu.memory_space<vmem>>, %arg3: memref<128x128xf32, #tpu.memory_space<vmem>>, %arg4: memref<1x128xf32, #tpu.memory_space<vmem>>, %arg5: memref<128x512xf32, #tpu.memory_space<vmem>>, %arg6: memref<1x512xf32, #tpu.memory_space<vmem>>, %arg7: memref<512x128xf32, #tpu.memory_space<vmem>>, %arg8: memref<1x128xf32, #tpu.memory_space<vmem>>, %arg9: memref<1x128xf32, #tpu.memory_space<vmem>>, %arg10: memref<1x128xf32, #tpu.memory_space<vmem>>, %arg11: memref<1x128xf32, #tpu.memory_space<vmem>>, %arg12: memref<1x128xf32, #tpu.memory_space<vmem>>, %arg13: memref<1x21x128xf32, #tpu.memory_space<vmem>>, %arg14: memref<1x21x128xf32, #tpu.memory_space<vmem>>) attributes {dimension_semantics = [#tpu.dimension_semantics<parallel>], iteration_bounds = array<i64: 2>, scalar_prefetch = 0 : i64, scratch_operands = 0 : i64, tpu.core_type = #tpu.core_type<tc>, window_params = [{transform_indices = @transform_0, window_bounds = array<i64: 1, 21, 128>}, {pipeline_mode = #tpu.pipeline_mode<synchronous>, transform_indices = @transform_1, window_bounds = array<i64: 128, 384>}, {pipeline_mode = #tpu.pipeline_mode<synchronous>, transform_indices = @transform_2, window_bounds = array<i64: 128, 128>}, {pipeline_mode = #tpu.pipeline_mode<synchronous>, transform_indices = @transform_3, window_bounds = array<i64: 1, 128>}, {pipeline_mode = #tpu.pipeline_mode<synchronous>, transform_indices = @transform_4, window_bounds = array<i64: 128, 512>}, {pipeline_mode = #tpu.pipeline_mode<synchronous>, transform_indices = @transform_5, window_bounds = array<i64: 1, 512>}, {pipeline_mode = #tpu.pipeline_mode<synchronous>, transform_indices = @transform_6, window_bounds = array<i64: 512, 128>}, {pipeline_mode = #tpu.pipeline_mode<synchronous>, transform_indices = @transform_7, window_bounds = array<i64: 1, 128>}, {pipeline_mode = #tpu.pipeline_mode<synchronous>, transform_indices = @transform_8, window_bounds = array<i64: 1, 128>}, {pipeline_mode = #tpu.pipeline_mode<synchronous>, transform_indices = @transform_9, window_bounds = array<i64: 1, 128>}, {pipeline_mode = #tpu.pipeline_mode<synchronous>, transform_indices = @transform_10, window_bounds = array<i64: 1, 128>}, {pipeline_mode = #tpu.pipeline_mode<synchronous>, transform_indices = @transform_11, window_bounds = array<i64: 1, 128>}, {transform_indices = @transform_12, window_bounds = array<i64: 1, 21, 128>}, {transform_indices = @transform_13, window_bounds = array<i64: 1, 21, 128>}]} {
    %c0 = arith.constant 0 : index
    %c0_0 = arith.constant 0 : index
    %c0_1 = arith.constant 0 : index
    %0 = vector.load %arg1[%c0, %c0_0, %c0_1] : memref<1x21x128xf32, #tpu.memory_space<vmem>>, vector<1x21x128xf32>
    %1 = vector.shape_cast %0 : vector<1x21x128xf32> to vector<21x128xf32>
    %c0_2 = arith.constant 0 : index
    %c0_3 = arith.constant 0 : index
    %2 = vector.load %arg2[%c0_2, %c0_3] : memref<128x384xf32, #tpu.memory_space<vmem>>, vector<128x384xf32>
    %cst = arith.constant dense<0.000000e+00> : vector<21x384xf32>
    %3 = tpu.matmul %1, %2, %cst {dimension_numbers = #tpu.dot_dimension_numbers<[1], [0], [0], [1], [0, 0, 1, 1], [], []>} : vector<21x128xf32>, vector<128x384xf32>, vector<21x384xf32> -> vector<21x384xf32>
    %4 = vector.extract_strided_slice %3 {offsets = [0, 0], sizes = [21, 128], strides = [1, 1]} : vector<21x384xf32> to vector<21x128xf32>
    %5 = vector.extract_strided_slice %3 {offsets = [0, 128], sizes = [21, 128], strides = [1, 1]} : vector<21x384xf32> to vector<21x128xf32>
    %6 = vector.extract_strided_slice %3 {offsets = [0, 256], sizes = [21, 128], strides = [1, 1]} : vector<21x384xf32> to vector<21x128xf32>
    %7 = vector.extract_strided_slice %4 {offsets = [0, 0], sizes = [21, 16], strides = [1, 1]} : vector<21x128xf32> to vector<21x16xf32>
    %8 = vector.extract_strided_slice %5 {offsets = [0, 0], sizes = [21, 16], strides = [1, 1]} : vector<21x128xf32> to vector<21x16xf32>
    %9 = vector.extract_strided_slice %6 {offsets = [0, 0], sizes = [21, 16], strides = [1, 1]} : vector<21x128xf32> to vector<21x16xf32>
    %cst_4 = arith.constant dense<0.000000e+00> : vector<21x21xf32>
    %10 = tpu.matmul %7, %8, %cst_4 {dimension_numbers = #tpu.dot_dimension_numbers<[1], [1], [0], [0], [0, 0, 1, 0], [], []>} : vector<21x16xf32>, vector<21x16xf32>, vector<21x21xf32> -> vector<21x21xf32>
    %cst_5 = arith.constant dense<0xFF800000> : vector<21xf32>
    %11 = vector.multi_reduction <maximumf>, %10, %cst_5 [1] : vector<21x21xf32> to vector<21xf32>
    %12 = vector.shape_cast %11 : vector<21xf32> to vector<21x1xf32>
    %13 = vector.broadcast %12 : vector<21x1xf32> to vector<21x21xf32>
    %14 = arith.subf %10, %13 : vector<21x21xf32>
    %15 = math.exp %14 : vector<21x21xf32>
    %cst_6 = arith.constant dense<0.000000e+00> : vector<21xf32>
    %16 = vector.multi_reduction <add>, %15, %cst_6 [1] : vector<21x21xf32> to vector<21xf32>
    %17 = vector.shape_cast %16 : vector<21xf32> to vector<21x1xf32>
    %18 = tpu.reciprocal %17 {approx = true} : vector<21x1xf32> -> vector<21x1xf32>
    %19 = vector.broadcast %18 : vector<21x1xf32> to vector<21x21xf32>
    %20 = arith.mulf %15, %19 : vector<21x21xf32>
    %cst_7 = arith.constant dense<0.000000e+00> : vector<21x16xf32>
    %21 = tpu.matmul %20, %9, %cst_7 {dimension_numbers = #tpu.dot_dimension_numbers<[1], [0], [0], [1], [0, 0, 1, 1], [], []>} : vector<21x21xf32>, vector<21x16xf32>, vector<21x16xf32> -> vector<21x16xf32>
    %22 = vector.extract_strided_slice %4 {offsets = [0, 16], sizes = [21, 16], strides = [1, 1]} : vector<21x128xf32> to vector<21x16xf32>
    %23 = vector.extract_strided_slice %5 {offsets = [0, 16], sizes = [21, 16], strides = [1, 1]} : vector<21x128xf32> to vector<21x16xf32>
    %24 = vector.extract_strided_slice %6 {offsets = [0, 16], sizes = [21, 16], strides = [1, 1]} : vector<21x128xf32> to vector<21x16xf32>
    %cst_8 = arith.constant dense<0.000000e+00> : vector<21x21xf32>
    %25 = tpu.matmul %22, %23, %cst_8 {dimension_numbers = #tpu.dot_dimension_numbers<[1], [1], [0], [0], [0, 0, 1, 0], [], []>} : vector<21x16xf32>, vector<21x16xf32>, vector<21x21xf32> -> vector<21x21xf32>
    %cst_9 = arith.constant dense<0xFF800000> : vector<21xf32>
    %26 = vector.multi_reduction <maximumf>, %25, %cst_9 [1] : vector<21x21xf32> to vector<21xf32>
    %27 = vector.shape_cast %26 : vector<21xf32> to vector<21x1xf32>
    %28 = vector.broadcast %27 : vector<21x1xf32> to vector<21x21xf32>
    %29 = arith.subf %25, %28 : vector<21x21xf32>
    %30 = math.exp %29 : vector<21x21xf32>
    %cst_10 = arith.constant dense<0.000000e+00> : vector<21xf32>
    %31 = vector.multi_reduction <add>, %30, %cst_10 [1] : vector<21x21xf32> to vector<21xf32>
    %32 = vector.shape_cast %31 : vector<21xf32> to vector<21x1xf32>
    %33 = tpu.reciprocal %32 {approx = true} : vector<21x1xf32> -> vector<21x1xf32>
    %34 = vector.broadcast %33 : vector<21x1xf32> to vector<21x21xf32>
    %35 = arith.mulf %30, %34 : vector<21x21xf32>
    %cst_11 = arith.constant dense<0.000000e+00> : vector<21x16xf32>
    %36 = tpu.matmul %35, %24, %cst_11 {dimension_numbers = #tpu.dot_dimension_numbers<[1], [0], [0], [1], [0, 0, 1, 1], [], []>} : vector<21x21xf32>, vector<21x16xf32>, vector<21x16xf32> -> vector<21x16xf32>
    %37 = vector.extract_strided_slice %4 {offsets = [0, 32], sizes = [21, 16], strides = [1, 1]} : vector<21x128xf32> to vector<21x16xf32>
    %38 = vector.extract_strided_slice %5 {offsets = [0, 32], sizes = [21, 16], strides = [1, 1]} : vector<21x128xf32> to vector<21x16xf32>
    %39 = vector.extract_strided_slice %6 {offsets = [0, 32], sizes = [21, 16], strides = [1, 1]} : vector<21x128xf32> to vector<21x16xf32>
    %cst_12 = arith.constant dense<0.000000e+00> : vector<21x21xf32>
    %40 = tpu.matmul %37, %38, %cst_12 {dimension_numbers = #tpu.dot_dimension_numbers<[1], [1], [0], [0], [0, 0, 1, 0], [], []>} : vector<21x16xf32>, vector<21x16xf32>, vector<21x21xf32> -> vector<21x21xf32>
    %cst_13 = arith.constant dense<0xFF800000> : vector<21xf32>
    %41 = vector.multi_reduction <maximumf>, %40, %cst_13 [1] : vector<21x21xf32> to vector<21xf32>
    %42 = vector.shape_cast %41 : vector<21xf32> to vector<21x1xf32>
    %43 = vector.broadcast %42 : vector<21x1xf32> to vector<21x21xf32>
    %44 = arith.subf %40, %43 : vector<21x21xf32>
    %45 = math.exp %44 : vector<21x21xf32>
    %cst_14 = arith.constant dense<0.000000e+00> : vector<21xf32>
    %46 = vector.multi_reduction <add>, %45, %cst_14 [1] : vector<21x21xf32> to vector<21xf32>
    %47 = vector.shape_cast %46 : vector<21xf32> to vector<21x1xf32>
    %48 = tpu.reciprocal %47 {approx = true} : vector<21x1xf32> -> vector<21x1xf32>
    %49 = vector.broadcast %48 : vector<21x1xf32> to vector<21x21xf32>
    %50 = arith.mulf %45, %49 : vector<21x21xf32>
    %cst_15 = arith.constant dense<0.000000e+00> : vector<21x16xf32>
    %51 = tpu.matmul %50, %39, %cst_15 {dimension_numbers = #tpu.dot_dimension_numbers<[1], [0], [0], [1], [0, 0, 1, 1], [], []>} : vector<21x21xf32>, vector<21x16xf32>, vector<21x16xf32> -> vector<21x16xf32>
    %52 = vector.extract_strided_slice %4 {offsets = [0, 48], sizes = [21, 16], strides = [1, 1]} : vector<21x128xf32> to vector<21x16xf32>
    %53 = vector.extract_strided_slice %5 {offsets = [0, 48], sizes = [21, 16], strides = [1, 1]} : vector<21x128xf32> to vector<21x16xf32>
    %54 = vector.extract_strided_slice %6 {offsets = [0, 48], sizes = [21, 16], strides = [1, 1]} : vector<21x128xf32> to vector<21x16xf32>
    %cst_16 = arith.constant dense<0.000000e+00> : vector<21x21xf32>
    %55 = tpu.matmul %52, %53, %cst_16 {dimension_numbers = #tpu.dot_dimension_numbers<[1], [1], [0], [0], [0, 0, 1, 0], [], []>} : vector<21x16xf32>, vector<21x16xf32>, vector<21x21xf32> -> vector<21x21xf32>
    %cst_17 = arith.constant dense<0xFF800000> : vector<21xf32>
    %56 = vector.multi_reduction <maximumf>, %55, %cst_17 [1] : vector<21x21xf32> to vector<21xf32>
    %57 = vector.shape_cast %56 : vector<21xf32> to vector<21x1xf32>
    %58 = vector.broadcast %57 : vector<21x1xf32> to vector<21x21xf32>
    %59 = arith.subf %55, %58 : vector<21x21xf32>
    %60 = math.exp %59 : vector<21x21xf32>
    %cst_18 = arith.constant dense<0.000000e+00> : vector<21xf32>
    %61 = vector.multi_reduction <add>, %60, %cst_18 [1] : vector<21x21xf32> to vector<21xf32>
    %62 = vector.shape_cast %61 : vector<21xf32> to vector<21x1xf32>
    %63 = tpu.reciprocal %62 {approx = true} : vector<21x1xf32> -> vector<21x1xf32>
    %64 = vector.broadcast %63 : vector<21x1xf32> to vector<21x21xf32>
    %65 = arith.mulf %60, %64 : vector<21x21xf32>
    %cst_19 = arith.constant dense<0.000000e+00> : vector<21x16xf32>
    %66 = tpu.matmul %65, %54, %cst_19 {dimension_numbers = #tpu.dot_dimension_numbers<[1], [0], [0], [1], [0, 0, 1, 1], [], []>} : vector<21x21xf32>, vector<21x16xf32>, vector<21x16xf32> -> vector<21x16xf32>
    %67 = vector.extract_strided_slice %4 {offsets = [0, 64], sizes = [21, 16], strides = [1, 1]} : vector<21x128xf32> to vector<21x16xf32>
    %68 = vector.extract_strided_slice %5 {offsets = [0, 64], sizes = [21, 16], strides = [1, 1]} : vector<21x128xf32> to vector<21x16xf32>
    %69 = vector.extract_strided_slice %6 {offsets = [0, 64], sizes = [21, 16], strides = [1, 1]} : vector<21x128xf32> to vector<21x16xf32>
    %cst_20 = arith.constant dense<0.000000e+00> : vector<21x21xf32>
    %70 = tpu.matmul %67, %68, %cst_20 {dimension_numbers = #tpu.dot_dimension_numbers<[1], [1], [0], [0], [0, 0, 1, 0], [], []>} : vector<21x16xf32>, vector<21x16xf32>, vector<21x21xf32> -> vector<21x21xf32>
    %cst_21 = arith.constant dense<0xFF800000> : vector<21xf32>
    %71 = vector.multi_reduction <maximumf>, %70, %cst_21 [1] : vector<21x21xf32> to vector<21xf32>
    %72 = vector.shape_cast %71 : vector<21xf32> to vector<21x1xf32>
    %73 = vector.broadcast %72 : vector<21x1xf32> to vector<21x21xf32>
    %74 = arith.subf %70, %73 : vector<21x21xf32>
    %75 = math.exp %74 : vector<21x21xf32>
    %cst_22 = arith.constant dense<0.000000e+00> : vector<21xf32>
    %76 = vector.multi_reduction <add>, %75, %cst_22 [1] : vector<21x21xf32> to vector<21xf32>
    %77 = vector.shape_cast %76 : vector<21xf32> to vector<21x1xf32>
    %78 = tpu.reciprocal %77 {approx = true} : vector<21x1xf32> -> vector<21x1xf32>
    %79 = vector.broadcast %78 : vector<21x1xf32> to vector<21x21xf32>
    %80 = arith.mulf %75, %79 : vector<21x21xf32>
    %cst_23 = arith.constant dense<0.000000e+00> : vector<21x16xf32>
    %81 = tpu.matmul %80, %69, %cst_23 {dimension_numbers = #tpu.dot_dimension_numbers<[1], [0], [0], [1], [0, 0, 1, 1], [], []>} : vector<21x21xf32>, vector<21x16xf32>, vector<21x16xf32> -> vector<21x16xf32>
    %82 = vector.extract_strided_slice %4 {offsets = [0, 80], sizes = [21, 16], strides = [1, 1]} : vector<21x128xf32> to vector<21x16xf32>
    %83 = vector.extract_strided_slice %5 {offsets = [0, 80], sizes = [21, 16], strides = [1, 1]} : vector<21x128xf32> to vector<21x16xf32>
    %84 = vector.extract_strided_slice %6 {offsets = [0, 80], sizes = [21, 16], strides = [1, 1]} : vector<21x128xf32> to vector<21x16xf32>
    %cst_24 = arith.constant dense<0.000000e+00> : vector<21x21xf32>
    %85 = tpu.matmul %82, %83, %cst_24 {dimension_numbers = #tpu.dot_dimension_numbers<[1], [1], [0], [0], [0, 0, 1, 0], [], []>} : vector<21x16xf32>, vector<21x16xf32>, vector<21x21xf32> -> vector<21x21xf32>
    %cst_25 = arith.constant dense<0xFF800000> : vector<21xf32>
    %86 = vector.multi_reduction <maximumf>, %85, %cst_25 [1] : vector<21x21xf32> to vector<21xf32>
    %87 = vector.shape_cast %86 : vector<21xf32> to vector<21x1xf32>
    %88 = vector.broadcast %87 : vector<21x1xf32> to vector<21x21xf32>
    %89 = arith.subf %85, %88 : vector<21x21xf32>
    %90 = math.exp %89 : vector<21x21xf32>
    %cst_26 = arith.constant dense<0.000000e+00> : vector<21xf32>
    %91 = vector.multi_reduction <add>, %90, %cst_26 [1] : vector<21x21xf32> to vector<21xf32>
    %92 = vector.shape_cast %91 : vector<21xf32> to vector<21x1xf32>
    %93 = tpu.reciprocal %92 {approx = true} : vector<21x1xf32> -> vector<21x1xf32>
    %94 = vector.broadcast %93 : vector<21x1xf32> to vector<21x21xf32>
    %95 = arith.mulf %90, %94 : vector<21x21xf32>
    %cst_27 = arith.constant dense<0.000000e+00> : vector<21x16xf32>
    %96 = tpu.matmul %95, %84, %cst_27 {dimension_numbers = #tpu.dot_dimension_numbers<[1], [0], [0], [1], [0, 0, 1, 1], [], []>} : vector<21x21xf32>, vector<21x16xf32>, vector<21x16xf32> -> vector<21x16xf32>
    %97 = vector.extract_strided_slice %4 {offsets = [0, 96], sizes = [21, 16], strides = [1, 1]} : vector<21x128xf32> to vector<21x16xf32>
    %98 = vector.extract_strided_slice %5 {offsets = [0, 96], sizes = [21, 16], strides = [1, 1]} : vector<21x128xf32> to vector<21x16xf32>
    %99 = vector.extract_strided_slice %6 {offsets = [0, 96], sizes = [21, 16], strides = [1, 1]} : vector<21x128xf32> to vector<21x16xf32>
    %cst_28 = arith.constant dense<0.000000e+00> : vector<21x21xf32>
    %100 = tpu.matmul %97, %98, %cst_28 {dimension_numbers = #tpu.dot_dimension_numbers<[1], [1], [0], [0], [0, 0, 1, 0], [], []>} : vector<21x16xf32>, vector<21x16xf32>, vector<21x21xf32> -> vector<21x21xf32>
    %cst_29 = arith.constant dense<0xFF800000> : vector<21xf32>
    %101 = vector.multi_reduction <maximumf>, %100, %cst_29 [1] : vector<21x21xf32> to vector<21xf32>
    %102 = vector.shape_cast %101 : vector<21xf32> to vector<21x1xf32>
    %103 = vector.broadcast %102 : vector<21x1xf32> to vector<21x21xf32>
    %104 = arith.subf %100, %103 : vector<21x21xf32>
    %105 = math.exp %104 : vector<21x21xf32>
    %cst_30 = arith.constant dense<0.000000e+00> : vector<21xf32>
    %106 = vector.multi_reduction <add>, %105, %cst_30 [1] : vector<21x21xf32> to vector<21xf32>
    %107 = vector.shape_cast %106 : vector<21xf32> to vector<21x1xf32>
    %108 = tpu.reciprocal %107 {approx = true} : vector<21x1xf32> -> vector<21x1xf32>
    %109 = vector.broadcast %108 : vector<21x1xf32> to vector<21x21xf32>
    %110 = arith.mulf %105, %109 : vector<21x21xf32>
    %cst_31 = arith.constant dense<0.000000e+00> : vector<21x16xf32>
    %111 = tpu.matmul %110, %99, %cst_31 {dimension_numbers = #tpu.dot_dimension_numbers<[1], [0], [0], [1], [0, 0, 1, 1], [], []>} : vector<21x21xf32>, vector<21x16xf32>, vector<21x16xf32> -> vector<21x16xf32>
    %112 = vector.extract_strided_slice %4 {offsets = [0, 112], sizes = [21, 16], strides = [1, 1]} : vector<21x128xf32> to vector<21x16xf32>
    %113 = vector.extract_strided_slice %5 {offsets = [0, 112], sizes = [21, 16], strides = [1, 1]} : vector<21x128xf32> to vector<21x16xf32>
    %114 = vector.extract_strided_slice %6 {offsets = [0, 112], sizes = [21, 16], strides = [1, 1]} : vector<21x128xf32> to vector<21x16xf32>
    %cst_32 = arith.constant dense<0.000000e+00> : vector<21x21xf32>
    %115 = tpu.matmul %112, %113, %cst_32 {dimension_numbers = #tpu.dot_dimension_numbers<[1], [1], [0], [0], [0, 0, 1, 0], [], []>} : vector<21x16xf32>, vector<21x16xf32>, vector<21x21xf32> -> vector<21x21xf32>
    %cst_33 = arith.constant dense<0xFF800000> : vector<21xf32>
    %116 = vector.multi_reduction <maximumf>, %115, %cst_33 [1] : vector<21x21xf32> to vector<21xf32>
    %117 = vector.shape_cast %116 : vector<21xf32> to vector<21x1xf32>
    %118 = vector.broadcast %117 : vector<21x1xf32> to vector<21x21xf32>
    %119 = arith.subf %115, %118 : vector<21x21xf32>
    %120 = math.exp %119 : vector<21x21xf32>
    %cst_34 = arith.constant dense<0.000000e+00> : vector<21xf32>
    %121 = vector.multi_reduction <add>, %120, %cst_34 [1] : vector<21x21xf32> to vector<21xf32>
    %122 = vector.shape_cast %121 : vector<21xf32> to vector<21x1xf32>
    %123 = tpu.reciprocal %122 {approx = true} : vector<21x1xf32> -> vector<21x1xf32>
    %124 = vector.broadcast %123 : vector<21x1xf32> to vector<21x21xf32>
    %125 = arith.mulf %120, %124 : vector<21x21xf32>
    %cst_35 = arith.constant dense<0.000000e+00> : vector<21x16xf32>
    %126 = tpu.matmul %125, %114, %cst_35 {dimension_numbers = #tpu.dot_dimension_numbers<[1], [0], [0], [1], [0, 0, 1, 1], [], []>} : vector<21x21xf32>, vector<21x16xf32>, vector<21x16xf32> -> vector<21x16xf32>
    %127 = tpu.concatenate %21, %36, %51, %66, %81, %96, %111, %126 in 1 : vector<21x16xf32>, vector<21x16xf32>, vector<21x16xf32>, vector<21x16xf32>, vector<21x16xf32>, vector<21x16xf32>, vector<21x16xf32>, vector<21x16xf32> -> vector<21x128xf32>
    %c0_36 = arith.constant 0 : index
    %c0_37 = arith.constant 0 : index
    %128 = vector.load %arg3[%c0_36, %c0_37] : memref<128x128xf32, #tpu.memory_space<vmem>>, vector<128x128xf32>
    %cst_38 = arith.constant dense<0.000000e+00> : vector<21x128xf32>
    %129 = tpu.matmul %127, %128, %cst_38 {dimension_numbers = #tpu.dot_dimension_numbers<[1], [0], [0], [1], [0, 0, 1, 1], [], []>} : vector<21x128xf32>, vector<128x128xf32>, vector<21x128xf32> -> vector<21x128xf32>
    %c0_39 = arith.constant 0 : index
    %c0_40 = arith.constant 0 : index
    %130 = vector.load %arg4[%c0_39, %c0_40] : memref<1x128xf32, #tpu.memory_space<vmem>>, vector<1x128xf32>
    %131 = vector.broadcast %130 : vector<1x128xf32> to vector<21x128xf32>
    %132 = arith.addf %129, %131 : vector<21x128xf32>
    %c0_41 = arith.constant 0 : index
    %c0_42 = arith.constant 0 : index
    %c0_43 = arith.constant 0 : index
    %133 = vector.load %arg14[%c0_41, %c0_42, %c0_43] : memref<1x21x128xf32, #tpu.memory_space<vmem>>, vector<1x21x128xf32>
    %134 = vector.shape_cast %133 : vector<1x21x128xf32> to vector<21x128xf32>
    %135 = vector.shape_cast %132 : vector<21x128xf32> to vector<1x21x128xf32>
    tpu.vector_store %arg14[%c0_41, %c0_42, %c0_43], %135 {strides = array<i32>} : memref<1x21x128xf32, #tpu.memory_space<vmem>>, vector<1x21x128xf32>,
    %c0_44 = arith.constant 0 : index
    %c0_45 = arith.constant 0 : index
    %136 = vector.load %arg9[%c0_44, %c0_45] : memref<1x128xf32, #tpu.memory_space<vmem>>, vector<1x128xf32>
    %c0_46 = arith.constant 0 : index
    %c0_47 = arith.constant 0 : index
    %137 = vector.load %arg10[%c0_46, %c0_47] : memref<1x128xf32, #tpu.memory_space<vmem>>, vector<1x128xf32>
    %138 = arith.addf %1, %132 : vector<21x128xf32>
    %cst_48 = arith.constant dense<0.000000e+00> : vector<128xf32>
    %139 = vector.multi_reduction <add>, %138, %cst_48 [0] : vector<21x128xf32> to vector<128xf32>
    %140 = vector.shape_cast %139 : vector<128xf32> to vector<1x128xf32>
    %cst_49 = arith.constant 0.0476190485 : f32
    %141 = vector.broadcast %cst_49 : f32 to vector<1x128xf32>
    %142 = arith.mulf %140, %141 : vector<1x128xf32>
    %143 = arith.mulf %138, %138 : vector<21x128xf32>
    %cst_50 = arith.constant dense<0.000000e+00> : vector<128xf32>
    %144 = vector.multi_reduction <add>, %143, %cst_50 [0] : vector<21x128xf32> to vector<128xf32>
    %145 = vector.shape_cast %144 : vector<128xf32> to vector<1x128xf32>
    %cst_51 = arith.constant 0.0476190485 : f32
    %146 = vector.broadcast %cst_51 : f32 to vector<1x128xf32>
    %147 = arith.mulf %145, %146 : vector<1x128xf32>
    %148 = arith.mulf %142, %142 : vector<1x128xf32>
    %149 = arith.subf %147, %148 : vector<1x128xf32>
    %cst_52 = arith.constant 9.99999974E-6 : f32
    %150 = vector.broadcast %cst_52 : f32 to vector<1x128xf32>
    %151 = arith.addf %149, %150 : vector<1x128xf32>
    %152 = math.rsqrt %151 : vector<1x128xf32>
    %153 = arith.mulf %152, %136 : vector<1x128xf32>
    %154 = vector.broadcast %142 : vector<1x128xf32> to vector<21x128xf32>
    %155 = arith.subf %138, %154 : vector<21x128xf32>
    %156 = vector.broadcast %153 : vector<1x128xf32> to vector<21x128xf32>
    %157 = arith.mulf %155, %156 : vector<21x128xf32>
    %158 = vector.broadcast %137 : vector<1x128xf32> to vector<21x128xf32>
    %159 = arith.addf %157, %158 : vector<21x128xf32>
    %c0_53 = arith.constant 0 : index
    %c0_54 = arith.constant 0 : index
    %160 = vector.load %arg5[%c0_53, %c0_54] : memref<128x512xf32, #tpu.memory_space<vmem>>, vector<128x512xf32>
    %cst_55 = arith.constant dense<0.000000e+00> : vector<21x512xf32>
    %161 = tpu.matmul %159, %160, %cst_55 {dimension_numbers = #tpu.dot_dimension_numbers<[1], [0], [0], [1], [0, 0, 1, 1], [], []>} : vector<21x128xf32>, vector<128x512xf32>, vector<21x512xf32> -> vector<21x512xf32>
    %c0_56 = arith.constant 0 : index
    %c0_57 = arith.constant 0 : index
    %162 = vector.load %arg6[%c0_56, %c0_57] : memref<1x512xf32, #tpu.memory_space<vmem>>, vector<1x512xf32>
    %163 = vector.broadcast %162 : vector<1x512xf32> to vector<21x512xf32>
    %164 = arith.addf %161, %163 : vector<21x512xf32>
    %cst_58 = arith.constant 0.000000e+00 : f32
    %165 = vector.broadcast %cst_58 : f32 to vector<21x512xf32>
    %166 = arith.maximumf %164, %165 : vector<21x512xf32>
    %c0_59 = arith.constant 0 : index
    %c0_60 = arith.constant 0 : index
    %167 = vector.load %arg7[%c0_59, %c0_60] : memref<512x128xf32, #tpu.memory_space<vmem>>, vector<512x128xf32>
    %cst_61 = arith.constant dense<0.000000e+00> : vector<21x128xf32>
    %168 = tpu.matmul %166, %167, %cst_61 {dimension_numbers = #tpu.dot_dimension_numbers<[1], [0], [0], [1], [0, 0, 1, 1], [], []>} : vector<21x512xf32>, vector<512x128xf32>, vector<21x128xf32> -> vector<21x128xf32>
    %c0_62 = arith.constant 0 : index
    %c0_63 = arith.constant 0 : index
    %169 = vector.load %arg8[%c0_62, %c0_63] : memref<1x128xf32, #tpu.memory_space<vmem>>, vector<1x128xf32>
    %170 = vector.broadcast %169 : vector<1x128xf32> to vector<21x128xf32>
    %171 = arith.addf %168, %170 : vector<21x128xf32>
    %c0_64 = arith.constant 0 : index
    %c0_65 = arith.constant 0 : index
    %172 = vector.load %arg11[%c0_64, %c0_65] : memref<1x128xf32, #tpu.memory_space<vmem>>, vector<1x128xf32>
    %c0_66 = arith.constant 0 : index
    %c0_67 = arith.constant 0 : index
    %173 = vector.load %arg12[%c0_66, %c0_67] : memref<1x128xf32, #tpu.memory_space<vmem>>, vector<1x128xf32>
    %174 = arith.addf %159, %171 : vector<21x128xf32>
    %cst_68 = arith.constant dense<0.000000e+00> : vector<128xf32>
    %175 = vector.multi_reduction <add>, %174, %cst_68 [0] : vector<21x128xf32> to vector<128xf32>
    %176 = vector.shape_cast %175 : vector<128xf32> to vector<1x128xf32>
    %cst_69 = arith.constant 0.0476190485 : f32
    %177 = vector.broadcast %cst_69 : f32 to vector<1x128xf32>
    %178 = arith.mulf %176, %177 : vector<1x128xf32>
    %179 = arith.mulf %174, %174 : vector<21x128xf32>
    %cst_70 = arith.constant dense<0.000000e+00> : vector<128xf32>
    %180 = vector.multi_reduction <add>, %179, %cst_70 [0] : vector<21x128xf32> to vector<128xf32>
    %181 = vector.shape_cast %180 : vector<128xf32> to vector<1x128xf32>
    %cst_71 = arith.constant 0.0476190485 : f32
    %182 = vector.broadcast %cst_71 : f32 to vector<1x128xf32>
    %183 = arith.mulf %181, %182 : vector<1x128xf32>
    %184 = arith.mulf %178, %178 : vector<1x128xf32>
    %185 = arith.subf %183, %184 : vector<1x128xf32>
    %cst_72 = arith.constant 9.99999974E-6 : f32
    %186 = vector.broadcast %cst_72 : f32 to vector<1x128xf32>
    %187 = arith.addf %185, %186 : vector<1x128xf32>
    %188 = math.rsqrt %187 : vector<1x128xf32>
    %189 = arith.mulf %188, %172 : vector<1x128xf32>
    %190 = vector.broadcast %178 : vector<1x128xf32> to vector<21x128xf32>
    %191 = arith.subf %174, %190 : vector<21x128xf32>
    %192 = vector.broadcast %189 : vector<1x128xf32> to vector<21x128xf32>
    %193 = arith.mulf %191, %192 : vector<21x128xf32>
    %194 = vector.broadcast %173 : vector<1x128xf32> to vector<21x128xf32>
    %195 = arith.addf %193, %194 : vector<21x128xf32>
    %c0_73 = arith.constant 0 : index
    %c0_74 = arith.constant 0 : index
    %c0_75 = arith.constant 0 : index
    %196 = vector.load %arg13[%c0_73, %c0_74, %c0_75] : memref<1x21x128xf32, #tpu.memory_space<vmem>>, vector<1x21x128xf32>
    %197 = vector.shape_cast %196 : vector<1x21x128xf32> to vector<21x128xf32>
    %198 = vector.shape_cast %195 : vector<21x128xf32> to vector<1x21x128xf32>
    tpu.vector_store %arg13[%c0_73, %c0_74, %c0_75], %198 {strides = array<i32>} : memref<1x21x128xf32, #tpu.memory_space<vmem>>, vector<1x21x128xf32>,
    return
  }
  func.func @transform_0(%arg0: i32) -> (i32, i32, i32) {
    %c0_i32 = arith.constant 0 : i32
    %c0_i32_0 = arith.constant 0 : i32
    %c0_i32_1 = arith.constant 0 : i32
    return %arg0, %c0_i32, %c0_i32_0 : i32, i32, i32
  }
  func.func @transform_1(%arg0: i32) -> (i32, i32) {
    %c0_i32 = arith.constant 0 : i32
    %c0_i32_0 = arith.constant 0 : i32
    %c0_i32_1 = arith.constant 0 : i32
    return %c0_i32, %c0_i32_0 : i32, i32
  }
  func.func @transform_2(%arg0: i32) -> (i32, i32) {
    %c0_i32 = arith.constant 0 : i32
    %c0_i32_0 = arith.constant 0 : i32
    %c0_i32_1 = arith.constant 0 : i32
    return %c0_i32, %c0_i32_0 : i32, i32
  }
  func.func @transform_3(%arg0: i32) -> (i32, i32) {
    %c0_i32 = arith.constant 0 : i32
    %c0_i32_0 = arith.constant 0 : i32
    %c0_i32_1 = arith.constant 0 : i32
    return %c0_i32, %c0_i32_0 : i32, i32
  }
  func.func @transform_4(%arg0: i32) -> (i32, i32) {
    %c0_i32 = arith.constant 0 : i32
    %c0_i32_0 = arith.constant 0 : i32
    %c0_i32_1 = arith.constant 0 : i32
    return %c0_i32, %c0_i32_0 : i32, i32
  }
  func.func @transform_5(%arg0: i32) -> (i32, i32) {
    %c0_i32 = arith.constant 0 : i32
    %c0_i32_0 = arith.constant 0 : i32
    %c0_i32_1 = arith.constant 0 : i32
    return %c0_i32, %c0_i32_0 : i32, i32
  }
  func.func @transform_6(%arg0: i32) -> (i32, i32) {
    %c0_i32 = arith.constant 0 : i32
    %c0_i32_0 = arith.constant 0 : i32
    %c0_i32_1 = arith.constant 0 : i32
    return %c0_i32, %c0_i32_0 : i32, i32
  }
  func.func @transform_7(%arg0: i32) -> (i32, i32) {
    %c0_i32 = arith.constant 0 : i32
    %c0_i32_0 = arith.constant 0 : i32
    %c0_i32_1 = arith.constant 0 : i32
    return %c0_i32, %c0_i32_0 : i32, i32
  }
  func.func @transform_8(%arg0: i32) -> (i32, i32) {
    %c0_i32 = arith.constant 0 : i32
    %c0_i32_0 = arith.constant 0 : i32
    %c0_i32_1 = arith.constant 0 : i32
    return %c0_i32, %c0_i32_0 : i32, i32
  }
  func.func @transform_9(%arg0: i32) -> (i32, i32) {
    %c0_i32 = arith.constant 0 : i32
    %c0_i32_0 = arith.constant 0 : i32
    %c0_i32_1 = arith.constant 0 : i32
    return %c0_i32, %c0_i32_0 : i32, i32
  }
  func.func @transform_10(%arg0: i32) -> (i32, i32) {
    %c0_i32 = arith.constant 0 : i32
    %c0_i32_0 = arith.constant 0 : i32
    %c0_i32_1 = arith.constant 0 : i32
    return %c0_i32, %c0_i32_0 : i32, i32
  }
  func.func @transform_11(%arg0: i32) -> (i32, i32) {
    %c0_i32 = arith.constant 0 : i32
    %c0_i32_0 = arith.constant 0 : i32
    %c0_i32_1 = arith.constant 0 : i32
    return %c0_i32, %c0_i32_0 : i32, i32
  }
  func.func @transform_12(%arg0: i32) -> (i32, i32, i32) {
    %c0_i32 = arith.constant 0 : i32
    %c0_i32_0 = arith.constant 0 : i32
    %c0_i32_1 = arith.constant 0 : i32
    return %arg0, %c0_i32, %c0_i32_0 : i32, i32, i32
  }
  func.func @transform_13(%arg0: i32) -> (i32, i32, i32) {
    %c0_i32 = arith.constant 0 : i32
    %c0_i32_0 = arith.constant 0 : i32
    %c0_i32_1 = arith.constant 0 : i32
    return %arg0, %c0_i32, %c0_i32_0 : i32, i32, i32
  }
}

</mosaic_0001>

<llo_original>
// kernel: vrp_encoder_forward.3
$region0: #{vrp_encoder_forward.3}
  #allocation0 [shape = 'u32[]', space=smem, size = 0x4, offset = 0x4, fixed_abs, tag = 'smem constant byte address 0x4 - core index']
  #allocation1 [shape = 'u32[144,128]{1,0:T(1,128)}', space=vmem, size = 0x12000, scoped, tag = 'internal scratch']
  %s0 = inlined_call_operand.vmem [shape: f32[2,21,128], index: 0, kind: input, shape index: {}]
  %s1 = inlined_call_operand.vmem [shape: f32[128,384], index: 1, kind: input, shape index: {}]
  %s2 = inlined_call_operand.vmem [shape: f32[128,128], index: 2, kind: input, shape index: {}]
  %s3 = inlined_call_operand.vmem [shape: f32[1,128], index: 3, kind: input, shape index: {}]
  %s4 = inlined_call_operand.vmem [shape: f32[128,512], index: 4, kind: input, shape index: {}]
  %s5 = inlined_call_operand.vmem [shape: f32[1,512], index: 5, kind: input, shape index: {}]
  %s6 = inlined_call_operand.vmem [shape: f32[512,128], index: 6, kind: input, shape index: {}]
  %s7 = inlined_call_operand.vmem [shape: f32[1,128], index: 7, kind: input, shape index: {}]
  %s8 = inlined_call_operand.vmem [shape: f32[1,128], index: 8, kind: input, shape index: {}]
  %s9 = inlined_call_operand.vmem [shape: f32[1,128], index: 9, kind: input, shape index: {}]
  %s10 = inlined_call_operand.vmem [shape: f32[1,128], index: 10, kind: input, shape index: {}]
  %s11 = inlined_call_operand.vmem [shape: f32[1,128], index: 11, kind: input, shape index: {}]
  %s12 = inlined_call_operand.vmem [shape: f32[2,21,128], index: 12, kind: output, shape index: {0}]
  %s13 = inlined_call_operand.vmem [shape: f32[2,21,128], index: 13, kind: output, shape index: {1}]
  %14 = xla_tuple %s12, %s13
  %s15 = sld [smem:[#allocation0]]
  $region89: #{vrp_encoder_forward.3} parent=0
    _
  %s17 = ssub.s32 1, %s15
  %s18 = scalar_select 0, %s17, %s15
  loop: start=0, step=1, limit=4
  $region2: #{vrp_encoder_forward.3} parent=0 // loop_pre_header
    _
  $region3: #{vrp_encoder_forward.3} parent=0 // loop_header
    %s20 = sphi 0, %s24
    %p21 = scmp.ge.s32.totalorder %s20, 4
    %s30 = sphi 0, %s32
    %s33 = sphi 0, %s30
    %s34 = sphi 0, %s33
    %s50 = sphi 0, %s34
    %s54 = sphi 0, %s54
    %s56 = sphi 0, %s54
    %s57 = sphi 0, %s56
    %s71 = sphi 0, %s57
    %s75 = sphi 0, %s75
    %s77 = sphi 0, %s75
    %s78 = sphi 0, %s77
    %s92 = sphi 0, %s78
    %s96 = sphi 0, %s96
    %s98 = sphi 0, %s96
    %s99 = sphi 0, %s98
    %s113 = sphi 0, %s99
    %s117 = sphi 0, %s117
    %s119 = sphi 0, %s117
    %s120 = sphi 0, %s119
    %s134 = sphi 0, %s120
    %s138 = sphi 0, %s138
    %s140 = sphi 0, %s138
    %s141 = sphi 0, %s140
    %s155 = sphi 0, %s141
    %s159 = sphi 0, %s159
    %s161 = sphi 0, %s159
    %s162 = sphi 0, %s161
    %s176 = sphi 0, %s162
    %s180 = sphi 0, %s180
    %s182 = sphi 0, %s180
    %s183 = sphi 0, %s182
    %s197 = sphi 0, %s183
    %s201 = sphi 0, %s201
    %s203 = sphi 0, %s201
    %s204 = sphi 0, %s203
    %s218 = sphi 0, %s204
    %s222 = sphi 0, %s222
    %s224 = sphi 0, %s222
    %s225 = sphi 0, %s224
    %s239 = sphi 0, %s225
    %s243 = sphi 0, %s243
    %s245 = sphi 0, %s243
    %s246 = sphi 0, %s245
    %s260 = sphi 0, %s246
    %s264 = sphi 0, %s264
    %s266 = sphi 0, %s264
    %s267 = sphi 0, %s266
    %s281 = sphi 0, %s267
    %s287 = sphi 0, %s289
    %s290 = sphi 0, %s287
    %s291 = sphi 0, %s290
    %s307 = sphi 0, %s291
    %s313 = sphi 0, %s315
    %s316 = sphi 0, %s313
    %s317 = sphi 0, %s316
    %s333 = sphi 0, %s317
  $region4: #{vrp_encoder_forward.3} parent=0 // loop_header_branch
    %23 = sbr.rel (%p21) target = $region8
  $region5: #{vrp_encoder_forward.3} parent=0 // loop_body
    %s25 = ssub.s32 %s20, 1
    %s26 = ssub.s32 %s20, 2
    %s27 = sadd.s32 %s20, 1
    %s28 = ssub.s32 %s20, %s27
    %p29 = scmp.eq.s32.totalorder %s28, 0
    %s31 = sadd.s32 %s30, 1
    %s32 = scalar_select %p29, %s30, %s31
    %p35 = pneg %p29
    %p36 = scmp.eq.s32.totalorder %s20, 1
    %p37 = por %p35, %p36
    %p38 = scmp.ne.s32.totalorder %s30, %s33
    %p39 = scmp.eq.s32.totalorder %s20, 0
    %p40 = por %p38, %p39
    %p41 = scmp.ne.s32.totalorder %s30, %s33
    %p42 = scmp.eq.s32.totalorder %s25, 1
    %p43 = por %p41, %p42
    %p44 = scmp.ne.s32.totalorder %s33, %s34
    %p45 = scmp.eq.s32.totalorder %s25, 0
    %p46 = por %p44, %p45
    %p47 = scmp.ne.s32.totalorder %s33, %s34
    %p48 = scmp.eq.s32.totalorder %s26, 1
    %p49 = por %p47, %p48
    %p51 = scmp.ne.s32.totalorder %s34, %s50
    %p52 = scmp.eq.s32.totalorder %s26, 0
    %p53 = por %p51, %p52
    %s55 = sadd.s32 %s54, 1
    %p58 = scmp.eq.s32.totalorder %s20, 1
    %p59 = scmp.ne.s32.totalorder %s54, %s56
    %p60 = scmp.eq.s32.totalorder %s20, 0
    %p61 = por %p59, %p60
    %p62 = scmp.ne.s32.totalorder %s54, %s56
    %p63 = scmp.eq.s32.totalorder %s25, 1
    %p64 = por %p62, %p63
    %p65 = scmp.ne.s32.totalorder %s56, %s57
    %p66 = scmp.eq.s32.totalorder %s25, 0
    %p67 = por %p65, %p66
    %p68 = scmp.ne.s32.totalorder %s56, %s57
    %p69 = scmp.eq.s32.totalorder %s26, 1
    %p70 = por %p68, %p69
    %p72 = scmp.ne.s32.totalorder %s57, %s71
    %p73 = scmp.eq.s32.totalorder %s26, 0
    %p74 = por %p72, %p73
    %s76 = sadd.s32 %s75, 1
    %p79 = scmp.eq.s32.totalorder %s20, 1
    %p80 = scmp.ne.s32.totalorder %s75, %s77
    %p81 = scmp.eq.s32.totalorder %s20, 0
    %p82 = por %p80, %p81
    %p83 = scmp.ne.s32.totalorder %s75, %s77
    %p84 = scmp.eq.s32.totalorder %s25, 1
    %p85 = por %p83, %p84
    %p86 = scmp.ne.s32.totalorder %s77, %s78
    %p87 = scmp.eq.s32.totalorder %s25, 0
    %p88 = por %p86, %p87
    %p89 = scmp.ne.s32.totalorder %s77, %s78
    %p90 = scmp.eq.s32.totalorder %s26, 1
    %p91 = por %p89, %p90
    %p93 = scmp.ne.s32.totalorder %s78, %s92
    %p94 = scmp.eq.s32.totalorder %s26, 0
    %p95 = por %p93, %p94
    %s97 = sadd.s32 %s96, 1
    %p100 = scmp.eq.s32.totalorder %s20, 1
    %p101 = scmp.ne.s32.totalorder %s96, %s98
    %p102 = scmp.eq.s32.totalorder %s20, 0
    %p103 = por %p101, %p102
    %p104 = scmp.ne.s32.totalorder %s96, %s98
    %p105 = scmp.eq.s32.totalorder %s25, 1
    %p106 = por %p104, %p105
    %p107 = scmp.ne.s32.totalorder %s98, %s99
    %p108 = scmp.eq.s32.totalorder %s25, 0
    %p109 = por %p107, %p108
    %p110 = scmp.ne.s32.totalorder %s98, %s99
    %p111 = scmp.eq.s32.totalorder %s26, 1
    %p112 = por %p110, %p111
    %p114 = scmp.ne.s32.totalorder %s99, %s113
    %p115 = scmp.eq.s32.totalorder %s26, 0
    %p116 = por %p114, %p115
    %s118 = sadd.s32 %s117, 1
    %p121 = scmp.eq.s32.totalorder %s20, 1
    %p122 = scmp.ne.s32.totalorder %s117, %s119
    %p123 = scmp.eq.s32.totalorder %s20, 0
    %p124 = por %p122, %p123
    %p125 = scmp.ne.s32.totalorder %s117, %s119
    %p126 = scmp.eq.s32.totalorder %s25, 1
    %p127 = por %p125, %p126
    %p128 = scmp.ne.s32.totalorder %s119, %s120
    %p129 = scmp.eq.s32.totalorder %s25, 0
    %p130 = por %p128, %p129
    %p131 = scmp.ne.s32.totalorder %s119, %s120
    %p132 = scmp.eq.s32.totalorder %s26, 1
    %p133 = por %p131, %p132
    %p135 = scmp.ne.s32.totalorder %s120, %s134
    %p136 = scmp.eq.s32.totalorder %s26, 0
    %p137 = por %p135, %p136
    %s139 = sadd.s32 %s138, 1
    %p142 = scmp.eq.s32.totalorder %s20, 1
    %p143 = scmp.ne.s32.totalorder %s138, %s140
    %p144 = scmp.eq.s32.totalorder %s20, 0
    %p145 = por %p143, %p144
    %p146 = scmp.ne.s32.totalorder %s138, %s140
    %p147 = scmp.eq.s32.totalorder %s25, 1
    %p148 = por %p146, %p147
    %p149 = scmp.ne.s32.totalorder %s140, %s141
    %p150 = scmp.eq.s32.totalorder %s25, 0
    %p151 = por %p149, %p150
    %p152 = scmp.ne.s32.totalorder %s140, %s141
    %p153 = scmp.eq.s32.totalorder %s26, 1
    %p154 = por %p152, %p153
    %p156 = scmp.ne.s32.totalorder %s141, %s155
    %p157 = scmp.eq.s32.totalorder %s26, 0
    %p158 = por %p156, %p157
    %s160 = sadd.s32 %s159, 1
    %p163 = scmp.eq.s32.totalorder %s20, 1
    %p164 = scmp.ne.s32.totalorder %s159, %s161
    %p165 = scmp.eq.s32.totalorder %s20, 0
    %p166 = por %p164, %p165
    %p167 = scmp.ne.s32.totalorder %s159, %s161
    %p168 = scmp.eq.s32.totalorder %s25, 1
    %p169 = por %p167, %p168
    %p170 = scmp.ne.s32.totalorder %s161, %s162
    %p171 = scmp.eq.s32.totalorder %s25, 0
    %p172 = por %p170, %p171
    %p173 = scmp.ne.s32.totalorder %s161, %s162
    %p174 = scmp.eq.s32.totalorder %s26, 1
    %p175 = por %p173, %p174
    %p177 = scmp.ne.s32.totalorder %s162, %s176
    %p178 = scmp.eq.s32.totalorder %s26, 0
    %p179 = por %p177, %p178
    %s181 = sadd.s32 %s180, 1
    %p184 = scmp.eq.s32.totalorder %s20, 1
    %p185 = scmp.ne.s32.totalorder %s180, %s182
    %p186 = scmp.eq.s32.totalorder %s20, 0
    %p187 = por %p185, %p186
    %p188 = scmp.ne.s32.totalorder %s180, %s182
    %p189 = scmp.eq.s32.totalorder %s25, 1
    %p190 = por %p188, %p189
    %p191 = scmp.ne.s32.totalorder %s182, %s183
    %p192 = scmp.eq.s32.totalorder %s25, 0
    %p193 = por %p191, %p192
    %p194 = scmp.ne.s32.totalorder %s182, %s183
    %p195 = scmp.eq.s32.totalorder %s26, 1
    %p196 = por %p194, %p195
    %p198 = scmp.ne.s32.totalorder %s183, %s197
    %p199 = scmp.eq.s32.totalorder %s26, 0
    %p200 = por %p198, %p199
    %s202 = sadd.s32 %s201, 1
    %p205 = scmp.eq.s32.totalorder %s20, 1
    %p206 = scmp.ne.s32.totalorder %s201, %s203
    %p207 = scmp.eq.s32.totalorder %s20, 0
    %p208 = por %p206, %p207
    %p209 = scmp.ne.s32.totalorder %s201, %s203
    %p210 = scmp.eq.s32.totalorder %s25, 1
    %p211 = por %p209, %p210
    %p212 = scmp.ne.s32.totalorder %s203, %s204
    %p213 = scmp.eq.s32.totalorder %s25, 0
    %p214 = por %p212, %p213
    %p215 = scmp.ne.s32.totalorder %s203, %s204
    %p216 = scmp.eq.s32.totalorder %s26, 1
    %p217 = por %p215, %p216
    %p219 = scmp.ne.s32.totalorder %s204, %s218
    %p220 = scmp.eq.s32.totalorder %s26, 0
    %p221 = por %p219, %p220
    %s223 = sadd.s32 %s222, 1
    %p226 = scmp.eq.s32.totalorder %s20, 1
    %p227 = scmp.ne.s32.totalorder %s222, %s224
    %p228 = scmp.eq.s32.totalorder %s20, 0
    %p229 = por %p227, %p228
    %p230 = scmp.ne.s32.totalorder %s222, %s224
    %p231 = scmp.eq.s32.totalorder %s25, 1
    %p232 = por %p230, %p231
    %p233 = scmp.ne.s32.totalorder %s224, %s225
    %p234 = scmp.eq.s32.totalorder %s25, 0
    %p235 = por %p233, %p234
    %p236 = scmp.ne.s32.totalorder %s224, %s225
    %p237 = scmp.eq.s32.totalorder %s26, 1
    %p238 = por %p236, %p237
    %p240 = scmp.ne.s32.totalorder %s225, %s239
    %p241 = scmp.eq.s32.totalorder %s26, 0
    %p242 = por %p240, %p241
    %s244 = sadd.s32 %s243, 1
    %p247 = scmp.eq.s32.totalorder %s20, 1
    %p248 = scmp.ne.s32.totalorder %s243, %s245
    %p249 = scmp.eq.s32.totalorder %s20, 0
    %p250 = por %p248, %p249
    %p251 = scmp.ne.s32.totalorder %s243, %s245
    %p252 = scmp.eq.s32.totalorder %s25, 1
    %p253 = por %p251, %p252
    %p254 = scmp.ne.s32.totalorder %s245, %s246
    %p255 = scmp.eq.s32.totalorder %s25, 0
    %p256 = por %p254, %p255
    %p257 = scmp.ne.s32.totalorder %s245, %s246
    %p258 = scmp.eq.s32.totalorder %s26, 1
    %p259 = por %p257, %p258
    %p261 = scmp.ne.s32.totalorder %s246, %s260
    %p262 = scmp.eq.s32.totalorder %s26, 0
    %p263 = por %p261, %p262
    %s265 = sadd.s32 %s264, 1
    %p268 = scmp.eq.s32.totalorder %s20, 1
    %p269 = scmp.ne.s32.totalorder %s264, %s266
    %p270 = scmp.eq.s32.totalorder %s20, 0
    %p271 = por %p269, %p270
    %p272 = scmp.ne.s32.totalorder %s264, %s266
    %p273 = scmp.eq.s32.totalorder %s25, 1
    %p274 = por %p272, %p273
    %p275 = scmp.ne.s32.totalorder %s266, %s267
    %p276 = scmp.eq.s32.totalorder %s25, 0
    %p277 = por %p275, %p276
    %p278 = scmp.ne.s32.totalorder %s266, %s267
    %p279 = scmp.eq.s32.totalorder %s26, 1
    %p280 = por %p278, %p279
    %p282 = scmp.ne.s32.totalorder %s267, %s281
    %p283 = scmp.eq.s32.totalorder %s26, 0
    %p284 = por %p282, %p283
    %s285 = ssub.s32 %s20, %s27
    %p286 = scmp.eq.s32.totalorder %s285, 0
    %s288 = sadd.s32 %s287, 1
    %s289 = scalar_select %p286, %s287, %s288
    %p292 = pneg %p286
    %p293 = scmp.eq.s32.totalorder %s20, 1
    %p294 = por %p292, %p293
    %p295 = scmp.ne.s32.totalorder %s287, %s290
    %p296 = scmp.eq.s32.totalorder %s20, 0
    %p297 = por %p295, %p296
    %p298 = scmp.ne.s32.totalorder %s287, %s290
    %p299 = scmp.eq.s32.totalorder %s25, 1
    %p300 = por %p298, %p299
    %p301 = scmp.ne.s32.totalorder %s290, %s291
    %p302 = scmp.eq.s32.totalorder %s25, 0
    %p303 = por %p301, %p302
    %p304 = scmp.ne.s32.totalorder %s290, %s291
    %p305 = scmp.eq.s32.totalorder %s26, 1
    %p306 = por %p304, %p305
    %p308 = scmp.ne.s32.totalorder %s291, %s307
    %p309 = scmp.eq.s32.totalorder %s26, 0
    %p310 = por %p308, %p309
    %s311 = ssub.s32 %s20, %s27
    %p312 = scmp.eq.s32.totalorder %s311, 0
    %s314 = sadd.s32 %s313, 1
    %s315 = scalar_select %p312, %s313, %s314
    %p318 = pneg %p312
    %p319 = scmp.eq.s32.totalorder %s20, 1
    %p320 = por %p318, %p319
    %p321 = scmp.ne.s32.totalorder %s313, %s316
    %p322 = scmp.eq.s32.totalorder %s20, 0
    %p323 = por %p321, %p322
    %p324 = scmp.ne.s32.totalorder %s313, %s316
    %p325 = scmp.eq.s32.totalorder %s25, 1
    %p326 = por %p324, %p325
    %p327 = scmp.ne.s32.totalorder %s316, %s317
    %p328 = scmp.eq.s32.totalorder %s25, 0
    %p329 = por %p327, %p328
    %p330 = scmp.ne.s32.totalorder %s316, %s317
    %p331 = scmp.eq.s32.totalorder %s26, 1
    %p332 = por %p330, %p331
    %p334 = scmp.ne.s32.totalorder %s317, %s333
    %p335 = scmp.eq.s32.totalorder %s26, 0
    %p336 = por %p334, %p335
    %p337 = scmp.le.s32.totalorder 1, %s20
    %p338 = scmp.lt.s32.totalorder %s20, 3
    %p339 = pnand %p337, %p338
    %p340 = pneg %p339
    // Predicated region
    $region9: #{vrp_encoder_forward.3} parent=5 // pred_check
      _
    $region10: #{vrp_encoder_forward.3} parent=5 // pred_check_branch
      %342 = sbr.rel (%p339) target = $region12
    $region11: #{vrp_encoder_forward.3} parent=5 // pred_region
      %s343 = ssub.s32 %s20, 1
      // Predicated region
      $region13: #{vrp_encoder_forward.3} parent=11 // pred_check
        %p344 = pneg %p67
      $region14: #{vrp_encoder_forward.3} parent=11 // pred_check_branch
        %346 = sbr.rel (%p344) target = $region16
      $region15: #{vrp_encoder_forward.3} parent=11 // pred_region
        _
      $region16: #{vrp_encoder_forward.3} parent=11 // pred_fallthru
        _
      // Predicated region
      $region17: #{vrp_encoder_forward.3} parent=11 // pred_check
        %p347 = pneg %p88
      $region18: #{vrp_encoder_forward.3} parent=11 // pred_check_branch
        %349 = sbr.rel (%p347) target = $region20
      $region19: #{vrp_encoder_forward.3} parent=11 // pred_region
        _
      $region20: #{vrp_encoder_forward.3} parent=11 // pred_fallthru
        _
      // Predicated region
      $region21: #{vrp_encoder_forward.3} parent=11 // pred_check
        %p350 = pneg %p109
      $region22: #{vrp_encoder_forward.3} parent=11 // pred_check_branch
        %352 = sbr.rel (%p350) target = $region24
      $region23: #{vrp_encoder_forward.3} parent=11 // pred_region
        _
      $region24: #{vrp_encoder_forward.3} parent=11 // pred_fallthru
        _
      // Predicated region
      $region25: #{vrp_encoder_forward.3} parent=11 // pred_check
        %p353 = pneg %p130
      $region26: #{vrp_encoder_forward.3} parent=11 // pred_check_branch
        %355 = sbr.rel (%p353) target = $region28
      $region27: #{vrp_encoder_forward.3} parent=11 // pred_region
        _
      $region28: #{vrp_encoder_forward.3} parent=11 // pred_fallthru
        _
      // Predicated region
      $region29: #{vrp_encoder_forward.3} parent=11 // pred_check
        %p356 = pneg %p151
      $region30: #{vrp_encoder_forward.3} parent=11 // pred_check_branch
        %358 = sbr.rel (%p356) target = $region32
      $region31: #{vrp_encoder_forward.3} parent=11 // pred_region
        _
      $region32: #{vrp_encoder_forward.3} parent=11 // pred_fallthru
        _
      // Predicated region
      $region33: #{vrp_encoder_forward.3} parent=11 // pred_check
        %p359 = pneg %p172
      $region34: #{vrp_encoder_forward.3} parent=11 // pred_check_branch
        %361 = sbr.rel (%p359) target = $region36
      $region35: #{vrp_encoder_forward.3} parent=11 // pred_region
        _
      $region36: #{vrp_encoder_forward.3} parent=11 // pred_fallthru
        _
      // Predicated region
      $region37: #{vrp_encoder_forward.3} parent=11 // pred_check
        %p362 = pneg %p193
      $region38: #{vrp_encoder_forward.3} parent=11 // pred_check_branch
        %364 = sbr.rel (%p362) target = $region40
      $region39: #{vrp_encoder_forward.3} parent=11 // pred_region
        _
      $region40: #{vrp_encoder_forward.3} parent=11 // pred_fallthru
        _
      // Predicated region
      $region41: #{vrp_encoder_forward.3} parent=11 // pred_check
        %p365 = pneg %p214
      $region42: #{vrp_encoder_forward.3} parent=11 // pred_check_branch
        %367 = sbr.rel (%p365) target = $region44
      $region43: #{vrp_encoder_forward.3} parent=11 // pred_region
        _
      $region44: #{vrp_encoder_forward.3} parent=11 // pred_fallthru
        _
      // Predicated region
      $region45: #{vrp_encoder_forward.3} parent=11 // pred_check
        %p368 = pneg %p235
      $region46: #{vrp_encoder_forward.3} parent=11 // pred_check_branch
        %370 = sbr.rel (%p368) target = $region48
      $region47: #{vrp_encoder_forward.3} parent=11 // pred_region
        _
      $region48: #{vrp_encoder_forward.3} parent=11 // pred_fallthru
        _
      // Predicated region
      $region49: #{vrp_encoder_forward.3} parent=11 // pred_check
        %p371 = pneg %p256
      $region50: #{vrp_encoder_forward.3} parent=11 // pred_check_branch
        %373 = sbr.rel (%p371) target = $region52
      $region51: #{vrp_encoder_forward.3} parent=11 // pred_region
        _
      $region52: #{vrp_encoder_forward.3} parent=11 // pred_fallthru
        _
      // Predicated region
      $region53: #{vrp_encoder_forward.3} parent=11 // pred_check
        %p374 = pneg %p277
      $region54: #{vrp_encoder_forward.3} parent=11 // pred_check_branch
        %376 = sbr.rel (%p374) target = $region56
      $region55: #{vrp_encoder_forward.3} parent=11 // pred_region
        _
      $region56: #{vrp_encoder_forward.3} parent=11 // pred_fallthru
        _
    $region12: #{vrp_encoder_forward.3} parent=5 // pred_fallthru
      _
    %p377 = scmp.lt.s32.totalorder %s20, 2
    // Predicated region
    $region57: #{vrp_encoder_forward.3} parent=5 // pred_check
      %p378 = pneg %p377
    $region58: #{vrp_encoder_forward.3} parent=5 // pred_check_branch
      %380 = sbr.rel (%p378) target = $region60
    $region59: #{vrp_encoder_forward.3} parent=5 // pred_region
      // Predicated region
      $region61: #{vrp_encoder_forward.3} parent=59 // pred_check
        %p381 = pneg %p40
      $region62: #{vrp_encoder_forward.3} parent=59 // pred_check_branch
        %383 = sbr.rel (%p381) target = $region64
      $region63: #{vrp_encoder_forward.3} parent=59 // pred_region
        %p384 = scmp.lt.s32.totalorder %s20, 1
        %s385 = scalar_select %p384, %s20, 1
        %s386 = smul.addr %s385, 3
        %s387 = smul.addr %s386, 8
        %s388 = scalar_lea.vmem %s0, %s387
      $region64: #{vrp_encoder_forward.3} parent=59 // pred_fallthru
        _
    $region60: #{vrp_encoder_forward.3} parent=5 // pred_fallthru
      _
    %p389 = scmp.le.s32.totalorder 1, %s20
    %p390 = scmp.lt.s32.totalorder %s20, 3
    %p391 = pnand %p389, %p390
    %p392 = pneg %p391
    // Predicated region
    $region65: #{vrp_encoder_forward.3} parent=5 // pred_check
      _
    $region66: #{vrp_encoder_forward.3} parent=5 // pred_check_branch
      %394 = sbr.rel (%p391) target = $region68
    $region67: #{vrp_encoder_forward.3} parent=5 // pred_region
      %s395 = ssub.s32 %s20, 1
      %p396 = scmp.lt.s32.totalorder %s25, 1
      %s397 = scalar_select %p396, %s25, 1
      %s398 = smul.addr %s397, 3
      %s399 = smul.addr %s398, 8
      %s400 = scalar_lea.vmem %s0, %s399
      %p401 = pneg %p46
      %p402 = pneg %p43
      %p403 = pneg %p67
      %p404 = pneg %p64
      %p405 = pneg %p88
      %p406 = pneg %p85
      %p407 = pneg %p109
      %p408 = pneg %p106
      %p409 = pneg %p130
      %p410 = pneg %p127
      %p411 = pneg %p151
      %p412 = pneg %p148
      %p413 = pneg %p172
      %p414 = pneg %p169
      %p415 = pneg %p193
      %p416 = pneg %p190
      %p417 = pneg %p214
      %p418 = pneg %p211
      %p419 = pneg %p235
      %p420 = pneg %p232
      %p421 = pneg %p256
      %p422 = pneg %p253
      %p423 = pneg %p277
      %p424 = pneg %p274
      %p425 = pneg %p303
      %p426 = pneg %p300
      %p427 = scmp.lt.s32.totalorder %s25, 1
      %s428 = scalar_select %p427, %s25, 1
      %s429 = smul.addr %s428, 3
      %s430 = smul.addr %s429, 8
      %s431 = scalar_lea.vmem %s12, %s430
      %p432 = pneg %p329
      %p433 = pneg %p326
      %p434 = scmp.lt.s32.totalorder %s25, 1
      %s435 = scalar_select %p434, %s25, 1
      %s436 = smul.addr %s435, 3
      %s437 = smul.addr %s436, 8
      %s438 = scalar_lea.vmem %s13, %s437
      %p439 = scmp.lt.s32.totalorder %s25, 1
      %s440 = scalar_select %p439, %s25, 1
      %s441 = smul.addr %s440, 3
      %s442 = smul.addr %s441, 8
      %s443 = scalar_lea.vmem %s0, %s442
      %p444 = scmp.lt.s32.totalorder %s25, 1
      %s445 = scalar_select %p444, %s25, 1
      %s446 = smul.addr %s445, 3
      %s447 = smul.addr %s446, 8
      %s448 = scalar_lea.vmem %s12, %s447
      %p449 = scmp.lt.s32.totalorder %s25, 1
      %s450 = scalar_select %p449, %s25, 1
      %s451 = smul.addr %s450, 3
      %s452 = smul.addr %s451, 8
      %s453 = scalar_lea.vmem %s13, %s452
      %v454 = vld [vmem:[%s443] sm:$0xff]
      %v455 = vld [vmem:[%s443 + $0x8] sm:$0xff]
      %v456 = vld [vmem:[%s443 + $0x10] sm:$0x1f]
      %v457 = vld [vmem:[%s1] sm:$0xff]
      %v458 = vld [vmem:[%s1 + $0x8] sm:$0xff]
      %v459 = vld [vmem:[%s1 + $0x10] sm:$0xff]
      %v460 = vld [vmem:[%s1 + $0x18] sm:$0xff]
      %v461 = vld [vmem:[%s1 + $0x20] sm:$0xff]
      %v462 = vld [vmem:[%s1 + $0x28] sm:$0xff]
      %v463 = vld [vmem:[%s1 + $0x30] sm:$0xff]
      %v464 = vld [vmem:[%s1 + $0x38] sm:$0xff]
      %v465 = vld [vmem:[%s1 + $0x40] sm:$0xff]
      %v466 = vld [vmem:[%s1 + $0x48] sm:$0xff]
      %v467 = vld [vmem:[%s1 + $0x50] sm:$0xff]
      %v468 = vld [vmem:[%s1 + $0x58] sm:$0xff]
      %v469 = vld [vmem:[%s1 + $0x60] sm:$0xff]
      %v470 = vld [vmem:[%s1 + $0x68] sm:$0xff]
      %v471 = vld [vmem:[%s1 + $0x70] sm:$0xff]
      %v472 = vld [vmem:[%s1 + $0x78] sm:$0xff]
      %v473 = vld [vmem:[%s1 + $0x80] sm:$0xff]
      %v474 = vld [vmem:[%s1 + $0x88] sm:$0xff]
      %v475 = vld [vmem:[%s1 + $0x90] sm:$0xff]
      %v476 = vld [vmem:[%s1 + $0x98] sm:$0xff]
      %v477 = vld [vmem:[%s1 + $0xa0] sm:$0xff]
      %v478 = vld [vmem:[%s1 + $0xa8] sm:$0xff]
      %v479 = vld [vmem:[%s1 + $0xb0] sm:$0xff]
      %v480 = vld [vmem:[%s1 + $0xb8] sm:$0xff]
      %v481 = vld [vmem:[%s1 + $0xc0] sm:$0xff]
      %v482 = vld [vmem:[%s1 + $0xc8] sm:$0xff]
      %v483 = vld [vmem:[%s1 + $0xd0] sm:$0xff]
      %v484 = vld [vmem:[%s1 + $0xd8] sm:$0xff]
      %v485 = vld [vmem:[%s1 + $0xe0] sm:$0xff]
      %v486 = vld [vmem:[%s1 + $0xe8] sm:$0xff]
      %v487 = vld [vmem:[%s1 + $0xf0] sm:$0xff]
      %v488 = vld [vmem:[%s1 + $0xf8] sm:$0xff]
      %v489 = vld [vmem:[%s1 + $0x100] sm:$0xff]
      %v490 = vld [vmem:[%s1 + $0x108] sm:$0xff]
      %v491 = vld [vmem:[%s1 + $0x110] sm:$0xff]
      %v492 = vld [vmem:[%s1 + $0x118] sm:$0xff]
      %v493 = vld [vmem:[%s1 + $0x120] sm:$0xff]
      %v494 = vld [vmem:[%s1 + $0x128] sm:$0xff]
      %v495 = vld [vmem:[%s1 + $0x130] sm:$0xff]
      %v496 = vld [vmem:[%s1 + $0x138] sm:$0xff]
      %v497 = vld [vmem:[%s1 + $0x140] sm:$0xff]
      %v498 = vld [vmem:[%s1 + $0x148] sm:$0xff]
      %v499 = vld [vmem:[%s1 + $0x150] sm:$0xff]
      %v500 = vld [vmem:[%s1 + $0x158] sm:$0xff]
      %v501 = vld [vmem:[%s1 + $0x160] sm:$0xff]
      %v502 = vld [vmem:[%s1 + $0x168] sm:$0xff]
      %v503 = vld [vmem:[%s1 + $0x170] sm:$0xff]
      %v504 = vld [vmem:[%s1 + $0x178] sm:$0xff]
      %505 = vmatprep.subr.mxu0 %v458
      %506 = vmatpush1.msra.mxu0 %v457
      %507 = vmatprep.subr.mxu0 %v461
      %508 = vmatpush1.msra.mxu0 %v460
      %509 = vmatprep.subr.mxu0 %v464
      %510 = vmatpush1.msra.mxu0 %v463
      %511 = vmatprep.subr.mxu0 %v467
      %512 = vmatpush1.msra.mxu0 %v466
      %513 = vmatprep.subr.mxu0 %v470
      %514 = vmatpush1.msra.mxu0 %v469
      %515 = vmatprep.subr.mxu0 %v473
      %516 = vmatpush1.msra.mxu0 %v472
      %517 = vmatprep.subr.mxu0 %v476
      %518 = vmatpush1.msra.mxu0 %v475
      %519 = vmatprep.subr.mxu0 %v479
      %520 = vmatpush1.msra.mxu0 %v478
      %521 = vmatprep.subr.mxu0 %v482
      %522 = vmatpush1.msra.mxu0 %v481
      %523 = vmatprep.subr.mxu0 %v485
      %524 = vmatpush1.msra.mxu0 %v484
      %525 = vmatprep.subr.mxu0 %v488
      %526 = vmatpush1.msra.mxu0 %v487
      %527 = vmatprep.subr.mxu0 %v491
      %528 = vmatpush1.msra.mxu0 %v490
      %529 = vmatprep.subr.mxu0 %v494
      %530 = vmatpush1.msra.mxu0 %v493
      %531 = vmatprep.subr.mxu0 %v497
      %532 = vmatpush1.msra.mxu0 %v496
      %533 = vmatprep.subr.mxu0 %v500
      %534 = vmatpush1.msra.mxu0 %v499
      %535 = vmatprep.subr.mxu0 %v503
      %536 = vmatpush1.msra.mxu0 %v502
      %537 = vmatprep.subr.mxu0 0.0
      %538 = vmatpush1.msra.mxu0 0.0
      %539 = vmatprep.subr.mxu0 0.0
      %540 = vmatpush1.msra.mxu0 0.0
      %541 = vmatprep.subr.mxu0 0.0
      %542 = vmatpush1.msra.mxu0 0.0
      %543 = vmatprep.subr.mxu0 0.0
      %544 = vmatpush1.msra.mxu0 0.0
      %545 = vmatprep.subr.mxu0 0.0
      %546 = vmatpush1.msra.mxu0 0.0
      %547 = vmatprep.subr.mxu0 0.0
      %548 = vmatpush1.msra.mxu0 0.0
      %549 = vmatprep.subr.mxu0 0.0
      %550 = vmatpush1.msra.mxu0 0.0
      %551 = vmatprep.subr.mxu0 0.0
      %552 = vmatpush1.msra.mxu0 0.0
      %553 = vmatprep.subr.mxu0 0.0
      %554 = vmatpush1.msra.mxu0 0.0
      %555 = vmatprep.subr.mxu0 0.0
      %556 = vmatpush1.msra.mxu0 0.0
      %557 = vmatprep.subr.mxu0 0.0
      %558 = vmatpush1.msra.mxu0 0.0
      %559 = vmatprep.subr.mxu0 0.0
      %560 = vmatpush1.msra.mxu0 0.0
      %561 = vmatprep.subr.mxu0 0.0
      %562 = vmatpush1.msra.mxu0 0.0
      %563 = vmatprep.subr.mxu0 0.0
      %564 = vmatpush1.msra.mxu0 0.0
      %565 = vmatprep.subr.mxu0 0.0
      %566 = vmatpush1.msra.mxu0 0.0
      %567 = vmatprep.subr.mxu0 0.0
      %568 = vmatpush1.msra.mxu0 0.0
      %569 = vmatprep.mubr.f32.mxu0 0.0
      %570 = vmatmul.mubr.f32.gmra.mrb[0].mxu0 %v454
      %v571 = vpop.f32.mrb[0].mxu0
      %v572 = vadd.f32 0.0, %v571
      %v573 = vpop.f32.mrb[0].mxu0
      %v574 = vadd.f32 0.0, %v573
      %575 = vmatprep.mubr.f32.mxu0 0.0
      %576 = vmatmul.mubr.f32.gmra.mrb[0].mxu0 %v455
      %v577 = vpop.f32.mrb[0].mxu0
      %v578 = vadd.f32 0.0, %v577
      %v579 = vpop.f32.mrb[0].mxu0
      %v580 = vadd.f32 0.0, %v579
      %581 = vmatprep.mubr.f32.mxu0 0.0
      %582 = vmatmul.mubr.f32.gmra.mrb[0].mxu0 %v456
      %v583 = vpop.f32.mrb[0].mxu0
      %v584 = vadd.f32 0.0, %v583
      %v585 = vpop.f32.mrb[0].mxu0
      %v586 = vadd.f32 0.0, %v585
      %587 = vdwg.mxu0
      %588 = vmatprep.subr.mxu0 0.0
      %589 = vmatpush1.msra.mxu0 %v459
      %590 = vmatprep.subr.mxu0 0.0
      %591 = vmatpush1.msra.mxu0 %v462
      %592 = vmatprep.subr.mxu0 0.0
      %593 = vmatpush1.msra.mxu0 %v465
      %594 = vmatprep.subr.mxu0 0.0
      %595 = vmatpush1.msra.mxu0 %v468
      %596 = vmatprep.subr.mxu0 0.0
      %597 = vmatpush1.msra.mxu0 %v471
      %598 = vmatprep.subr.mxu0 0.0
      %599 = vmatpush1.msra.mxu0 %v474
      %600 = vmatprep.subr.mxu0 0.0
      %601 = vmatpush1.msra.mxu0 %v477
      %602 = vmatprep.subr.mxu0 0.0
      %603 = vmatpush1.msra.mxu0 %v480
      %604 = vmatprep.subr.mxu0 0.0
      %605 = vmatpush1.msra.mxu0 %v483
      %606 = vmatprep.subr.mxu0 0.0
      %607 = vmatpush1.msra.mxu0 %v486
      %608 = vmatprep.subr.mxu0 0.0
      %609 = vmatpush1.msra.mxu0 %v489
      %610 = vmatprep.subr.mxu0 0.0
      %611 = vmatpush1.msra.mxu0 %v492
      %612 = vmatprep.subr.mxu0 0.0
      %613 = vmatpush1.msra.mxu0 %v495
      %614 = vmatprep.subr.mxu0 0.0
      %615 = vmatpush1.msra.mxu0 %v498
      %616 = vmatprep.subr.mxu0 0.0
      %617 = vmatpush1.msra.mxu0 %v501
      %618 = vmatprep.subr.mxu0 0.0
      %619 = vmatpush1.msra.mxu0 %v504
      %620 = vmatprep.subr.mxu0 0.0
      %621 = vmatpush1.msra.mxu0 0.0
      %622 = vmatprep.subr.mxu0 0.0
      %623 = vmatpush1.msra.mxu0 0.0
      %624 = vmatprep.subr.mxu0 0.0
      %625 = vmatpush1.msra.mxu0 0.0
      %626 = vmatprep.subr.mxu0 0.0
      %627 = vmatpush1.msra.mxu0 0.0
      %628 = vmatprep.subr.mxu0 0.0
      %629 = vmatpush1.msra.mxu0 0.0
      %630 = vmatprep.subr.mxu0 0.0
      %631 = vmatpush1.msra.mxu0 0.0
      %632 = vmatprep.subr.mxu0 0.0
      %633 = vmatpush1.msra.mxu0 0.0
      %634 = vmatprep.subr.mxu0 0.0
      %635 = vmatpush1.msra.mxu0 0.0
      %636 = vmatprep.subr.mxu0 0.0
      %637 = vmatpush1.msra.mxu0 0.0
      %638 = vmatprep.subr.mxu0 0.0
      %639 = vmatpush1.msra.mxu0 0.0
      %640 = vmatprep.subr.mxu0 0.0
      %641 = vmatpush1.msra.mxu0 0.0
      %642 = vmatprep.subr.mxu0 0.0
      %643 = vmatpush1.msra.mxu0 0.0
      %644 = vmatprep.subr.mxu0 0.0
      %645 = vmatpush1.msra.mxu0 0.0
      %646 = vmatprep.subr.mxu0 0.0
      %647 = vmatpush1.msra.mxu0 0.0
      %648 = vmatprep.subr.mxu0 0.0
      %649 = vmatpush1.msra.mxu0 0.0
      %650 = vmatprep.subr.mxu0 0.0
      %651 = vmatpush1.msra.mxu0 0.0
      %652 = vmatprep.mubr.f32.mxu0 0.0
      %653 = vmatmul.mubr.f32.gmra.mrb[0].mxu0 %v454
      %v654 = vpop.f32.mrb[0].mxu0
      %v655 = vadd.f32 0.0, %v654
      %v656 = vpop.f32.mrb[0].mxu0
      %657 = vmatprep.mubr.f32.mxu0 0.0
      %658 = vmatmul.mubr.f32.gmra.mrb[0].mxu0 %v455
      %v659 = vpop.f32.mrb[0].mxu0
      %v660 = vadd.f32 0.0, %v659
      %v661 = vpop.f32.mrb[0].mxu0
      %662 = vmatprep.mubr.f32.mxu0 0.0
      %663 = vmatmul.mubr.f32.gmra.mrb[0].mxu0 %v456
      %v664 = vpop.f32.mrb[0].mxu0
      %v665 = vadd.f32 0.0, %v664
      %v666 = vpop.f32.mrb[0].mxu0
      %667 = vdwg.mxu0
      %vm668 = vcmask 130048
      %v670 = vsel %vm668, %v572, 0
      %v673 = vsel %vm668, %v578, 0
      %v676 = vsel %vm668, %v584, 0
      %v679 = vsel %vm668, %v574, 0
      %v682 = vsel %vm668, %v580, 0
      %v685 = vsel %vm668, %v586, 0
      %687 = vmatprep.subr.mxu0 0.0
      %688 = vmatpush1.xpose.msra.mxu0 %v679
      %689 = vmatprep.subr.mxu0 0.0
      %690 = vmatpush1.xpose.msra.mxu0 %v682
      %691 = vmatprep.subr.mxu0 0.0
      %692 = vmatpush1.xpose.msra.mxu0 %v685
      %693 = vmatprep.subr.mxu0 0.0
      %694 = vmatpush1.xpose.msra.mxu0 0.0
      %695 = vmatprep.subr.mxu0 0.0
      %696 = vmatpush1.xpose.msra.mxu0 0.0
      %697 = vmatprep.subr.mxu0 0.0
      %698 = vmatpush1.xpose.msra.mxu0 0.0
      %699 = vmatprep.subr.mxu0 0.0
      %700 = vmatpush1.xpose.msra.mxu0 0.0
      %701 = vmatprep.subr.mxu0 0.0
      %702 = vmatpush1.xpose.msra.mxu0 0.0
      %703 = vmatprep.subr.mxu0 0.0
      %704 = vmatpush1.xpose.msra.mxu0 0.0
      %705 = vmatprep.subr.mxu0 0.0
      %706 = vmatpush1.xpose.msra.mxu0 0.0
      %707 = vmatprep.subr.mxu0 0.0
      %708 = vmatpush1.xpose.msra.mxu0 0.0
      %709 = vmatprep.subr.mxu0 0.0
      %710 = vmatpush1.xpose.msra.mxu0 0.0
      %711 = vmatprep.subr.mxu0 0.0
      %712 = vmatpush1.xpose.msra.mxu0 0.0
      %713 = vmatprep.subr.mxu0 0.0
      %714 = vmatpush1.xpose.msra.mxu0 0.0
      %715 = vmatprep.subr.mxu0 0.0
      %716 = vmatpush1.xpose.msra.mxu0 0.0
      %717 = vmatprep.subr.mxu0 0.0
      %718 = vmatpush1.xpose.msra.mxu0 0.0
      %719 = vmatprep.subr.mxu0 0.0
      %720 = vmatpush1.xpose.msra.mxu0 0.0
      %721 = vmatprep.subr.mxu0 0.0
      %722 = vmatpush1.xpose.msra.mxu0 0.0
      %723 = vmatprep.subr.mxu0 0.0
      %724 = vmatpush1.xpose.msra.mxu0 0.0
      %725 = vmatprep.subr.mxu0 0.0
      %726 = vmatpush1.xpose.msra.mxu0 0.0
      %727 = vmatprep.subr.mxu0 0.0
      %728 = vmatpush1.xpose.msra.mxu0 0.0
      %729 = vmatprep.subr.mxu0 0.0
      %730 = vmatpush1.xpose.msra.mxu0 0.0
      %731 = vmatprep.subr.mxu0 0.0
      %732 = vmatpush1.xpose.msra.mxu0 0.0
      %733 = vmatprep.subr.mxu0 0.0
      %734 = vmatpush1.xpose.msra.mxu0 0.0
      %735 = vmatprep.subr.mxu0 0.0
      %736 = vmatpush1.xpose.msra.mxu0 0.0
      %737 = vmatprep.subr.mxu0 0.0
      %738 = vmatpush1.xpose.msra.mxu0 0.0
      %739 = vmatprep.subr.mxu0 0.0
      %740 = vmatpush1.xpose.msra.mxu0 0.0
      %741 = vmatprep.subr.mxu0 0.0
      %742 = vmatpush1.xpose.msra.mxu0 0.0
      %743 = vmatprep.subr.mxu0 0.0
      %744 = vmatpush1.xpose.msra.mxu0 0.0
      %745 = vmatprep.subr.mxu0 0.0
      %746 = vmatpush1.xpose.msra.mxu0 0.0
      %747 = vmatprep.subr.mxu0 0.0
      %748 = vmatpush1.xpose.msra.mxu0 0.0
      %749 = vmatprep.subr.mxu0 0.0
      %750 = vmatpush1.xpose.msra.mxu0 0.0
      %751 = vmatprep.mubr.f32.mxu0 0.0
      %752 = vmatmul.mubr.f32.gmra.mrb[0].mxu0 %v670
      %v753 = vpop.f32.mrb[0].mxu0
      %v754 = vadd.f32 0.0, %v753
      %v755 = vpop.f32.mrb[0].mxu0
      %756 = vmatprep.mubr.f32.mxu0 0.0
      %757 = vmatmul.mubr.f32.gmra.mrb[0].mxu0 %v673
      %v758 = vpop.f32.mrb[0].mxu0
      %v759 = vadd.f32 0.0, %v758
      %v760 = vpop.f32.mrb[0].mxu0
      %761 = vmatprep.mubr.f32.mxu0 0.0
      %762 = vmatmul.mubr.f32.gmra.mrb[0].mxu0 %v676
      %v763 = vpop.f32.mrb[0].mxu0
      %v764 = vadd.f32 0.0, %v763
      %v765 = vpop.f32.mrb[0].mxu0
      %766 = vdwg.mxu0
      %vm767 = vcmask 171008
      %v768 = vsel %vm767, %v754, -inf
      %769 = vmax.xlane.f32.xlu0 %v768
      %v770 = vpop.xlane.xlu0 %769
      %v771 = vsel %vm767, %v759, -inf
      %772 = vmax.xlane.f32.xlu0 %v771
      %v773 = vpop.xlane.xlu0 %772
      %vm774 = vcmask 167936
      %v775 = vsel %vm774, %v764, -inf
      %776 = vmax.xlane.f32.xlu0 %v775
      %v777 = vpop.xlane.xlu0 %776
      %v778 = vsub.f32 %v754, %v770
      %v779 = vsub.f32 %v759, %v773
      %v780 = vsub.f32 %v764, %v777
      %v781 = vmul.f32 %v778, 1.442695
      %v782 = vpow.pop %v781
      %v783 = vmul.f32 %v779, 1.442695
      %v784 = vpow.pop %v783
      %v785 = vmul.f32 %v780, 1.442695
      %v786 = vpow.pop %v785
      %v787 = vsel %vm767, %v782, 0.0
      %788 = vadd.xlane.f32.xlu0 %v787
      %v789 = vpop.xlane.xlu0 %788
      %v790 = vsel %vm767, %v784, 0.0
      %791 = vadd.xlane.f32.xlu0 %v790
      %v792 = vpop.xlane.xlu0 %791
      %v793 = vsel %vm774, %v786, 0.0
      %794 = vadd.xlane.f32.xlu0 %v793
      %v795 = vpop.xlane.xlu0 %794
      %v796 = vrcp.pop %v789
      %v797 = vrcp.pop %v792
      %v798 = vrcp.pop %v795
      %v799 = vmul.f32 %v782, %v796
      %v800 = vmul.f32 %v784, %v797
      %v801 = vmul.f32 %v786, %v798
      %v803 = vsel %vm767, %v799, 0
      %v806 = vsel %vm767, %v800, 0
      %v809 = vsel %vm767, %v801, 0
      %vm811 = vcmask 1044480
      %v813 = vsel %vm811, %v665, 0
      %815 = vmatprep.subr.mxu0 0.0
      %816 = vmatpush1.msra.mxu0 %v655
      %817 = vmatprep.subr.mxu0 0.0
      %818 = vmatpush1.msra.mxu0 %v660
      %819 = vmatprep.subr.mxu0 0.0
      %820 = vmatpush1.msra.mxu0 %v813
      %821 = vmatprep.subr.mxu0 0.0
      %822 = vmatpush1.msra.mxu0 0.0
      %823 = vmatprep.subr.mxu0 0.0
      %824 = vmatpush1.msra.mxu0 0.0
      %825 = vmatprep.subr.mxu0 0.0
      %826 = vmatpush1.msra.mxu0 0.0
      %827 = vmatprep.subr.mxu0 0.0
      %828 = vmatpush1.msra.mxu0 0.0
      %829 = vmatprep.subr.mxu0 0.0
      %830 = vmatpush1.msra.mxu0 0.0
      %831 = vmatprep.subr.mxu0 0.0
      %832 = vmatpush1.msra.mxu0 0.0
      %833 = vmatprep.subr.mxu0 0.0
      %834 = vmatpush1.msra.mxu0 0.0
      %835 = vmatprep.subr.mxu0 0.0
      %836 = vmatpush1.msra.mxu0 0.0
      %837 = vmatprep.subr.mxu0 0.0
      %838 = vmatpush1.msra.mxu0 0.0
      %839 = vmatprep.subr.mxu0 0.0
      %840 = vmatpush1.msra.mxu0 0.0
      %841 = vmatprep.subr.mxu0 0.0
      %842 = vmatpush1.msra.mxu0 0.0
      %843 = vmatprep.subr.mxu0 0.0
      %844 = vmatpush1.msra.mxu0 0.0
      %845 = vmatprep.subr.mxu0 0.0
      %846 = vmatpush1.msra.mxu0 0.0
      %847 = vmatprep.subr.mxu0 0.0
      %848 = vmatpush1.msra.mxu0 0.0
      %849 = vmatprep.subr.mxu0 0.0
      %850 = vmatpush1.msra.mxu0 0.0
      %851 = vmatprep.subr.mxu0 0.0
      %852 = vmatpush1.msra.mxu0 0.0
      %853 = vmatprep.subr.mxu0 0.0
      %854 = vmatpush1.msra.mxu0 0.0
      %855 = vmatprep.subr.mxu0 0.0
      %856 = vmatpush1.msra.mxu0 0.0
      %857 = vmatprep.subr.mxu0 0.0
      %858 = vmatpush1.msra.mxu0 0.0
      %859 = vmatprep.subr.mxu0 0.0
      %860 = vmatpush1.msra.mxu0 0.0
      %861 = vmatprep.subr.mxu0 0.0
      %862 = vmatpush1.msra.mxu0 0.0
      %863 = vmatprep.subr.mxu0 0.0
      %864 = vmatpush1.msra.mxu0 0.0
      %865 = vmatprep.subr.mxu0 0.0
      %866 = vmatpush1.msra.mxu0 0.0
      %867 = vmatprep.subr.mxu0 0.0
      %868 = vmatpush1.msra.mxu0 0.0
      %869 = vmatprep.subr.mxu0 0.0
      %870 = vmatpush1.msra.mxu0 0.0
      %871 = vmatprep.subr.mxu0 0.0
      %872 = vmatpush1.msra.mxu0 0.0
      %873 = vmatprep.subr.mxu0 0.0
      %874 = vmatpush1.msra.mxu0 0.0
      %875 = vmatprep.subr.mxu0 0.0
      %876 = vmatpush1.msra.mxu0 0.0
      %877 = vmatprep.subr.mxu0 0.0
      %878 = vmatpush1.msra.mxu0 0.0
      %879 = vmatprep.mubr.f32.mxu0 0.0
      %880 = vmatmul.mubr.f32.gmra.mrb[0].mxu0 %v803
      %v881 = vpop.f32.mrb[0].mxu0
      %v882 = vadd.f32 0.0, %v881
      %v883 = vpop.f32.mrb[0].mxu0
      %884 = vmatprep.mubr.f32.mxu0 0.0
      %885 = vmatmul.mubr.f32.gmra.mrb[0].mxu0 %v806
      %v886 = vpop.f32.mrb[0].mxu0
      %v887 = vadd.f32 0.0, %v886
      %v888 = vpop.f32.mrb[0].mxu0
      %889 = vmatprep.mubr.f32.mxu0 0.0
      %890 = vmatmul.mubr.f32.gmra.mrb[0].mxu0 %v809
      %v891 = vpop.f32.mrb[0].mxu0
      %v892 = vadd.f32 0.0, %v891
      %v893 = vpop.f32.mrb[0].mxu0
      %894 = vdwg.mxu0
      %895 = vrot.lane.b32.xlu0 %v572, 112
      %v896 = vpop.permute.xlu0 %895
      %897 = vrot.lane.b32.xlu0 %v578, 112
      %v898 = vpop.permute.xlu0 %897
      %899 = vrot.lane.b32.xlu0 %v584, 112
      %v900 = vpop.permute.xlu0 %899
      %901 = vrot.lane.b32.xlu0 %v574, 112
      %v902 = vpop.permute.xlu0 %901
      %903 = vrot.lane.b32.xlu0 %v580, 112
      %v904 = vpop.permute.xlu0 %903
      %905 = vrot.lane.b32.xlu0 %v586, 112
      %v906 = vpop.permute.xlu0 %905
      %v907 = vsel %vm668, %v896, 0
      %v909 = vsel %vm668, %v898, 0
      %v911 = vsel %vm668, %v900, 0
      %v913 = vsel %vm668, %v902, 0
      %v915 = vsel %vm668, %v904, 0
      %v917 = vsel %vm668, %v906, 0
      %919 = vmatprep.subr.mxu0 0.0
      %920 = vmatpush1.xpose.msra.mxu0 %v913
      %921 = vmatprep.subr.mxu0 0.0
      %922 = vmatpush1.xpose.msra.mxu0 %v915
      %923 = vmatprep.subr.mxu0 0.0
      %924 = vmatpush1.xpose.msra.mxu0 %v917
      %925 = vmatprep.subr.mxu0 0.0
      %926 = vmatpush1.xpose.msra.mxu0 0.0
      %927 = vmatprep.subr.mxu0 0.0
      %928 = vmatpush1.xpose.msra.mxu0 0.0
      %929 = vmatprep.subr.mxu0 0.0
      %930 = vmatpush1.xpose.msra.mxu0 0.0
      %931 = vmatprep.subr.mxu0 0.0
      %932 = vmatpush1.xpose.msra.mxu0 0.0
      %933 = vmatprep.subr.mxu0 0.0
      %934 = vmatpush1.xpose.msra.mxu0 0.0
      %935 = vmatprep.subr.mxu0 0.0
      %936 = vmatpush1.xpose.msra.mxu0 0.0
      %937 = vmatprep.subr.mxu0 0.0
      %938 = vmatpush1.xpose.msra.mxu0 0.0
      %939 = vmatprep.subr.mxu0 0.0
      %940 = vmatpush1.xpose.msra.mxu0 0.0
      %941 = vmatprep.subr.mxu0 0.0
      %942 = vmatpush1.xpose.msra.mxu0 0.0
      %943 = vmatprep.subr.mxu0 0.0
      %944 = vmatpush1.xpose.msra.mxu0 0.0
      %945 = vmatprep.subr.mxu0 0.0
      %946 = vmatpush1.xpose.msra.mxu0 0.0
      %947 = vmatprep.subr.mxu0 0.0
      %948 = vmatpush1.xpose.msra.mxu0 0.0
      %949 = vmatprep.subr.mxu0 0.0
      %950 = vmatpush1.xpose.msra.mxu0 0.0
      %951 = vmatprep.subr.mxu0 0.0
      %952 = vmatpush1.xpose.msra.mxu0 0.0
      %953 = vmatprep.subr.mxu0 0.0
      %954 = vmatpush1.xpose.msra.mxu0 0.0
      %955 = vmatprep.subr.mxu0 0.0
      %956 = vmatpush1.xpose.msra.mxu0 0.0
      %957 = vmatprep.subr.mxu0 0.0
      %958 = vmatpush1.xpose.msra.mxu0 0.0
      %959 = vmatprep.subr.mxu0 0.0
      %960 = vmatpush1.xpose.msra.mxu0 0.0
      %961 = vmatprep.subr.mxu0 0.0
      %962 = vmatpush1.xpose.msra.mxu0 0.0
      %963 = vmatprep.subr.mxu0 0.0
      %964 = vmatpush1.xpose.msra.mxu0 0.0
      %965 = vmatprep.subr.mxu0 0.0
      %966 = vmatpush1.xpose.msra.mxu0 0.0
      %967 = vmatprep.subr.mxu0 0.0
      %968 = vmatpush1.xpose.msra.mxu0 0.0
      %969 = vmatprep.subr.mxu0 0.0
      %970 = vmatpush1.xpose.msra.mxu0 0.0
      %971 = vmatprep.subr.mxu0 0.0
      %972 = vmatpush1.xpose.msra.mxu0 0.0
      %973 = vmatprep.subr.mxu0 0.0
      %974 = vmatpush1.xpose.msra.mxu0 0.0
      %975 = vmatprep.subr.mxu0 0.0
      %976 = vmatpush1.xpose.msra.mxu0 0.0
      %977 = vmatprep.subr.mxu0 0.0
      %978 = vmatpush1.xpose.msra.mxu0 0.0
      %979 = vmatprep.subr.mxu0 0.0
      %980 = vmatpush1.xpose.msra.mxu0 0.0
      %981 = vmatprep.subr.mxu0 0.0
      %982 = vmatpush1.xpose.msra.mxu0 0.0
      %983 = vmatprep.mubr.f32.mxu0 0.0
      %984 = vmatmul.mubr.f32.gmra.mrb[0].mxu0 %v907
      %v985 = vpop.f32.mrb[0].mxu0
      %v986 = vadd.f32 0.0, %v985
      %v987 = vpop.f32.mrb[0].mxu0
      %988 = vmatprep.mubr.f32.mxu0 0.0
      %989 = vmatmul.mubr.f32.gmra.mrb[0].mxu0 %v909
      %v990 = vpop.f32.mrb[0].mxu0
      %v991 = vadd.f32 0.0, %v990
      %v992 = vpop.f32.mrb[0].mxu0
      %993 = vmatprep.mubr.f32.mxu0 0.0
      %994 = vmatmul.mubr.f32.gmra.mrb[0].mxu0 %v911
      %v995 = vpop.f32.mrb[0].mxu0
      %v996 = vadd.f32 0.0, %v995
      %v997 = vpop.f32.mrb[0].mxu0
      %998 = vdwg.mxu0
      %v999 = vsel %vm767, %v986, -inf
      %1000 = vmax.xlane.f32.xlu0 %v999
      %v1001 = vpop.xlane.xlu0 %1000
      %v1002 = vsel %vm767, %v991, -inf
      %1003 = vmax.xlane.f32.xlu0 %v1002
      %v1004 = vpop.xlane.xlu0 %1003
      %v1005 = vsel %vm774, %v996, -inf
      %1006 = vmax.xlane.f32.xlu0 %v1005
      %v1007 = vpop.xlane.xlu0 %1006
      %v1008 = vsub.f32 %v986, %v1001
      %v1009 = vsub.f32 %v991, %v1004
      %v1010 = vsub.f32 %v996, %v1007
      %v1011 = vmul.f32 %v1008, 1.442695
      %v1012 = vpow.pop %v1011
      %v1013 = vmul.f32 %v1009, 1.442695
      %v1014 = vpow.pop %v1013
      %v1015 = vmul.f32 %v1010, 1.442695
      %v1016 = vpow.pop %v1015
      %v1017 = vsel %vm767, %v1012, 0.0
      %1018 = vadd.xlane.f32.xlu0 %v1017
      %v1019 = vpop.xlane.xlu0 %1018
      %v1020 = vsel %vm767, %v1014, 0.0
      %1021 = vadd.xlane.f32.xlu0 %v1020
      %v1022 = vpop.xlane.xlu0 %1021
      %v1023 = vsel %vm774, %v1016, 0.0
      %1024 = vadd.xlane.f32.xlu0 %v1023
      %v1025 = vpop.xlane.xlu0 %1024
      %v1026 = vrcp.pop %v1019
      %v1027 = vrcp.pop %v1022
      %v1028 = vrcp.pop %v1025
      %v1029 = vmul.f32 %v1012, %v1026
      %v1030 = vmul.f32 %v1014, %v1027
      %v1031 = vmul.f32 %v1016, %v1028
      %1034 = vrot.lane.b32.xlu0 %v655, 112
      %v1035 = vpop.permute.xlu0 %1034
      %1036 = vrot.lane.b32.xlu0 %v660, 112
      %v1037 = vpop.permute.xlu0 %1036
      %1038 = vrot.lane.b32.xlu0 %v665, 112
      %v1039 = vpop.permute.xlu0 %1038
      %v1043 = vsel %vm767, %v1029, 0
      %v1046 = vsel %vm767, %v1030, 0
      %v1049 = vsel %vm767, %v1031, 0
      %v1051 = vsel %vm811, %v1039, 0
      %1053 = vmatprep.subr.mxu0 0.0
      %1054 = vmatpush1.msra.mxu0 %v1035
      %1055 = vmatprep.subr.mxu0 0.0
      %1056 = vmatpush1.msra.mxu0 %v1037
      %1057 = vmatprep.subr.mxu0 0.0
      %1058 = vmatpush1.msra.mxu0 %v1051
      %1059 = vmatprep.subr.mxu0 0.0
      %1060 = vmatpush1.msra.mxu0 0.0
      %1061 = vmatprep.subr.mxu0 0.0
      %1062 = vmatpush1.msra.mxu0 0.0
      %1063 = vmatprep.subr.mxu0 0.0
      %1064 = vmatpush1.msra.mxu0 0.0
      %1065 = vmatprep.subr.mxu0 0.0
      %1066 = vmatpush1.msra.mxu0 0.0
      %1067 = vmatprep.subr.mxu0 0.0
      %1068 = vmatpush1.msra.mxu0 0.0
      %1069 = vmatprep.subr.mxu0 0.0
      %1070 = vmatpush1.msra.mxu0 0.0
      %1071 = vmatprep.subr.mxu0 0.0
      %1072 = vmatpush1.msra.mxu0 0.0
      %1073 = vmatprep.subr.mxu0 0.0
      %1074 = vmatpush1.msra.mxu0 0.0
      %1075 = vmatprep.subr.mxu0 0.0
      %1076 = vmatpush1.msra.mxu0 0.0
      %1077 = vmatprep.subr.mxu0 0.0
      %1078 = vmatpush1.msra.mxu0 0.0
      %1079 = vmatprep.subr.mxu0 0.0
      %1080 = vmatpush1.msra.mxu0 0.0
      %1081 = vmatprep.subr.mxu0 0.0
      %1082 = vmatpush1.msra.mxu0 0.0
      %1083 = vmatprep.subr.mxu0 0.0
      %1084 = vmatpush1.msra.mxu0 0.0
      %1085 = vmatprep.subr.mxu0 0.0
      %1086 = vmatpush1.msra.mxu0 0.0
      %1087 = vmatprep.subr.mxu0 0.0
      %1088 = vmatpush1.msra.mxu0 0.0
      %1089 = vmatprep.subr.mxu0 0.0
      %1090 = vmatpush1.msra.mxu0 0.0
      %1091 = vmatprep.subr.mxu0 0.0
      %1092 = vmatpush1.msra.mxu0 0.0
      %1093 = vmatprep.subr.mxu0 0.0
      %1094 = vmatpush1.msra.mxu0 0.0
      %1095 = vmatprep.subr.mxu0 0.0
      %1096 = vmatpush1.msra.mxu0 0.0
      %1097 = vmatprep.subr.mxu0 0.0
      %1098 = vmatpush1.msra.mxu0 0.0
      %1099 = vmatprep.subr.mxu0 0.0
      %1100 = vmatpush1.msra.mxu0 0.0
      %1101 = vmatprep.subr.mxu0 0.0
      %1102 = vmatpush1.msra.mxu0 0.0
      %1103 = vmatprep.subr.mxu0 0.0
      %1104 = vmatpush1.msra.mxu0 0.0
      %1105 = vmatprep.subr.mxu0 0.0
      %1106 = vmatpush1.msra.mxu0 0.0
      %1107 = vmatprep.subr.mxu0 0.0
      %1108 = vmatpush1.msra.mxu0 0.0
      %1109 = vmatprep.subr.mxu0 0.0
      %1110 = vmatpush1.msra.mxu0 0.0
      %1111 = vmatprep.subr.mxu0 0.0
      %1112 = vmatpush1.msra.mxu0 0.0
      %1113 = vmatprep.subr.mxu0 0.0
      %1114 = vmatpush1.msra.mxu0 0.0
      %1115 = vmatprep.subr.mxu0 0.0
      %1116 = vmatpush1.msra.mxu0 0.0
      %1117 = vmatprep.mubr.f32.mxu0 0.0
      %1118 = vmatmul.mubr.f32.gmra.mrb[0].mxu0 %v1043
      %v1119 = vpop.f32.mrb[0].mxu0
      %v1120 = vadd.f32 0.0, %v1119
      %v1121 = vpop.f32.mrb[0].mxu0
      %1122 = vmatprep.mubr.f32.mxu0 0.0
      %1123 = vmatmul.mubr.f32.gmra.mrb[0].mxu0 %v1046
      %v1124 = vpop.f32.mrb[0].mxu0
      %v1125 = vadd.f32 0.0, %v1124
      %v1126 = vpop.f32.mrb[0].mxu0
      %1127 = vmatprep.mubr.f32.mxu0 0.0
      %1128 = vmatmul.mubr.f32.gmra.mrb[0].mxu0 %v1049
      %v1129 = vpop.f32.mrb[0].mxu0
      %v1130 = vadd.f32 0.0, %v1129
      %v1131 = vpop.f32.mrb[0].mxu0
      %1132 = vdwg.mxu0
      %1133 = vrot.lane.b32.xlu0 %v572, 96
      %v1134 = vpop.permute.xlu0 %1133
      %1135 = vrot.lane.b32.xlu0 %v578, 96
      %v1136 = vpop.permute.xlu0 %1135
      %1137 = vrot.lane.b32.xlu0 %v584, 96
      %v1138 = vpop.permute.xlu0 %1137
      %1139 = vrot.lane.b32.xlu0 %v574, 96
      %v1140 = vpop.permute.xlu0 %1139
      %1141 = vrot.lane.b32.xlu0 %v580, 96
      %v1142 = vpop.permute.xlu0 %1141
      %1143 = vrot.lane.b32.xlu0 %v586, 96
      %v1144 = vpop.permute.xlu0 %1143
      %v1145 = vsel %vm668, %v1134, 0
      %v1147 = vsel %vm668, %v1136, 0
      %v1149 = vsel %vm668, %v1138, 0
      %v1151 = vsel %vm668, %v1140, 0
      %v1153 = vsel %vm668, %v1142, 0
      %v1155 = vsel %vm668, %v1144, 0
      %1157 = vmatprep.subr.mxu0 0.0
      %1158 = vmatpush1.xpose.msra.mxu0 %v1151
      %1159 = vmatprep.subr.mxu0 0.0
      %1160 = vmatpush1.xpose.msra.mxu0 %v1153
      %1161 = vmatprep.subr.mxu0 0.0
      %1162 = vmatpush1.xpose.msra.mxu0 %v1155
      %1163 = vmatprep.subr.mxu0 0.0
      %1164 = vmatpush1.xpose.msra.mxu0 0.0
      %1165 = vmatprep.subr.mxu0 0.0
      %1166 = vmatpush1.xpose.msra.mxu0 0.0
      %1167 = vmatprep.subr.mxu0 0.0
      %1168 = vmatpush1.xpose.msra.mxu0 0.0
      %1169 = vmatprep.subr.mxu0 0.0
      %1170 = vmatpush1.xpose.msra.mxu0 0.0
      %1171 = vmatprep.subr.mxu0 0.0
      %1172 = vmatpush1.xpose.msra.mxu0 0.0
      %1173 = vmatprep.subr.mxu0 0.0
      %1174 = vmatpush1.xpose.msra.mxu0 0.0
      %1175 = vmatprep.subr.mxu0 0.0
      %1176 = vmatpush1.xpose.msra.mxu0 0.0
      %1177 = vmatprep.subr.mxu0 0.0
      %1178 = vmatpush1.xpose.msra.mxu0 0.0
      %1179 = vmatprep.subr.mxu0 0.0
      %1180 = vmatpush1.xpose.msra.mxu0 0.0
      %1181 = vmatprep.subr.mxu0 0.0
      %1182 = vmatpush1.xpose.msra.mxu0 0.0
      %1183 = vmatprep.subr.mxu0 0.0
      %1184 = vmatpush1.xpose.msra.mxu0 0.0
      %1185 = vmatprep.subr.mxu0 0.0
      %1186 = vmatpush1.xpose.msra.mxu0 0.0
      %1187 = vmatprep.subr.mxu0 0.0
      %1188 = vmatpush1.xpose.msra.mxu0 0.0
      %1189 = vmatprep.subr.mxu0 0.0
      %1190 = vmatpush1.xpose.msra.mxu0 0.0
      %1191 = vmatprep.subr.mxu0 0.0
      %1192 = vmatpush1.xpose.msra.mxu0 0.0
      %1193 = vmatprep.subr.mxu0 0.0
      %1194 = vmatpush1.xpose.msra.mxu0 0.0
      %1195 = vmatprep.subr.mxu0 0.0
      %1196 = vmatpush1.xpose.msra.mxu0 0.0
      %1197 = vmatprep.subr.mxu0 0.0
      %1198 = vmatpush1.xpose.msra.mxu0 0.0
      %1199 = vmatprep.subr.mxu0 0.0
      %1200 = vmatpush1.xpose.msra.mxu0 0.0
      %1201 = vmatprep.subr.mxu0 0.0
      %1202 = vmatpush1.xpose.msra.mxu0 0.0
      %1203 = vmatprep.subr.mxu0 0.0
      %1204 = vmatpush1.xpose.msra.mxu0 0.0
      %1205 = vmatprep.subr.mxu0 0.0
      %1206 = vmatpush1.xpose.msra.mxu0 0.0
      %1207 = vmatprep.subr.mxu0 0.0
      %1208 = vmatpush1.xpose.msra.mxu0 0.0
      %1209 = vmatprep.subr.mxu0 0.0
      %1210 = vmatpush1.xpose.msra.mxu0 0.0
      %1211 = vmatprep.subr.mxu0 0.0
      %1212 = vmatpush1.xpose.msra.mxu0 0.0
      %1213 = vmatprep.subr.mxu0 0.0
      %1214 = vmatpush1.xpose.msra.mxu0 0.0
      %1215 = vmatprep.subr.mxu0 0.0
      %1216 = vmatpush1.xpose.msra.mxu0 0.0
      %1217 = vmatprep.subr.mxu0 0.0
      %1218 = vmatpush1.xpose.msra.mxu0 0.0
      %1219 = vmatprep.subr.mxu0 0.0
      %1220 = vmatpush1.xpose.msra.mxu0 0.0
      %1221 = vmatprep.mubr.f32.mxu0 0.0
      %1222 = vmatmul.mubr.f32.gmra.mrb[0].mxu0 %v1145
      %v1223 = vpop.f32.mrb[0].mxu0
      %v1224 = vadd.f32 0.0, %v1223
      %v1225 = vpop.f32.mrb[0].mxu0
      %1226 = vmatprep.mubr.f32.mxu0 0.0
      %1227 = vmatmul.mubr.f32.gmra.mrb[0].mxu0 %v1147
      %v1228 = vpop.f32.mrb[0].mxu0
      %v1229 = vadd.f32 0.0, %v1228
      %v1230 = vpop.f32.mrb[0].mxu0
      %1231 = vmatprep.mubr.f32.mxu0 0.0
      %1232 = vmatmul.mubr.f32.gmra.mrb[0].mxu0 %v1149
      %v1233 = vpop.f32.mrb[0].mxu0
      %v1234 = vadd.f32 0.0, %v1233
      %v1235 = vpop.f32.mrb[0].mxu0
      %1236 = vdwg.mxu0
      %v1237 = vsel %vm767, %v1224, -inf
      %1238 = vmax.xlane.f32.xlu0 %v1237
      %v1239 = vpop.xlane.xlu0 %1238
      %v1240 = vsel %vm767, %v1229, -inf
      %1241 = vmax.xlane.f32.xlu0 %v1240
      %v1242 = vpop.xlane.xlu0 %1241
      %v1243 = vsel %vm774, %v1234, -inf
      %1244 = vmax.xlane.f32.xlu0 %v1243
      %v1245 = vpop.xlane.xlu0 %1244
      %v1246 = vsub.f32 %v1224, %v1239
      %v1247 = vsub.f32 %v1229, %v1242
      %v1248 = vsub.f32 %v1234, %v1245
      %v1249 = vmul.f32 %v1246, 1.442695
      %v1250 = vpow.pop %v1249
      %v1251 = vmul.f32 %v1247, 1.442695
      %v1252 = vpow.pop %v1251
      %v1253 = vmul.f32 %v1248, 1.442695
      %v1254 = vpow.pop %v1253
      %v1255 = vsel %vm767, %v1250, 0.0
      %1256 = vadd.xlane.f32.xlu0 %v1255
      %v1257 = vpop.xlane.xlu0 %1256
      %v1258 = vsel %vm767, %v1252, 0.0
      %1259 = vadd.xlane.f32.xlu0 %v1258
      %v1260 = vpop.xlane.xlu0 %1259
      %v1261 = vsel %vm774, %v1254, 0.0
      %1262 = vadd.xlane.f32.xlu0 %v1261
      %v1263 = vpop.xlane.xlu0 %1262
      %v1264 = vrcp.pop %v1257
      %v1265 = vrcp.pop %v1260
      %v1266 = vrcp.pop %v1263
      %v1267 = vmul.f32 %v1250, %v1264
      %v1268 = vmul.f32 %v1252, %v1265
      %v1269 = vmul.f32 %v1254, %v1266
      %1270 = vrot.lane.b32.xlu0 %v655, 96
      %v1271 = vpop.permute.xlu0 %1270
      %1272 = vrot.lane.b32.xlu0 %v660, 96
      %v1273 = vpop.permute.xlu0 %1272
      %1274 = vrot.lane.b32.xlu0 %v665, 96
      %v1275 = vpop.permute.xlu0 %1274
      %v1279 = vsel %vm767, %v1267, 0
      %v1282 = vsel %vm767, %v1268, 0
      %v1285 = vsel %vm767, %v1269, 0
      %v1287 = vsel %vm811, %v1275, 0
      %1289 = vmatprep.subr.mxu0 0.0
      %1290 = vmatpush1.msra.mxu0 %v1271
      %1291 = vmatprep.subr.mxu0 0.0
      %1292 = vmatpush1.msra.mxu0 %v1273
      %1293 = vmatprep.subr.mxu0 0.0
      %1294 = vmatpush1.msra.mxu0 %v1287
      %1295 = vmatprep.subr.mxu0 0.0
      %1296 = vmatpush1.msra.mxu0 0.0
      %1297 = vmatprep.subr.mxu0 0.0
      %1298 = vmatpush1.msra.mxu0 0.0
      %1299 = vmatprep.subr.mxu0 0.0
      %1300 = vmatpush1.msra.mxu0 0.0
      %1301 = vmatprep.subr.mxu0 0.0
      %1302 = vmatpush1.msra.mxu0 0.0
      %1303 = vmatprep.subr.mxu0 0.0
      %1304 = vmatpush1.msra.mxu0 0.0
      %1305 = vmatprep.subr.mxu0 0.0
      %1306 = vmatpush1.msra.mxu0 0.0
      %1307 = vmatprep.subr.mxu0 0.0
      %1308 = vmatpush1.msra.mxu0 0.0
      %1309 = vmatprep.subr.mxu0 0.0
      %1310 = vmatpush1.msra.mxu0 0.0
      %1311 = vmatprep.subr.mxu0 0.0
      %1312 = vmatpush1.msra.mxu0 0.0
      %1313 = vmatprep.subr.mxu0 0.0
      %1314 = vmatpush1.msra.mxu0 0.0
      %1315 = vmatprep.subr.mxu0 0.0
      %1316 = vmatpush1.msra.mxu0 0.0
      %1317 = vmatprep.subr.mxu0 0.0
      %1318 = vmatpush1.msra.mxu0 0.0
      %1319 = vmatprep.subr.mxu0 0.0
      %1320 = vmatpush1.msra.mxu0 0.0
      %1321 = vmatprep.subr.mxu0 0.0
      %1322 = vmatpush1.msra.mxu0 0.0
      %1323 = vmatprep.subr.mxu0 0.0
      %1324 = vmatpush1.msra.mxu0 0.0
      %1325 = vmatprep.subr.mxu0 0.0
      %1326 = vmatpush1.msra.mxu0 0.0
      %1327 = vmatprep.subr.mxu0 0.0
      %1328 = vmatpush1.msra.mxu0 0.0
      %1329 = vmatprep.subr.mxu0 0.0
      %1330 = vmatpush1.msra.mxu0 0.0
      %1331 = vmatprep.subr.mxu0 0.0
      %1332 = vmatpush1.msra.mxu0 0.0
      %1333 = vmatprep.subr.mxu0 0.0
      %1334 = vmatpush1.msra.mxu0 0.0
      %1335 = vmatprep.subr.mxu0 0.0
      %1336 = vmatpush1.msra.mxu0 0.0
      %1337 = vmatprep.subr.mxu0 0.0
      %1338 = vmatpush1.msra.mxu0 0.0
      %1339 = vmatprep.subr.mxu0 0.0
      %1340 = vmatpush1.msra.mxu0 0.0
      %1341 = vmatprep.subr.mxu0 0.0
      %1342 = vmatpush1.msra.mxu0 0.0
      %1343 = vmatprep.subr.mxu0 0.0
      %1344 = vmatpush1.msra.mxu0 0.0
      %1345 = vmatprep.subr.mxu0 0.0
      %1346 = vmatpush1.msra.mxu0 0.0
      %1347 = vmatprep.subr.mxu0 0.0
      %1348 = vmatpush1.msra.mxu0 0.0
      %1349 = vmatprep.subr.mxu0 0.0
      %1350 = vmatpush1.msra.mxu0 0.0
      %1351 = vmatprep.subr.mxu0 0.0
      %1352 = vmatpush1.msra.mxu0 0.0
      %1353 = vmatprep.mubr.f32.mxu0 0.0
      %1354 = vmatmul.mubr.f32.gmra.mrb[0].mxu0 %v1279
      %v1355 = vpop.f32.mrb[0].mxu0
      %v1356 = vadd.f32 0.0, %v1355
      %v1357 = vpop.f32.mrb[0].mxu0
      %1358 = vmatprep.mubr.f32.mxu0 0.0
      %1359 = vmatmul.mubr.f32.gmra.mrb[0].mxu0 %v1282
      %v1360 = vpop.f32.mrb[0].mxu0
      %v1361 = vadd.f32 0.0, %v1360
      %v1362 = vpop.f32.mrb[0].mxu0
      %1363 = vmatprep.mubr.f32.mxu0 0.0
      %1364 = vmatmul.mubr.f32.gmra.mrb[0].mxu0 %v1285
      %v1365 = vpop.f32.mrb[0].mxu0
      %v1366 = vadd.f32 0.0, %v1365
      %v1367 = vpop.f32.mrb[0].mxu0
      %1368 = vdwg.mxu0
      %1369 = vrot.lane.b32.xlu0 %v572, 80
      %v1370 = vpop.permute.xlu0 %1369
      %1371 = vrot.lane.b32.xlu0 %v578, 80
      %v1372 = vpop.permute.xlu0 %1371
      %1373 = vrot.lane.b32.xlu0 %v584, 80
      %v1374 = vpop.permute.xlu0 %1373
      %1375 = vrot.lane.b32.xlu0 %v574, 80
      %v1376 = vpop.permute.xlu0 %1375
      %1377 = vrot.lane.b32.xlu0 %v580, 80
      %v1378 = vpop.permute.xlu0 %1377
      %1379 = vrot.lane.b32.xlu0 %v586, 80
      %v1380 = vpop.permute.xlu0 %1379
      %v1381 = vsel %vm668, %v1370, 0
      %v1383 = vsel %vm668, %v1372, 0
      %v1385 = vsel %vm668, %v1374, 0
      %v1387 = vsel %vm668, %v1376, 0
      %v1389 = vsel %vm668, %v1378, 0
      %v1391 = vsel %vm668, %v1380, 0
      %1393 = vmatprep.subr.mxu0 0.0
      %1394 = vmatpush1.xpose.msra.mxu0 %v1387
      %1395 = vmatprep.subr.mxu0 0.0
      %1396 = vmatpush1.xpose.msra.mxu0 %v1389
      %1397 = vmatprep.subr.mxu0 0.0
      %1398 = vmatpush1.xpose.msra.mxu0 %v1391
      %1399 = vmatprep.subr.mxu0 0.0
      %1400 = vmatpush1.xpose.msra.mxu0 0.0
      %1401 = vmatprep.subr.mxu0 0.0
      %1402 = vmatpush1.xpose.msra.mxu0 0.0
      %1403 = vmatprep.subr.mxu0 0.0
      %1404 = vmatpush1.xpose.msra.mxu0 0.0
      %1405 = vmatprep.subr.mxu0 0.0
      %1406 = vmatpush1.xpose.msra.mxu0 0.0
      %1407 = vmatprep.subr.mxu0 0.0
      %1408 = vmatpush1.xpose.msra.mxu0 0.0
      %1409 = vmatprep.subr.mxu0 0.0
      %1410 = vmatpush1.xpose.msra.mxu0 0.0
      %1411 = vmatprep.subr.mxu0 0.0
      %1412 = vmatpush1.xpose.msra.mxu0 0.0
      %1413 = vmatprep.subr.mxu0 0.0
      %1414 = vmatpush1.xpose.msra.mxu0 0.0
      %1415 = vmatprep.subr.mxu0 0.0
      %1416 = vmatpush1.xpose.msra.mxu0 0.0
      %1417 = vmatprep.subr.mxu0 0.0
      %1418 = vmatpush1.xpose.msra.mxu0 0.0
      %1419 = vmatprep.subr.mxu0 0.0
      %1420 = vmatpush1.xpose.msra.mxu0 0.0
      %1421 = vmatprep.subr.mxu0 0.0
      %1422 = vmatpush1.xpose.msra.mxu0 0.0
      %1423 = vmatprep.subr.mxu0 0.0
      %1424 = vmatpush1.xpose.msra.mxu0 0.0
      %1425 = vmatprep.subr.mxu0 0.0
      %1426 = vmatpush1.xpose.msra.mxu0 0.0
      %1427 = vmatprep.subr.mxu0 0.0
      %1428 = vmatpush1.xpose.msra.mxu0 0.0
      %1429 = vmatprep.subr.mxu0 0.0
      %1430 = vmatpush1.xpose.msra.mxu0 0.0
      %1431 = vmatprep.subr.mxu0 0.0
      %1432 = vmatpush1.xpose.msra.mxu0 0.0
      %1433 = vmatprep.subr.mxu0 0.0
      %1434 = vmatpush1.xpose.msra.mxu0 0.0
      %1435 = vmatprep.subr.mxu0 0.0
      %1436 = vmatpush1.xpose.msra.mxu0 0.0
      %1437 = vmatprep.subr.mxu0 0.0
      %1438 = vmatpush1.xpose.msra.mxu0 0.0
      %1439 = vmatprep.subr.mxu0 0.0
      %1440 = vmatpush1.xpose.msra.mxu0 0.0
      %1441 = vmatprep.subr.mxu0 0.0
      %1442 = vmatpush1.xpose.msra.mxu0 0.0
      %1443 = vmatprep.subr.mxu0 0.0
      %1444 = vmatpush1.xpose.msra.mxu0 0.0
      %1445 = vmatprep.subr.mxu0 0.0
      %1446 = vmatpush1.xpose.msra.mxu0 0.0
      %1447 = vmatprep.subr.mxu0 0.0
      %1448 = vmatpush1.xpose.msra.mxu0 0.0
      %1449 = vmatprep.subr.mxu0 0.0
      %1450 = vmatpush1.xpose.msra.mxu0 0.0
      %1451 = vmatprep.subr.mxu0 0.0
      %1452 = vmatpush1.xpose.msra.mxu0 0.0
      %1453 = vmatprep.subr.mxu0 0.0
      %1454 = vmatpush1.xpose.msra.mxu0 0.0
      %1455 = vmatprep.subr.mxu0 0.0
      %1456 = vmatpush1.xpose.msra.mxu0 0.0
      %1457 = vmatprep.mubr.f32.mxu0 0.0
      %1458 = vmatmul.mubr.f32.gmra.mrb[0].mxu0 %v1381
      %v1459 = vpop.f32.mrb[0].mxu0
      %v1460 = vadd.f32 0.0, %v1459
      %v1461 = vpop.f32.mrb[0].mxu0
      %1462 = vmatprep.mubr.f32.mxu0 0.0
      %1463 = vmatmul.mubr.f32.gmra.mrb[0].mxu0 %v1383
      %v1464 = vpop.f32.mrb[0].mxu0
      %v1465 = vadd.f32 0.0, %v1464
      %v1466 = vpop.f32.mrb[0].mxu0
      %1467 = vmatprep.mubr.f32.mxu0 0.0
      %1468 = vmatmul.mubr.f32.gmra.mrb[0].mxu0 %v1385
      %v1469 = vpop.f32.mrb[0].mxu0
      %v1470 = vadd.f32 0.0, %v1469
      %v1471 = vpop.f32.mrb[0].mxu0
      %1472 = vdwg.mxu0
      %v1473 = vsel %vm767, %v1460, -inf
      %1474 = vmax.xlane.f32.xlu0 %v1473
      %v1475 = vpop.xlane.xlu0 %1474
      %v1476 = vsel %vm767, %v1465, -inf
      %1477 = vmax.xlane.f32.xlu0 %v1476
      %v1478 = vpop.xlane.xlu0 %1477
      %v1479 = vsel %vm774, %v1470, -inf
      %1480 = vmax.xlane.f32.xlu0 %v1479
      %v1481 = vpop.xlane.xlu0 %1480
      %v1482 = vsub.f32 %v1460, %v1475
      %v1483 = vsub.f32 %v1465, %v1478
      %v1484 = vsub.f32 %v1470, %v1481
      %v1485 = vmul.f32 %v1482, 1.442695
      %v1486 = vpow.pop %v1485
      %v1487 = vmul.f32 %v1483, 1.442695
      %v1488 = vpow.pop %v1487
      %v1489 = vmul.f32 %v1484, 1.442695
      %v1490 = vpow.pop %v1489
      %v1491 = vsel %vm767, %v1486, 0.0
      %1492 = vadd.xlane.f32.xlu0 %v1491
      %v1493 = vpop.xlane.xlu0 %1492
      %v1494 = vsel %vm767, %v1488, 0.0
      %1495 = vadd.xlane.f32.xlu0 %v1494
      %v1496 = vpop.xlane.xlu0 %1495
      %v1497 = vsel %vm774, %v1490, 0.0
      %1498 = vadd.xlane.f32.xlu0 %v1497
      %v1499 = vpop.xlane.xlu0 %1498
      %v1500 = vrcp.pop %v1493
      %v1501 = vrcp.pop %v1496
      %v1502 = vrcp.pop %v1499
      %v1503 = vmul.f32 %v1486, %v1500
      %v1504 = vmul.f32 %v1488, %v1501
      %v1505 = vmul.f32 %v1490, %v1502
      %1506 = vrot.lane.b32.xlu0 %v655, 80
      %v1507 = vpop.permute.xlu0 %1506
      %1508 = vrot.lane.b32.xlu0 %v660, 80
      %v1509 = vpop.permute.xlu0 %1508
      %1510 = vrot.lane.b32.xlu0 %v665, 80
      %v1511 = vpop.permute.xlu0 %1510
      %v1515 = vsel %vm767, %v1503, 0
      %v1518 = vsel %vm767, %v1504, 0
      %v1521 = vsel %vm767, %v1505, 0
      %v1523 = vsel %vm811, %v1511, 0
      %1525 = vmatprep.subr.mxu0 0.0
      %1526 = vmatpush1.msra.mxu0 %v1507
      %1527 = vmatprep.subr.mxu0 0.0
      %1528 = vmatpush1.msra.mxu0 %v1509
      %1529 = vmatprep.subr.mxu0 0.0
      %1530 = vmatpush1.msra.mxu0 %v1523
      %1531 = vmatprep.subr.mxu0 0.0
      %1532 = vmatpush1.msra.mxu0 0.0
      %1533 = vmatprep.subr.mxu0 0.0
      %1534 = vmatpush1.msra.mxu0 0.0
      %1535 = vmatprep.subr.mxu0 0.0
      %1536 = vmatpush1.msra.mxu0 0.0
      %1537 = vmatprep.subr.mxu0 0.0
      %1538 = vmatpush1.msra.mxu0 0.0
      %1539 = vmatprep.subr.mxu0 0.0
      %1540 = vmatpush1.msra.mxu0 0.0
      %1541 = vmatprep.subr.mxu0 0.0
      %1542 = vmatpush1.msra.mxu0 0.0
      %1543 = vmatprep.subr.mxu0 0.0
      %1544 = vmatpush1.msra.mxu0 0.0
      %1545 = vmatprep.subr.mxu0 0.0
      %1546 = vmatpush1.msra.mxu0 0.0
      %1547 = vmatprep.subr.mxu0 0.0
      %1548 = vmatpush1.msra.mxu0 0.0
      %1549 = vmatprep.subr.mxu0 0.0
      %1550 = vmatpush1.msra.mxu0 0.0
      %1551 = vmatprep.subr.mxu0 0.0
      %1552 = vmatpush1.msra.mxu0 0.0
      %1553 = vmatprep.subr.mxu0 0.0
      %1554 = vmatpush1.msra.mxu0 0.0
      %1555 = vmatprep.subr.mxu0 0.0
      %1556 = vmatpush1.msra.mxu0 0.0
      %1557 = vmatprep.subr.mxu0 0.0
      %1558 = vmatpush1.msra.mxu0 0.0
      %1559 = vmatprep.subr.mxu0 0.0
      %1560 = vmatpush1.msra.mxu0 0.0
      %1561 = vmatprep.subr.mxu0 0.0
      %1562 = vmatpush1.msra.mxu0 0.0
      %1563 = vmatprep.subr.mxu0 0.0
      %1564 = vmatpush1.msra.mxu0 0.0
      %1565 = vmatprep.subr.mxu0 0.0
      %1566 = vmatpush1.msra.mxu0 0.0
      %1567 = vmatprep.subr.mxu0 0.0
      %1568 = vmatpush1.msra.mxu0 0.0
      %1569 = vmatprep.subr.mxu0 0.0
      %1570 = vmatpush1.msra.mxu0 0.0
      %1571 = vmatprep.subr.mxu0 0.0
      %1572 = vmatpush1.msra.mxu0 0.0
      %1573 = vmatprep.subr.mxu0 0.0
      %1574 = vmatpush1.msra.mxu0 0.0
      %1575 = vmatprep.subr.mxu0 0.0
      %1576 = vmatpush1.msra.mxu0 0.0
      %1577 = vmatprep.subr.mxu0 0.0
      %1578 = vmatpush1.msra.mxu0 0.0
      %1579 = vmatprep.subr.mxu0 0.0
      %1580 = vmatpush1.msra.mxu0 0.0
      %1581 = vmatprep.subr.mxu0 0.0
      %1582 = vmatpush1.msra.mxu0 0.0
      %1583 = vmatprep.subr.mxu0 0.0
      %1584 = vmatpush1.msra.mxu0 0.0
      %1585 = vmatprep.subr.mxu0 0.0
      %1586 = vmatpush1.msra.mxu0 0.0
      %1587 = vmatprep.subr.mxu0 0.0
      %1588 = vmatpush1.msra.mxu0 0.0
      %1589 = vmatprep.mubr.f32.mxu0 0.0
      %1590 = vmatmul.mubr.f32.gmra.mrb[0].mxu0 %v1515
      %v1591 = vpop.f32.mrb[0].mxu0
      %v1592 = vadd.f32 0.0, %v1591
      %v1593 = vpop.f32.mrb[0].mxu0
      %1594 = vmatprep.mubr.f32.mxu0 0.0
      %1595 = vmatmul.mubr.f32.gmra.mrb[0].mxu0 %v1518
      %v1596 = vpop.f32.mrb[0].mxu0
      %v1597 = vadd.f32 0.0, %v1596
      %v1598 = vpop.f32.mrb[0].mxu0
      %1599 = vmatprep.mubr.f32.mxu0 0.0
      %1600 = vmatmul.mubr.f32.gmra.mrb[0].mxu0 %v1521
      %v1601 = vpop.f32.mrb[0].mxu0
      %v1602 = vadd.f32 0.0, %v1601
      %v1603 = vpop.f32.mrb[0].mxu0
      %1604 = vdwg.mxu0
      %1605 = vrot.lane.b32.xlu0 %v572, 64
      %v1606 = vpop.permute.xlu0 %1605
      %1607 = vrot.lane.b32.xlu0 %v578, 64
      %v1608 = vpop.permute.xlu0 %1607
      %1609 = vrot.lane.b32.xlu0 %v584, 64
      %v1610 = vpop.permute.xlu0 %1609
      %1611 = vrot.lane.b32.xlu0 %v574, 64
      %v1612 = vpop.permute.xlu0 %1611
      %1613 = vrot.lane.b32.xlu0 %v580, 64
      %v1614 = vpop.permute.xlu0 %1613
      %1615 = vrot.lane.b32.xlu0 %v586, 64
      %v1616 = vpop.permute.xlu0 %1615
      %v1617 = vsel %vm668, %v1606, 0
      %v1619 = vsel %vm668, %v1608, 0
      %v1621 = vsel %vm668, %v1610, 0
      %v1623 = vsel %vm668, %v1612, 0
      %v1625 = vsel %vm668, %v1614, 0
      %v1627 = vsel %vm668, %v1616, 0
      %1629 = vmatprep.subr.mxu0 0.0
      %1630 = vmatpush1.xpose.msra.mxu0 %v1623
      %1631 = vmatprep.subr.mxu0 0.0
      %1632 = vmatpush1.xpose.msra.mxu0 %v1625
      %1633 = vmatprep.subr.mxu0 0.0
      %1634 = vmatpush1.xpose.msra.mxu0 %v1627
      %1635 = vmatprep.subr.mxu0 0.0
      %1636 = vmatpush1.xpose.msra.mxu0 0.0
      %1637 = vmatprep.subr.mxu0 0.0
      %1638 = vmatpush1.xpose.msra.mxu0 0.0
      %1639 = vmatprep.subr.mxu0 0.0
      %1640 = vmatpush1.xpose.msra.mxu0 0.0
      %1641 = vmatprep.subr.mxu0 0.0
      %1642 = vmatpush1.xpose.msra.mxu0 0.0
      %1643 = vmatprep.subr.mxu0 0.0
      %1644 = vmatpush1.xpose.msra.mxu0 0.0
      %1645 = vmatprep.subr.mxu0 0.0
      %1646 = vmatpush1.xpose.msra.mxu0 0.0
      %1647 = vmatprep.subr.mxu0 0.0
      %1648 = vmatpush1.xpose.msra.mxu0 0.0
      %1649 = vmatprep.subr.mxu0 0.0
      %1650 = vmatpush1.xpose.msra.mxu0 0.0
      %1651 = vmatprep.subr.mxu0 0.0
      %1652 = vmatpush1.xpose.msra.mxu0 0.0
      %1653 = vmatprep.subr.mxu0 0.0
      %1654 = vmatpush1.xpose.msra.mxu0 0.0
      %1655 = vmatprep.subr.mxu0 0.0
      %1656 = vmatpush1.xpose.msra.mxu0 0.0
      %1657 = vmatprep.subr.mxu0 0.0
      %1658 = vmatpush1.xpose.msra.mxu0 0.0
      %1659 = vmatprep.subr.mxu0 0.0
      %1660 = vmatpush1.xpose.msra.mxu0 0.0
      %1661 = vmatprep.subr.mxu0 0.0
      %1662 = vmatpush1.xpose.msra.mxu0 0.0
      %1663 = vmatprep.subr.mxu0 0.0
      %1664 = vmatpush1.xpose.msra.mxu0 0.0
      %1665 = vmatprep.subr.mxu0 0.0
      %1666 = vmatpush1.xpose.msra.mxu0 0.0
      %1667 = vmatprep.subr.mxu0 0.0
      %1668 = vmatpush1.xpose.msra.mxu0 0.0
      %1669 = vmatprep.subr.mxu0 0.0
      %1670 = vmatpush1.xpose.msra.mxu0 0.0
      %1671 = vmatprep.subr.mxu0 0.0
      %1672 = vmatpush1.xpose.msra.mxu0 0.0
      %1673 = vmatprep.subr.mxu0 0.0
      %1674 = vmatpush1.xpose.msra.mxu0 0.0
      %1675 = vmatprep.subr.mxu0 0.0
      %1676 = vmatpush1.xpose.msra.mxu0 0.0
      %1677 = vmatprep.subr.mxu0 0.0
      %1678 = vmatpush1.xpose.msra.mxu0 0.0
      %1679 = vmatprep.subr.mxu0 0.0
      %1680 = vmatpush1.xpose.msra.mxu0 0.0
      %1681 = vmatprep.subr.mxu0 0.0
      %1682 = vmatpush1.xpose.msra.mxu0 0.0
      %1683 = vmatprep.subr.mxu0 0.0
      %1684 = vmatpush1.xpose.msra.mxu0 0.0
      %1685 = vmatprep.subr.mxu0 0.0
      %1686 = vmatpush1.xpose.msra.mxu0 0.0
      %1687 = vmatprep.subr.mxu0 0.0
      %1688 = vmatpush1.xpose.msra.mxu0 0.0
      %1689 = vmatprep.subr.mxu0 0.0
      %1690 = vmatpush1.xpose.msra.mxu0 0.0
      %1691 = vmatprep.subr.mxu0 0.0
      %1692 = vmatpush1.xpose.msra.mxu0 0.0
      %1693 = vmatprep.mubr.f32.mxu0 0.0
      %1694 = vmatmul.mubr.f32.gmra.mrb[0].mxu0 %v1617
      %v1695 = vpop.f32.mrb[0].mxu0
      %v1696 = vadd.f32 0.0, %v1695
      %v1697 = vpop.f32.mrb[0].mxu0
      %1698 = vmatprep.mubr.f32.mxu0 0.0
      %1699 = vmatmul.mubr.f32.gmra.mrb[0].mxu0 %v1619
      %v1700 = vpop.f32.mrb[0].mxu0
      %v1701 = vadd.f32 0.0, %v1700
      %v1702 = vpop.f32.mrb[0].mxu0
      %1703 = vmatprep.mubr.f32.mxu0 0.0
      %1704 = vmatmul.mubr.f32.gmra.mrb[0].mxu0 %v1621
      %v1705 = vpop.f32.mrb[0].mxu0
      %v1706 = vadd.f32 0.0, %v1705
      %v1707 = vpop.f32.mrb[0].mxu0
      %1708 = vdwg.mxu0
      %v1709 = vsel %vm767, %v1696, -inf
      %1710 = vmax.xlane.f32.xlu0 %v1709
      %v1711 = vpop.xlane.xlu0 %1710
      %v1712 = vsel %vm767, %v1701, -inf
      %1713 = vmax.xlane.f32.xlu0 %v1712
      %v1714 = vpop.xlane.xlu0 %1713
      %v1715 = vsel %vm774, %v1706, -inf
      %1716 = vmax.xlane.f32.xlu0 %v1715
      %v1717 = vpop.xlane.xlu0 %1716
      %v1718 = vsub.f32 %v1696, %v1711
      %v1719 = vsub.f32 %v1701, %v1714
      %v1720 = vsub.f32 %v1706, %v1717
      %v1721 = vmul.f32 %v1718, 1.442695
      %v1722 = vpow.pop %v1721
      %v1723 = vmul.f32 %v1719, 1.442695
      %v1724 = vpow.pop %v1723
      %v1725 = vmul.f32 %v1720, 1.442695
      %v1726 = vpow.pop %v1725
      %v1727 = vsel %vm767, %v1722, 0.0
      %1728 = vadd.xlane.f32.xlu0 %v1727
      %v1729 = vpop.xlane.xlu0 %1728
      %v1730 = vsel %vm767, %v1724, 0.0
      %1731 = vadd.xlane.f32.xlu0 %v1730
      %v1732 = vpop.xlane.xlu0 %1731
      %v1733 = vsel %vm774, %v1726, 0.0
      %1734 = vadd.xlane.f32.xlu0 %v1733
      %v1735 = vpop.xlane.xlu0 %1734
      %v1736 = vrcp.pop %v1729
      %v1737 = vrcp.pop %v1732
      %v1738 = vrcp.pop %v1735
      %v1739 = vmul.f32 %v1722, %v1736
      %v1740 = vmul.f32 %v1724, %v1737
      %v1741 = vmul.f32 %v1726, %v1738
      %1742 = vrot.lane.b32.xlu0 %v655, 64
      %v1743 = vpop.permute.xlu0 %1742
      %1744 = vrot.lane.b32.xlu0 %v660, 64
      %v1745 = vpop.permute.xlu0 %1744
      %1746 = vrot.lane.b32.xlu0 %v665, 64
      %v1747 = vpop.permute.xlu0 %1746
      %v1751 = vsel %vm767, %v1739, 0
      %v1754 = vsel %vm767, %v1740, 0
      %v1757 = vsel %vm767, %v1741, 0
      %v1759 = vsel %vm811, %v1747, 0
      %1761 = vmatprep.subr.mxu0 0.0
      %1762 = vmatpush1.msra.mxu0 %v1743
      %1763 = vmatprep.subr.mxu0 0.0
      %1764 = vmatpush1.msra.mxu0 %v1745
      %1765 = vmatprep.subr.mxu0 0.0
      %1766 = vmatpush1.msra.mxu0 %v1759
      %1767 = vmatprep.subr.mxu0 0.0
      %1768 = vmatpush1.msra.mxu0 0.0
      %1769 = vmatprep.subr.mxu0 0.0
      %1770 = vmatpush1.msra.mxu0 0.0
      %1771 = vmatprep.subr.mxu0 0.0
      %1772 = vmatpush1.msra.mxu0 0.0
      %1773 = vmatprep.subr.mxu0 0.0
      %1774 = vmatpush1.msra.mxu0 0.0
      %1775 = vmatprep.subr.mxu0 0.0
      %1776 = vmatpush1.msra.mxu0 0.0
      %1777 = vmatprep.subr.mxu0 0.0
      %1778 = vmatpush1.msra.mxu0 0.0
      %1779 = vmatprep.subr.mxu0 0.0
      %1780 = vmatpush1.msra.mxu0 0.0
      %1781 = vmatprep.subr.mxu0 0.0
      %1782 = vmatpush1.msra.mxu0 0.0
      %1783 = vmatprep.subr.mxu0 0.0
      %1784 = vmatpush1.msra.mxu0 0.0
      %1785 = vmatprep.subr.mxu0 0.0
      %1786 = vmatpush1.msra.mxu0 0.0
      %1787 = vmatprep.subr.mxu0 0.0
      %1788 = vmatpush1.msra.mxu0 0.0
      %1789 = vmatprep.subr.mxu0 0.0
      %1790 = vmatpush1.msra.mxu0 0.0
      %1791 = vmatprep.subr.mxu0 0.0
      %1792 = vmatpush1.msra.mxu0 0.0
      %1793 = vmatprep.subr.mxu0 0.0
      %1794 = vmatpush1.msra.mxu0 0.0
      %1795 = vmatprep.subr.mxu0 0.0
      %1796 = vmatpush1.msra.mxu0 0.0
      %1797 = vmatprep.subr.mxu0 0.0
      %1798 = vmatpush1.msra.mxu0 0.0
      %1799 = vmatprep.subr.mxu0 0.0
      %1800 = vmatpush1.msra.mxu0 0.0
      %1801 = vmatprep.subr.mxu0 0.0
      %1802 = vmatpush1.msra.mxu0 0.0
      %1803 = vmatprep.subr.mxu0 0.0
      %1804 = vmatpush1.msra.mxu0 0.0
      %1805 = vmatprep.subr.mxu0 0.0
      %1806 = vmatpush1.msra.mxu0 0.0
      %1807 = vmatprep.subr.mxu0 0.0
      %1808 = vmatpush1.msra.mxu0 0.0
      %1809 = vmatprep.subr.mxu0 0.0
      %1810 = vmatpush1.msra.mxu0 0.0
      %1811 = vmatprep.subr.mxu0 0.0
      %1812 = vmatpush1.msra.mxu0 0.0
      %1813 = vmatprep.subr.mxu0 0.0
      %1814 = vmatpush1.msra.mxu0 0.0
      %1815 = vmatprep.subr.mxu0 0.0
      %1816 = vmatpush1.msra.mxu0 0.0
      %1817 = vmatprep.subr.mxu0 0.0
      %1818 = vmatpush1.msra.mxu0 0.0
      %1819 = vmatprep.subr.mxu0 0.0
      %1820 = vmatpush1.msra.mxu0 0.0
      %1821 = vmatprep.subr.mxu0 0.0
      %1822 = vmatpush1.msra.mxu0 0.0
      %1823 = vmatprep.subr.mxu0 0.0
      %1824 = vmatpush1.msra.mxu0 0.0
      %1825 = vmatprep.mubr.f32.mxu0 0.0
      %1826 = vmatmul.mubr.f32.gmra.mrb[0].mxu0 %v1751
      %v1827 = vpop.f32.mrb[0].mxu0
      %v1828 = vadd.f32 0.0, %v1827
      %v1829 = vpop.f32.mrb[0].mxu0
      %1830 = vmatprep.mubr.f32.mxu0 0.0
      %1831 = vmatmul.mubr.f32.gmra.mrb[0].mxu0 %v1754
      %v1832 = vpop.f32.mrb[0].mxu0
      %v1833 = vadd.f32 0.0, %v1832
      %v1834 = vpop.f32.mrb[0].mxu0
      %1835 = vmatprep.mubr.f32.mxu0 0.0
      %1836 = vmatmul.mubr.f32.gmra.mrb[0].mxu0 %v1757
      %v1837 = vpop.f32.mrb[0].mxu0
      %v1838 = vadd.f32 0.0, %v1837
      %v1839 = vpop.f32.mrb[0].mxu0
      %1840 = vdwg.mxu0
      %1841 = vrot.lane.b32.xlu0 %v572, 48
      %v1842 = vpop.permute.xlu0 %1841
      %1843 = vrot.lane.b32.xlu0 %v578, 48
      %v1844 = vpop.permute.xlu0 %1843
      %1845 = vrot.lane.b32.xlu0 %v584, 48
      %v1846 = vpop.permute.xlu0 %1845
      %1847 = vrot.lane.b32.xlu0 %v574, 48
      %v1848 = vpop.permute.xlu0 %1847
      %1849 = vrot.lane.b32.xlu0 %v580, 48
      %v1850 = vpop.permute.xlu0 %1849
      %1851 = vrot.lane.b32.xlu0 %v586, 48
      %v1852 = vpop.permute.xlu0 %1851
      %v1853 = vsel %vm668, %v1842, 0
      %v1855 = vsel %vm668, %v1844, 0
      %v1857 = vsel %vm668, %v1846, 0
      %v1859 = vsel %vm668, %v1848, 0
      %v1861 = vsel %vm668, %v1850, 0
      %v1863 = vsel %vm668, %v1852, 0
      %1865 = vmatprep.subr.mxu0 0.0
      %1866 = vmatpush1.xpose.msra.mxu0 %v1859
      %1867 = vmatprep.subr.mxu0 0.0
      %1868 = vmatpush1.xpose.msra.mxu0 %v1861
      %1869 = vmatprep.subr.mxu0 0.0
      %1870 = vmatpush1.xpose.msra.mxu0 %v1863
      %1871 = vmatprep.subr.mxu0 0.0
      %1872 = vmatpush1.xpose.msra.mxu0 0.0
      %1873 = vmatprep.subr.mxu0 0.0
      %1874 = vmatpush1.xpose.msra.mxu0 0.0
      %1875 = vmatprep.subr.mxu0 0.0
      %1876 = vmatpush1.xpose.msra.mxu0 0.0
      %1877 = vmatprep.subr.mxu0 0.0
      %1878 = vmatpush1.xpose.msra.mxu0 0.0
      %1879 = vmatprep.subr.mxu0 0.0
      %1880 = vmatpush1.xpose.msra.mxu0 0.0
      %1881 = vmatprep.subr.mxu0 0.0
      %1882 = vmatpush1.xpose.msra.mxu0 0.0
      %1883 = vmatprep.subr.mxu0 0.0
      %1884 = vmatpush1.xpose.msra.mxu0 0.0
      %1885 = vmatprep.subr.mxu0 0.0
      %1886 = vmatpush1.xpose.msra.mxu0 0.0
      %1887 = vmatprep.subr.mxu0 0.0
      %1888 = vmatpush1.xpose.msra.mxu0 0.0
      %1889 = vmatprep.subr.mxu0 0.0
      %1890 = vmatpush1.xpose.msra.mxu0 0.0
      %1891 = vmatprep.subr.mxu0 0.0
      %1892 = vmatpush1.xpose.msra.mxu0 0.0
      %1893 = vmatprep.subr.mxu0 0.0
      %1894 = vmatpush1.xpose.msra.mxu0 0.0
      %1895 = vmatprep.subr.mxu0 0.0
      %1896 = vmatpush1.xpose.msra.mxu0 0.0
      %1897 = vmatprep.subr.mxu0 0.0
      %1898 = vmatpush1.xpose.msra.mxu0 0.0
      %1899 = vmatprep.subr.mxu0 0.0
      %1900 = vmatpush1.xpose.msra.mxu0 0.0
      %1901 = vmatprep.subr.mxu0 0.0
      %1902 = vmatpush1.xpose.msra.mxu0 0.0
      %1903 = vmatprep.subr.mxu0 0.0
      %1904 = vmatpush1.xpose.msra.mxu0 0.0
      %1905 = vmatprep.subr.mxu0 0.0
      %1906 = vmatpush1.xpose.msra.mxu0 0.0
      %1907 = vmatprep.subr.mxu0 0.0
      %1908 = vmatpush1.xpose.msra.mxu0 0.0
      %1909 = vmatprep.subr.mxu0 0.0
      %1910 = vmatpush1.xpose.msra.mxu0 0.0
      %1911 = vmatprep.subr.mxu0 0.0
      %1912 = vmatpush1.xpose.msra.mxu0 0.0
      %1913 = vmatprep.subr.mxu0 0.0
      %1914 = vmatpush1.xpose.msra.mxu0 0.0
      %1915 = vmatprep.subr.mxu0 0.0
      %1916 = vmatpush1.xpose.msra.mxu0 0.0
      %1917 = vmatprep.subr.mxu0 0.0
      %1918 = vmatpush1.xpose.msra.mxu0 0.0
      %1919 = vmatprep.subr.mxu0 0.0
      %1920 = vmatpush1.xpose.msra.mxu0 0.0
      %1921 = vmatprep.subr.mxu0 0.0
      %1922 = vmatpush1.xpose.msra.mxu0 0.0
      %1923 = vmatprep.subr.mxu0 0.0
      %1924 = vmatpush1.xpose.msra.mxu0 0.0
      %1925 = vmatprep.subr.mxu0 0.0
      %1926 = vmatpush1.xpose.msra.mxu0 0.0
      %1927 = vmatprep.subr.mxu0 0.0
      %1928 = vmatpush1.xpose.msra.mxu0 0.0
      %1929 = vmatprep.mubr.f32.mxu0 0.0
      %1930 = vmatmul.mubr.f32.gmra.mrb[0].mxu0 %v1853
      %v1931 = vpop.f32.mrb[0].mxu0
      %v1932 = vadd.f32 0.0, %v1931
      %v1933 = vpop.f32.mrb[0].mxu0
      %1934 = vmatprep.mubr.f32.mxu0 0.0
      %1935 = vmatmul.mubr.f32.gmra.mrb[0].mxu0 %v1855
      %v1936 = vpop.f32.mrb[0].mxu0
      %v1937 = vadd.f32 0.0, %v1936
      %v1938 = vpop.f32.mrb[0].mxu0
      %1939 = vmatprep.mubr.f32.mxu0 0.0
      %1940 = vmatmul.mubr.f32.gmra.mrb[0].mxu0 %v1857
      %v1941 = vpop.f32.mrb[0].mxu0
      %v1942 = vadd.f32 0.0, %v1941
      %v1943 = vpop.f32.mrb[0].mxu0
      %1944 = vdwg.mxu0
      %v1945 = vsel %vm767, %v1932, -inf
      %1946 = vmax.xlane.f32.xlu0 %v1945
      %v1947 = vpop.xlane.xlu0 %1946
      %v1948 = vsel %vm767, %v1937, -inf
      %1949 = vmax.xlane.f32.xlu0 %v1948
      %v1950 = vpop.xlane.xlu0 %1949
      %v1951 = vsel %vm774, %v1942, -inf
      %1952 = vmax.xlane.f32.xlu0 %v1951
      %v1953 = vpop.xlane.xlu0 %1952
      %v1954 = vsub.f32 %v1932, %v1947
      %v1955 = vsub.f32 %v1937, %v1950
      %v1956 = vsub.f32 %v1942, %v1953
      %v1957 = vmul.f32 %v1954, 1.442695
      %v1958 = vpow.pop %v1957
      %v1959 = vmul.f32 %v1955, 1.442695
      %v1960 = vpow.pop %v1959
      %v1961 = vmul.f32 %v1956, 1.442695
      %v1962 = vpow.pop %v1961
      %v1963 = vsel %vm767, %v1958, 0.0
      %1964 = vadd.xlane.f32.xlu0 %v1963
      %v1965 = vpop.xlane.xlu0 %1964
      %v1966 = vsel %vm767, %v1960, 0.0
      %1967 = vadd.xlane.f32.xlu0 %v1966
      %v1968 = vpop.xlane.xlu0 %1967
      %v1969 = vsel %vm774, %v1962, 0.0
      %1970 = vadd.xlane.f32.xlu0 %v1969
      %v1971 = vpop.xlane.xlu0 %1970
      %v1972 = vrcp.pop %v1965
      %v1973 = vrcp.pop %v1968
      %v1974 = vrcp.pop %v1971
      %v1975 = vmul.f32 %v1958, %v1972
      %v1976 = vmul.f32 %v1960, %v1973
      %v1977 = vmul.f32 %v1962, %v1974
      %1978 = vrot.lane.b32.xlu0 %v655, 48
      %v1979 = vpop.permute.xlu0 %1978
      %1980 = vrot.lane.b32.xlu0 %v660, 48
      %v1981 = vpop.permute.xlu0 %1980
      %1982 = vrot.lane.b32.xlu0 %v665, 48
      %v1983 = vpop.permute.xlu0 %1982
      %v1987 = vsel %vm767, %v1975, 0
      %v1990 = vsel %vm767, %v1976, 0
      %v1993 = vsel %vm767, %v1977, 0
      %v1995 = vsel %vm811, %v1983, 0
      %1997 = vmatprep.subr.mxu0 0.0
      %1998 = vmatpush1.msra.mxu0 %v1979
      %1999 = vmatprep.subr.mxu0 0.0
      %2000 = vmatpush1.msra.mxu0 %v1981
      %2001 = vmatprep.subr.mxu0 0.0
      %2002 = vmatpush1.msra.mxu0 %v1995
      %2003 = vmatprep.subr.mxu0 0.0
      %2004 = vmatpush1.msra.mxu0 0.0
      %2005 = vmatprep.subr.mxu0 0.0
      %2006 = vmatpush1.msra.mxu0 0.0
      %2007 = vmatprep.subr.mxu0 0.0
      %2008 = vmatpush1.msra.mxu0 0.0
      %2009 = vmatprep.subr.mxu0 0.0
      %2010 = vmatpush1.msra.mxu0 0.0
      %2011 = vmatprep.subr.mxu0 0.0
      %2012 = vmatpush1.msra.mxu0 0.0
      %2013 = vmatprep.subr.mxu0 0.0
      %2014 = vmatpush1.msra.mxu0 0.0
      %2015 = vmatprep.subr.mxu0 0.0
      %2016 = vmatpush1.msra.mxu0 0.0
      %2017 = vmatprep.subr.mxu0 0.0
      %2018 = vmatpush1.msra.mxu0 0.0
      %2019 = vmatprep.subr.mxu0 0.0
      %2020 = vmatpush1.msra.mxu0 0.0
      %2021 = vmatprep.subr.mxu0 0.0
      %2022 = vmatpush1.msra.mxu0 0.0
      %2023 = vmatprep.subr.mxu0 0.0
      %2024 = vmatpush1.msra.mxu0 0.0
      %2025 = vmatprep.subr.mxu0 0.0
      %2026 = vmatpush1.msra.mxu0 0.0
      %2027 = vmatprep.subr.mxu0 0.0
      %2028 = vmatpush1.msra.mxu0 0.0
      %2029 = vmatprep.subr.mxu0 0.0
      %2030 = vmatpush1.msra.mxu0 0.0
      %2031 = vmatprep.subr.mxu0 0.0
      %2032 = vmatpush1.msra.mxu0 0.0
      %2033 = vmatprep.subr.mxu0 0.0
      %2034 = vmatpush1.msra.mxu0 0.0
      %2035 = vmatprep.subr.mxu0 0.0
      %2036 = vmatpush1.msra.mxu0 0.0
      %2037 = vmatprep.subr.mxu0 0.0
      %2038 = vmatpush1.msra.mxu0 0.0
      %2039 = vmatprep.subr.mxu0 0.0
      %2040 = vmatpush1.msra.mxu0 0.0
      %2041 = vmatprep.subr.mxu0 0.0
      %2042 = vmatpush1.msra.mxu0 0.0
      %2043 = vmatprep.subr.mxu0 0.0
      %2044 = vmatpush1.msra.mxu0 0.0
      %2045 = vmatprep.subr.mxu0 0.0
      %2046 = vmatpush1.msra.mxu0 0.0
      %2047 = vmatprep.subr.mxu0 0.0
      %2048 = vmatpush1.msra.mxu0 0.0
      %2049 = vmatprep.subr.mxu0 0.0
      %2050 = vmatpush1.msra.mxu0 0.0
      %2051 = vmatprep.subr.mxu0 0.0
      %2052 = vmatpush1.msra.mxu0 0.0
      %2053 = vmatprep.subr.mxu0 0.0
      %2054 = vmatpush1.msra.mxu0 0.0
      %2055 = vmatprep.subr.mxu0 0.0
      %2056 = vmatpush1.msra.mxu0 0.0
      %2057 = vmatprep.subr.mxu0 0.0
      %2058 = vmatpush1.msra.mxu0 0.0
      %2059 = vmatprep.subr.mxu0 0.0
      %2060 = vmatpush1.msra.mxu0 0.0
      %2061 = vmatprep.mubr.f32.mxu0 0.0
      %2062 = vmatmul.mubr.f32.gmra.mrb[0].mxu0 %v1987
      %v2063 = vpop.f32.mrb[0].mxu0
      %v2064 = vadd.f32 0.0, %v2063
      %v2065 = vpop.f32.mrb[0].mxu0
      %2066 = vmatprep.mubr.f32.mxu0 0.0
      %2067 = vmatmul.mubr.f32.gmra.mrb[0].mxu0 %v1990
      %v2068 = vpop.f32.mrb[0].mxu0
      %v2069 = vadd.f32 0.0, %v2068
      %v2070 = vpop.f32.mrb[0].mxu0
      %2071 = vmatprep.mubr.f32.mxu0 0.0
      %2072 = vmatmul.mubr.f32.gmra.mrb[0].mxu0 %v1993
      %v2073 = vpop.f32.mrb[0].mxu0
      %v2074 = vadd.f32 0.0, %v2073
      %v2075 = vpop.f32.mrb[0].mxu0
      %2076 = vdwg.mxu0
      %2077 = vrot.lane.b32.xlu0 %v572, 32
      %v2078 = vpop.permute.xlu0 %2077
      %2079 = vrot.lane.b32.xlu0 %v578, 32
      %v2080 = vpop.permute.xlu0 %2079
      %2081 = vrot.lane.b32.xlu0 %v584, 32
      %v2082 = vpop.permute.xlu0 %2081
      %2083 = vrot.lane.b32.xlu0 %v574, 32
      %v2084 = vpop.permute.xlu0 %2083
      %2085 = vrot.lane.b32.xlu0 %v580, 32
      %v2086 = vpop.permute.xlu0 %2085
      %2087 = vrot.lane.b32.xlu0 %v586, 32
      %v2088 = vpop.permute.xlu0 %2087
      %v2089 = vsel %vm668, %v2078, 0
      %v2091 = vsel %vm668, %v2080, 0
      %v2093 = vsel %vm668, %v2082, 0
      %v2095 = vsel %vm668, %v2084, 0
      %v2097 = vsel %vm668, %v2086, 0
      %v2099 = vsel %vm668, %v2088, 0
      %2101 = vmatprep.subr.mxu0 0.0
      %2102 = vmatpush1.xpose.msra.mxu0 %v2095
      %2103 = vmatprep.subr.mxu0 0.0
      %2104 = vmatpush1.xpose.msra.mxu0 %v2097
      %2105 = vmatprep.subr.mxu0 0.0
      %2106 = vmatpush1.xpose.msra.mxu0 %v2099
      %2107 = vmatprep.subr.mxu0 0.0
      %2108 = vmatpush1.xpose.msra.mxu0 0.0
      %2109 = vmatprep.subr.mxu0 0.0
      %2110 = vmatpush1.xpose.msra.mxu0 0.0
      %2111 = vmatprep.subr.mxu0 0.0
      %2112 = vmatpush1.xpose.msra.mxu0 0.0
      %2113 = vmatprep.subr.mxu0 0.0
      %2114 = vmatpush1.xpose.msra.mxu0 0.0
      %2115 = vmatprep.subr.mxu0 0.0
      %2116 = vmatpush1.xpose.msra.mxu0 0.0
      %2117 = vmatprep.subr.mxu0 0.0
      %2118 = vmatpush1.xpose.msra.mxu0 0.0
      %2119 = vmatprep.subr.mxu0 0.0
      %2120 = vmatpush1.xpose.msra.mxu0 0.0
      %2121 = vmatprep.subr.mxu0 0.0
      %2122 = vmatpush1.xpose.msra.mxu0 0.0
      %2123 = vmatprep.subr.mxu0 0.0
      %2124 = vmatpush1.xpose.msra.mxu0 0.0
      %2125 = vmatprep.subr.mxu0 0.0
      %2126 = vmatpush1.xpose.msra.mxu0 0.0
      %2127 = vmatprep.subr.mxu0 0.0
      %2128 = vmatpush1.xpose.msra.mxu0 0.0
      %2129 = vmatprep.subr.mxu0 0.0
      %2130 = vmatpush1.xpose.msra.mxu0 0.0
      %2131 = vmatprep.subr.mxu0 0.0
      %2132 = vmatpush1.xpose.msra.mxu0 0.0
      %2133 = vmatprep.subr.mxu0 0.0
      %2134 = vmatpush1.xpose.msra.mxu0 0.0
      %2135 = vmatprep.subr.mxu0 0.0
      %2136 = vmatpush1.xpose.msra.mxu0 0.0
      %2137 = vmatprep.subr.mxu0 0.0
      %2138 = vmatpush1.xpose.msra.mxu0 0.0
      %2139 = vmatprep.subr.mxu0 0.0
      %2140 = vmatpush1.xpose.msra.mxu0 0.0
      %2141 = vmatprep.subr.mxu0 0.0
      %2142 = vmatpush1.xpose.msra.mxu0 0.0
      %2143 = vmatprep.subr.mxu0 0.0
      %2144 = vmatpush1.xpose.msra.mxu0 0.0
      %2145 = vmatprep.subr.mxu0 0.0
      %2146 = vmatpush1.xpose.msra.mxu0 0.0
      %2147 = vmatprep.subr.mxu0 0.0
      %2148 = vmatpush1.xpose.msra.mxu0 0.0
      %2149 = vmatprep.subr.mxu0 0.0
      %2150 = vmatpush1.xpose.msra.mxu0 0.0
      %2151 = vmatprep.subr.mxu0 0.0
      %2152 = vmatpush1.xpose.msra.mxu0 0.0
      %2153 = vmatprep.subr.mxu0 0.0
      %2154 = vmatpush1.xpose.msra.mxu0 0.0
      %2155 = vmatprep.subr.mxu0 0.0
      %2156 = vmatpush1.xpose.msra.mxu0 0.0
      %2157 = vmatprep.subr.mxu0 0.0
      %2158 = vmatpush1.xpose.msra.mxu0 0.0
      %2159 = vmatprep.subr.mxu0 0.0
      %2160 = vmatpush1.xpose.msra.mxu0 0.0
      %2161 = vmatprep.subr.mxu0 0.0
      %2162 = vmatpush1.xpose.msra.mxu0 0.0
      %2163 = vmatprep.subr.mxu0 0.0
      %2164 = vmatpush1.xpose.msra.mxu0 0.0
      %2165 = vmatprep.mubr.f32.mxu0 0.0
      %2166 = vmatmul.mubr.f32.gmra.mrb[0].mxu0 %v2089
      %v2167 = vpop.f32.mrb[0].mxu0
      %v2168 = vadd.f32 0.0, %v2167
      %v2169 = vpop.f32.mrb[0].mxu0
      %2170 = vmatprep.mubr.f32.mxu0 0.0
      %2171 = vmatmul.mubr.f32.gmra.mrb[0].mxu0 %v2091
      %v2172 = vpop.f32.mrb[0].mxu0
      %v2173 = vadd.f32 0.0, %v2172
      %v2174 = vpop.f32.mrb[0].mxu0
      %2175 = vmatprep.mubr.f32.mxu0 0.0
      %2176 = vmatmul.mubr.f32.gmra.mrb[0].mxu0 %v2093
      %v2177 = vpop.f32.mrb[0].mxu0
      %v2178 = vadd.f32 0.0, %v2177
      %v2179 = vpop.f32.mrb[0].mxu0
      %2180 = vdwg.mxu0
      %v2181 = vsel %vm767, %v2168, -inf
      %2182 = vmax.xlane.f32.xlu0 %v2181
      %v2183 = vpop.xlane.xlu0 %2182
      %v2184 = vsel %vm767, %v2173, -inf
      %2185 = vmax.xlane.f32.xlu0 %v2184
      %v2186 = vpop.xlane.xlu0 %2185
      %v2187 = vsel %vm774, %v2178, -inf
      %2188 = vmax.xlane.f32.xlu0 %v2187
      %v2189 = vpop.xlane.xlu0 %2188
      %v2190 = vsub.f32 %v2168, %v2183
      %v2191 = vsub.f32 %v2173, %v2186
      %v2192 = vsub.f32 %v2178, %v2189
      %v2193 = vmul.f32 %v2190, 1.442695
      %v2194 = vpow.pop %v2193
      %v2195 = vmul.f32 %v2191, 1.442695
      %v2196 = vpow.pop %v2195
      %v2197 = vmul.f32 %v2192, 1.442695
      %v2198 = vpow.pop %v2197
      %v2199 = vsel %vm767, %v2194, 0.0
      %2200 = vadd.xlane.f32.xlu0 %v2199
      %v2201 = vpop.xlane.xlu0 %2200
      %v2202 = vsel %vm767, %v2196, 0.0
      %2203 = vadd.xlane.f32.xlu0 %v2202
      %v2204 = vpop.xlane.xlu0 %2203
      %v2205 = vsel %vm774, %v2198, 0.0
      %2206 = vadd.xlane.f32.xlu0 %v2205
      %v2207 = vpop.xlane.xlu0 %2206
      %v2208 = vrcp.pop %v2201
      %v2209 = vrcp.pop %v2204
      %v2210 = vrcp.pop %v2207
      %v2211 = vmul.f32 %v2194, %v2208
      %v2212 = vmul.f32 %v2196, %v2209
      %v2213 = vmul.f32 %v2198, %v2210
      %2214 = vrot.lane.b32.xlu0 %v655, 32
      %v2215 = vpop.permute.xlu0 %2214
      %2216 = vrot.lane.b32.xlu0 %v660, 32
      %v2217 = vpop.permute.xlu0 %2216
      %2218 = vrot.lane.b32.xlu0 %v665, 32
      %v2219 = vpop.permute.xlu0 %2218
      %v2223 = vsel %vm767, %v2211, 0
      %v2226 = vsel %vm767, %v2212, 0
      %v2229 = vsel %vm767, %v2213, 0
      %v2231 = vsel %vm811, %v2219, 0
      %2233 = vmatprep.subr.mxu0 0.0
      %2234 = vmatpush1.msra.mxu0 %v2215
      %2235 = vmatprep.subr.mxu0 0.0
      %2236 = vmatpush1.msra.mxu0 %v2217
      %2237 = vmatprep.subr.mxu0 0.0
      %2238 = vmatpush1.msra.mxu0 %v2231
      %2239 = vmatprep.subr.mxu0 0.0
      %2240 = vmatpush1.msra.mxu0 0.0
      %2241 = vmatprep.subr.mxu0 0.0
      %2242 = vmatpush1.msra.mxu0 0.0
      %2243 = vmatprep.subr.mxu0 0.0
      %2244 = vmatpush1.msra.mxu0 0.0
      %2245 = vmatprep.subr.mxu0 0.0
      %2246 = vmatpush1.msra.mxu0 0.0
      %2247 = vmatprep.subr.mxu0 0.0
      %2248 = vmatpush1.msra.mxu0 0.0
      %2249 = vmatprep.subr.mxu0 0.0
      %2250 = vmatpush1.msra.mxu0 0.0
      %2251 = vmatprep.subr.mxu0 0.0
      %2252 = vmatpush1.msra.mxu0 0.0
      %2253 = vmatprep.subr.mxu0 0.0
      %2254 = vmatpush1.msra.mxu0 0.0
      %2255 = vmatprep.subr.mxu0 0.0
      %2256 = vmatpush1.msra.mxu0 0.0
      %2257 = vmatprep.subr.mxu0 0.0
      %2258 = vmatpush1.msra.mxu0 0.0
      %2259 = vmatprep.subr.mxu0 0.0
      %2260 = vmatpush1.msra.mxu0 0.0
      %2261 = vmatprep.subr.mxu0 0.0
      %2262 = vmatpush1.msra.mxu0 0.0
      %2263 = vmatprep.subr.mxu0 0.0
      %2264 = vmatpush1.msra.mxu0 0.0
      %2265 = vmatprep.subr.mxu0 0.0
      %2266 = vmatpush1.msra.mxu0 0.0
      %2267 = vmatprep.subr.mxu0 0.0
      %2268 = vmatpush1.msra.mxu0 0.0
      %2269 = vmatprep.subr.mxu0 0.0
      %2270 = vmatpush1.msra.mxu0 0.0
      %2271 = vmatprep.subr.mxu0 0.0
      %2272 = vmatpush1.msra.mxu0 0.0
      %2273 = vmatprep.subr.mxu0 0.0
      %2274 = vmatpush1.msra.mxu0 0.0
      %2275 = vmatprep.subr.mxu0 0.0
      %2276 = vmatpush1.msra.mxu0 0.0
      %2277 = vmatprep.subr.mxu0 0.0
      %2278 = vmatpush1.msra.mxu0 0.0
      %2279 = vmatprep.subr.mxu0 0.0
      %2280 = vmatpush1.msra.mxu0 0.0
      %2281 = vmatprep.subr.mxu0 0.0
      %2282 = vmatpush1.msra.mxu0 0.0
      %2283 = vmatprep.subr.mxu0 0.0
      %2284 = vmatpush1.msra.mxu0 0.0
      %2285 = vmatprep.subr.mxu0 0.0
      %2286 = vmatpush1.msra.mxu0 0.0
      %2287 = vmatprep.subr.mxu0 0.0
      %2288 = vmatpush1.msra.mxu0 0.0
      %2289 = vmatprep.subr.mxu0 0.0
      %2290 = vmatpush1.msra.mxu0 0.0
      %2291 = vmatprep.subr.mxu0 0.0
      %2292 = vmatpush1.msra.mxu0 0.0
      %2293 = vmatprep.subr.mxu0 0.0
      %2294 = vmatpush1.msra.mxu0 0.0
      %2295 = vmatprep.subr.mxu0 0.0
      %2296 = vmatpush1.msra.mxu0 0.0
      %2297 = vmatprep.mubr.f32.mxu0 0.0
      %2298 = vmatmul.mubr.f32.gmra.mrb[0].mxu0 %v2223
      %v2299 = vpop.f32.mrb[0].mxu0
      %v2300 = vadd.f32 0.0, %v2299
      %v2301 = vpop.f32.mrb[0].mxu0
      %2302 = vmatprep.mubr.f32.mxu0 0.0
      %2303 = vmatmul.mubr.f32.gmra.mrb[0].mxu0 %v2226
      %v2304 = vpop.f32.mrb[0].mxu0
      %v2305 = vadd.f32 0.0, %v2304
      %v2306 = vpop.f32.mrb[0].mxu0
      %2307 = vmatprep.mubr.f32.mxu0 0.0
      %2308 = vmatmul.mubr.f32.gmra.mrb[0].mxu0 %v2229
      %v2309 = vpop.f32.mrb[0].mxu0
      %v2310 = vadd.f32 0.0, %v2309
      %v2311 = vpop.f32.mrb[0].mxu0
      %2312 = vdwg.mxu0
      %2313 = vrot.lane.b32.xlu0 %v572, 16
      %v2314 = vpop.permute.xlu0 %2313
      %2315 = vrot.lane.b32.xlu0 %v578, 16
      %v2316 = vpop.permute.xlu0 %2315
      %2317 = vrot.lane.b32.xlu0 %v584, 16
      %v2318 = vpop.permute.xlu0 %2317
      %2319 = vrot.lane.b32.xlu0 %v574, 16
      %v2320 = vpop.permute.xlu0 %2319
      %2321 = vrot.lane.b32.xlu0 %v580, 16
      %v2322 = vpop.permute.xlu0 %2321
      %2323 = vrot.lane.b32.xlu0 %v586, 16
      %v2324 = vpop.permute.xlu0 %2323
      %v2325 = vsel %vm668, %v2314, 0
      %v2327 = vsel %vm668, %v2316, 0
      %v2329 = vsel %vm668, %v2318, 0
      %v2331 = vsel %vm668, %v2320, 0
      %v2333 = vsel %vm668, %v2322, 0
      %v2335 = vsel %vm668, %v2324, 0
      %2337 = vmatprep.subr.mxu0 0.0
      %2338 = vmatpush1.xpose.msra.mxu0 %v2331
      %2339 = vmatprep.subr.mxu0 0.0
      %2340 = vmatpush1.xpose.msra.mxu0 %v2333
      %2341 = vmatprep.subr.mxu0 0.0
      %2342 = vmatpush1.xpose.msra.mxu0 %v2335
      %2343 = vmatprep.subr.mxu0 0.0
      %2344 = vmatpush1.xpose.msra.mxu0 0.0
      %2345 = vmatprep.subr.mxu0 0.0
      %2346 = vmatpush1.xpose.msra.mxu0 0.0
      %2347 = vmatprep.subr.mxu0 0.0
      %2348 = vmatpush1.xpose.msra.mxu0 0.0
      %2349 = vmatprep.subr.mxu0 0.0
      %2350 = vmatpush1.xpose.msra.mxu0 0.0
      %2351 = vmatprep.subr.mxu0 0.0
      %2352 = vmatpush1.xpose.msra.mxu0 0.0
      %2353 = vmatprep.subr.mxu0 0.0
      %2354 = vmatpush1.xpose.msra.mxu0 0.0
      %2355 = vmatprep.subr.mxu0 0.0
      %2356 = vmatpush1.xpose.msra.mxu0 0.0
      %2357 = vmatprep.subr.mxu0 0.0
      %2358 = vmatpush1.xpose.msra.mxu0 0.0
      %2359 = vmatprep.subr.mxu0 0.0
      %2360 = vmatpush1.xpose.msra.mxu0 0.0
      %2361 = vmatprep.subr.mxu0 0.0
      %2362 = vmatpush1.xpose.msra.mxu0 0.0
      %2363 = vmatprep.subr.mxu0 0.0
      %2364 = vmatpush1.xpose.msra.mxu0 0.0
      %2365 = vmatprep.subr.mxu0 0.0
      %2366 = vmatpush1.xpose.msra.mxu0 0.0
      %2367 = vmatprep.subr.mxu0 0.0
      %2368 = vmatpush1.xpose.msra.mxu0 0.0
      %2369 = vmatprep.subr.mxu0 0.0
      %2370 = vmatpush1.xpose.msra.mxu0 0.0
      %2371 = vmatprep.subr.mxu0 0.0
      %2372 = vmatpush1.xpose.msra.mxu0 0.0
      %2373 = vmatprep.subr.mxu0 0.0
      %2374 = vmatpush1.xpose.msra.mxu0 0.0
      %2375 = vmatprep.subr.mxu0 0.0
      %2376 = vmatpush1.xpose.msra.mxu0 0.0
      %2377 = vmatprep.subr.mxu0 0.0
      %2378 = vmatpush1.xpose.msra.mxu0 0.0
      %2379 = vmatprep.subr.mxu0 0.0
      %2380 = vmatpush1.xpose.msra.mxu0 0.0
      %2381 = vmatprep.subr.mxu0 0.0
      %2382 = vmatpush1.xpose.msra.mxu0 0.0
      %2383 = vmatprep.subr.mxu0 0.0
      %2384 = vmatpush1.xpose.msra.mxu0 0.0
      %2385 = vmatprep.subr.mxu0 0.0
      %2386 = vmatpush1.xpose.msra.mxu0 0.0
      %2387 = vmatprep.subr.mxu0 0.0
      %2388 = vmatpush1.xpose.msra.mxu0 0.0
      %2389 = vmatprep.subr.mxu0 0.0
      %2390 = vmatpush1.xpose.msra.mxu0 0.0
      %2391 = vmatprep.subr.mxu0 0.0
      %2392 = vmatpush1.xpose.msra.mxu0 0.0
      %2393 = vmatprep.subr.mxu0 0.0
      %2394 = vmatpush1.xpose.msra.mxu0 0.0
      %2395 = vmatprep.subr.mxu0 0.0
      %2396 = vmatpush1.xpose.msra.mxu0 0.0
      %2397 = vmatprep.subr.mxu0 0.0
      %2398 = vmatpush1.xpose.msra.mxu0 0.0
      %2399 = vmatprep.subr.mxu0 0.0
      %2400 = vmatpush1.xpose.msra.mxu0 0.0
      %2401 = vmatprep.mubr.f32.mxu0 0.0
      %2402 = vmatmul.mubr.f32.gmra.mrb[0].mxu0 %v2325
      %v2403 = vpop.f32.mrb[0].mxu0
      %v2404 = vadd.f32 0.0, %v2403
      %v2405 = vpop.f32.mrb[0].mxu0
      %2406 = vmatprep.mubr.f32.mxu0 0.0
      %2407 = vmatmul.mubr.f32.gmra.mrb[0].mxu0 %v2327
      %v2408 = vpop.f32.mrb[0].mxu0
      %v2409 = vadd.f32 0.0, %v2408
      %v2410 = vpop.f32.mrb[0].mxu0
      %2411 = vmatprep.mubr.f32.mxu0 0.0
      %2412 = vmatmul.mubr.f32.gmra.mrb[0].mxu0 %v2329
      %v2413 = vpop.f32.mrb[0].mxu0
      %v2414 = vadd.f32 0.0, %v2413
      %v2415 = vpop.f32.mrb[0].mxu0
      %2416 = vdwg.mxu0
      %v2417 = vsel %vm767, %v2404, -inf
      %2418 = vmax.xlane.f32.xlu0 %v2417
      %v2419 = vpop.xlane.xlu0 %2418
      %v2420 = vsel %vm767, %v2409, -inf
      %2421 = vmax.xlane.f32.xlu0 %v2420
      %v2422 = vpop.xlane.xlu0 %2421
      %v2423 = vsel %vm774, %v2414, -inf
      %2424 = vmax.xlane.f32.xlu0 %v2423
      %v2425 = vpop.xlane.xlu0 %2424
      %v2426 = vsub.f32 %v2404, %v2419
      %v2427 = vsub.f32 %v2409, %v2422
      %v2428 = vsub.f32 %v2414, %v2425
      %v2429 = vmul.f32 %v2426, 1.442695
      %v2430 = vpow.pop %v2429
      %v2431 = vmul.f32 %v2427, 1.442695
      %v2432 = vpow.pop %v2431
      %v2433 = vmul.f32 %v2428, 1.442695
      %v2434 = vpow.pop %v2433
      %v2435 = vsel %vm767, %v2430, 0.0
      %2436 = vadd.xlane.f32.xlu0 %v2435
      %v2437 = vpop.xlane.xlu0 %2436
      %v2438 = vsel %vm767, %v2432, 0.0
      %2439 = vadd.xlane.f32.xlu0 %v2438
      %v2440 = vpop.xlane.xlu0 %2439
      %v2441 = vsel %vm774, %v2434, 0.0
      %2442 = vadd.xlane.f32.xlu0 %v2441
      %v2443 = vpop.xlane.xlu0 %2442
      %v2444 = vrcp.pop %v2437
      %v2445 = vrcp.pop %v2440
      %v2446 = vrcp.pop %v2443
      %v2447 = vmul.f32 %v2430, %v2444
      %v2448 = vmul.f32 %v2432, %v2445
      %v2449 = vmul.f32 %v2434, %v2446
      %2450 = vrot.lane.b32.xlu0 %v655, 16
      %v2451 = vpop.permute.xlu0 %2450
      %2452 = vrot.lane.b32.xlu0 %v660, 16
      %v2453 = vpop.permute.xlu0 %2452
      %2454 = vrot.lane.b32.xlu0 %v665, 16
      %v2455 = vpop.permute.xlu0 %2454
      %v2459 = vsel %vm767, %v2447, 0
      %v2462 = vsel %vm767, %v2448, 0
      %v2465 = vsel %vm767, %v2449, 0
      %v2467 = vsel %vm811, %v2455, 0
      %2469 = vmatprep.subr.mxu0 0.0
      %2470 = vmatpush1.msra.mxu0 %v2451
      %2471 = vmatprep.subr.mxu0 0.0
      %2472 = vmatpush1.msra.mxu0 %v2453
      %2473 = vmatprep.subr.mxu0 0.0
      %2474 = vmatpush1.msra.mxu0 %v2467
      %2475 = vmatprep.subr.mxu0 0.0
      %2476 = vmatpush1.msra.mxu0 0.0
      %2477 = vmatprep.subr.mxu0 0.0
      %2478 = vmatpush1.msra.mxu0 0.0
      %2479 = vmatprep.subr.mxu0 0.0
      %2480 = vmatpush1.msra.mxu0 0.0
      %2481 = vmatprep.subr.mxu0 0.0
      %2482 = vmatpush1.msra.mxu0 0.0
      %2483 = vmatprep.subr.mxu0 0.0
      %2484 = vmatpush1.msra.mxu0 0.0
      %2485 = vmatprep.subr.mxu0 0.0
      %2486 = vmatpush1.msra.mxu0 0.0
      %2487 = vmatprep.subr.mxu0 0.0
      %2488 = vmatpush1.msra.mxu0 0.0
      %2489 = vmatprep.subr.mxu0 0.0
      %2490 = vmatpush1.msra.mxu0 0.0
      %2491 = vmatprep.subr.mxu0 0.0
      %2492 = vmatpush1.msra.mxu0 0.0
      %2493 = vmatprep.subr.mxu0 0.0
      %2494 = vmatpush1.msra.mxu0 0.0
      %2495 = vmatprep.subr.mxu0 0.0
      %2496 = vmatpush1.msra.mxu0 0.0
      %2497 = vmatprep.subr.mxu0 0.0
      %2498 = vmatpush1.msra.mxu0 0.0
      %2499 = vmatprep.subr.mxu0 0.0
      %2500 = vmatpush1.msra.mxu0 0.0
      %2501 = vmatprep.subr.mxu0 0.0
      %2502 = vmatpush1.msra.mxu0 0.0
      %2503 = vmatprep.subr.mxu0 0.0
      %2504 = vmatpush1.msra.mxu0 0.0
      %2505 = vmatprep.subr.mxu0 0.0
      %2506 = vmatpush1.msra.mxu0 0.0
      %2507 = vmatprep.subr.mxu0 0.0
      %2508 = vmatpush1.msra.mxu0 0.0
      %2509 = vmatprep.subr.mxu0 0.0
      %2510 = vmatpush1.msra.mxu0 0.0
      %2511 = vmatprep.subr.mxu0 0.0
      %2512 = vmatpush1.msra.mxu0 0.0
      %2513 = vmatprep.subr.mxu0 0.0
      %2514 = vmatpush1.msra.mxu0 0.0
      %2515 = vmatprep.subr.mxu0 0.0
      %2516 = vmatpush1.msra.mxu0 0.0
      %2517 = vmatprep.subr.mxu0 0.0
      %2518 = vmatpush1.msra.mxu0 0.0
      %2519 = vmatprep.subr.mxu0 0.0
      %2520 = vmatpush1.msra.mxu0 0.0
      %2521 = vmatprep.subr.mxu0 0.0
      %2522 = vmatpush1.msra.mxu0 0.0
      %2523 = vmatprep.subr.mxu0 0.0
      %2524 = vmatpush1.msra.mxu0 0.0
      %2525 = vmatprep.subr.mxu0 0.0
      %2526 = vmatpush1.msra.mxu0 0.0
      %2527 = vmatprep.subr.mxu0 0.0
      %2528 = vmatpush1.msra.mxu0 0.0
      %2529 = vmatprep.subr.mxu0 0.0
      %2530 = vmatpush1.msra.mxu0 0.0
      %2531 = vmatprep.subr.mxu0 0.0
      %2532 = vmatpush1.msra.mxu0 0.0
      %2533 = vmatprep.mubr.f32.mxu0 0.0
      %2534 = vmatmul.mubr.f32.gmra.mrb[0].mxu0 %v2459
      %v2535 = vpop.f32.mrb[0].mxu0
      %v2536 = vadd.f32 0.0, %v2535
      %v2537 = vpop.f32.mrb[0].mxu0
      %2538 = vmatprep.mubr.f32.mxu0 0.0
      %2539 = vmatmul.mubr.f32.gmra.mrb[0].mxu0 %v2462
      %v2540 = vpop.f32.mrb[0].mxu0
      %v2541 = vadd.f32 0.0, %v2540
      %v2542 = vpop.f32.mrb[0].mxu0
      %2543 = vmatprep.mubr.f32.mxu0 0.0
      %2544 = vmatmul.mubr.f32.gmra.mrb[0].mxu0 %v2465
      %v2545 = vpop.f32.mrb[0].mxu0
      %v2546 = vadd.f32 0.0, %v2545
      %v2547 = vpop.f32.mrb[0].mxu0
      %2548 = vdwg.mxu0
      %2552 = vrot.lane.b32.xlu0 %v1120, 16
      %v2553 = vpop.permute.xlu0 %2552
      %2554 = vrot.lane.b32.xlu0 %v1125, 16
      %v2555 = vpop.permute.xlu0 %2554
      %2556 = vrot.lane.b32.xlu0 %v1130, 16
      %v2557 = vpop.permute.xlu0 %2556
      %2564 = vrot.lane.b32.xlu0 %v1356, 32
      %v2565 = vpop.permute.xlu0 %2564
      %2566 = vrot.lane.b32.xlu0 %v1361, 32
      %v2567 = vpop.permute.xlu0 %2566
      %2568 = vrot.lane.b32.xlu0 %v1366, 32
      %v2569 = vpop.permute.xlu0 %2568
      %2576 = vrot.lane.b32.xlu0 %v1592, 48
      %v2577 = vpop.permute.xlu0 %2576
      %2578 = vrot.lane.b32.xlu0 %v1597, 48
      %v2579 = vpop.permute.xlu0 %2578
      %2580 = vrot.lane.b32.xlu0 %v1602, 48
      %v2581 = vpop.permute.xlu0 %2580
      %2588 = vrot.lane.b32.xlu0 %v1828, 64
      %v2589 = vpop.permute.xlu0 %2588
      %2590 = vrot.lane.b32.xlu0 %v1833, 64
      %v2591 = vpop.permute.xlu0 %2590
      %2592 = vrot.lane.b32.xlu0 %v1838, 64
      %v2593 = vpop.permute.xlu0 %2592
      %2600 = vrot.lane.b32.xlu0 %v2064, 80
      %v2601 = vpop.permute.xlu0 %2600
      %2602 = vrot.lane.b32.xlu0 %v2069, 80
      %v2603 = vpop.permute.xlu0 %2602
      %2604 = vrot.lane.b32.xlu0 %v2074, 80
      %v2605 = vpop.permute.xlu0 %2604
      %2612 = vrot.lane.b32.xlu0 %v2300, 96
      %v2613 = vpop.permute.xlu0 %2612
      %2614 = vrot.lane.b32.xlu0 %v2305, 96
      %v2615 = vpop.permute.xlu0 %2614
      %2616 = vrot.lane.b32.xlu0 %v2310, 96
      %v2617 = vpop.permute.xlu0 %2616
      %2624 = vrot.lane.b32.xlu0 %v2536, 112
      %v2625 = vpop.permute.xlu0 %2624
      %2626 = vrot.lane.b32.xlu0 %v2541, 112
      %v2627 = vpop.permute.xlu0 %2626
      %2628 = vrot.lane.b32.xlu0 %v2546, 112
      %v2629 = vpop.permute.xlu0 %2628
      %v2633 = vsel %vm668, %v882, %v2553
      %v2634 = vsel %vm668, %v887, %v2555
      %v2635 = vsel %vm668, %v892, %v2557
      %vm2636 = vcmask 261120
      %v2637 = vsel %vm2636, %v2633, %v2565
      %v2638 = vsel %vm2636, %v2634, %v2567
      %v2639 = vsel %vm2636, %v2635, %v2569
      %vm2640 = vcmask 392192
      %v2641 = vsel %vm2640, %v2637, %v2577
      %v2642 = vsel %vm2640, %v2638, %v2579
      %v2643 = vsel %vm2640, %v2639, %v2581
      %vm2644 = vcmask 523264
      %v2645 = vsel %vm2644, %v2641, %v2589
      %v2646 = vsel %vm2644, %v2642, %v2591
      %v2647 = vsel %vm2644, %v2643, %v2593
      %vm2648 = vcmask 654336
      %v2649 = vsel %vm2648, %v2645, %v2601
      %v2650 = vsel %vm2648, %v2646, %v2603
      %v2651 = vsel %vm2648, %v2647, %v2605
      %vm2652 = vcmask 785408
      %v2653 = vsel %vm2652, %v2649, %v2613
      %v2654 = vsel %vm2652, %v2650, %v2615
      %v2655 = vsel %vm2652, %v2651, %v2617
      %vm2656 = vcmask 916480
      %v2657 = vsel %vm2656, %v2653, %v2625
      %v2658 = vsel %vm2656, %v2654, %v2627
      %v2659 = vsel %vm2656, %v2655, %v2629
      %v2660 = vld [vmem:[%s2] sm:$0xff]
      %v2661 = vld [vmem:[%s2 + $0x8] sm:$0xff]
      %v2662 = vld [vmem:[%s2 + $0x10] sm:$0xff]
      %v2663 = vld [vmem:[%s2 + $0x18] sm:$0xff]
      %v2664 = vld [vmem:[%s2 + $0x20] sm:$0xff]
      %v2665 = vld [vmem:[%s2 + $0x28] sm:$0xff]
      %v2666 = vld [vmem:[%s2 + $0x30] sm:$0xff]
      %v2667 = vld [vmem:[%s2 + $0x38] sm:$0xff]
      %v2668 = vld [vmem:[%s2 + $0x40] sm:$0xff]
      %v2669 = vld [vmem:[%s2 + $0x48] sm:$0xff]
      %v2670 = vld [vmem:[%s2 + $0x50] sm:$0xff]
      %v2671 = vld [vmem:[%s2 + $0x58] sm:$0xff]
      %v2672 = vld [vmem:[%s2 + $0x60] sm:$0xff]
      %v2673 = vld [vmem:[%s2 + $0x68] sm:$0xff]
      %v2674 = vld [vmem:[%s2 + $0x70] sm:$0xff]
      %v2675 = vld [vmem:[%s2 + $0x78] sm:$0xff]
      %v2676 = vld [vmem:[%s3] sm:$0x1]
      %v2678 = vlaneseq
      %v2679 = vshrl.u32 %v2678, 7
      %v2680 = vsub.s32 0, %v2679
      %v2681 = vrot.slane %v2676, %v2680
      %2683 = vmatprep.subr.mxu0 0.0
      %2684 = vmatpush1.msra.mxu0 %v2660
      %2685 = vmatprep.subr.mxu0 0.0
      %2686 = vmatpush1.msra.mxu0 %v2661
      %2687 = vmatprep.subr.mxu0 0.0
      %2688 = vmatpush1.msra.mxu0 %v2662
      %2689 = vmatprep.subr.mxu0 0.0
      %2690 = vmatpush1.msra.mxu0 %v2663
      %2691 = vmatprep.subr.mxu0 0.0
      %2692 = vmatpush1.msra.mxu0 %v2664
      %2693 = vmatprep.subr.mxu0 0.0
      %2694 = vmatpush1.msra.mxu0 %v2665
      %2695 = vmatprep.subr.mxu0 0.0
      %2696 = vmatpush1.msra.mxu0 %v2666
      %2697 = vmatprep.subr.mxu0 0.0
      %2698 = vmatpush1.msra.mxu0 %v2667
      %2699 = vmatprep.subr.mxu0 0.0
      %2700 = vmatpush1.msra.mxu0 %v2668
      %2701 = vmatprep.subr.mxu0 0.0
      %2702 = vmatpush1.msra.mxu0 %v2669
      %2703 = vmatprep.subr.mxu0 0.0
      %2704 = vmatpush1.msra.mxu0 %v2670
      %2705 = vmatprep.subr.mxu0 0.0
      %2706 = vmatpush1.msra.mxu0 %v2671
      %2707 = vmatprep.subr.mxu0 0.0
      %2708 = vmatpush1.msra.mxu0 %v2672
      %2709 = vmatprep.subr.mxu0 0.0
      %2710 = vmatpush1.msra.mxu0 %v2673
      %2711 = vmatprep.subr.mxu0 0.0
      %2712 = vmatpush1.msra.mxu0 %v2674
      %2713 = vmatprep.subr.mxu0 0.0
      %2714 = vmatpush1.msra.mxu0 %v2675
      %2715 = vmatprep.subr.mxu0 0.0
      %2716 = vmatpush1.msra.mxu0 0.0
      %2717 = vmatprep.subr.mxu0 0.0
      %2718 = vmatpush1.msra.mxu0 0.0
      %2719 = vmatprep.subr.mxu0 0.0
      %2720 = vmatpush1.msra.mxu0 0.0
      %2721 = vmatprep.subr.mxu0 0.0
      %2722 = vmatpush1.msra.mxu0 0.0
      %2723 = vmatprep.subr.mxu0 0.0
      %2724 = vmatpush1.msra.mxu0 0.0
      %2725 = vmatprep.subr.mxu0 0.0
      %2726 = vmatpush1.msra.mxu0 0.0
      %2727 = vmatprep.subr.mxu0 0.0
      %2728 = vmatpush1.msra.mxu0 0.0
      %2729 = vmatprep.subr.mxu0 0.0
      %2730 = vmatpush1.msra.mxu0 0.0
      %2731 = vmatprep.subr.mxu0 0.0
      %2732 = vmatpush1.msra.mxu0 0.0
      %2733 = vmatprep.subr.mxu0 0.0
      %2734 = vmatpush1.msra.mxu0 0.0
      %2735 = vmatprep.subr.mxu0 0.0
      %2736 = vmatpush1.msra.mxu0 0.0
      %2737 = vmatprep.subr.mxu0 0.0
      %2738 = vmatpush1.msra.mxu0 0.0
      %2739 = vmatprep.subr.mxu0 0.0
      %2740 = vmatpush1.msra.mxu0 0.0
      %2741 = vmatprep.subr.mxu0 0.0
      %2742 = vmatpush1.msra.mxu0 0.0
      %2743 = vmatprep.subr.mxu0 0.0
      %2744 = vmatpush1.msra.mxu0 0.0
      %2745 = vmatprep.subr.mxu0 0.0
      %2746 = vmatpush1.msra.mxu0 0.0
      %2747 = vmatprep.mubr.f32.mxu0 0.0
      %2748 = vmatmul.mubr.f32.gmra.mrb[0].mxu0 %v2657
      %v2749 = vpop.f32.mrb[0].mxu0
      %v2750 = vadd.f32 %v2681, %v2749
      %v2751 = vpop.f32.mrb[0].mxu0
      %2752 = vmatprep.mubr.f32.mxu0 0.0
      %2753 = vmatmul.mubr.f32.gmra.mrb[0].mxu0 %v2658
      %v2754 = vpop.f32.mrb[0].mxu0
      %v2755 = vadd.f32 %v2681, %v2754
      %v2756 = vpop.f32.mrb[0].mxu0
      %2757 = vmatprep.mubr.f32.mxu0 0.0
      %2758 = vmatmul.mubr.f32.gmra.mrb[0].mxu0 %v2659
      %v2759 = vpop.f32.mrb[0].mxu0
      %v2760 = vadd.f32 %v2681, %v2759
      %v2761 = vpop.f32.mrb[0].mxu0
      %2762 = vdwg.mxu0
      %2763 = vst [vmem:[%s453] sm:$0xff] %v2750
      %2764 = vst [vmem:[%s453 + $0x8] sm:$0xff] %v2755
      %2765 = vst [vmem:[%s453 + $0x10] sm:$0x1f] %v2760
      %v2766 = vld [vmem:[%s8] sm:$0x1]
      %v2767 = vld [vmem:[%s9] sm:$0x1]
      %v2768 = vadd.f32 %v454, %v2750
      %v2769 = vadd.f32 %v455, %v2755
      %v2770 = vadd.f32 %v456, %v2760
      %v2771 = vadd.f32 %v2768, %v2769
      %v2772 = vsel %vm811, %v2770, 0.0
      %v2773 = vadd.f32 %v2771, %v2772
      %v2774 = vrot.slane %v2773, 4
      %v2775 = vadd.f32 %v2773, %v2774
      %v2776 = vrot.slane %v2775, 2
      %v2777 = vadd.f32 %v2775, %v2776
      %v2778 = vrot.slane %v2777, 1
      %v2779 = vadd.f32 %v2777, %v2778
      %v2780 = vmul.f32 %v2779, 0.04761905
      %v2781 = vmul.f32 %v2768, %v2768
      %v2782 = vmul.f32 %v2769, %v2769
      %v2783 = vmul.f32 %v2770, %v2770
      %v2784 = vadd.f32 %v2781, %v2782
      %v2785 = vsel %vm811, %v2783, 0.0
      %v2786 = vadd.f32 %v2784, %v2785
      %v2787 = vrot.slane %v2786, 4
      %v2788 = vadd.f32 %v2786, %v2787
      %v2789 = vrot.slane %v2788, 2
      %v2790 = vadd.f32 %v2788, %v2789
      %v2791 = vrot.slane %v2790, 1
      %v2792 = vadd.f32 %v2790, %v2791
      %v2793 = vmul.f32 %v2792, 0.04761905
      %v2794 = vmul.f32 %v2780, %v2780
      %v2795 = vsub.f32 %v2793, %v2794
      %v2796 = vadd.f32 %v2795, 1e-05
      %v2797 = vrsqrt.pop %v2796
      %v2798 = vmul.f32 %v2797, %v2766
      %v2799 = vsub.f32 %v2768, %v2780
      %v2800 = vsub.f32 %v2769, %v2780
      %v2801 = vsub.f32 %v2770, %v2780
      %v2802 = vlaneseq
      %v2803 = vshrl.u32 %v2802, 7
      %v2804 = vsub.s32 0, %v2803
      %v2805 = vrot.slane %v2798, %v2804
      %v2806 = vmul.f32 %v2799, %v2805
      %v2807 = vmul.f32 %v2800, %v2805
      %v2808 = vmul.f32 %v2801, %v2805
      %v2810 = vlaneseq
      %v2811 = vshrl.u32 %v2810, 7
      %v2812 = vsub.s32 0, %v2811
      %v2813 = vrot.slane %v2767, %v2812
      %v2815 = vadd.f32 %v2806, %v2813
      %v2816 = vadd.f32 %v2807, %v2813
      %v2817 = vadd.f32 %v2808, %v2813
      %v2818 = vld [vmem:[%s4] sm:$0xff]
      %v2819 = vld [vmem:[%s4 + $0x8] sm:$0xff]
      %v2820 = vld [vmem:[%s4 + $0x10] sm:$0xff]
      %v2821 = vld [vmem:[%s4 + $0x18] sm:$0xff]
      %v2822 = vld [vmem:[%s4 + $0x20] sm:$0xff]
      %v2823 = vld [vmem:[%s4 + $0x28] sm:$0xff]
      %v2824 = vld [vmem:[%s4 + $0x30] sm:$0xff]
      %v2825 = vld [vmem:[%s4 + $0x38] sm:$0xff]
      %v2826 = vld [vmem:[%s4 + $0x40] sm:$0xff]
      %v2827 = vld [vmem:[%s4 + $0x48] sm:$0xff]
      %v2828 = vld [vmem:[%s4 + $0x50] sm:$0xff]
      %v2829 = vld [vmem:[%s4 + $0x58] sm:$0xff]
      %v2830 = vld [vmem:[%s4 + $0x60] sm:$0xff]
      %v2831 = vld [vmem:[%s4 + $0x68] sm:$0xff]
      %v2832 = vld [vmem:[%s4 + $0x70] sm:$0xff]
      %v2833 = vld [vmem:[%s4 + $0x78] sm:$0xff]
      %v2834 = vld [vmem:[%s4 + $0x80] sm:$0xff]
      %v2835 = vld [vmem:[%s4 + $0x88] sm:$0xff]
      %v2836 = vld [vmem:[%s4 + $0x90] sm:$0xff]
      %v2837 = vld [vmem:[%s4 + $0x98] sm:$0xff]
      %v2838 = vld [vmem:[%s4 + $0xa0] sm:$0xff]
      %v2839 = vld [vmem:[%s4 + $0xa8] sm:$0xff]
      %v2840 = vld [vmem:[%s4 + $0xb0] sm:$0xff]
      %v2841 = vld [vmem:[%s4 + $0xb8] sm:$0xff]
      %v2842 = vld [vmem:[%s4 + $0xc0] sm:$0xff]
      %v2843 = vld [vmem:[%s4 + $0xc8] sm:$0xff]
      %v2844 = vld [vmem:[%s4 + $0xd0] sm:$0xff]
      %v2845 = vld [vmem:[%s4 + $0xd8] sm:$0xff]
      %v2846 = vld [vmem:[%s4 + $0xe0] sm:$0xff]
      %v2847 = vld [vmem:[%s4 + $0xe8] sm:$0xff]
      %v2848 = vld [vmem:[%s4 + $0xf0] sm:$0xff]
      %v2849 = vld [vmem:[%s4 + $0xf8] sm:$0xff]
      %v2850 = vld [vmem:[%s4 + $0x100] sm:$0xff]
      %v2851 = vld [vmem:[%s4 + $0x108] sm:$0xff]
      %v2852 = vld [vmem:[%s4 + $0x110] sm:$0xff]
      %v2853 = vld [vmem:[%s4 + $0x118] sm:$0xff]
      %v2854 = vld [vmem:[%s4 + $0x120] sm:$0xff]
      %v2855 = vld [vmem:[%s4 + $0x128] sm:$0xff]
      %v2856 = vld [vmem:[%s4 + $0x130] sm:$0xff]
      %v2857 = vld [vmem:[%s4 + $0x138] sm:$0xff]
      %v2858 = vld [vmem:[%s4 + $0x140] sm:$0xff]
      %v2859 = vld [vmem:[%s4 + $0x148] sm:$0xff]
      %v2860 = vld [vmem:[%s4 + $0x150] sm:$0xff]
      %v2861 = vld [vmem:[%s4 + $0x158] sm:$0xff]
      %v2862 = vld [vmem:[%s4 + $0x160] sm:$0xff]
      %v2863 = vld [vmem:[%s4 + $0x168] sm:$0xff]
      %v2864 = vld [vmem:[%s4 + $0x170] sm:$0xff]
      %v2865 = vld [vmem:[%s4 + $0x178] sm:$0xff]
      %v2866 = vld [vmem:[%s4 + $0x180] sm:$0xff]
      %v2867 = vld [vmem:[%s4 + $0x188] sm:$0xff]
      %v2868 = vld [vmem:[%s4 + $0x190] sm:$0xff]
      %v2869 = vld [vmem:[%s4 + $0x198] sm:$0xff]
      %v2870 = vld [vmem:[%s4 + $0x1a0] sm:$0xff]
      %v2871 = vld [vmem:[%s4 + $0x1a8] sm:$0xff]
      %v2872 = vld [vmem:[%s4 + $0x1b0] sm:$0xff]
      %v2873 = vld [vmem:[%s4 + $0x1b8] sm:$0xff]
      %v2874 = vld [vmem:[%s4 + $0x1c0] sm:$0xff]
      %v2875 = vld [vmem:[%s4 + $0x1c8] sm:$0xff]
      %v2876 = vld [vmem:[%s4 + $0x1d0] sm:$0xff]
      %v2877 = vld [vmem:[%s4 + $0x1d8] sm:$0xff]
      %v2878 = vld [vmem:[%s4 + $0x1e0] sm:$0xff]
      %v2879 = vld [vmem:[%s4 + $0x1e8] sm:$0xff]
      %v2880 = vld [vmem:[%s4 + $0x1f0] sm:$0xff]
      %v2881 = vld [vmem:[%s4 + $0x1f8] sm:$0xff]
      %v2882 = vld [vmem:[%s5] sm:$0xf]
      %v2884 = vlaneseq
      %v2885 = vshrl.u32 %v2884, 7
      %v2886 = vsub.s32 0, %v2885
      %v2887 = vrot.slane %v2882, %v2886
      %v2888 = vlaneseq
      %v2889 = vshrl.u32 %v2888, 7
      %v2890 = vsub.s32 1, %v2889
      %v2891 = vrot.slane %v2882, %v2890
      %v2892 = vlaneseq
      %v2893 = vshrl.u32 %v2892, 7
      %v2894 = vsub.s32 2, %v2893
      %v2895 = vrot.slane %v2882, %v2894
      %v2896 = vlaneseq
      %v2897 = vshrl.u32 %v2896, 7
      %v2898 = vsub.s32 3, %v2897
      %v2899 = vrot.slane %v2882, %v2898
      %2904 = vmatprep.subr.mxu0 %v2819
      %2905 = vmatpush1.msra.mxu0 %v2818
      %2906 = vmatprep.subr.mxu0 %v2823
      %2907 = vmatpush1.msra.mxu0 %v2822
      %2908 = vmatprep.subr.mxu0 %v2827
      %2909 = vmatpush1.msra.mxu0 %v2826
      %2910 = vmatprep.subr.mxu0 %v2831
      %2911 = vmatpush1.msra.mxu0 %v2830
      %2912 = vmatprep.subr.mxu0 %v2835
      %2913 = vmatpush1.msra.mxu0 %v2834
      %2914 = vmatprep.subr.mxu0 %v2839
      %2915 = vmatpush1.msra.mxu0 %v2838
      %2916 = vmatprep.subr.mxu0 %v2843
      %2917 = vmatpush1.msra.mxu0 %v2842
      %2918 = vmatprep.subr.mxu0 %v2847
      %2919 = vmatpush1.msra.mxu0 %v2846
      %2920 = vmatprep.subr.mxu0 %v2851
      %2921 = vmatpush1.msra.mxu0 %v2850
      %2922 = vmatprep.subr.mxu0 %v2855
      %2923 = vmatpush1.msra.mxu0 %v2854
      %2924 = vmatprep.subr.mxu0 %v2859
      %2925 = vmatpush1.msra.mxu0 %v2858
      %2926 = vmatprep.subr.mxu0 %v2863
      %2927 = vmatpush1.msra.mxu0 %v2862
      %2928 = vmatprep.subr.mxu0 %v2867
      %2929 = vmatpush1.msra.mxu0 %v2866
      %2930 = vmatprep.subr.mxu0 %v2871
      %2931 = vmatpush1.msra.mxu0 %v2870
      %2932 = vmatprep.subr.mxu0 %v2875
      %2933 = vmatpush1.msra.mxu0 %v2874
      %2934 = vmatprep.subr.mxu0 %v2879
      %2935 = vmatpush1.msra.mxu0 %v2878
      %2936 = vmatprep.subr.mxu0 0.0
      %2937 = vmatpush1.msra.mxu0 0.0
      %2938 = vmatprep.subr.mxu0 0.0
      %2939 = vmatpush1.msra.mxu0 0.0
      %2940 = vmatprep.subr.mxu0 0.0
      %2941 = vmatpush1.msra.mxu0 0.0
      %2942 = vmatprep.subr.mxu0 0.0
      %2943 = vmatpush1.msra.mxu0 0.0
      %2944 = vmatprep.subr.mxu0 0.0
      %2945 = vmatpush1.msra.mxu0 0.0
      %2946 = vmatprep.subr.mxu0 0.0
      %2947 = vmatpush1.msra.mxu0 0.0
      %2948 = vmatprep.subr.mxu0 0.0
      %2949 = vmatpush1.msra.mxu0 0.0
      %2950 = vmatprep.subr.mxu0 0.0
      %2951 = vmatpush1.msra.mxu0 0.0
      %2952 = vmatprep.subr.mxu0 0.0
      %2953 = vmatpush1.msra.mxu0 0.0
      %2954 = vmatprep.subr.mxu0 0.0
      %2955 = vmatpush1.msra.mxu0 0.0
      %2956 = vmatprep.subr.mxu0 0.0
      %2957 = vmatpush1.msra.mxu0 0.0
      %2958 = vmatprep.subr.mxu0 0.0
      %2959 = vmatpush1.msra.mxu0 0.0
      %2960 = vmatprep.subr.mxu0 0.0
      %2961 = vmatpush1.msra.mxu0 0.0
      %2962 = vmatprep.subr.mxu0 0.0
      %2963 = vmatpush1.msra.mxu0 0.0
      %2964 = vmatprep.subr.mxu0 0.0
      %2965 = vmatpush1.msra.mxu0 0.0
      %2966 = vmatprep.subr.mxu0 0.0
      %2967 = vmatpush1.msra.mxu0 0.0
      %2968 = vmatprep.mubr.f32.mxu0 0.0
      %2969 = vmatmul.mubr.f32.gmra.mrb[0].mxu0 %v2815
      %v2970 = vpop.f32.mrb[0].mxu0
      %v2971 = vadd.f32 %v2887, %v2970
      %v2972 = vpop.f32.mrb[0].mxu0
      %v2973 = vadd.f32 %v2891, %v2972
      %2974 = vmatprep.mubr.f32.mxu0 0.0
      %2975 = vmatmul.mubr.f32.gmra.mrb[0].mxu0 %v2816
      %v2976 = vpop.f32.mrb[0].mxu0
      %v2977 = vadd.f32 %v2887, %v2976
      %v2978 = vpop.f32.mrb[0].mxu0
      %v2979 = vadd.f32 %v2891, %v2978
      %2980 = vmatprep.mubr.f32.mxu0 0.0
      %2981 = vmatmul.mubr.f32.gmra.mrb[0].mxu0 %v2817
      %v2982 = vpop.f32.mrb[0].mxu0
      %v2983 = vadd.f32 %v2887, %v2982
      %v2984 = vpop.f32.mrb[0].mxu0
      %v2985 = vadd.f32 %v2891, %v2984
      %2986 = vdwg.mxu0
      %2987 = vmatprep.subr.mxu0 %v2821
      %2988 = vmatpush1.msra.mxu0 %v2820
      %2989 = vmatprep.subr.mxu0 %v2825
      %2990 = vmatpush1.msra.mxu0 %v2824
      %2991 = vmatprep.subr.mxu0 %v2829
      %2992 = vmatpush1.msra.mxu0 %v2828
      %2993 = vmatprep.subr.mxu0 %v2833
      %2994 = vmatpush1.msra.mxu0 %v2832
      %2995 = vmatprep.subr.mxu0 %v2837
      %2996 = vmatpush1.msra.mxu0 %v2836
      %2997 = vmatprep.subr.mxu0 %v2841
      %2998 = vmatpush1.msra.mxu0 %v2840
      %2999 = vmatprep.subr.mxu0 %v2845
      %3000 = vmatpush1.msra.mxu0 %v2844
      %3001 = vmatprep.subr.mxu0 %v2849
      %3002 = vmatpush1.msra.mxu0 %v2848
      %3003 = vmatprep.subr.mxu0 %v2853
      %3004 = vmatpush1.msra.mxu0 %v2852
      %3005 = vmatprep.subr.mxu0 %v2857
      %3006 = vmatpush1.msra.mxu0 %v2856
      %3007 = vmatprep.subr.mxu0 %v2861
      %3008 = vmatpush1.msra.mxu0 %v2860
      %3009 = vmatprep.subr.mxu0 %v2865
      %3010 = vmatpush1.msra.mxu0 %v2864
      %3011 = vmatprep.subr.mxu0 %v2869
      %3012 = vmatpush1.msra.mxu0 %v2868
      %3013 = vmatprep.subr.mxu0 %v2873
      %3014 = vmatpush1.msra.mxu0 %v2872
      %3015 = vmatprep.subr.mxu0 %v2877
      %3016 = vmatpush1.msra.mxu0 %v2876
      %3017 = vmatprep.subr.mxu0 %v2881
      %3018 = vmatpush1.msra.mxu0 %v2880
      %3019 = vmatprep.subr.mxu0 0.0
      %3020 = vmatpush1.msra.mxu0 0.0
      %3021 = vmatprep.subr.mxu0 0.0
      %3022 = vmatpush1.msra.mxu0 0.0
      %3023 = vmatprep.subr.mxu0 0.0
      %3024 = vmatpush1.msra.mxu0 0.0
      %3025 = vmatprep.subr.mxu0 0.0
      %3026 = vmatpush1.msra.mxu0 0.0
      %3027 = vmatprep.subr.mxu0 0.0
      %3028 = vmatpush1.msra.mxu0 0.0
      %3029 = vmatprep.subr.mxu0 0.0
      %3030 = vmatpush1.msra.mxu0 0.0
      %3031 = vmatprep.subr.mxu0 0.0
      %3032 = vmatpush1.msra.mxu0 0.0
      %3033 = vmatprep.subr.mxu0 0.0
      %3034 = vmatpush1.msra.mxu0 0.0
      %3035 = vmatprep.subr.mxu0 0.0
      %3036 = vmatpush1.msra.mxu0 0.0
      %3037 = vmatprep.subr.mxu0 0.0
      %3038 = vmatpush1.msra.mxu0 0.0
      %3039 = vmatprep.subr.mxu0 0.0
      %3040 = vmatpush1.msra.mxu0 0.0
      %3041 = vmatprep.subr.mxu0 0.0
      %3042 = vmatpush1.msra.mxu0 0.0
      %3043 = vmatprep.subr.mxu0 0.0
      %3044 = vmatpush1.msra.mxu0 0.0
      %3045 = vmatprep.subr.mxu0 0.0
      %3046 = vmatpush1.msra.mxu0 0.0
      %3047 = vmatprep.subr.mxu0 0.0
      %3048 = vmatpush1.msra.mxu0 0.0
      %3049 = vmatprep.subr.mxu0 0.0
      %3050 = vmatpush1.msra.mxu0 0.0
      %3051 = vmatprep.mubr.f32.mxu0 0.0
      %3052 = vmatmul.mubr.f32.gmra.mrb[0].mxu0 %v2815
      %v3053 = vpop.f32.mrb[0].mxu0
      %v3054 = vadd.f32 %v2895, %v3053
      %v3055 = vpop.f32.mrb[0].mxu0
      %v3056 = vadd.f32 %v2899, %v3055
      %3057 = vmatprep.mubr.f32.mxu0 0.0
      %3058 = vmatmul.mubr.f32.gmra.mrb[0].mxu0 %v2816
      %v3059 = vpop.f32.mrb[0].mxu0
      %v3060 = vadd.f32 %v2895, %v3059
      %v3061 = vpop.f32.mrb[0].mxu0
      %v3062 = vadd.f32 %v2899, %v3061
      %3063 = vmatprep.mubr.f32.mxu0 0.0
      %3064 = vmatmul.mubr.f32.gmra.mrb[0].mxu0 %v2817
      %v3065 = vpop.f32.mrb[0].mxu0
      %v3066 = vadd.f32 %v2895, %v3065
      %v3067 = vpop.f32.mrb[0].mxu0
      %v3068 = vadd.f32 %v2899, %v3067
      %3069 = vdwg.mxu0
      %v3070 = vmax.f32 %v2971, 0.0
      %v3071 = vmax.f32 %v2973, 0.0
      %v3072 = vmax.f32 %v3054, 0.0
      %v3073 = vmax.f32 %v3056, 0.0
      %v3074 = vmax.f32 %v2977, 0.0
      %v3075 = vmax.f32 %v2979, 0.0
      %v3076 = vmax.f32 %v3060, 0.0
      %v3077 = vmax.f32 %v3062, 0.0
      %v3078 = vmax.f32 %v2983, 0.0
      %v3079 = vmax.f32 %v2985, 0.0
      %v3080 = vmax.f32 %v3066, 0.0
      %v3081 = vmax.f32 %v3068, 0.0
      %v3082 = vld [vmem:[%s6] sm:$0xff]
      %v3083 = vld [vmem:[%s6 + $0x8] sm:$0xff]
      %v3084 = vld [vmem:[%s6 + $0x10] sm:$0xff]
      %v3085 = vld [vmem:[%s6 + $0x18] sm:$0xff]
      %v3086 = vld [vmem:[%s6 + $0x20] sm:$0xff]
      %v3087 = vld [vmem:[%s6 + $0x28] sm:$0xff]
      %v3088 = vld [vmem:[%s6 + $0x30] sm:$0xff]
      %v3089 = vld [vmem:[%s6 + $0x38] sm:$0xff]
      %v3090 = vld [vmem:[%s6 + $0x40] sm:$0xff]
      %v3091 = vld [vmem:[%s6 + $0x48] sm:$0xff]
      %v3092 = vld [vmem:[%s6 + $0x50] sm:$0xff]
      %v3093 = vld [vmem:[%s6 + $0x58] sm:$0xff]
      %v3094 = vld [vmem:[%s6 + $0x60] sm:$0xff]
      %v3095 = vld [vmem:[%s6 + $0x68] sm:$0xff]
      %v3096 = vld [vmem:[%s6 + $0x70] sm:$0xff]
      %v3097 = vld [vmem:[%s6 + $0x78] sm:$0xff]
      %v3098 = vld [vmem:[%s6 + $0x80] sm:$0xff]
      %v3099 = vld [vmem:[%s6 + $0x88] sm:$0xff]
      %v3100 = vld [vmem:[%s6 + $0x90] sm:$0xff]
      %v3101 = vld [vmem:[%s6 + $0x98] sm:$0xff]
      %v3102 = vld [vmem:[%s6 + $0xa0] sm:$0xff]
      %v3103 = vld [vmem:[%s6 + $0xa8] sm:$0xff]
      %v3104 = vld [vmem:[%s6 + $0xb0] sm:$0xff]
      %v3105 = vld [vmem:[%s6 + $0xb8] sm:$0xff]
      %v3106 = vld [vmem:[%s6 + $0xc0] sm:$0xff]
      %v3107 = vld [vmem:[%s6 + $0xc8] sm:$0xff]
      %v3108 = vld [vmem:[%s6 + $0xd0] sm:$0xff]
      %v3109 = vld [vmem:[%s6 + $0xd8] sm:$0xff]
      %v3110 = vld [vmem:[%s6 + $0xe0] sm:$0xff]
      %v3111 = vld [vmem:[%s6 + $0xe8] sm:$0xff]
      %v3112 = vld [vmem:[%s6 + $0xf0] sm:$0xff]
      %v3113 = vld [vmem:[%s6 + $0xf8] sm:$0xff]
      %v3114 = vld [vmem:[%s6 + $0x100] sm:$0xff]
      %v3115 = vld [vmem:[%s6 + $0x108] sm:$0xff]
      %v3116 = vld [vmem:[%s6 + $0x110] sm:$0xff]
      %v3117 = vld [vmem:[%s6 + $0x118] sm:$0xff]
      %v3118 = vld [vmem:[%s6 + $0x120] sm:$0xff]
      %v3119 = vld [vmem:[%s6 + $0x128] sm:$0xff]
      %v3120 = vld [vmem:[%s6 + $0x130] sm:$0xff]
      %v3121 = vld [vmem:[%s6 + $0x138] sm:$0xff]
      %v3122 = vld [vmem:[%s6 + $0x140] sm:$0xff]
      %v3123 = vld [vmem:[%s6 + $0x148] sm:$0xff]
      %v3124 = vld [vmem:[%s6 + $0x150] sm:$0xff]
      %v3125 = vld [vmem:[%s6 + $0x158] sm:$0xff]
      %v3126 = vld [vmem:[%s6 + $0x160] sm:$0xff]
      %v3127 = vld [vmem:[%s6 + $0x168] sm:$0xff]
      %v3128 = vld [vmem:[%s6 + $0x170] sm:$0xff]
      %v3129 = vld [vmem:[%s6 + $0x178] sm:$0xff]
      %v3130 = vld [vmem:[%s6 + $0x180] sm:$0xff]
      %v3131 = vld [vmem:[%s6 + $0x188] sm:$0xff]
      %v3132 = vld [vmem:[%s6 + $0x190] sm:$0xff]
      %v3133 = vld [vmem:[%s6 + $0x198] sm:$0xff]
      %v3134 = vld [vmem:[%s6 + $0x1a0] sm:$0xff]
      %v3135 = vld [vmem:[%s6 + $0x1a8] sm:$0xff]
      %v3136 = vld [vmem:[%s6 + $0x1b0] sm:$0xff]
      %v3137 = vld [vmem:[%s6 + $0x1b8] sm:$0xff]
      %v3138 = vld [vmem:[%s6 + $0x1c0] sm:$0xff]
      %v3139 = vld [vmem:[%s6 + $0x1c8] sm:$0xff]
      %v3140 = vld [vmem:[%s6 + $0x1d0] sm:$0xff]
      %v3141 = vld [vmem:[%s6 + $0x1d8] sm:$0xff]
      %v3142 = vld [vmem:[%s6 + $0x1e0] sm:$0xff]
      %v3143 = vld [vmem:[%s6 + $0x1e8] sm:$0xff]
      %v3144 = vld [vmem:[%s6 + $0x1f0] sm:$0xff]
      %v3145 = vld [vmem:[%s6 + $0x1f8] sm:$0xff]
      %v3146 = vld [vmem:[%s7] sm:$0x1]
      %v3148 = vlaneseq
      %v3149 = vshrl.u32 %v3148, 7
      %v3150 = vsub.s32 0, %v3149
      %v3151 = vrot.slane %v3146, %v3150
      %3153 = vmatprep.subr.mxu0 0.0
      %3154 = vmatpush1.msra.mxu0 %v3082
      %3155 = vmatprep.subr.mxu0 0.0
      %3156 = vmatpush1.msra.mxu0 %v3083
      %3157 = vmatprep.subr.mxu0 0.0
      %3158 = vmatpush1.msra.mxu0 %v3084
      %3159 = vmatprep.subr.mxu0 0.0
      %3160 = vmatpush1.msra.mxu0 %v3085
      %3161 = vmatprep.subr.mxu0 0.0
      %3162 = vmatpush1.msra.mxu0 %v3086
      %3163 = vmatprep.subr.mxu0 0.0
      %3164 = vmatpush1.msra.mxu0 %v3087
      %3165 = vmatprep.subr.mxu0 0.0
      %3166 = vmatpush1.msra.mxu0 %v3088
      %3167 = vmatprep.subr.mxu0 0.0
      %3168 = vmatpush1.msra.mxu0 %v3089
      %3169 = vmatprep.subr.mxu0 0.0
      %3170 = vmatpush1.msra.mxu0 %v3090
      %3171 = vmatprep.subr.mxu0 0.0
      %3172 = vmatpush1.msra.mxu0 %v3091
      %3173 = vmatprep.subr.mxu0 0.0
      %3174 = vmatpush1.msra.mxu0 %v3092
      %3175 = vmatprep.subr.mxu0 0.0
      %3176 = vmatpush1.msra.mxu0 %v3093
      %3177 = vmatprep.subr.mxu0 0.0
      %3178 = vmatpush1.msra.mxu0 %v3094
      %3179 = vmatprep.subr.mxu0 0.0
      %3180 = vmatpush1.msra.mxu0 %v3095
      %3181 = vmatprep.subr.mxu0 0.0
      %3182 = vmatpush1.msra.mxu0 %v3096
      %3183 = vmatprep.subr.mxu0 0.0
      %3184 = vmatpush1.msra.mxu0 %v3097
      %3185 = vmatprep.subr.mxu0 0.0
      %3186 = vmatpush1.msra.mxu0 %v3098
      %3187 = vmatprep.subr.mxu0 0.0
      %3188 = vmatpush1.msra.mxu0 %v3099
      %3189 = vmatprep.subr.mxu0 0.0
      %3190 = vmatpush1.msra.mxu0 %v3100
      %3191 = vmatprep.subr.mxu0 0.0
      %3192 = vmatpush1.msra.mxu0 %v3101
      %3193 = vmatprep.subr.mxu0 0.0
      %3194 = vmatpush1.msra.mxu0 %v3102
      %3195 = vmatprep.subr.mxu0 0.0
      %3196 = vmatpush1.msra.mxu0 %v3103
      %3197 = vmatprep.subr.mxu0 0.0
      %3198 = vmatpush1.msra.mxu0 %v3104
      %3199 = vmatprep.subr.mxu0 0.0
      %3200 = vmatpush1.msra.mxu0 %v3105
      %3201 = vmatprep.subr.mxu0 0.0
      %3202 = vmatpush1.msra.mxu0 %v3106
      %3203 = vmatprep.subr.mxu0 0.0
      %3204 = vmatpush1.msra.mxu0 %v3107
      %3205 = vmatprep.subr.mxu0 0.0
      %3206 = vmatpush1.msra.mxu0 %v3108
      %3207 = vmatprep.subr.mxu0 0.0
      %3208 = vmatpush1.msra.mxu0 %v3109
      %3209 = vmatprep.subr.mxu0 0.0
      %3210 = vmatpush1.msra.mxu0 %v3110
      %3211 = vmatprep.subr.mxu0 0.0
      %3212 = vmatpush1.msra.mxu0 %v3111
      %3213 = vmatprep.subr.mxu0 0.0
      %3214 = vmatpush1.msra.mxu0 %v3112
      %3215 = vmatprep.subr.mxu0 0.0
      %3216 = vmatpush1.msra.mxu0 %v3113
      %3217 = vmatprep.mubr.f32.mxu0 %v3071
      %3218 = vmatmul.mubr.f32.gmra.mrb[0].mxu0 %v3070
      %v3219 = vpop.f32.mrb[0].mxu0
      %v3220 = vadd.f32 %v3151, %v3219
      %v3221 = vpop.f32.mrb[0].mxu0
      %3222 = vmatprep.mubr.f32.mxu0 %v3075
      %3223 = vmatmul.mubr.f32.gmra.mrb[0].mxu0 %v3074
      %v3224 = vpop.f32.mrb[0].mxu0
      %v3225 = vadd.f32 %v3151, %v3224
      %v3226 = vpop.f32.mrb[0].mxu0
      %3227 = vmatprep.mubr.f32.mxu0 %v3079
      %3228 = vmatmul.mubr.f32.gmra.mrb[0].mxu0 %v3078
      %v3229 = vpop.f32.mrb[0].mxu0
      %v3230 = vadd.f32 %v3151, %v3229
      %v3231 = vpop.f32.mrb[0].mxu0
      %3232 = vdwg.mxu0
      %3233 = vmatprep.subr.mxu0 0.0
      %3234 = vmatpush1.msra.mxu0 %v3114
      %3235 = vmatprep.subr.mxu0 0.0
      %3236 = vmatpush1.msra.mxu0 %v3115
      %3237 = vmatprep.subr.mxu0 0.0
      %3238 = vmatpush1.msra.mxu0 %v3116
      %3239 = vmatprep.subr.mxu0 0.0
      %3240 = vmatpush1.msra.mxu0 %v3117
      %3241 = vmatprep.subr.mxu0 0.0
      %3242 = vmatpush1.msra.mxu0 %v3118
      %3243 = vmatprep.subr.mxu0 0.0
      %3244 = vmatpush1.msra.mxu0 %v3119
      %3245 = vmatprep.subr.mxu0 0.0
      %3246 = vmatpush1.msra.mxu0 %v3120
      %3247 = vmatprep.subr.mxu0 0.0
      %3248 = vmatpush1.msra.mxu0 %v3121
      %3249 = vmatprep.subr.mxu0 0.0
      %3250 = vmatpush1.msra.mxu0 %v3122
      %3251 = vmatprep.subr.mxu0 0.0
      %3252 = vmatpush1.msra.mxu0 %v3123
      %3253 = vmatprep.subr.mxu0 0.0
      %3254 = vmatpush1.msra.mxu0 %v3124
      %3255 = vmatprep.subr.mxu0 0.0
      %3256 = vmatpush1.msra.mxu0 %v3125
      %3257 = vmatprep.subr.mxu0 0.0
      %3258 = vmatpush1.msra.mxu0 %v3126
      %3259 = vmatprep.subr.mxu0 0.0
      %3260 = vmatpush1.msra.mxu0 %v3127
      %3261 = vmatprep.subr.mxu0 0.0
      %3262 = vmatpush1.msra.mxu0 %v3128
      %3263 = vmatprep.subr.mxu0 0.0
      %3264 = vmatpush1.msra.mxu0 %v3129
      %3265 = vmatprep.subr.mxu0 0.0
      %3266 = vmatpush1.msra.mxu0 %v3130
      %3267 = vmatprep.subr.mxu0 0.0
      %3268 = vmatpush1.msra.mxu0 %v3131
      %3269 = vmatprep.subr.mxu0 0.0
      %3270 = vmatpush1.msra.mxu0 %v3132
      %3271 = vmatprep.subr.mxu0 0.0
      %3272 = vmatpush1.msra.mxu0 %v3133
      %3273 = vmatprep.subr.mxu0 0.0
      %3274 = vmatpush1.msra.mxu0 %v3134
      %3275 = vmatprep.subr.mxu0 0.0
      %3276 = vmatpush1.msra.mxu0 %v3135
      %3277 = vmatprep.subr.mxu0 0.0
      %3278 = vmatpush1.msra.mxu0 %v3136
      %3279 = vmatprep.subr.mxu0 0.0
      %3280 = vmatpush1.msra.mxu0 %v3137
      %3281 = vmatprep.subr.mxu0 0.0
      %3282 = vmatpush1.msra.mxu0 %v3138
      %3283 = vmatprep.subr.mxu0 0.0
      %3284 = vmatpush1.msra.mxu0 %v3139
      %3285 = vmatprep.subr.mxu0 0.0
      %3286 = vmatpush1.msra.mxu0 %v3140
      %3287 = vmatprep.subr.mxu0 0.0
      %3288 = vmatpush1.msra.mxu0 %v3141
      %3289 = vmatprep.subr.mxu0 0.0
      %3290 = vmatpush1.msra.mxu0 %v3142
      %3291 = vmatprep.subr.mxu0 0.0
      %3292 = vmatpush1.msra.mxu0 %v3143
      %3293 = vmatprep.subr.mxu0 0.0
      %3294 = vmatpush1.msra.mxu0 %v3144
      %3295 = vmatprep.subr.mxu0 0.0
      %3296 = vmatpush1.msra.mxu0 %v3145
      %3297 = vmatprep.mubr.f32.mxu0 %v3073
      %3298 = vmatmul.mubr.f32.gmra.mrb[0].mxu0 %v3072
      %v3299 = vpop.f32.mrb[0].mxu0
      %v3300 = vadd.f32 %v3220, %v3299
      %v3301 = vpop.f32.mrb[0].mxu0
      %3302 = vmatprep.mubr.f32.mxu0 %v3077
      %3303 = vmatmul.mubr.f32.gmra.mrb[0].mxu0 %v3076
      %v3304 = vpop.f32.mrb[0].mxu0
      %v3305 = vadd.f32 %v3225, %v3304
      %v3306 = vpop.f32.mrb[0].mxu0
      %3307 = vmatprep.mubr.f32.mxu0 %v3081
      %3308 = vmatmul.mubr.f32.gmra.mrb[0].mxu0 %v3080
      %v3309 = vpop.f32.mrb[0].mxu0
      %v3310 = vadd.f32 %v3230, %v3309
      %v3311 = vpop.f32.mrb[0].mxu0
      %3312 = vdwg.mxu0
      %v3313 = vld [vmem:[%s10] sm:$0x1]
      %v3314 = vld [vmem:[%s11] sm:$0x1]
      %v3315 = vadd.f32 %v2815, %v3300
      %v3316 = vadd.f32 %v2816, %v3305
      %v3317 = vadd.f32 %v2817, %v3310
      %v3318 = vadd.f32 %v3315, %v3316
      %v3319 = vsel %vm811, %v3317, 0.0
      %v3320 = vadd.f32 %v3318, %v3319
      %v3321 = vrot.slane %v3320, 4
      %v3322 = vadd.f32 %v3320, %v3321
      %v3323 = vrot.slane %v3322, 2
      %v3324 = vadd.f32 %v3322, %v3323
      %v3325 = vrot.slane %v3324, 1
      %v3326 = vadd.f32 %v3324, %v3325
      %v3327 = vmul.f32 %v3326, 0.04761905
      %v3328 = vmul.f32 %v3315, %v3315
      %v3329 = vmul.f32 %v3316, %v3316
      %v3330 = vmul.f32 %v3317, %v3317
      %v3331 = vadd.f32 %v3328, %v3329
      %v3332 = vsel %vm811, %v3330, 0.0
      %v3333 = vadd.f32 %v3331, %v3332
      %v3334 = vrot.slane %v3333, 4
      %v3335 = vadd.f32 %v3333, %v3334
      %v3336 = vrot.slane %v3335, 2
      %v3337 = vadd.f32 %v3335, %v3336
      %v3338 = vrot.slane %v3337, 1
      %v3339 = vadd.f32 %v3337, %v3338
      %v3340 = vmul.f32 %v3339, 0.04761905
      %v3341 = vmul.f32 %v3327, %v3327
      %v3342 = vsub.f32 %v3340, %v3341
      %v3343 = vadd.f32 %v3342, 1e-05
      %v3344 = vrsqrt.pop %v3343
      %v3345 = vmul.f32 %v3344, %v3313
      %v3346 = vsub.f32 %v3315, %v3327
      %v3347 = vsub.f32 %v3316, %v3327
      %v3348 = vsub.f32 %v3317, %v3327
      %v3349 = vlaneseq
      %v3350 = vshrl.u32 %v3349, 7
      %v3351 = vsub.s32 0, %v3350
      %v3352 = vrot.slane %v3345, %v3351
      %v3353 = vmul.f32 %v3346, %v3352
      %v3354 = vmul.f32 %v3347, %v3352
      %v3355 = vmul.f32 %v3348, %v3352
      %v3357 = vlaneseq
      %v3358 = vshrl.u32 %v3357, 7
      %v3359 = vsub.s32 0, %v3358
      %v3360 = vrot.slane %v3314, %v3359
      %v3362 = vadd.f32 %v3353, %v3360
      %v3363 = vadd.f32 %v3354, %v3360
      %v3364 = vadd.f32 %v3355, %v3360
      %3365 = vst [vmem:[%s448] sm:$0xff] %v3362
      %3366 = vst [vmem:[%s448 + $0x8] sm:$0xff] %v3363
      %3367 = vst [vmem:[%s448 + $0x10] sm:$0x1f] %v3364
      %p3368 = scmp.lt.s32.totalorder %s25, 1
      %s3369 = scalar_select %p3368, %s25, 1
      %s3370 = smul.addr %s3369, 3
      %s3371 = smul.addr %s3370, 8
      %s3372 = scalar_lea.vmem %s12, %s3371
      %p3373 = scmp.lt.s32.totalorder %s25, 1
      %s3374 = scalar_select %p3373, %s25, 1
      %s3375 = smul.addr %s3374, 3
      %s3376 = smul.addr %s3375, 8
      %s3377 = scalar_lea.vmem %s13, %s3376
      // Predicated region
      $region69: #{vrp_encoder_forward.3} parent=67 // pred_check
        %p3378 = pneg %p300
      $region70: #{vrp_encoder_forward.3} parent=67 // pred_check_branch
        %3380 = sbr.rel (%p3378) target = $region72
      $region71: #{vrp_encoder_forward.3} parent=67 // pred_region
        _
      $region72: #{vrp_encoder_forward.3} parent=67 // pred_fallthru
        _
      // Predicated region
      $region73: #{vrp_encoder_forward.3} parent=67 // pred_check
        %p3381 = pneg %p326
      $region74: #{vrp_encoder_forward.3} parent=67 // pred_check_branch
        %3383 = sbr.rel (%p3381) target = $region76
      $region75: #{vrp_encoder_forward.3} parent=67 // pred_region
        _
      $region76: #{vrp_encoder_forward.3} parent=67 // pred_fallthru
        _
    $region68: #{vrp_encoder_forward.3} parent=5 // pred_fallthru
      _
    %p3384 = scmp.le.s32.totalorder 2, %s20
    // Predicated region
    $region77: #{vrp_encoder_forward.3} parent=5 // pred_check
      %p3385 = pneg %p3384
    $region78: #{vrp_encoder_forward.3} parent=5 // pred_check_branch
      %3387 = sbr.rel (%p3385) target = $region80
    $region79: #{vrp_encoder_forward.3} parent=5 // pred_region
      %s3388 = ssub.s32 %s20, 2
      // Predicated region
      $region81: #{vrp_encoder_forward.3} parent=79 // pred_check
        %p3389 = pneg %p306
      $region82: #{vrp_encoder_forward.3} parent=79 // pred_check_branch
        %3391 = sbr.rel (%p3389) target = $region84
      $region83: #{vrp_encoder_forward.3} parent=79 // pred_region
        %p3392 = scmp.lt.s32.totalorder %s26, 1
        %s3393 = scalar_select %p3392, %s26, 1
        %s3394 = smul.addr %s3393, 3
        %s3395 = smul.addr %s3394, 8
        %s3396 = scalar_lea.vmem %s12, %s3395
      $region84: #{vrp_encoder_forward.3} parent=79 // pred_fallthru
        _
      // Predicated region
      $region85: #{vrp_encoder_forward.3} parent=79 // pred_check
        %p3397 = pneg %p332
      $region86: #{vrp_encoder_forward.3} parent=79 // pred_check_branch
        %3399 = sbr.rel (%p3397) target = $region88
      $region87: #{vrp_encoder_forward.3} parent=79 // pred_region
        %p3400 = scmp.lt.s32.totalorder %s26, 1
        %s3401 = scalar_select %p3400, %s26, 1
        %s3402 = smul.addr %s3401, 3
        %s3403 = smul.addr %s3402, 8
        %s3404 = scalar_lea.vmem %s13, %s3403
      $region88: #{vrp_encoder_forward.3} parent=79 // pred_fallthru
        _
    $region80: #{vrp_encoder_forward.3} parent=5 // pred_fallthru
      _
  $region6: #{vrp_encoder_forward.3} parent=0 // loop_footer
    %s24 = sadd.s32 1, %s20
  $region7: #{vrp_encoder_forward.3} parent=0 // loop_footer_branch
    %19 = sbr.rel target = $region3
  $region8: #{vrp_encoder_forward.3} parent=0 // loop_exit
    _

// kernel: vrp_encoder_forward.2
$region0: #{vrp_encoder_forward.2}
  #allocation0 [shape = 'u32[]', space=smem, size = 0x4, offset = 0x4, fixed_abs, tag = 'smem constant byte address 0x4 - core index']
  #allocation1 [shape = 'u32[144,128]{1,0:T(1,128)}', space=vmem, size = 0x12000, scoped, tag = 'internal scratch']
  %s0 = inlined_call_operand.vmem [shape: f32[2,21,128], index: 0, kind: input, shape index: {}]
  %s1 = inlined_call_operand.hbm [shape: f32[128,384], index: 1, kind: input, shape index: {}]
  %s2 = inlined_call_operand.vmem [shape: f32[128,128], index: 2, kind: input, shape index: {}]
  %s3 = inlined_call_operand.vmem [shape: f32[1,128], index: 3, kind: input, shape index: {}]
  %s4 = inlined_call_operand.hbm [shape: f32[128,512], index: 4, kind: input, shape index: {}]
  %s5 = inlined_call_operand.vmem [shape: f32[1,512], index: 5, kind: input, shape index: {}]
  %s6 = inlined_call_operand.hbm [shape: f32[512,128], index: 6, kind: input, shape index: {}]
  %s7 = inlined_call_operand.vmem [shape: f32[1,128], index: 7, kind: input, shape index: {}]
  %s8 = inlined_call_operand.vmem [shape: f32[1,128], index: 8, kind: input, shape index: {}]
  %s9 = inlined_call_operand.vmem [shape: f32[1,128], index: 9, kind: input, shape index: {}]
  %s10 = inlined_call_operand.vmem [shape: f32[1,128], index: 10, kind: input, shape index: {}]
  %s11 = inlined_call_operand.vmem [shape: f32[1,128], index: 11, kind: input, shape index: {}]
  %s12 = inlined_call_operand.vmem [shape: f32[2,21,128], index: 12, kind: output, shape index: {0}]
  %s13 = inlined_call_operand.vmem [shape: f32[2,21,128], index: 13, kind: output, shape index: {1}]
  %14 = xla_tuple %s12, %s13
  %s15 = sld [smem:[#allocation0]]
  $region101: #{vrp_encoder_forward.2} parent=0
    _
  %s17 = ssub.s32 1, %s15
  %s18 = scalar_select 0, %s17, %s15
  $region1: #{vrp_encoder_forward.2} parent=0
    #allocation2 [shape = 'u8[196608]{0}', space=vmem, size = 0x30000, scoped, tag = 'input window, operand 1, single buffered']
    #allocation3 [shape = 's32[2]{0}', space=sflag, size = 0x8, scoped, tag = 'scoped memory for vrp_encoder_forward.2']
    #allocation4 [shape = 'u8[262144]{0}', space=vmem, size = 0x40000, scoped, tag = 'input window, operand 4, single buffered']
    #allocation5 [shape = 's32[1]{0}', space=sflag, size = 0x4, scoped, tag = 'scoped memory for vrp_encoder_forward.2']
    #allocation6 [shape = 'u8[262144]{0}', space=vmem, size = 0x40000, scoped, tag = 'input window, operand 6, single buffered']
    %19 = vsyncpa [#allocation3], 0
    %20 = vsyncpa [#allocation5], 0
    loop: start=0, step=1, limit=4
    $region2: #{vrp_encoder_forward.2} parent=1 // loop_pre_header
      _
    $region3: #{vrp_encoder_forward.2} parent=1 // loop_header
      %s22 = sphi 0, %s26
      %p23 = scmp.ge.s32.totalorder %s22, 4
      %s32 = sphi 0, %s34
      %s35 = sphi 0, %s32
      %s36 = sphi 0, %s35
      %s52 = sphi 0, %s36
      %s56 = sphi 0, %s56
      %s58 = sphi 0, %s56
      %s59 = sphi 0, %s58
      %s73 = sphi 0, %s59
      %s77 = sphi 0, %s77
      %s79 = sphi 0, %s77
      %s80 = sphi 0, %s79
      %s94 = sphi 0, %s80
      %s98 = sphi 0, %s98
      %s100 = sphi 0, %s98
      %s101 = sphi 0, %s100
      %s115 = sphi 0, %s101
      %s119 = sphi 0, %s119
      %s121 = sphi 0, %s119
      %s122 = sphi 0, %s121
      %s136 = sphi 0, %s122
      %s140 = sphi 0, %s140
      %s142 = sphi 0, %s140
      %s143 = sphi 0, %s142
      %s157 = sphi 0, %s143
      %s161 = sphi 0, %s161
      %s163 = sphi 0, %s161
      %s164 = sphi 0, %s163
      %s178 = sphi 0, %s164
      %s182 = sphi 0, %s182
      %s184 = sphi 0, %s182
      %s185 = sphi 0, %s184
      %s199 = sphi 0, %s185
      %s203 = sphi 0, %s203
      %s205 = sphi 0, %s203
      %s206 = sphi 0, %s205
      %s220 = sphi 0, %s206
      %s224 = sphi 0, %s224
      %s226 = sphi 0, %s224
      %s227 = sphi 0, %s226
      %s241 = sphi 0, %s227
      %s245 = sphi 0, %s245
      %s247 = sphi 0, %s245
      %s248 = sphi 0, %s247
      %s262 = sphi 0, %s248
      %s266 = sphi 0, %s266
      %s268 = sphi 0, %s266
      %s269 = sphi 0, %s268
      %s283 = sphi 0, %s269
      %s289 = sphi 0, %s291
      %s292 = sphi 0, %s289
      %s293 = sphi 0, %s292
      %s309 = sphi 0, %s293
      %s315 = sphi 0, %s317
      %s318 = sphi 0, %s315
      %s319 = sphi 0, %s318
      %s335 = sphi 0, %s319
    $region4: #{vrp_encoder_forward.2} parent=1 // loop_header_branch
      %25 = sbr.rel (%p23) target = $region8
    $region5: #{vrp_encoder_forward.2} parent=1 // loop_body
      %s27 = ssub.s32 %s22, 1
      %s28 = ssub.s32 %s22, 2
      %s29 = sadd.s32 %s22, 1
      %s30 = ssub.s32 %s22, %s29
      %p31 = scmp.eq.s32.totalorder %s30, 0
      %s33 = sadd.s32 %s32, 1
      %s34 = scalar_select %p31, %s32, %s33
      %p37 = pneg %p31
      %p38 = scmp.eq.s32.totalorder %s22, 1
      %p39 = por %p37, %p38
      %p40 = scmp.ne.s32.totalorder %s32, %s35
      %p41 = scmp.eq.s32.totalorder %s22, 0
      %p42 = por %p40, %p41
      %p43 = scmp.ne.s32.totalorder %s32, %s35
      %p44 = scmp.eq.s32.totalorder %s27, 1
      %p45 = por %p43, %p44
      %p46 = scmp.ne.s32.totalorder %s35, %s36
      %p47 = scmp.eq.s32.totalorder %s27, 0
      %p48 = por %p46, %p47
      %p49 = scmp.ne.s32.totalorder %s35, %s36
      %p50 = scmp.eq.s32.totalorder %s28, 1
      %p51 = por %p49, %p50
      %p53 = scmp.ne.s32.totalorder %s36, %s52
      %p54 = scmp.eq.s32.totalorder %s28, 0
      %p55 = por %p53, %p54
      %s57 = sadd.s32 %s56, 1
      %p60 = scmp.eq.s32.totalorder %s22, 1
      %p61 = scmp.ne.s32.totalorder %s56, %s58
      %p62 = scmp.eq.s32.totalorder %s22, 0
      %p63 = por %p61, %p62
      %p64 = scmp.ne.s32.totalorder %s56, %s58
      %p65 = scmp.eq.s32.totalorder %s27, 1
      %p66 = por %p64, %p65
      %p67 = scmp.ne.s32.totalorder %s58, %s59
      %p68 = scmp.eq.s32.totalorder %s27, 0
      %p69 = por %p67, %p68
      %p70 = scmp.ne.s32.totalorder %s58, %s59
      %p71 = scmp.eq.s32.totalorder %s28, 1
      %p72 = por %p70, %p71
      %p74 = scmp.ne.s32.totalorder %s59, %s73
      %p75 = scmp.eq.s32.totalorder %s28, 0
      %p76 = por %p74, %p75
      %s78 = sadd.s32 %s77, 1
      %p81 = scmp.eq.s32.totalorder %s22, 1
      %p82 = scmp.ne.s32.totalorder %s77, %s79
      %p83 = scmp.eq.s32.totalorder %s22, 0
      %p84 = por %p82, %p83
      %p85 = scmp.ne.s32.totalorder %s77, %s79
      %p86 = scmp.eq.s32.totalorder %s27, 1
      %p87 = por %p85, %p86
      %p88 = scmp.ne.s32.totalorder %s79, %s80
      %p89 = scmp.eq.s32.totalorder %s27, 0
      %p90 = por %p88, %p89
      %p91 = scmp.ne.s32.totalorder %s79, %s80
      %p92 = scmp.eq.s32.totalorder %s28, 1
      %p93 = por %p91, %p92
      %p95 = scmp.ne.s32.totalorder %s80, %s94
      %p96 = scmp.eq.s32.totalorder %s28, 0
      %p97 = por %p95, %p96
      %s99 = sadd.s32 %s98, 1
      %p102 = scmp.eq.s32.totalorder %s22, 1
      %p103 = scmp.ne.s32.totalorder %s98, %s100
      %p104 = scmp.eq.s32.totalorder %s22, 0
      %p105 = por %p103, %p104
      %p106 = scmp.ne.s32.totalorder %s98, %s100
      %p107 = scmp.eq.s32.totalorder %s27, 1
      %p108 = por %p106, %p107
      %p109 = scmp.ne.s32.totalorder %s100, %s101
      %p110 = scmp.eq.s32.totalorder %s27, 0
      %p111 = por %p109, %p110
      %p112 = scmp.ne.s32.totalorder %s100, %s101
      %p113 = scmp.eq.s32.totalorder %s28, 1
      %p114 = por %p112, %p113
      %p116 = scmp.ne.s32.totalorder %s101, %s115
      %p117 = scmp.eq.s32.totalorder %s28, 0
      %p118 = por %p116, %p117
      %s120 = sadd.s32 %s119, 1
      %p123 = scmp.eq.s32.totalorder %s22, 1
      %p124 = scmp.ne.s32.totalorder %s119, %s121
      %p125 = scmp.eq.s32.totalorder %s22, 0
      %p126 = por %p124, %p125
      %p127 = scmp.ne.s32.totalorder %s119, %s121
      %p128 = scmp.eq.s32.totalorder %s27, 1
      %p129 = por %p127, %p128
      %p130 = scmp.ne.s32.totalorder %s121, %s122
      %p131 = scmp.eq.s32.totalorder %s27, 0
      %p132 = por %p130, %p131
      %p133 = scmp.ne.s32.totalorder %s121, %s122
      %p134 = scmp.eq.s32.totalorder %s28, 1
      %p135 = por %p133, %p134
      %p137 = scmp.ne.s32.totalorder %s122, %s136
      %p138 = scmp.eq.s32.totalorder %s28, 0
      %p139 = por %p137, %p138
      %s141 = sadd.s32 %s140, 1
      %p144 = scmp.eq.s32.totalorder %s22, 1
      %p145 = scmp.ne.s32.totalorder %s140, %s142
      %p146 = scmp.eq.s32.totalorder %s22, 0
      %p147 = por %p145, %p146
      %p148 = scmp.ne.s32.totalorder %s140, %s142
      %p149 = scmp.eq.s32.totalorder %s27, 1
      %p150 = por %p148, %p149
      %p151 = scmp.ne.s32.totalorder %s142, %s143
      %p152 = scmp.eq.s32.totalorder %s27, 0
      %p153 = por %p151, %p152
      %p154 = scmp.ne.s32.totalorder %s142, %s143
      %p155 = scmp.eq.s32.totalorder %s28, 1
      %p156 = por %p154, %p155
      %p158 = scmp.ne.s32.totalorder %s143, %s157
      %p159 = scmp.eq.s32.totalorder %s28, 0
      %p160 = por %p158, %p159
      %s162 = sadd.s32 %s161, 1
      %p165 = scmp.eq.s32.totalorder %s22, 1
      %p166 = scmp.ne.s32.totalorder %s161, %s163
      %p167 = scmp.eq.s32.totalorder %s22, 0
      %p168 = por %p166, %p167
      %p169 = scmp.ne.s32.totalorder %s161, %s163
      %p170 = scmp.eq.s32.totalorder %s27, 1
      %p171 = por %p169, %p170
      %p172 = scmp.ne.s32.totalorder %s163, %s164
      %p173 = scmp.eq.s32.totalorder %s27, 0
      %p174 = por %p172, %p173
      %p175 = scmp.ne.s32.totalorder %s163, %s164
      %p176 = scmp.eq.s32.totalorder %s28, 1
      %p177 = por %p175, %p176
      %p179 = scmp.ne.s32.totalorder %s164, %s178
      %p180 = scmp.eq.s32.totalorder %s28, 0
      %p181 = por %p179, %p180
      %s183 = sadd.s32 %s182, 1
      %p186 = scmp.eq.s32.totalorder %s22, 1
      %p187 = scmp.ne.s32.totalorder %s182, %s184
      %p188 = scmp.eq.s32.totalorder %s22, 0
      %p189 = por %p187, %p188
      %p190 = scmp.ne.s32.totalorder %s182, %s184
      %p191 = scmp.eq.s32.totalorder %s27, 1
      %p192 = por %p190, %p191
      %p193 = scmp.ne.s32.totalorder %s184, %s185
      %p194 = scmp.eq.s32.totalorder %s27, 0
      %p195 = por %p193, %p194
      %p196 = scmp.ne.s32.totalorder %s184, %s185
      %p197 = scmp.eq.s32.totalorder %s28, 1
      %p198 = por %p196, %p197
      %p200 = scmp.ne.s32.totalorder %s185, %s199
      %p201 = scmp.eq.s32.totalorder %s28, 0
      %p202 = por %p200, %p201
      %s204 = sadd.s32 %s203, 1
      %p207 = scmp.eq.s32.totalorder %s22, 1
      %p208 = scmp.ne.s32.totalorder %s203, %s205
      %p209 = scmp.eq.s32.totalorder %s22, 0
      %p210 = por %p208, %p209
      %p211 = scmp.ne.s32.totalorder %s203, %s205
      %p212 = scmp.eq.s32.totalorder %s27, 1
      %p213 = por %p211, %p212
      %p214 = scmp.ne.s32.totalorder %s205, %s206
      %p215 = scmp.eq.s32.totalorder %s27, 0
      %p216 = por %p214, %p215
      %p217 = scmp.ne.s32.totalorder %s205, %s206
      %p218 = scmp.eq.s32.totalorder %s28, 1
      %p219 = por %p217, %p218
      %p221 = scmp.ne.s32.totalorder %s206, %s220
      %p222 = scmp.eq.s32.totalorder %s28, 0
      %p223 = por %p221, %p222
      %s225 = sadd.s32 %s224, 1
      %p228 = scmp.eq.s32.totalorder %s22, 1
      %p229 = scmp.ne.s32.totalorder %s224, %s226
      %p230 = scmp.eq.s32.totalorder %s22, 0
      %p231 = por %p229, %p230
      %p232 = scmp.ne.s32.totalorder %s224, %s226
      %p233 = scmp.eq.s32.totalorder %s27, 1
      %p234 = por %p232, %p233
      %p235 = scmp.ne.s32.totalorder %s226, %s227
      %p236 = scmp.eq.s32.totalorder %s27, 0
      %p237 = por %p235, %p236
      %p238 = scmp.ne.s32.totalorder %s226, %s227
      %p239 = scmp.eq.s32.totalorder %s28, 1
      %p240 = por %p238, %p239
      %p242 = scmp.ne.s32.totalorder %s227, %s241
      %p243 = scmp.eq.s32.totalorder %s28, 0
      %p244 = por %p242, %p243
      %s246 = sadd.s32 %s245, 1
      %p249 = scmp.eq.s32.totalorder %s22, 1
      %p250 = scmp.ne.s32.totalorder %s245, %s247
      %p251 = scmp.eq.s32.totalorder %s22, 0
      %p252 = por %p250, %p251
      %p253 = scmp.ne.s32.totalorder %s245, %s247
      %p254 = scmp.eq.s32.totalorder %s27, 1
      %p255 = por %p253, %p254
      %p256 = scmp.ne.s32.totalorder %s247, %s248
      %p257 = scmp.eq.s32.totalorder %s27, 0
      %p258 = por %p256, %p257
      %p259 = scmp.ne.s32.totalorder %s247, %s248
      %p260 = scmp.eq.s32.totalorder %s28, 1
      %p261 = por %p259, %p260
      %p263 = scmp.ne.s32.totalorder %s248, %s262
      %p264 = scmp.eq.s32.totalorder %s28, 0
      %p265 = por %p263, %p264
      %s267 = sadd.s32 %s266, 1
      %p270 = scmp.eq.s32.totalorder %s22, 1
      %p271 = scmp.ne.s32.totalorder %s266, %s268
      %p272 = scmp.eq.s32.totalorder %s22, 0
      %p273 = por %p271, %p272
      %p274 = scmp.ne.s32.totalorder %s266, %s268
      %p275 = scmp.eq.s32.totalorder %s27, 1
      %p276 = por %p274, %p275
      %p277 = scmp.ne.s32.totalorder %s268, %s269
      %p278 = scmp.eq.s32.totalorder %s27, 0
      %p279 = por %p277, %p278
      %p280 = scmp.ne.s32.totalorder %s268, %s269
      %p281 = scmp.eq.s32.totalorder %s28, 1
      %p282 = por %p280, %p281
      %p284 = scmp.ne.s32.totalorder %s269, %s283
      %p285 = scmp.eq.s32.totalorder %s28, 0
      %p286 = por %p284, %p285
      %s287 = ssub.s32 %s22, %s29
      %p288 = scmp.eq.s32.totalorder %s287, 0
      %s290 = sadd.s32 %s289, 1
      %s291 = scalar_select %p288, %s289, %s290
      %p294 = pneg %p288
      %p295 = scmp.eq.s32.totalorder %s22, 1
      %p296 = por %p294, %p295
      %p297 = scmp.ne.s32.totalorder %s289, %s292
      %p298 = scmp.eq.s32.totalorder %s22, 0
      %p299 = por %p297, %p298
      %p300 = scmp.ne.s32.totalorder %s289, %s292
      %p301 = scmp.eq.s32.totalorder %s27, 1
      %p302 = por %p300, %p301
      %p303 = scmp.ne.s32.totalorder %s292, %s293
      %p304 = scmp.eq.s32.totalorder %s27, 0
      %p305 = por %p303, %p304
      %p306 = scmp.ne.s32.totalorder %s292, %s293
      %p307 = scmp.eq.s32.totalorder %s28, 1
      %p308 = por %p306, %p307
      %p310 = scmp.ne.s32.totalorder %s293, %s309
      %p311 = scmp.eq.s32.totalorder %s28, 0
      %p312 = por %p310, %p311
      %s313 = ssub.s32 %s22, %s29
      %p314 = scmp.eq.s32.totalorder %s313, 0
      %s316 = sadd.s32 %s315, 1
      %s317 = scalar_select %p314, %s315, %s316
      %p320 = pneg %p314
      %p321 = scmp.eq.s32.totalorder %s22, 1
      %p322 = por %p320, %p321
      %p323 = scmp.ne.s32.totalorder %s315, %s318
      %p324 = scmp.eq.s32.totalorder %s22, 0
      %p325 = por %p323, %p324
      %p326 = scmp.ne.s32.totalorder %s315, %s318
      %p327 = scmp.eq.s32.totalorder %s27, 1
      %p328 = por %p326, %p327
      %p329 = scmp.ne.s32.totalorder %s318, %s319
      %p330 = scmp.eq.s32.totalorder %s27, 0
      %p331 = por %p329, %p330
      %p332 = scmp.ne.s32.totalorder %s318, %s319
      %p333 = scmp.eq.s32.totalorder %s28, 1
      %p334 = por %p332, %p333
      %p336 = scmp.ne.s32.totalorder %s319, %s335
      %p337 = scmp.eq.s32.totalorder %s28, 0
      %p338 = por %p336, %p337
      %p339 = scmp.le.s32.totalorder 1, %s22
      %p340 = scmp.lt.s32.totalorder %s22, 3
      %p341 = pnand %p339, %p340
      %p342 = pneg %p341
      // Predicated region
      $region9: #{vrp_encoder_forward.2} parent=5 // pred_check
        _
      $region10: #{vrp_encoder_forward.2} parent=5 // pred_check_branch
        %344 = sbr.rel (%p341) target = $region12
      $region11: #{vrp_encoder_forward.2} parent=5 // pred_region
        %s345 = ssub.s32 %s22, 1
        // Predicated region
        $region13: #{vrp_encoder_forward.2} parent=11 // pred_check
          %p346 = pneg %p69
        $region14: #{vrp_encoder_forward.2} parent=11 // pred_check_branch
          %348 = sbr.rel (%p346) target = $region16
        $region15: #{vrp_encoder_forward.2} parent=11 // pred_region
          %s350 = ssub.s32 6144, 6144
          %351 = vsyncadd [#allocation3], %s350
          %s352 = sshll.u32 [#allocation2], 4
          %s353 = int_to_ptr.vmem [resolvable:$true] %s352
          %358 = dma.hbm_to_vmem [thread:$0]  %s1, 6144, %s353, [#allocation3], 384, 384, 24
        $region16: #{vrp_encoder_forward.2} parent=11 // pred_fallthru
          _
        // Predicated region
        $region17: #{vrp_encoder_forward.2} parent=11 // pred_check
          %p359 = pneg %p90
        $region18: #{vrp_encoder_forward.2} parent=11 // pred_check_branch
          %361 = sbr.rel (%p359) target = $region20
        $region19: #{vrp_encoder_forward.2} parent=11 // pred_region
          _
        $region20: #{vrp_encoder_forward.2} parent=11 // pred_fallthru
          _
        // Predicated region
        $region21: #{vrp_encoder_forward.2} parent=11 // pred_check
          %p362 = pneg %p111
        $region22: #{vrp_encoder_forward.2} parent=11 // pred_check_branch
          %364 = sbr.rel (%p362) target = $region24
        $region23: #{vrp_encoder_forward.2} parent=11 // pred_region
          _
        $region24: #{vrp_encoder_forward.2} parent=11 // pred_fallthru
          _
        // Predicated region
        $region25: #{vrp_encoder_forward.2} parent=11 // pred_check
          %p365 = pneg %p132
        $region26: #{vrp_encoder_forward.2} parent=11 // pred_check_branch
          %367 = sbr.rel (%p365) target = $region28
        $region27: #{vrp_encoder_forward.2} parent=11 // pred_region
          %s369 = ssub.s32 8192, 8192
          %370 = vsyncadd [#allocation5], %s369
          %s371 = sshll.u32 [#allocation4], 4
          %s372 = int_to_ptr.vmem [resolvable:$true] %s371
          %377 = dma.hbm_to_vmem [thread:$0]  %s4, 8192, %s372, [#allocation5], 512, 512, 32
        $region28: #{vrp_encoder_forward.2} parent=11 // pred_fallthru
          _
        // Predicated region
        $region29: #{vrp_encoder_forward.2} parent=11 // pred_check
          %p378 = pneg %p153
        $region30: #{vrp_encoder_forward.2} parent=11 // pred_check_branch
          %380 = sbr.rel (%p378) target = $region32
        $region31: #{vrp_encoder_forward.2} parent=11 // pred_region
          _
        $region32: #{vrp_encoder_forward.2} parent=11 // pred_fallthru
          _
        // Predicated region
        $region33: #{vrp_encoder_forward.2} parent=11 // pred_check
          %p381 = pneg %p174
        $region34: #{vrp_encoder_forward.2} parent=11 // pred_check_branch
          %383 = sbr.rel (%p381) target = $region36
        $region35: #{vrp_encoder_forward.2} parent=11 // pred_region
          %s385 = ssub.s32 8192, 8192
          %386 = vsyncadd [#allocation5], %s385
          %s387 = sshll.u32 [#allocation6], 4
          %s388 = int_to_ptr.vmem [resolvable:$true] %s387
          %393 = dma.hbm_to_vmem [thread:$0]  %s6, 8192, %s388, [#allocation5], 128, 128, 8
        $region36: #{vrp_encoder_forward.2} parent=11 // pred_fallthru
          _
        // Predicated region
        $region37: #{vrp_encoder_forward.2} parent=11 // pred_check
          %p394 = pneg %p195
        $region38: #{vrp_encoder_forward.2} parent=11 // pred_check_branch
          %396 = sbr.rel (%p394) target = $region40
        $region39: #{vrp_encoder_forward.2} parent=11 // pred_region
          _
        $region40: #{vrp_encoder_forward.2} parent=11 // pred_fallthru
          _
        // Predicated region
        $region41: #{vrp_encoder_forward.2} parent=11 // pred_check
          %p397 = pneg %p216
        $region42: #{vrp_encoder_forward.2} parent=11 // pred_check_branch
          %399 = sbr.rel (%p397) target = $region44
        $region43: #{vrp_encoder_forward.2} parent=11 // pred_region
          _
        $region44: #{vrp_encoder_forward.2} parent=11 // pred_fallthru
          _
        // Predicated region
        $region45: #{vrp_encoder_forward.2} parent=11 // pred_check
          %p400 = pneg %p237
        $region46: #{vrp_encoder_forward.2} parent=11 // pred_check_branch
          %402 = sbr.rel (%p400) target = $region48
        $region47: #{vrp_encoder_forward.2} parent=11 // pred_region
          _
        $region48: #{vrp_encoder_forward.2} parent=11 // pred_fallthru
          _
        // Predicated region
        $region49: #{vrp_encoder_forward.2} parent=11 // pred_check
          %p403 = pneg %p258
        $region50: #{vrp_encoder_forward.2} parent=11 // pred_check_branch
          %405 = sbr.rel (%p403) target = $region52
        $region51: #{vrp_encoder_forward.2} parent=11 // pred_region
          _
        $region52: #{vrp_encoder_forward.2} parent=11 // pred_fallthru
          _
        // Predicated region
        $region53: #{vrp_encoder_forward.2} parent=11 // pred_check
          %p406 = pneg %p279
        $region54: #{vrp_encoder_forward.2} parent=11 // pred_check_branch
          %408 = sbr.rel (%p406) target = $region56
        $region55: #{vrp_encoder_forward.2} parent=11 // pred_region
          _
        $region56: #{vrp_encoder_forward.2} parent=11 // pred_fallthru
          _
      $region12: #{vrp_encoder_forward.2} parent=5 // pred_fallthru
        _
      %p409 = scmp.lt.s32.totalorder %s22, 2
      // Predicated region
      $region57: #{vrp_encoder_forward.2} parent=5 // pred_check
        %p410 = pneg %p409
      $region58: #{vrp_encoder_forward.2} parent=5 // pred_check_branch
        %412 = sbr.rel (%p410) target = $region60
      $region59: #{vrp_encoder_forward.2} parent=5 // pred_region
        // Predicated region
        $region61: #{vrp_encoder_forward.2} parent=59 // pred_check
          %p413 = pneg %p42
        $region62: #{vrp_encoder_forward.2} parent=59 // pred_check_branch
          %415 = sbr.rel (%p413) target = $region64
        $region63: #{vrp_encoder_forward.2} parent=59 // pred_region
          %p416 = scmp.lt.s32.totalorder %s22, 1
          %s417 = scalar_select %p416, %s22, 1
          %s418 = smul.addr %s417, 3
          %s419 = smul.addr %s418, 8
          %s420 = scalar_lea.vmem %s0, %s419
        $region64: #{vrp_encoder_forward.2} parent=59 // pred_fallthru
          _
      $region60: #{vrp_encoder_forward.2} parent=5 // pred_fallthru
        _
      %p421 = scmp.le.s32.totalorder 1, %s22
      %p422 = scmp.lt.s32.totalorder %s22, 3
      %p423 = pnand %p421, %p422
      %p424 = pneg %p423
      // Predicated region
      $region65: #{vrp_encoder_forward.2} parent=5 // pred_check
        _
      $region66: #{vrp_encoder_forward.2} parent=5 // pred_check_branch
        %426 = sbr.rel (%p423) target = $region68
      $region67: #{vrp_encoder_forward.2} parent=5 // pred_region
        %s427 = ssub.s32 %s22, 1
        // Predicated region
        $region69: #{vrp_encoder_forward.2} parent=67 // pred_check
          %p428 = pneg %p69
        $region70: #{vrp_encoder_forward.2} parent=67 // pred_check_branch
          %430 = sbr.rel (%p428) target = $region72
        $region71: #{vrp_encoder_forward.2} parent=67 // pred_region
          %431 = dma.done [#allocation3], 6144
        $region72: #{vrp_encoder_forward.2} parent=67 // pred_fallthru
          _
        // Predicated region
        $region73: #{vrp_encoder_forward.2} parent=67 // pred_check
          %p432 = pneg %p132
        $region74: #{vrp_encoder_forward.2} parent=67 // pred_check_branch
          %434 = sbr.rel (%p432) target = $region76
        $region75: #{vrp_encoder_forward.2} parent=67 // pred_region
          %435 = dma.done [#allocation5], 8192
        $region76: #{vrp_encoder_forward.2} parent=67 // pred_fallthru
          _
        // Predicated region
        $region77: #{vrp_encoder_forward.2} parent=67 // pred_check
          %p436 = pneg %p174
        $region78: #{vrp_encoder_forward.2} parent=67 // pred_check_branch
          %438 = sbr.rel (%p436) target = $region80
        $region79: #{vrp_encoder_forward.2} parent=67 // pred_region
          %439 = dma.done [#allocation5], 8192
        $region80: #{vrp_encoder_forward.2} parent=67 // pred_fallthru
          _
        %p440 = scmp.lt.s32.totalorder %s27, 1
        %s441 = scalar_select %p440, %s27, 1
        %s442 = smul.addr %s441, 3
        %s443 = smul.addr %s442, 8
        %s444 = scalar_lea.vmem %s0, %s443
        %p445 = pneg %p48
        %p446 = pneg %p45
        %p447 = pneg %p69
        %p448 = pneg %p66
        %p449 = pneg %p90
        %p450 = pneg %p87
        %p451 = pneg %p111
        %p452 = pneg %p108
        %p453 = pneg %p132
        %p454 = pneg %p129
        %p455 = pneg %p153
        %p456 = pneg %p150
        %p457 = pneg %p174
        %p458 = pneg %p171
        %p459 = pneg %p195
        %p460 = pneg %p192
        %p461 = pneg %p216
        %p462 = pneg %p213
        %p463 = pneg %p237
        %p464 = pneg %p234
        %p465 = pneg %p258
        %p466 = pneg %p255
        %p467 = pneg %p279
        %p468 = pneg %p276
        %p469 = pneg %p305
        %p470 = pneg %p302
        %p471 = scmp.lt.s32.totalorder %s27, 1
        %s472 = scalar_select %p471, %s27, 1
        %s473 = smul.addr %s472, 3
        %s474 = smul.addr %s473, 8
        %s475 = scalar_lea.vmem %s12, %s474
        %p476 = pneg %p331
        %p477 = pneg %p328
        %p478 = scmp.lt.s32.totalorder %s27, 1
        %s479 = scalar_select %p478, %s27, 1
        %s480 = smul.addr %s479, 3
        %s481 = smul.addr %s480, 8
        %s482 = scalar_lea.vmem %s13, %s481
        %p483 = scmp.lt.s32.totalorder %s27, 1
        %s484 = scalar_select %p483, %s27, 1
        %s485 = smul.addr %s484, 3
        %s486 = smul.addr %s485, 8
        %s487 = scalar_lea.vmem %s0, %s486
        %p488 = scmp.lt.s32.totalorder %s27, 1
        %s489 = scalar_select %p488, %s27, 1
        %s490 = smul.addr %s489, 3
        %s491 = smul.addr %s490, 8
        %s492 = scalar_lea.vmem %s12, %s491
        %p493 = scmp.lt.s32.totalorder %s27, 1
        %s494 = scalar_select %p493, %s27, 1
        %s495 = smul.addr %s494, 3
        %s496 = smul.addr %s495, 8
        %s497 = scalar_lea.vmem %s13, %s496
        %v498 = vld [vmem:[%s487] sm:$0xff]
        %v499 = vld [vmem:[%s487 + $0x8] sm:$0xff]
        %v500 = vld [vmem:[%s487 + $0x10] sm:$0x1f]
        %v501 = vld [vmem:[#allocation2] sm:$0xff]
        %v502 = vld [vmem:[#allocation2 + $0x8] sm:$0xff]
        %v503 = vld [vmem:[#allocation2 + $0x10] sm:$0xff]
        %v504 = vld [vmem:[#allocation2 + $0x18] sm:$0xff]
        %v505 = vld [vmem:[#allocation2 + $0x20] sm:$0xff]
        %v506 = vld [vmem:[#allocation2 + $0x28] sm:$0xff]
        %v507 = vld [vmem:[#allocation2 + $0x30] sm:$0xff]
        %v508 = vld [vmem:[#allocation2 + $0x38] sm:$0xff]
        %v509 = vld [vmem:[#allocation2 + $0x40] sm:$0xff]
        %v510 = vld [vmem:[#allocation2 + $0x48] sm:$0xff]
        %v511 = vld [vmem:[#allocation2 + $0x50] sm:$0xff]
        %v512 = vld [vmem:[#allocation2 + $0x58] sm:$0xff]
        %v513 = vld [vmem:[#allocation2 + $0x60] sm:$0xff]
        %v514 = vld [vmem:[#allocation2 + $0x68] sm:$0xff]
        %v515 = vld [vmem:[#allocation2 + $0x70] sm:$0xff]
        %v516 = vld [vmem:[#allocation2 + $0x78] sm:$0xff]
        %v517 = vld [vmem:[#allocation2 + $0x80] sm:$0xff]
        %v518 = vld [vmem:[#allocation2 + $0x88] sm:$0xff]
        %v519 = vld [vmem:[#allocation2 + $0x90] sm:$0xff]
        %v520 = vld [vmem:[#allocation2 + $0x98] sm:$0xff]
        %v521 = vld [vmem:[#allocation2 + $0xa0] sm:$0xff]
        %v522 = vld [vmem:[#allocation2 + $0xa8] sm:$0xff]
        %v523 = vld [vmem:[#allocation2 + $0xb0] sm:$0xff]
        %v524 = vld [vmem:[#allocation2 + $0xb8] sm:$0xff]
        %v525 = vld [vmem:[#allocation2 + $0xc0] sm:$0xff]
        %v526 = vld [vmem:[#allocation2 + $0xc8] sm:$0xff]
        %v527 = vld [vmem:[#allocation2 + $0xd0] sm:$0xff]
        %v528 = vld [vmem:[#allocation2 + $0xd8] sm:$0xff]
        %v529 = vld [vmem:[#allocation2 + $0xe0] sm:$0xff]
        %v530 = vld [vmem:[#allocation2 + $0xe8] sm:$0xff]
        %v531 = vld [vmem:[#allocation2 + $0xf0] sm:$0xff]
        %v532 = vld [vmem:[#allocation2 + $0xf8] sm:$0xff]
        %v533 = vld [vmem:[#allocation2 + $0x100] sm:$0xff]
        %v534 = vld [vmem:[#allocation2 + $0x108] sm:$0xff]
        %v535 = vld [vmem:[#allocation2 + $0x110] sm:$0xff]
        %v536 = vld [vmem:[#allocation2 + $0x118] sm:$0xff]
        %v537 = vld [vmem:[#allocation2 + $0x120] sm:$0xff]
        %v538 = vld [vmem:[#allocation2 + $0x128] sm:$0xff]
        %v539 = vld [vmem:[#allocation2 + $0x130] sm:$0xff]
        %v540 = vld [vmem:[#allocation2 + $0x138] sm:$0xff]
        %v541 = vld [vmem:[#allocation2 + $0x140] sm:$0xff]
        %v542 = vld [vmem:[#allocation2 + $0x148] sm:$0xff]
        %v543 = vld [vmem:[#allocation2 + $0x150] sm:$0xff]
        %v544 = vld [vmem:[#allocation2 + $0x158] sm:$0xff]
        %v545 = vld [vmem:[#allocation2 + $0x160] sm:$0xff]
        %v546 = vld [vmem:[#allocation2 + $0x168] sm:$0xff]
        %v547 = vld [vmem:[#allocation2 + $0x170] sm:$0xff]
        %v548 = vld [vmem:[#allocation2 + $0x178] sm:$0xff]
        %549 = vmatprep.subr.mxu0 %v502
        %550 = vmatpush1.msra.mxu0 %v501
        %551 = vmatprep.subr.mxu0 %v505
        %552 = vmatpush1.msra.mxu0 %v504
        %553 = vmatprep.subr.mxu0 %v508
        %554 = vmatpush1.msra.mxu0 %v507
        %555 = vmatprep.subr.mxu0 %v511
        %556 = vmatpush1.msra.mxu0 %v510
        %557 = vmatprep.subr.mxu0 %v514
        %558 = vmatpush1.msra.mxu0 %v513
        %559 = vmatprep.subr.mxu0 %v517
        %560 = vmatpush1.msra.mxu0 %v516
        %561 = vmatprep.subr.mxu0 %v520
        %562 = vmatpush1.msra.mxu0 %v519
        %563 = vmatprep.subr.mxu0 %v523
        %564 = vmatpush1.msra.mxu0 %v522
        %565 = vmatprep.subr.mxu0 %v526
        %566 = vmatpush1.msra.mxu0 %v525
        %567 = vmatprep.subr.mxu0 %v529
        %568 = vmatpush1.msra.mxu0 %v528
        %569 = vmatprep.subr.mxu0 %v532
        %570 = vmatpush1.msra.mxu0 %v531
        %571 = vmatprep.subr.mxu0 %v535
        %572 = vmatpush1.msra.mxu0 %v534
        %573 = vmatprep.subr.mxu0 %v538
        %574 = vmatpush1.msra.mxu0 %v537
        %575 = vmatprep.subr.mxu0 %v541
        %576 = vmatpush1.msra.mxu0 %v540
        %577 = vmatprep.subr.mxu0 %v544
        %578 = vmatpush1.msra.mxu0 %v543
        %579 = vmatprep.subr.mxu0 %v547
        %580 = vmatpush1.msra.mxu0 %v546
        %581 = vmatprep.subr.mxu0 0.0
        %582 = vmatpush1.msra.mxu0 0.0
        %583 = vmatprep.subr.mxu0 0.0
        %584 = vmatpush1.msra.mxu0 0.0
        %585 = vmatprep.subr.mxu0 0.0
        %586 = vmatpush1.msra.mxu0 0.0
        %587 = vmatprep.subr.mxu0 0.0
        %588 = vmatpush1.msra.mxu0 0.0
        %589 = vmatprep.subr.mxu0 0.0
        %590 = vmatpush1.msra.mxu0 0.0
        %591 = vmatprep.subr.mxu0 0.0
        %592 = vmatpush1.msra.mxu0 0.0
        %593 = vmatprep.subr.mxu0 0.0
        %594 = vmatpush1.msra.mxu0 0.0
        %595 = vmatprep.subr.mxu0 0.0
        %596 = vmatpush1.msra.mxu0 0.0
        %597 = vmatprep.subr.mxu0 0.0
        %598 = vmatpush1.msra.mxu0 0.0
        %599 = vmatprep.subr.mxu0 0.0
        %600 = vmatpush1.msra.mxu0 0.0
        %601 = vmatprep.subr.mxu0 0.0
        %602 = vmatpush1.msra.mxu0 0.0
        %603 = vmatprep.subr.mxu0 0.0
        %604 = vmatpush1.msra.mxu0 0.0
        %605 = vmatprep.subr.mxu0 0.0
        %606 = vmatpush1.msra.mxu0 0.0
        %607 = vmatprep.subr.mxu0 0.0
        %608 = vmatpush1.msra.mxu0 0.0
        %609 = vmatprep.subr.mxu0 0.0
        %610 = vmatpush1.msra.mxu0 0.0
        %611 = vmatprep.subr.mxu0 0.0
        %612 = vmatpush1.msra.mxu0 0.0
        %613 = vmatprep.mubr.f32.mxu0 0.0
        %614 = vmatmul.mubr.f32.gmra.mrb[0].mxu0 %v498
        %v615 = vpop.f32.mrb[0].mxu0
        %v616 = vadd.f32 0.0, %v615
        %v617 = vpop.f32.mrb[0].mxu0
        %v618 = vadd.f32 0.0, %v617
        %619 = vmatprep.mubr.f32.mxu0 0.0
        %620 = vmatmul.mubr.f32.gmra.mrb[0].mxu0 %v499
        %v621 = vpop.f32.mrb[0].mxu0
        %v622 = vadd.f32 0.0, %v621
        %v623 = vpop.f32.mrb[0].mxu0
        %v624 = vadd.f32 0.0, %v623
        %625 = vmatprep.mubr.f32.mxu0 0.0
        %626 = vmatmul.mubr.f32.gmra.mrb[0].mxu0 %v500
        %v627 = vpop.f32.mrb[0].mxu0
        %v628 = vadd.f32 0.0, %v627
        %v629 = vpop.f32.mrb[0].mxu0
        %v630 = vadd.f32 0.0, %v629
        %631 = vdwg.mxu0
        %632 = vmatprep.subr.mxu0 0.0
        %633 = vmatpush1.msra.mxu0 %v503
        %634 = vmatprep.subr.mxu0 0.0
        %635 = vmatpush1.msra.mxu0 %v506
        %636 = vmatprep.subr.mxu0 0.0
        %637 = vmatpush1.msra.mxu0 %v509
        %638 = vmatprep.subr.mxu0 0.0
        %639 = vmatpush1.msra.mxu0 %v512
        %640 = vmatprep.subr.mxu0 0.0
        %641 = vmatpush1.msra.mxu0 %v515
        %642 = vmatprep.subr.mxu0 0.0
        %643 = vmatpush1.msra.mxu0 %v518
        %644 = vmatprep.subr.mxu0 0.0
        %645 = vmatpush1.msra.mxu0 %v521
        %646 = vmatprep.subr.mxu0 0.0
        %647 = vmatpush1.msra.mxu0 %v524
        %648 = vmatprep.subr.mxu0 0.0
        %649 = vmatpush1.msra.mxu0 %v527
        %650 = vmatprep.subr.mxu0 0.0
        %651 = vmatpush1.msra.mxu0 %v530
        %652 = vmatprep.subr.mxu0 0.0
        %653 = vmatpush1.msra.mxu0 %v533
        %654 = vmatprep.subr.mxu0 0.0
        %655 = vmatpush1.msra.mxu0 %v536
        %656 = vmatprep.subr.mxu0 0.0
        %657 = vmatpush1.msra.mxu0 %v539
        %658 = vmatprep.subr.mxu0 0.0
        %659 = vmatpush1.msra.mxu0 %v542
        %660 = vmatprep.subr.mxu0 0.0
        %661 = vmatpush1.msra.mxu0 %v545
        %662 = vmatprep.subr.mxu0 0.0
        %663 = vmatpush1.msra.mxu0 %v548
        %664 = vmatprep.subr.mxu0 0.0
        %665 = vmatpush1.msra.mxu0 0.0
        %666 = vmatprep.subr.mxu0 0.0
        %667 = vmatpush1.msra.mxu0 0.0
        %668 = vmatprep.subr.mxu0 0.0
        %669 = vmatpush1.msra.mxu0 0.0
        %670 = vmatprep.subr.mxu0 0.0
        %671 = vmatpush1.msra.mxu0 0.0
        %672 = vmatprep.subr.mxu0 0.0
        %673 = vmatpush1.msra.mxu0 0.0
        %674 = vmatprep.subr.mxu0 0.0
        %675 = vmatpush1.msra.mxu0 0.0
        %676 = vmatprep.subr.mxu0 0.0
        %677 = vmatpush1.msra.mxu0 0.0
        %678 = vmatprep.subr.mxu0 0.0
        %679 = vmatpush1.msra.mxu0 0.0
        %680 = vmatprep.subr.mxu0 0.0
        %681 = vmatpush1.msra.mxu0 0.0
        %682 = vmatprep.subr.mxu0 0.0
        %683 = vmatpush1.msra.mxu0 0.0
        %684 = vmatprep.subr.mxu0 0.0
        %685 = vmatpush1.msra.mxu0 0.0
        %686 = vmatprep.subr.mxu0 0.0
        %687 = vmatpush1.msra.mxu0 0.0
        %688 = vmatprep.subr.mxu0 0.0
        %689 = vmatpush1.msra.mxu0 0.0
        %690 = vmatprep.subr.mxu0 0.0
        %691 = vmatpush1.msra.mxu0 0.0
        %692 = vmatprep.subr.mxu0 0.0
        %693 = vmatpush1.msra.mxu0 0.0
        %694 = vmatprep.subr.mxu0 0.0
        %695 = vmatpush1.msra.mxu0 0.0
        %696 = vmatprep.mubr.f32.mxu0 0.0
        %697 = vmatmul.mubr.f32.gmra.mrb[0].mxu0 %v498
        %v698 = vpop.f32.mrb[0].mxu0
        %v699 = vadd.f32 0.0, %v698
        %v700 = vpop.f32.mrb[0].mxu0
        %701 = vmatprep.mubr.f32.mxu0 0.0
        %702 = vmatmul.mubr.f32.gmra.mrb[0].mxu0 %v499
        %v703 = vpop.f32.mrb[0].mxu0
        %v704 = vadd.f32 0.0, %v703
        %v705 = vpop.f32.mrb[0].mxu0
        %706 = vmatprep.mubr.f32.mxu0 0.0
        %707 = vmatmul.mubr.f32.gmra.mrb[0].mxu0 %v500
        %v708 = vpop.f32.mrb[0].mxu0
        %v709 = vadd.f32 0.0, %v708
        %v710 = vpop.f32.mrb[0].mxu0
        %711 = vdwg.mxu0
        %vm712 = vcmask 130048
        %v714 = vsel %vm712, %v616, 0
        %v717 = vsel %vm712, %v622, 0
        %v720 = vsel %vm712, %v628, 0
        %v723 = vsel %vm712, %v618, 0
        %v726 = vsel %vm712, %v624, 0
        %v729 = vsel %vm712, %v630, 0
        %731 = vmatprep.subr.mxu0 0.0
        %732 = vmatpush1.xpose.msra.mxu0 %v723
        %733 = vmatprep.subr.mxu0 0.0
        %734 = vmatpush1.xpose.msra.mxu0 %v726
        %735 = vmatprep.subr.mxu0 0.0
        %736 = vmatpush1.xpose.msra.mxu0 %v729
        %737 = vmatprep.subr.mxu0 0.0
        %738 = vmatpush1.xpose.msra.mxu0 0.0
        %739 = vmatprep.subr.mxu0 0.0
        %740 = vmatpush1.xpose.msra.mxu0 0.0
        %741 = vmatprep.subr.mxu0 0.0
        %742 = vmatpush1.xpose.msra.mxu0 0.0
        %743 = vmatprep.subr.mxu0 0.0
        %744 = vmatpush1.xpose.msra.mxu0 0.0
        %745 = vmatprep.subr.mxu0 0.0
        %746 = vmatpush1.xpose.msra.mxu0 0.0
        %747 = vmatprep.subr.mxu0 0.0
        %748 = vmatpush1.xpose.msra.mxu0 0.0
        %749 = vmatprep.subr.mxu0 0.0
        %750 = vmatpush1.xpose.msra.mxu0 0.0
        %751 = vmatprep.subr.mxu0 0.0
        %752 = vmatpush1.xpose.msra.mxu0 0.0
        %753 = vmatprep.subr.mxu0 0.0
        %754 = vmatpush1.xpose.msra.mxu0 0.0
        %755 = vmatprep.subr.mxu0 0.0
        %756 = vmatpush1.xpose.msra.mxu0 0.0
        %757 = vmatprep.subr.mxu0 0.0
        %758 = vmatpush1.xpose.msra.mxu0 0.0
        %759 = vmatprep.subr.mxu0 0.0
        %760 = vmatpush1.xpose.msra.mxu0 0.0
        %761 = vmatprep.subr.mxu0 0.0
        %762 = vmatpush1.xpose.msra.mxu0 0.0
        %763 = vmatprep.subr.mxu0 0.0
        %764 = vmatpush1.xpose.msra.mxu0 0.0
        %765 = vmatprep.subr.mxu0 0.0
        %766 = vmatpush1.xpose.msra.mxu0 0.0
        %767 = vmatprep.subr.mxu0 0.0
        %768 = vmatpush1.xpose.msra.mxu0 0.0
        %769 = vmatprep.subr.mxu0 0.0
        %770 = vmatpush1.xpose.msra.mxu0 0.0
        %771 = vmatprep.subr.mxu0 0.0
        %772 = vmatpush1.xpose.msra.mxu0 0.0
        %773 = vmatprep.subr.mxu0 0.0
        %774 = vmatpush1.xpose.msra.mxu0 0.0
        %775 = vmatprep.subr.mxu0 0.0
        %776 = vmatpush1.xpose.msra.mxu0 0.0
        %777 = vmatprep.subr.mxu0 0.0
        %778 = vmatpush1.xpose.msra.mxu0 0.0
        %779 = vmatprep.subr.mxu0 0.0
        %780 = vmatpush1.xpose.msra.mxu0 0.0
        %781 = vmatprep.subr.mxu0 0.0
        %782 = vmatpush1.xpose.msra.mxu0 0.0
        %783 = vmatprep.subr.mxu0 0.0
        %784 = vmatpush1.xpose.msra.mxu0 0.0
        %785 = vmatprep.subr.mxu0 0.0
        %786 = vmatpush1.xpose.msra.mxu0 0.0
        %787 = vmatprep.subr.mxu0 0.0
        %788 = vmatpush1.xpose.msra.mxu0 0.0
        %789 = vmatprep.subr.mxu0 0.0
        %790 = vmatpush1.xpose.msra.mxu0 0.0
        %791 = vmatprep.subr.mxu0 0.0
        %792 = vmatpush1.xpose.msra.mxu0 0.0
        %793 = vmatprep.subr.mxu0 0.0
        %794 = vmatpush1.xpose.msra.mxu0 0.0
        %795 = vmatprep.mubr.f32.mxu0 0.0
        %796 = vmatmul.mubr.f32.gmra.mrb[0].mxu0 %v714
        %v797 = vpop.f32.mrb[0].mxu0
        %v798 = vadd.f32 0.0, %v797
        %v799 = vpop.f32.mrb[0].mxu0
        %800 = vmatprep.mubr.f32.mxu0 0.0
        %801 = vmatmul.mubr.f32.gmra.mrb[0].mxu0 %v717
        %v802 = vpop.f32.mrb[0].mxu0
        %v803 = vadd.f32 0.0, %v802
        %v804 = vpop.f32.mrb[0].mxu0
        %805 = vmatprep.mubr.f32.mxu0 0.0
        %806 = vmatmul.mubr.f32.gmra.mrb[0].mxu0 %v720
        %v807 = vpop.f32.mrb[0].mxu0
        %v808 = vadd.f32 0.0, %v807
        %v809 = vpop.f32.mrb[0].mxu0
        %810 = vdwg.mxu0
        %vm811 = vcmask 171008
        %v812 = vsel %vm811, %v798, -inf
        %813 = vmax.xlane.f32.xlu0 %v812
        %v814 = vpop.xlane.xlu0 %813
        %v815 = vsel %vm811, %v803, -inf
        %816 = vmax.xlane.f32.xlu0 %v815
        %v817 = vpop.xlane.xlu0 %816
        %vm818 = vcmask 167936
        %v819 = vsel %vm818, %v808, -inf
        %820 = vmax.xlane.f32.xlu0 %v819
        %v821 = vpop.xlane.xlu0 %820
        %v822 = vsub.f32 %v798, %v814
        %v823 = vsub.f32 %v803, %v817
        %v824 = vsub.f32 %v808, %v821
        %v825 = vmul.f32 %v822, 1.442695
        %v826 = vpow.pop %v825
        %v827 = vmul.f32 %v823, 1.442695
        %v828 = vpow.pop %v827
        %v829 = vmul.f32 %v824, 1.442695
        %v830 = vpow.pop %v829
        %v831 = vsel %vm811, %v826, 0.0
        %832 = vadd.xlane.f32.xlu0 %v831
        %v833 = vpop.xlane.xlu0 %832
        %v834 = vsel %vm811, %v828, 0.0
        %835 = vadd.xlane.f32.xlu0 %v834
        %v836 = vpop.xlane.xlu0 %835
        %v837 = vsel %vm818, %v830, 0.0
        %838 = vadd.xlane.f32.xlu0 %v837
        %v839 = vpop.xlane.xlu0 %838
        %v840 = vrcp.pop %v833
        %v841 = vrcp.pop %v836
        %v842 = vrcp.pop %v839
        %v843 = vmul.f32 %v826, %v840
        %v844 = vmul.f32 %v828, %v841
        %v845 = vmul.f32 %v830, %v842
        %v847 = vsel %vm811, %v843, 0
        %v850 = vsel %vm811, %v844, 0
        %v853 = vsel %vm811, %v845, 0
        %vm855 = vcmask 1044480
        %v857 = vsel %vm855, %v709, 0
        %859 = vmatprep.subr.mxu0 0.0
        %860 = vmatpush1.msra.mxu0 %v699
        %861 = vmatprep.subr.mxu0 0.0
        %862 = vmatpush1.msra.mxu0 %v704
        %863 = vmatprep.subr.mxu0 0.0
        %864 = vmatpush1.msra.mxu0 %v857
        %865 = vmatprep.subr.mxu0 0.0
        %866 = vmatpush1.msra.mxu0 0.0
        %867 = vmatprep.subr.mxu0 0.0
        %868 = vmatpush1.msra.mxu0 0.0
        %869 = vmatprep.subr.mxu0 0.0
        %870 = vmatpush1.msra.mxu0 0.0
        %871 = vmatprep.subr.mxu0 0.0
        %872 = vmatpush1.msra.mxu0 0.0
        %873 = vmatprep.subr.mxu0 0.0
        %874 = vmatpush1.msra.mxu0 0.0
        %875 = vmatprep.subr.mxu0 0.0
        %876 = vmatpush1.msra.mxu0 0.0
        %877 = vmatprep.subr.mxu0 0.0
        %878 = vmatpush1.msra.mxu0 0.0
        %879 = vmatprep.subr.mxu0 0.0
        %880 = vmatpush1.msra.mxu0 0.0
        %881 = vmatprep.subr.mxu0 0.0
        %882 = vmatpush1.msra.mxu0 0.0
        %883 = vmatprep.subr.mxu0 0.0
        %884 = vmatpush1.msra.mxu0 0.0
        %885 = vmatprep.subr.mxu0 0.0
        %886 = vmatpush1.msra.mxu0 0.0
        %887 = vmatprep.subr.mxu0 0.0
        %888 = vmatpush1.msra.mxu0 0.0
        %889 = vmatprep.subr.mxu0 0.0
        %890 = vmatpush1.msra.mxu0 0.0
        %891 = vmatprep.subr.mxu0 0.0
        %892 = vmatpush1.msra.mxu0 0.0
        %893 = vmatprep.subr.mxu0 0.0
        %894 = vmatpush1.msra.mxu0 0.0
        %895 = vmatprep.subr.mxu0 0.0
        %896 = vmatpush1.msra.mxu0 0.0
        %897 = vmatprep.subr.mxu0 0.0
        %898 = vmatpush1.msra.mxu0 0.0
        %899 = vmatprep.subr.mxu0 0.0
        %900 = vmatpush1.msra.mxu0 0.0
        %901 = vmatprep.subr.mxu0 0.0
        %902 = vmatpush1.msra.mxu0 0.0
        %903 = vmatprep.subr.mxu0 0.0
        %904 = vmatpush1.msra.mxu0 0.0
        %905 = vmatprep.subr.mxu0 0.0
        %906 = vmatpush1.msra.mxu0 0.0
        %907 = vmatprep.subr.mxu0 0.0
        %908 = vmatpush1.msra.mxu0 0.0
        %909 = vmatprep.subr.mxu0 0.0
        %910 = vmatpush1.msra.mxu0 0.0
        %911 = vmatprep.subr.mxu0 0.0
        %912 = vmatpush1.msra.mxu0 0.0
        %913 = vmatprep.subr.mxu0 0.0
        %914 = vmatpush1.msra.mxu0 0.0
        %915 = vmatprep.subr.mxu0 0.0
        %916 = vmatpush1.msra.mxu0 0.0
        %917 = vmatprep.subr.mxu0 0.0
        %918 = vmatpush1.msra.mxu0 0.0
        %919 = vmatprep.subr.mxu0 0.0
        %920 = vmatpush1.msra.mxu0 0.0
        %921 = vmatprep.subr.mxu0 0.0
        %922 = vmatpush1.msra.mxu0 0.0
        %923 = vmatprep.mubr.f32.mxu0 0.0
        %924 = vmatmul.mubr.f32.gmra.mrb[0].mxu0 %v847
        %v925 = vpop.f32.mrb[0].mxu0
        %v926 = vadd.f32 0.0, %v925
        %v927 = vpop.f32.mrb[0].mxu0
        %928 = vmatprep.mubr.f32.mxu0 0.0
        %929 = vmatmul.mubr.f32.gmra.mrb[0].mxu0 %v850
        %v930 = vpop.f32.mrb[0].mxu0
        %v931 = vadd.f32 0.0, %v930
        %v932 = vpop.f32.mrb[0].mxu0
        %933 = vmatprep.mubr.f32.mxu0 0.0
        %934 = vmatmul.mubr.f32.gmra.mrb[0].mxu0 %v853
        %v935 = vpop.f32.mrb[0].mxu0
        %v936 = vadd.f32 0.0, %v935
        %v937 = vpop.f32.mrb[0].mxu0
        %938 = vdwg.mxu0
        %939 = vrot.lane.b32.xlu0 %v616, 112
        %v940 = vpop.permute.xlu0 %939
        %941 = vrot.lane.b32.xlu0 %v622, 112
        %v942 = vpop.permute.xlu0 %941
        %943 = vrot.lane.b32.xlu0 %v628, 112
        %v944 = vpop.permute.xlu0 %943
        %945 = vrot.lane.b32.xlu0 %v618, 112
        %v946 = vpop.permute.xlu0 %945
        %947 = vrot.lane.b32.xlu0 %v624, 112
        %v948 = vpop.permute.xlu0 %947
        %949 = vrot.lane.b32.xlu0 %v630, 112
        %v950 = vpop.permute.xlu0 %949
        %v951 = vsel %vm712, %v940, 0
        %v953 = vsel %vm712, %v942, 0
        %v955 = vsel %vm712, %v944, 0
        %v957 = vsel %vm712, %v946, 0
        %v959 = vsel %vm712, %v948, 0
        %v961 = vsel %vm712, %v950, 0
        %963 = vmatprep.subr.mxu0 0.0
        %964 = vmatpush1.xpose.msra.mxu0 %v957
        %965 = vmatprep.subr.mxu0 0.0
        %966 = vmatpush1.xpose.msra.mxu0 %v959
        %967 = vmatprep.subr.mxu0 0.0
        %968 = vmatpush1.xpose.msra.mxu0 %v961
        %969 = vmatprep.subr.mxu0 0.0
        %970 = vmatpush1.xpose.msra.mxu0 0.0
        %971 = vmatprep.subr.mxu0 0.0
        %972 = vmatpush1.xpose.msra.mxu0 0.0
        %973 = vmatprep.subr.mxu0 0.0
        %974 = vmatpush1.xpose.msra.mxu0 0.0
        %975 = vmatprep.subr.mxu0 0.0
        %976 = vmatpush1.xpose.msra.mxu0 0.0
        %977 = vmatprep.subr.mxu0 0.0
        %978 = vmatpush1.xpose.msra.mxu0 0.0
        %979 = vmatprep.subr.mxu0 0.0
        %980 = vmatpush1.xpose.msra.mxu0 0.0
        %981 = vmatprep.subr.mxu0 0.0
        %982 = vmatpush1.xpose.msra.mxu0 0.0
        %983 = vmatprep.subr.mxu0 0.0
        %984 = vmatpush1.xpose.msra.mxu0 0.0
        %985 = vmatprep.subr.mxu0 0.0
        %986 = vmatpush1.xpose.msra.mxu0 0.0
        %987 = vmatprep.subr.mxu0 0.0
        %988 = vmatpush1.xpose.msra.mxu0 0.0
        %989 = vmatprep.subr.mxu0 0.0
        %990 = vmatpush1.xpose.msra.mxu0 0.0
        %991 = vmatprep.subr.mxu0 0.0
        %992 = vmatpush1.xpose.msra.mxu0 0.0
        %993 = vmatprep.subr.mxu0 0.0
        %994 = vmatpush1.xpose.msra.mxu0 0.0
        %995 = vmatprep.subr.mxu0 0.0
        %996 = vmatpush1.xpose.msra.mxu0 0.0
        %997 = vmatprep.subr.mxu0 0.0
        %998 = vmatpush1.xpose.msra.mxu0 0.0
        %999 = vmatprep.subr.mxu0 0.0
        %1000 = vmatpush1.xpose.msra.mxu0 0.0
        %1001 = vmatprep.subr.mxu0 0.0
        %1002 = vmatpush1.xpose.msra.mxu0 0.0
        %1003 = vmatprep.subr.mxu0 0.0
        %1004 = vmatpush1.xpose.msra.mxu0 0.0
        %1005 = vmatprep.subr.mxu0 0.0
        %1006 = vmatpush1.xpose.msra.mxu0 0.0
        %1007 = vmatprep.subr.mxu0 0.0
        %1008 = vmatpush1.xpose.msra.mxu0 0.0
        %1009 = vmatprep.subr.mxu0 0.0
        %1010 = vmatpush1.xpose.msra.mxu0 0.0
        %1011 = vmatprep.subr.mxu0 0.0
        %1012 = vmatpush1.xpose.msra.mxu0 0.0
        %1013 = vmatprep.subr.mxu0 0.0
        %1014 = vmatpush1.xpose.msra.mxu0 0.0
        %1015 = vmatprep.subr.mxu0 0.0
        %1016 = vmatpush1.xpose.msra.mxu0 0.0
        %1017 = vmatprep.subr.mxu0 0.0
        %1018 = vmatpush1.xpose.msra.mxu0 0.0
        %1019 = vmatprep.subr.mxu0 0.0
        %1020 = vmatpush1.xpose.msra.mxu0 0.0
        %1021 = vmatprep.subr.mxu0 0.0
        %1022 = vmatpush1.xpose.msra.mxu0 0.0
        %1023 = vmatprep.subr.mxu0 0.0
        %1024 = vmatpush1.xpose.msra.mxu0 0.0
        %1025 = vmatprep.subr.mxu0 0.0
        %1026 = vmatpush1.xpose.msra.mxu0 0.0
        %1027 = vmatprep.mubr.f32.mxu0 0.0
        %1028 = vmatmul.mubr.f32.gmra.mrb[0].mxu0 %v951
        %v1029 = vpop.f32.mrb[0].mxu0
        %v1030 = vadd.f32 0.0, %v1029
        %v1031 = vpop.f32.mrb[0].mxu0
        %1032 = vmatprep.mubr.f32.mxu0 0.0
        %1033 = vmatmul.mubr.f32.gmra.mrb[0].mxu0 %v953
        %v1034 = vpop.f32.mrb[0].mxu0
        %v1035 = vadd.f32 0.0, %v1034
        %v1036 = vpop.f32.mrb[0].mxu0
        %1037 = vmatprep.mubr.f32.mxu0 0.0
        %1038 = vmatmul.mubr.f32.gmra.mrb[0].mxu0 %v955
        %v1039 = vpop.f32.mrb[0].mxu0
        %v1040 = vadd.f32 0.0, %v1039
        %v1041 = vpop.f32.mrb[0].mxu0
        %1042 = vdwg.mxu0
        %v1043 = vsel %vm811, %v1030, -inf
        %1044 = vmax.xlane.f32.xlu0 %v1043
        %v1045 = vpop.xlane.xlu0 %1044
        %v1046 = vsel %vm811, %v1035, -inf
        %1047 = vmax.xlane.f32.xlu0 %v1046
        %v1048 = vpop.xlane.xlu0 %1047
        %v1049 = vsel %vm818, %v1040, -inf
        %1050 = vmax.xlane.f32.xlu0 %v1049
        %v1051 = vpop.xlane.xlu0 %1050
        %v1052 = vsub.f32 %v1030, %v1045
        %v1053 = vsub.f32 %v1035, %v1048
        %v1054 = vsub.f32 %v1040, %v1051
        %v1055 = vmul.f32 %v1052, 1.442695
        %v1056 = vpow.pop %v1055
        %v1057 = vmul.f32 %v1053, 1.442695
        %v1058 = vpow.pop %v1057
        %v1059 = vmul.f32 %v1054, 1.442695
        %v1060 = vpow.pop %v1059
        %v1061 = vsel %vm811, %v1056, 0.0
        %1062 = vadd.xlane.f32.xlu0 %v1061
        %v1063 = vpop.xlane.xlu0 %1062
        %v1064 = vsel %vm811, %v1058, 0.0
        %1065 = vadd.xlane.f32.xlu0 %v1064
        %v1066 = vpop.xlane.xlu0 %1065
        %v1067 = vsel %vm818, %v1060, 0.0
        %1068 = vadd.xlane.f32.xlu0 %v1067
        %v1069 = vpop.xlane.xlu0 %1068
        %v1070 = vrcp.pop %v1063
        %v1071 = vrcp.pop %v1066
        %v1072 = vrcp.pop %v1069
        %v1073 = vmul.f32 %v1056, %v1070
        %v1074 = vmul.f32 %v1058, %v1071
        %v1075 = vmul.f32 %v1060, %v1072
        %1078 = vrot.lane.b32.xlu0 %v699, 112
        %v1079 = vpop.permute.xlu0 %1078
        %1080 = vrot.lane.b32.xlu0 %v704, 112
        %v1081 = vpop.permute.xlu0 %1080
        %1082 = vrot.lane.b32.xlu0 %v709, 112
        %v1083 = vpop.permute.xlu0 %1082
        %v1087 = vsel %vm811, %v1073, 0
        %v1090 = vsel %vm811, %v1074, 0
        %v1093 = vsel %vm811, %v1075, 0
        %v1095 = vsel %vm855, %v1083, 0
        %1097 = vmatprep.subr.mxu0 0.0
        %1098 = vmatpush1.msra.mxu0 %v1079
        %1099 = vmatprep.subr.mxu0 0.0
        %1100 = vmatpush1.msra.mxu0 %v1081
        %1101 = vmatprep.subr.mxu0 0.0
        %1102 = vmatpush1.msra.mxu0 %v1095
        %1103 = vmatprep.subr.mxu0 0.0
        %1104 = vmatpush1.msra.mxu0 0.0
        %1105 = vmatprep.subr.mxu0 0.0
        %1106 = vmatpush1.msra.mxu0 0.0
        %1107 = vmatprep.subr.mxu0 0.0
        %1108 = vmatpush1.msra.mxu0 0.0
        %1109 = vmatprep.subr.mxu0 0.0
        %1110 = vmatpush1.msra.mxu0 0.0
        %1111 = vmatprep.subr.mxu0 0.0
        %1112 = vmatpush1.msra.mxu0 0.0
        %1113 = vmatprep.subr.mxu0 0.0
        %1114 = vmatpush1.msra.mxu0 0.0
        %1115 = vmatprep.subr.mxu0 0.0
        %1116 = vmatpush1.msra.mxu0 0.0
        %1117 = vmatprep.subr.mxu0 0.0
        %1118 = vmatpush1.msra.mxu0 0.0
        %1119 = vmatprep.subr.mxu0 0.0
        %1120 = vmatpush1.msra.mxu0 0.0
        %1121 = vmatprep.subr.mxu0 0.0
        %1122 = vmatpush1.msra.mxu0 0.0
        %1123 = vmatprep.subr.mxu0 0.0
        %1124 = vmatpush1.msra.mxu0 0.0
        %1125 = vmatprep.subr.mxu0 0.0
        %1126 = vmatpush1.msra.mxu0 0.0
        %1127 = vmatprep.subr.mxu0 0.0
        %1128 = vmatpush1.msra.mxu0 0.0
        %1129 = vmatprep.subr.mxu0 0.0
        %1130 = vmatpush1.msra.mxu0 0.0
        %1131 = vmatprep.subr.mxu0 0.0
        %1132 = vmatpush1.msra.mxu0 0.0
        %1133 = vmatprep.subr.mxu0 0.0
        %1134 = vmatpush1.msra.mxu0 0.0
        %1135 = vmatprep.subr.mxu0 0.0
        %1136 = vmatpush1.msra.mxu0 0.0
        %1137 = vmatprep.subr.mxu0 0.0
        %1138 = vmatpush1.msra.mxu0 0.0
        %1139 = vmatprep.subr.mxu0 0.0
        %1140 = vmatpush1.msra.mxu0 0.0
        %1141 = vmatprep.subr.mxu0 0.0
        %1142 = vmatpush1.msra.mxu0 0.0
        %1143 = vmatprep.subr.mxu0 0.0
        %1144 = vmatpush1.msra.mxu0 0.0
        %1145 = vmatprep.subr.mxu0 0.0
        %1146 = vmatpush1.msra.mxu0 0.0
        %1147 = vmatprep.subr.mxu0 0.0
        %1148 = vmatpush1.msra.mxu0 0.0
        %1149 = vmatprep.subr.mxu0 0.0
        %1150 = vmatpush1.msra.mxu0 0.0
        %1151 = vmatprep.subr.mxu0 0.0
        %1152 = vmatpush1.msra.mxu0 0.0
        %1153 = vmatprep.subr.mxu0 0.0
        %1154 = vmatpush1.msra.mxu0 0.0
        %1155 = vmatprep.subr.mxu0 0.0
        %1156 = vmatpush1.msra.mxu0 0.0
        %1157 = vmatprep.subr.mxu0 0.0
        %1158 = vmatpush1.msra.mxu0 0.0
        %1159 = vmatprep.subr.mxu0 0.0
        %1160 = vmatpush1.msra.mxu0 0.0
        %1161 = vmatprep.mubr.f32.mxu0 0.0
        %1162 = vmatmul.mubr.f32.gmra.mrb[0].mxu0 %v1087
        %v1163 = vpop.f32.mrb[0].mxu0
        %v1164 = vadd.f32 0.0, %v1163
        %v1165 = vpop.f32.mrb[0].mxu0
        %1166 = vmatprep.mubr.f32.mxu0 0.0
        %1167 = vmatmul.mubr.f32.gmra.mrb[0].mxu0 %v1090
        %v1168 = vpop.f32.mrb[0].mxu0
        %v1169 = vadd.f32 0.0, %v1168
        %v1170 = vpop.f32.mrb[0].mxu0
        %1171 = vmatprep.mubr.f32.mxu0 0.0
        %1172 = vmatmul.mubr.f32.gmra.mrb[0].mxu0 %v1093
        %v1173 = vpop.f32.mrb[0].mxu0
        %v1174 = vadd.f32 0.0, %v1173
        %v1175 = vpop.f32.mrb[0].mxu0
        %1176 = vdwg.mxu0
        %1177 = vrot.lane.b32.xlu0 %v616, 96
        %v1178 = vpop.permute.xlu0 %1177
        %1179 = vrot.lane.b32.xlu0 %v622, 96
        %v1180 = vpop.permute.xlu0 %1179
        %1181 = vrot.lane.b32.xlu0 %v628, 96
        %v1182 = vpop.permute.xlu0 %1181
        %1183 = vrot.lane.b32.xlu0 %v618, 96
        %v1184 = vpop.permute.xlu0 %1183
        %1185 = vrot.lane.b32.xlu0 %v624, 96
        %v1186 = vpop.permute.xlu0 %1185
        %1187 = vrot.lane.b32.xlu0 %v630, 96
        %v1188 = vpop.permute.xlu0 %1187
        %v1189 = vsel %vm712, %v1178, 0
        %v1191 = vsel %vm712, %v1180, 0
        %v1193 = vsel %vm712, %v1182, 0
        %v1195 = vsel %vm712, %v1184, 0
        %v1197 = vsel %vm712, %v1186, 0
        %v1199 = vsel %vm712, %v1188, 0
        %1201 = vmatprep.subr.mxu0 0.0
        %1202 = vmatpush1.xpose.msra.mxu0 %v1195
        %1203 = vmatprep.subr.mxu0 0.0
        %1204 = vmatpush1.xpose.msra.mxu0 %v1197
        %1205 = vmatprep.subr.mxu0 0.0
        %1206 = vmatpush1.xpose.msra.mxu0 %v1199
        %1207 = vmatprep.subr.mxu0 0.0
        %1208 = vmatpush1.xpose.msra.mxu0 0.0
        %1209 = vmatprep.subr.mxu0 0.0
        %1210 = vmatpush1.xpose.msra.mxu0 0.0
        %1211 = vmatprep.subr.mxu0 0.0
        %1212 = vmatpush1.xpose.msra.mxu0 0.0
        %1213 = vmatprep.subr.mxu0 0.0
        %1214 = vmatpush1.xpose.msra.mxu0 0.0
        %1215 = vmatprep.subr.mxu0 0.0
        %1216 = vmatpush1.xpose.msra.mxu0 0.0
        %1217 = vmatprep.subr.mxu0 0.0
        %1218 = vmatpush1.xpose.msra.mxu0 0.0
        %1219 = vmatprep.subr.mxu0 0.0
        %1220 = vmatpush1.xpose.msra.mxu0 0.0
        %1221 = vmatprep.subr.mxu0 0.0
        %1222 = vmatpush1.xpose.msra.mxu0 0.0
        %1223 = vmatprep.subr.mxu0 0.0
        %1224 = vmatpush1.xpose.msra.mxu0 0.0
        %1225 = vmatprep.subr.mxu0 0.0
        %1226 = vmatpush1.xpose.msra.mxu0 0.0
        %1227 = vmatprep.subr.mxu0 0.0
        %1228 = vmatpush1.xpose.msra.mxu0 0.0
        %1229 = vmatprep.subr.mxu0 0.0
        %1230 = vmatpush1.xpose.msra.mxu0 0.0
        %1231 = vmatprep.subr.mxu0 0.0
        %1232 = vmatpush1.xpose.msra.mxu0 0.0
        %1233 = vmatprep.subr.mxu0 0.0
        %1234 = vmatpush1.xpose.msra.mxu0 0.0
        %1235 = vmatprep.subr.mxu0 0.0
        %1236 = vmatpush1.xpose.msra.mxu0 0.0
        %1237 = vmatprep.subr.mxu0 0.0
        %1238 = vmatpush1.xpose.msra.mxu0 0.0
        %1239 = vmatprep.subr.mxu0 0.0
        %1240 = vmatpush1.xpose.msra.mxu0 0.0
        %1241 = vmatprep.subr.mxu0 0.0
        %1242 = vmatpush1.xpose.msra.mxu0 0.0
        %1243 = vmatprep.subr.mxu0 0.0
        %1244 = vmatpush1.xpose.msra.mxu0 0.0
        %1245 = vmatprep.subr.mxu0 0.0
        %1246 = vmatpush1.xpose.msra.mxu0 0.0
        %1247 = vmatprep.subr.mxu0 0.0
        %1248 = vmatpush1.xpose.msra.mxu0 0.0
        %1249 = vmatprep.subr.mxu0 0.0
        %1250 = vmatpush1.xpose.msra.mxu0 0.0
        %1251 = vmatprep.subr.mxu0 0.0
        %1252 = vmatpush1.xpose.msra.mxu0 0.0
        %1253 = vmatprep.subr.mxu0 0.0
        %1254 = vmatpush1.xpose.msra.mxu0 0.0
        %1255 = vmatprep.subr.mxu0 0.0
        %1256 = vmatpush1.xpose.msra.mxu0 0.0
        %1257 = vmatprep.subr.mxu0 0.0
        %1258 = vmatpush1.xpose.msra.mxu0 0.0
        %1259 = vmatprep.subr.mxu0 0.0
        %1260 = vmatpush1.xpose.msra.mxu0 0.0
        %1261 = vmatprep.subr.mxu0 0.0
        %1262 = vmatpush1.xpose.msra.mxu0 0.0
        %1263 = vmatprep.subr.mxu0 0.0
        %1264 = vmatpush1.xpose.msra.mxu0 0.0
        %1265 = vmatprep.mubr.f32.mxu0 0.0
        %1266 = vmatmul.mubr.f32.gmra.mrb[0].mxu0 %v1189
        %v1267 = vpop.f32.mrb[0].mxu0
        %v1268 = vadd.f32 0.0, %v1267
        %v1269 = vpop.f32.mrb[0].mxu0
        %1270 = vmatprep.mubr.f32.mxu0 0.0
        %1271 = vmatmul.mubr.f32.gmra.mrb[0].mxu0 %v1191
        %v1272 = vpop.f32.mrb[0].mxu0
        %v1273 = vadd.f32 0.0, %v1272
        %v1274 = vpop.f32.mrb[0].mxu0
        %1275 = vmatprep.mubr.f32.mxu0 0.0
        %1276 = vmatmul.mubr.f32.gmra.mrb[0].mxu0 %v1193
        %v1277 = vpop.f32.mrb[0].mxu0
        %v1278 = vadd.f32 0.0, %v1277
        %v1279 = vpop.f32.mrb[0].mxu0
        %1280 = vdwg.mxu0
        %v1281 = vsel %vm811, %v1268, -inf
        %1282 = vmax.xlane.f32.xlu0 %v1281
        %v1283 = vpop.xlane.xlu0 %1282
        %v1284 = vsel %vm811, %v1273, -inf
        %1285 = vmax.xlane.f32.xlu0 %v1284
        %v1286 = vpop.xlane.xlu0 %1285
        %v1287 = vsel %vm818, %v1278, -inf
        %1288 = vmax.xlane.f32.xlu0 %v1287
        %v1289 = vpop.xlane.xlu0 %1288
        %v1290 = vsub.f32 %v1268, %v1283
        %v1291 = vsub.f32 %v1273, %v1286
        %v1292 = vsub.f32 %v1278, %v1289
        %v1293 = vmul.f32 %v1290, 1.442695
        %v1294 = vpow.pop %v1293
        %v1295 = vmul.f32 %v1291, 1.442695
        %v1296 = vpow.pop %v1295
        %v1297 = vmul.f32 %v1292, 1.442695
        %v1298 = vpow.pop %v1297
        %v1299 = vsel %vm811, %v1294, 0.0
        %1300 = vadd.xlane.f32.xlu0 %v1299
        %v1301 = vpop.xlane.xlu0 %1300
        %v1302 = vsel %vm811, %v1296, 0.0
        %1303 = vadd.xlane.f32.xlu0 %v1302
        %v1304 = vpop.xlane.xlu0 %1303
        %v1305 = vsel %vm818, %v1298, 0.0
        %1306 = vadd.xlane.f32.xlu0 %v1305
        %v1307 = vpop.xlane.xlu0 %1306
        %v1308 = vrcp.pop %v1301
        %v1309 = vrcp.pop %v1304
        %v1310 = vrcp.pop %v1307
        %v1311 = vmul.f32 %v1294, %v1308
        %v1312 = vmul.f32 %v1296, %v1309
        %v1313 = vmul.f32 %v1298, %v1310
        %1314 = vrot.lane.b32.xlu0 %v699, 96
        %v1315 = vpop.permute.xlu0 %1314
        %1316 = vrot.lane.b32.xlu0 %v704, 96
        %v1317 = vpop.permute.xlu0 %1316
        %1318 = vrot.lane.b32.xlu0 %v709, 96
        %v1319 = vpop.permute.xlu0 %1318
        %v1323 = vsel %vm811, %v1311, 0
        %v1326 = vsel %vm811, %v1312, 0
        %v1329 = vsel %vm811, %v1313, 0
        %v1331 = vsel %vm855, %v1319, 0
        %1333 = vmatprep.subr.mxu0 0.0
        %1334 = vmatpush1.msra.mxu0 %v1315
        %1335 = vmatprep.subr.mxu0 0.0
        %1336 = vmatpush1.msra.mxu0 %v1317
        %1337 = vmatprep.subr.mxu0 0.0
        %1338 = vmatpush1.msra.mxu0 %v1331
        %1339 = vmatprep.subr.mxu0 0.0
        %1340 = vmatpush1.msra.mxu0 0.0
        %1341 = vmatprep.subr.mxu0 0.0
        %1342 = vmatpush1.msra.mxu0 0.0
        %1343 = vmatprep.subr.mxu0 0.0
        %1344 = vmatpush1.msra.mxu0 0.0
        %1345 = vmatprep.subr.mxu0 0.0
        %1346 = vmatpush1.msra.mxu0 0.0
        %1347 = vmatprep.subr.mxu0 0.0
        %1348 = vmatpush1.msra.mxu0 0.0
        %1349 = vmatprep.subr.mxu0 0.0
        %1350 = vmatpush1.msra.mxu0 0.0
        %1351 = vmatprep.subr.mxu0 0.0
        %1352 = vmatpush1.msra.mxu0 0.0
        %1353 = vmatprep.subr.mxu0 0.0
        %1354 = vmatpush1.msra.mxu0 0.0
        %1355 = vmatprep.subr.mxu0 0.0
        %1356 = vmatpush1.msra.mxu0 0.0
        %1357 = vmatprep.subr.mxu0 0.0
        %1358 = vmatpush1.msra.mxu0 0.0
        %1359 = vmatprep.subr.mxu0 0.0
        %1360 = vmatpush1.msra.mxu0 0.0
        %1361 = vmatprep.subr.mxu0 0.0
        %1362 = vmatpush1.msra.mxu0 0.0
        %1363 = vmatprep.subr.mxu0 0.0
        %1364 = vmatpush1.msra.mxu0 0.0
        %1365 = vmatprep.subr.mxu0 0.0
        %1366 = vmatpush1.msra.mxu0 0.0
        %1367 = vmatprep.subr.mxu0 0.0
        %1368 = vmatpush1.msra.mxu0 0.0
        %1369 = vmatprep.subr.mxu0 0.0
        %1370 = vmatpush1.msra.mxu0 0.0
        %1371 = vmatprep.subr.mxu0 0.0
        %1372 = vmatpush1.msra.mxu0 0.0
        %1373 = vmatprep.subr.mxu0 0.0
        %1374 = vmatpush1.msra.mxu0 0.0
        %1375 = vmatprep.subr.mxu0 0.0
        %1376 = vmatpush1.msra.mxu0 0.0
        %1377 = vmatprep.subr.mxu0 0.0
        %1378 = vmatpush1.msra.mxu0 0.0
        %1379 = vmatprep.subr.mxu0 0.0
        %1380 = vmatpush1.msra.mxu0 0.0
        %1381 = vmatprep.subr.mxu0 0.0
        %1382 = vmatpush1.msra.mxu0 0.0
        %1383 = vmatprep.subr.mxu0 0.0
        %1384 = vmatpush1.msra.mxu0 0.0
        %1385 = vmatprep.subr.mxu0 0.0
        %1386 = vmatpush1.msra.mxu0 0.0
        %1387 = vmatprep.subr.mxu0 0.0
        %1388 = vmatpush1.msra.mxu0 0.0
        %1389 = vmatprep.subr.mxu0 0.0
        %1390 = vmatpush1.msra.mxu0 0.0
        %1391 = vmatprep.subr.mxu0 0.0
        %1392 = vmatpush1.msra.mxu0 0.0
        %1393 = vmatprep.subr.mxu0 0.0
        %1394 = vmatpush1.msra.mxu0 0.0
        %1395 = vmatprep.subr.mxu0 0.0
        %1396 = vmatpush1.msra.mxu0 0.0
        %1397 = vmatprep.mubr.f32.mxu0 0.0
        %1398 = vmatmul.mubr.f32.gmra.mrb[0].mxu0 %v1323
        %v1399 = vpop.f32.mrb[0].mxu0
        %v1400 = vadd.f32 0.0, %v1399
        %v1401 = vpop.f32.mrb[0].mxu0
        %1402 = vmatprep.mubr.f32.mxu0 0.0
        %1403 = vmatmul.mubr.f32.gmra.mrb[0].mxu0 %v1326
        %v1404 = vpop.f32.mrb[0].mxu0
        %v1405 = vadd.f32 0.0, %v1404
        %v1406 = vpop.f32.mrb[0].mxu0
        %1407 = vmatprep.mubr.f32.mxu0 0.0
        %1408 = vmatmul.mubr.f32.gmra.mrb[0].mxu0 %v1329
        %v1409 = vpop.f32.mrb[0].mxu0
        %v1410 = vadd.f32 0.0, %v1409
        %v1411 = vpop.f32.mrb[0].mxu0
        %1412 = vdwg.mxu0
        %1413 = vrot.lane.b32.xlu0 %v616, 80
        %v1414 = vpop.permute.xlu0 %1413
        %1415 = vrot.lane.b32.xlu0 %v622, 80
        %v1416 = vpop.permute.xlu0 %1415
        %1417 = vrot.lane.b32.xlu0 %v628, 80
        %v1418 = vpop.permute.xlu0 %1417
        %1419 = vrot.lane.b32.xlu0 %v618, 80
        %v1420 = vpop.permute.xlu0 %1419
        %1421 = vrot.lane.b32.xlu0 %v624, 80
        %v1422 = vpop.permute.xlu0 %1421
        %1423 = vrot.lane.b32.xlu0 %v630, 80
        %v1424 = vpop.permute.xlu0 %1423
        %v1425 = vsel %vm712, %v1414, 0
        %v1427 = vsel %vm712, %v1416, 0
        %v1429 = vsel %vm712, %v1418, 0
        %v1431 = vsel %vm712, %v1420, 0
        %v1433 = vsel %vm712, %v1422, 0
        %v1435 = vsel %vm712, %v1424, 0
        %1437 = vmatprep.subr.mxu0 0.0
        %1438 = vmatpush1.xpose.msra.mxu0 %v1431
        %1439 = vmatprep.subr.mxu0 0.0
        %1440 = vmatpush1.xpose.msra.mxu0 %v1433
        %1441 = vmatprep.subr.mxu0 0.0
        %1442 = vmatpush1.xpose.msra.mxu0 %v1435
        %1443 = vmatprep.subr.mxu0 0.0
        %1444 = vmatpush1.xpose.msra.mxu0 0.0
        %1445 = vmatprep.subr.mxu0 0.0
        %1446 = vmatpush1.xpose.msra.mxu0 0.0
        %1447 = vmatprep.subr.mxu0 0.0
        %1448 = vmatpush1.xpose.msra.mxu0 0.0
        %1449 = vmatprep.subr.mxu0 0.0
        %1450 = vmatpush1.xpose.msra.mxu0 0.0
        %1451 = vmatprep.subr.mxu0 0.0
        %1452 = vmatpush1.xpose.msra.mxu0 0.0
        %1453 = vmatprep.subr.mxu0 0.0
        %1454 = vmatpush1.xpose.msra.mxu0 0.0
        %1455 = vmatprep.subr.mxu0 0.0
        %1456 = vmatpush1.xpose.msra.mxu0 0.0
        %1457 = vmatprep.subr.mxu0 0.0
        %1458 = vmatpush1.xpose.msra.mxu0 0.0
        %1459 = vmatprep.subr.mxu0 0.0
        %1460 = vmatpush1.xpose.msra.mxu0 0.0
        %1461 = vmatprep.subr.mxu0 0.0
        %1462 = vmatpush1.xpose.msra.mxu0 0.0
        %1463 = vmatprep.subr.mxu0 0.0
        %1464 = vmatpush1.xpose.msra.mxu0 0.0
        %1465 = vmatprep.subr.mxu0 0.0
        %1466 = vmatpush1.xpose.msra.mxu0 0.0
        %1467 = vmatprep.subr.mxu0 0.0
        %1468 = vmatpush1.xpose.msra.mxu0 0.0
        %1469 = vmatprep.subr.mxu0 0.0
        %1470 = vmatpush1.xpose.msra.mxu0 0.0
        %1471 = vmatprep.subr.mxu0 0.0
        %1472 = vmatpush1.xpose.msra.mxu0 0.0
        %1473 = vmatprep.subr.mxu0 0.0
        %1474 = vmatpush1.xpose.msra.mxu0 0.0
        %1475 = vmatprep.subr.mxu0 0.0
        %1476 = vmatpush1.xpose.msra.mxu0 0.0
        %1477 = vmatprep.subr.mxu0 0.0
        %1478 = vmatpush1.xpose.msra.mxu0 0.0
        %1479 = vmatprep.subr.mxu0 0.0
        %1480 = vmatpush1.xpose.msra.mxu0 0.0
        %1481 = vmatprep.subr.mxu0 0.0
        %1482 = vmatpush1.xpose.msra.mxu0 0.0
        %1483 = vmatprep.subr.mxu0 0.0
        %1484 = vmatpush1.xpose.msra.mxu0 0.0
        %1485 = vmatprep.subr.mxu0 0.0
        %1486 = vmatpush1.xpose.msra.mxu0 0.0
        %1487 = vmatprep.subr.mxu0 0.0
        %1488 = vmatpush1.xpose.msra.mxu0 0.0
        %1489 = vmatprep.subr.mxu0 0.0
        %1490 = vmatpush1.xpose.msra.mxu0 0.0
        %1491 = vmatprep.subr.mxu0 0.0
        %1492 = vmatpush1.xpose.msra.mxu0 0.0
        %1493 = vmatprep.subr.mxu0 0.0
        %1494 = vmatpush1.xpose.msra.mxu0 0.0
        %1495 = vmatprep.subr.mxu0 0.0
        %1496 = vmatpush1.xpose.msra.mxu0 0.0
        %1497 = vmatprep.subr.mxu0 0.0
        %1498 = vmatpush1.xpose.msra.mxu0 0.0
        %1499 = vmatprep.subr.mxu0 0.0
        %1500 = vmatpush1.xpose.msra.mxu0 0.0
        %1501 = vmatprep.mubr.f32.mxu0 0.0
        %1502 = vmatmul.mubr.f32.gmra.mrb[0].mxu0 %v1425
        %v1503 = vpop.f32.mrb[0].mxu0
        %v1504 = vadd.f32 0.0, %v1503
        %v1505 = vpop.f32.mrb[0].mxu0
        %1506 = vmatprep.mubr.f32.mxu0 0.0
        %1507 = vmatmul.mubr.f32.gmra.mrb[0].mxu0 %v1427
        %v1508 = vpop.f32.mrb[0].mxu0
        %v1509 = vadd.f32 0.0, %v1508
        %v1510 = vpop.f32.mrb[0].mxu0
        %1511 = vmatprep.mubr.f32.mxu0 0.0
        %1512 = vmatmul.mubr.f32.gmra.mrb[0].mxu0 %v1429
        %v1513 = vpop.f32.mrb[0].mxu0
        %v1514 = vadd.f32 0.0, %v1513
        %v1515 = vpop.f32.mrb[0].mxu0
        %1516 = vdwg.mxu0
        %v1517 = vsel %vm811, %v1504, -inf
        %1518 = vmax.xlane.f32.xlu0 %v1517
        %v1519 = vpop.xlane.xlu0 %1518
        %v1520 = vsel %vm811, %v1509, -inf
        %1521 = vmax.xlane.f32.xlu0 %v1520
        %v1522 = vpop.xlane.xlu0 %1521
        %v1523 = vsel %vm818, %v1514, -inf
        %1524 = vmax.xlane.f32.xlu0 %v1523
        %v1525 = vpop.xlane.xlu0 %1524
        %v1526 = vsub.f32 %v1504, %v1519
        %v1527 = vsub.f32 %v1509, %v1522
        %v1528 = vsub.f32 %v1514, %v1525
        %v1529 = vmul.f32 %v1526, 1.442695
        %v1530 = vpow.pop %v1529
        %v1531 = vmul.f32 %v1527, 1.442695
        %v1532 = vpow.pop %v1531
        %v1533 = vmul.f32 %v1528, 1.442695
        %v1534 = vpow.pop %v1533
        %v1535 = vsel %vm811, %v1530, 0.0
        %1536 = vadd.xlane.f32.xlu0 %v1535
        %v1537 = vpop.xlane.xlu0 %1536
        %v1538 = vsel %vm811, %v1532, 0.0
        %1539 = vadd.xlane.f32.xlu0 %v1538
        %v1540 = vpop.xlane.xlu0 %1539
        %v1541 = vsel %vm818, %v1534, 0.0
        %1542 = vadd.xlane.f32.xlu0 %v1541
        %v1543 = vpop.xlane.xlu0 %1542
        %v1544 = vrcp.pop %v1537
        %v1545 = vrcp.pop %v1540
        %v1546 = vrcp.pop %v1543
        %v1547 = vmul.f32 %v1530, %v1544
        %v1548 = vmul.f32 %v1532, %v1545
        %v1549 = vmul.f32 %v1534, %v1546
        %1550 = vrot.lane.b32.xlu0 %v699, 80
        %v1551 = vpop.permute.xlu0 %1550
        %1552 = vrot.lane.b32.xlu0 %v704, 80
        %v1553 = vpop.permute.xlu0 %1552
        %1554 = vrot.lane.b32.xlu0 %v709, 80
        %v1555 = vpop.permute.xlu0 %1554
        %v1559 = vsel %vm811, %v1547, 0
        %v1562 = vsel %vm811, %v1548, 0
        %v1565 = vsel %vm811, %v1549, 0
        %v1567 = vsel %vm855, %v1555, 0
        %1569 = vmatprep.subr.mxu0 0.0
        %1570 = vmatpush1.msra.mxu0 %v1551
        %1571 = vmatprep.subr.mxu0 0.0
        %1572 = vmatpush1.msra.mxu0 %v1553
        %1573 = vmatprep.subr.mxu0 0.0
        %1574 = vmatpush1.msra.mxu0 %v1567
        %1575 = vmatprep.subr.mxu0 0.0
        %1576 = vmatpush1.msra.mxu0 0.0
        %1577 = vmatprep.subr.mxu0 0.0
        %1578 = vmatpush1.msra.mxu0 0.0
        %1579 = vmatprep.subr.mxu0 0.0
        %1580 = vmatpush1.msra.mxu0 0.0
        %1581 = vmatprep.subr.mxu0 0.0
        %1582 = vmatpush1.msra.mxu0 0.0
        %1583 = vmatprep.subr.mxu0 0.0
        %1584 = vmatpush1.msra.mxu0 0.0
        %1585 = vmatprep.subr.mxu0 0.0
        %1586 = vmatpush1.msra.mxu0 0.0
        %1587 = vmatprep.subr.mxu0 0.0
        %1588 = vmatpush1.msra.mxu0 0.0
        %1589 = vmatprep.subr.mxu0 0.0
        %1590 = vmatpush1.msra.mxu0 0.0
        %1591 = vmatprep.subr.mxu0 0.0
        %1592 = vmatpush1.msra.mxu0 0.0
        %1593 = vmatprep.subr.mxu0 0.0
        %1594 = vmatpush1.msra.mxu0 0.0
        %1595 = vmatprep.subr.mxu0 0.0
        %1596 = vmatpush1.msra.mxu0 0.0
        %1597 = vmatprep.subr.mxu0 0.0
        %1598 = vmatpush1.msra.mxu0 0.0
        %1599 = vmatprep.subr.mxu0 0.0
        %1600 = vmatpush1.msra.mxu0 0.0
        %1601 = vmatprep.subr.mxu0 0.0
        %1602 = vmatpush1.msra.mxu0 0.0
        %1603 = vmatprep.subr.mxu0 0.0
        %1604 = vmatpush1.msra.mxu0 0.0
        %1605 = vmatprep.subr.mxu0 0.0
        %1606 = vmatpush1.msra.mxu0 0.0
        %1607 = vmatprep.subr.mxu0 0.0
        %1608 = vmatpush1.msra.mxu0 0.0
        %1609 = vmatprep.subr.mxu0 0.0
        %1610 = vmatpush1.msra.mxu0 0.0
        %1611 = vmatprep.subr.mxu0 0.0
        %1612 = vmatpush1.msra.mxu0 0.0
        %1613 = vmatprep.subr.mxu0 0.0
        %1614 = vmatpush1.msra.mxu0 0.0
        %1615 = vmatprep.subr.mxu0 0.0
        %1616 = vmatpush1.msra.mxu0 0.0
        %1617 = vmatprep.subr.mxu0 0.0
        %1618 = vmatpush1.msra.mxu0 0.0
        %1619 = vmatprep.subr.mxu0 0.0
        %1620 = vmatpush1.msra.mxu0 0.0
        %1621 = vmatprep.subr.mxu0 0.0
        %1622 = vmatpush1.msra.mxu0 0.0
        %1623 = vmatprep.subr.mxu0 0.0
        %1624 = vmatpush1.msra.mxu0 0.0
        %1625 = vmatprep.subr.mxu0 0.0
        %1626 = vmatpush1.msra.mxu0 0.0
        %1627 = vmatprep.subr.mxu0 0.0
        %1628 = vmatpush1.msra.mxu0 0.0
        %1629 = vmatprep.subr.mxu0 0.0
        %1630 = vmatpush1.msra.mxu0 0.0
        %1631 = vmatprep.subr.mxu0 0.0
        %1632 = vmatpush1.msra.mxu0 0.0
        %1633 = vmatprep.mubr.f32.mxu0 0.0
        %1634 = vmatmul.mubr.f32.gmra.mrb[0].mxu0 %v1559
        %v1635 = vpop.f32.mrb[0].mxu0
        %v1636 = vadd.f32 0.0, %v1635
        %v1637 = vpop.f32.mrb[0].mxu0
        %1638 = vmatprep.mubr.f32.mxu0 0.0
        %1639 = vmatmul.mubr.f32.gmra.mrb[0].mxu0 %v1562
        %v1640 = vpop.f32.mrb[0].mxu0
        %v1641 = vadd.f32 0.0, %v1640
        %v1642 = vpop.f32.mrb[0].mxu0
        %1643 = vmatprep.mubr.f32.mxu0 0.0
        %1644 = vmatmul.mubr.f32.gmra.mrb[0].mxu0 %v1565
        %v1645 = vpop.f32.mrb[0].mxu0
        %v1646 = vadd.f32 0.0, %v1645
        %v1647 = vpop.f32.mrb[0].mxu0
        %1648 = vdwg.mxu0
        %1649 = vrot.lane.b32.xlu0 %v616, 64
        %v1650 = vpop.permute.xlu0 %1649
        %1651 = vrot.lane.b32.xlu0 %v622, 64
        %v1652 = vpop.permute.xlu0 %1651
        %1653 = vrot.lane.b32.xlu0 %v628, 64
        %v1654 = vpop.permute.xlu0 %1653
        %1655 = vrot.lane.b32.xlu0 %v618, 64
        %v1656 = vpop.permute.xlu0 %1655
        %1657 = vrot.lane.b32.xlu0 %v624, 64
        %v1658 = vpop.permute.xlu0 %1657
        %1659 = vrot.lane.b32.xlu0 %v630, 64
        %v1660 = vpop.permute.xlu0 %1659
        %v1661 = vsel %vm712, %v1650, 0
        %v1663 = vsel %vm712, %v1652, 0
        %v1665 = vsel %vm712, %v1654, 0
        %v1667 = vsel %vm712, %v1656, 0
        %v1669 = vsel %vm712, %v1658, 0
        %v1671 = vsel %vm712, %v1660, 0
        %1673 = vmatprep.subr.mxu0 0.0
        %1674 = vmatpush1.xpose.msra.mxu0 %v1667
        %1675 = vmatprep.subr.mxu0 0.0
        %1676 = vmatpush1.xpose.msra.mxu0 %v1669
        %1677 = vmatprep.subr.mxu0 0.0
        %1678 = vmatpush1.xpose.msra.mxu0 %v1671
        %1679 = vmatprep.subr.mxu0 0.0
        %1680 = vmatpush1.xpose.msra.mxu0 0.0
        %1681 = vmatprep.subr.mxu0 0.0
        %1682 = vmatpush1.xpose.msra.mxu0 0.0
        %1683 = vmatprep.subr.mxu0 0.0
        %1684 = vmatpush1.xpose.msra.mxu0 0.0
        %1685 = vmatprep.subr.mxu0 0.0
        %1686 = vmatpush1.xpose.msra.mxu0 0.0
        %1687 = vmatprep.subr.mxu0 0.0
        %1688 = vmatpush1.xpose.msra.mxu0 0.0
        %1689 = vmatprep.subr.mxu0 0.0
        %1690 = vmatpush1.xpose.msra.mxu0 0.0
        %1691 = vmatprep.subr.mxu0 0.0
        %1692 = vmatpush1.xpose.msra.mxu0 0.0
        %1693 = vmatprep.subr.mxu0 0.0
        %1694 = vmatpush1.xpose.msra.mxu0 0.0
        %1695 = vmatprep.subr.mxu0 0.0
        %1696 = vmatpush1.xpose.msra.mxu0 0.0
        %1697 = vmatprep.subr.mxu0 0.0
        %1698 = vmatpush1.xpose.msra.mxu0 0.0
        %1699 = vmatprep.subr.mxu0 0.0
        %1700 = vmatpush1.xpose.msra.mxu0 0.0
        %1701 = vmatprep.subr.mxu0 0.0
        %1702 = vmatpush1.xpose.msra.mxu0 0.0
        %1703 = vmatprep.subr.mxu0 0.0
        %1704 = vmatpush1.xpose.msra.mxu0 0.0
        %1705 = vmatprep.subr.mxu0 0.0
        %1706 = vmatpush1.xpose.msra.mxu0 0.0
        %1707 = vmatprep.subr.mxu0 0.0
        %1708 = vmatpush1.xpose.msra.mxu0 0.0
        %1709 = vmatprep.subr.mxu0 0.0
        %1710 = vmatpush1.xpose.msra.mxu0 0.0
        %1711 = vmatprep.subr.mxu0 0.0
        %1712 = vmatpush1.xpose.msra.mxu0 0.0
        %1713 = vmatprep.subr.mxu0 0.0
        %1714 = vmatpush1.xpose.msra.mxu0 0.0
        %1715 = vmatprep.subr.mxu0 0.0
        %1716 = vmatpush1.xpose.msra.mxu0 0.0
        %1717 = vmatprep.subr.mxu0 0.0
        %1718 = vmatpush1.xpose.msra.mxu0 0.0
        %1719 = vmatprep.subr.mxu0 0.0
        %1720 = vmatpush1.xpose.msra.mxu0 0.0
        %1721 = vmatprep.subr.mxu0 0.0
        %1722 = vmatpush1.xpose.msra.mxu0 0.0
        %1723 = vmatprep.subr.mxu0 0.0
        %1724 = vmatpush1.xpose.msra.mxu0 0.0
        %1725 = vmatprep.subr.mxu0 0.0
        %1726 = vmatpush1.xpose.msra.mxu0 0.0
        %1727 = vmatprep.subr.mxu0 0.0
        %1728 = vmatpush1.xpose.msra.mxu0 0.0
        %1729 = vmatprep.subr.mxu0 0.0
        %1730 = vmatpush1.xpose.msra.mxu0 0.0
        %1731 = vmatprep.subr.mxu0 0.0
        %1732 = vmatpush1.xpose.msra.mxu0 0.0
        %1733 = vmatprep.subr.mxu0 0.0
        %1734 = vmatpush1.xpose.msra.mxu0 0.0
        %1735 = vmatprep.subr.mxu0 0.0
        %1736 = vmatpush1.xpose.msra.mxu0 0.0
        %1737 = vmatprep.mubr.f32.mxu0 0.0
        %1738 = vmatmul.mubr.f32.gmra.mrb[0].mxu0 %v1661
        %v1739 = vpop.f32.mrb[0].mxu0
        %v1740 = vadd.f32 0.0, %v1739
        %v1741 = vpop.f32.mrb[0].mxu0
        %1742 = vmatprep.mubr.f32.mxu0 0.0
        %1743 = vmatmul.mubr.f32.gmra.mrb[0].mxu0 %v1663
        %v1744 = vpop.f32.mrb[0].mxu0
        %v1745 = vadd.f32 0.0, %v1744
        %v1746 = vpop.f32.mrb[0].mxu0
        %1747 = vmatprep.mubr.f32.mxu0 0.0
        %1748 = vmatmul.mubr.f32.gmra.mrb[0].mxu0 %v1665
        %v1749 = vpop.f32.mrb[0].mxu0
        %v1750 = vadd.f32 0.0, %v1749
        %v1751 = vpop.f32.mrb[0].mxu0
        %1752 = vdwg.mxu0
        %v1753 = vsel %vm811, %v1740, -inf
        %1754 = vmax.xlane.f32.xlu0 %v1753
        %v1755 = vpop.xlane.xlu0 %1754
        %v1756 = vsel %vm811, %v1745, -inf
        %1757 = vmax.xlane.f32.xlu0 %v1756
        %v1758 = vpop.xlane.xlu0 %1757
        %v1759 = vsel %vm818, %v1750, -inf
        %1760 = vmax.xlane.f32.xlu0 %v1759
        %v1761 = vpop.xlane.xlu0 %1760
        %v1762 = vsub.f32 %v1740, %v1755
        %v1763 = vsub.f32 %v1745, %v1758
        %v1764 = vsub.f32 %v1750, %v1761
        %v1765 = vmul.f32 %v1762, 1.442695
        %v1766 = vpow.pop %v1765
        %v1767 = vmul.f32 %v1763, 1.442695
        %v1768 = vpow.pop %v1767
        %v1769 = vmul.f32 %v1764, 1.442695
        %v1770 = vpow.pop %v1769
        %v1771 = vsel %vm811, %v1766, 0.0
        %1772 = vadd.xlane.f32.xlu0 %v1771
        %v1773 = vpop.xlane.xlu0 %1772
        %v1774 = vsel %vm811, %v1768, 0.0
        %1775 = vadd.xlane.f32.xlu0 %v1774
        %v1776 = vpop.xlane.xlu0 %1775
        %v1777 = vsel %vm818, %v1770, 0.0
        %1778 = vadd.xlane.f32.xlu0 %v1777
        %v1779 = vpop.xlane.xlu0 %1778
        %v1780 = vrcp.pop %v1773
        %v1781 = vrcp.pop %v1776
        %v1782 = vrcp.pop %v1779
        %v1783 = vmul.f32 %v1766, %v1780
        %v1784 = vmul.f32 %v1768, %v1781
        %v1785 = vmul.f32 %v1770, %v1782
        %1786 = vrot.lane.b32.xlu0 %v699, 64
        %v1787 = vpop.permute.xlu0 %1786
        %1788 = vrot.lane.b32.xlu0 %v704, 64
        %v1789 = vpop.permute.xlu0 %1788
        %1790 = vrot.lane.b32.xlu0 %v709, 64
        %v1791 = vpop.permute.xlu0 %1790
        %v1795 = vsel %vm811, %v1783, 0
        %v1798 = vsel %vm811, %v1784, 0
        %v1801 = vsel %vm811, %v1785, 0
        %v1803 = vsel %vm855, %v1791, 0
        %1805 = vmatprep.subr.mxu0 0.0
        %1806 = vmatpush1.msra.mxu0 %v1787
        %1807 = vmatprep.subr.mxu0 0.0
        %1808 = vmatpush1.msra.mxu0 %v1789
        %1809 = vmatprep.subr.mxu0 0.0
        %1810 = vmatpush1.msra.mxu0 %v1803
        %1811 = vmatprep.subr.mxu0 0.0
        %1812 = vmatpush1.msra.mxu0 0.0
        %1813 = vmatprep.subr.mxu0 0.0
        %1814 = vmatpush1.msra.mxu0 0.0
        %1815 = vmatprep.subr.mxu0 0.0
        %1816 = vmatpush1.msra.mxu0 0.0
        %1817 = vmatprep.subr.mxu0 0.0
        %1818 = vmatpush1.msra.mxu0 0.0
        %1819 = vmatprep.subr.mxu0 0.0
        %1820 = vmatpush1.msra.mxu0 0.0
        %1821 = vmatprep.subr.mxu0 0.0
        %1822 = vmatpush1.msra.mxu0 0.0
        %1823 = vmatprep.subr.mxu0 0.0
        %1824 = vmatpush1.msra.mxu0 0.0
        %1825 = vmatprep.subr.mxu0 0.0
        %1826 = vmatpush1.msra.mxu0 0.0
        %1827 = vmatprep.subr.mxu0 0.0
        %1828 = vmatpush1.msra.mxu0 0.0
        %1829 = vmatprep.subr.mxu0 0.0
        %1830 = vmatpush1.msra.mxu0 0.0
        %1831 = vmatprep.subr.mxu0 0.0
        %1832 = vmatpush1.msra.mxu0 0.0
        %1833 = vmatprep.subr.mxu0 0.0
        %1834 = vmatpush1.msra.mxu0 0.0
        %1835 = vmatprep.subr.mxu0 0.0
        %1836 = vmatpush1.msra.mxu0 0.0
        %1837 = vmatprep.subr.mxu0 0.0
        %1838 = vmatpush1.msra.mxu0 0.0
        %1839 = vmatprep.subr.mxu0 0.0
        %1840 = vmatpush1.msra.mxu0 0.0
        %1841 = vmatprep.subr.mxu0 0.0
        %1842 = vmatpush1.msra.mxu0 0.0
        %1843 = vmatprep.subr.mxu0 0.0
        %1844 = vmatpush1.msra.mxu0 0.0
        %1845 = vmatprep.subr.mxu0 0.0
        %1846 = vmatpush1.msra.mxu0 0.0
        %1847 = vmatprep.subr.mxu0 0.0
        %1848 = vmatpush1.msra.mxu0 0.0
        %1849 = vmatprep.subr.mxu0 0.0
        %1850 = vmatpush1.msra.mxu0 0.0
        %1851 = vmatprep.subr.mxu0 0.0
        %1852 = vmatpush1.msra.mxu0 0.0
        %1853 = vmatprep.subr.mxu0 0.0
        %1854 = vmatpush1.msra.mxu0 0.0
        %1855 = vmatprep.subr.mxu0 0.0
        %1856 = vmatpush1.msra.mxu0 0.0
        %1857 = vmatprep.subr.mxu0 0.0
        %1858 = vmatpush1.msra.mxu0 0.0
        %1859 = vmatprep.subr.mxu0 0.0
        %1860 = vmatpush1.msra.mxu0 0.0
        %1861 = vmatprep.subr.mxu0 0.0
        %1862 = vmatpush1.msra.mxu0 0.0
        %1863 = vmatprep.subr.mxu0 0.0
        %1864 = vmatpush1.msra.mxu0 0.0
        %1865 = vmatprep.subr.mxu0 0.0
        %1866 = vmatpush1.msra.mxu0 0.0
        %1867 = vmatprep.subr.mxu0 0.0
        %1868 = vmatpush1.msra.mxu0 0.0
        %1869 = vmatprep.mubr.f32.mxu0 0.0
        %1870 = vmatmul.mubr.f32.gmra.mrb[0].mxu0 %v1795
        %v1871 = vpop.f32.mrb[0].mxu0
        %v1872 = vadd.f32 0.0, %v1871
        %v1873 = vpop.f32.mrb[0].mxu0
        %1874 = vmatprep.mubr.f32.mxu0 0.0
        %1875 = vmatmul.mubr.f32.gmra.mrb[0].mxu0 %v1798
        %v1876 = vpop.f32.mrb[0].mxu0
        %v1877 = vadd.f32 0.0, %v1876
        %v1878 = vpop.f32.mrb[0].mxu0
        %1879 = vmatprep.mubr.f32.mxu0 0.0
        %1880 = vmatmul.mubr.f32.gmra.mrb[0].mxu0 %v1801
        %v1881 = vpop.f32.mrb[0].mxu0
        %v1882 = vadd.f32 0.0, %v1881
        %v1883 = vpop.f32.mrb[0].mxu0
        %1884 = vdwg.mxu0
        %1885 = vrot.lane.b32.xlu0 %v616, 48
        %v1886 = vpop.permute.xlu0 %1885
        %1887 = vrot.lane.b32.xlu0 %v622, 48
        %v1888 = vpop.permute.xlu0 %1887
        %1889 = vrot.lane.b32.xlu0 %v628, 48
        %v1890 = vpop.permute.xlu0 %1889
        %1891 = vrot.lane.b32.xlu0 %v618, 48
        %v1892 = vpop.permute.xlu0 %1891
        %1893 = vrot.lane.b32.xlu0 %v624, 48
        %v1894 = vpop.permute.xlu0 %1893
        %1895 = vrot.lane.b32.xlu0 %v630, 48
        %v1896 = vpop.permute.xlu0 %1895
        %v1897 = vsel %vm712, %v1886, 0
        %v1899 = vsel %vm712, %v1888, 0
        %v1901 = vsel %vm712, %v1890, 0
        %v1903 = vsel %vm712, %v1892, 0
        %v1905 = vsel %vm712, %v1894, 0
        %v1907 = vsel %vm712, %v1896, 0
        %1909 = vmatprep.subr.mxu0 0.0
        %1910 = vmatpush1.xpose.msra.mxu0 %v1903
        %1911 = vmatprep.subr.mxu0 0.0
        %1912 = vmatpush1.xpose.msra.mxu0 %v1905
        %1913 = vmatprep.subr.mxu0 0.0
        %1914 = vmatpush1.xpose.msra.mxu0 %v1907
        %1915 = vmatprep.subr.mxu0 0.0
        %1916 = vmatpush1.xpose.msra.mxu0 0.0
        %1917 = vmatprep.subr.mxu0 0.0
        %1918 = vmatpush1.xpose.msra.mxu0 0.0
        %1919 = vmatprep.subr.mxu0 0.0
        %1920 = vmatpush1.xpose.msra.mxu0 0.0
        %1921 = vmatprep.subr.mxu0 0.0
        %1922 = vmatpush1.xpose.msra.mxu0 0.0
        %1923 = vmatprep.subr.mxu0 0.0
        %1924 = vmatpush1.xpose.msra.mxu0 0.0
        %1925 = vmatprep.subr.mxu0 0.0
        %1926 = vmatpush1.xpose.msra.mxu0 0.0
        %1927 = vmatprep.subr.mxu0 0.0
        %1928 = vmatpush1.xpose.msra.mxu0 0.0
        %1929 = vmatprep.subr.mxu0 0.0
        %1930 = vmatpush1.xpose.msra.mxu0 0.0
        %1931 = vmatprep.subr.mxu0 0.0
        %1932 = vmatpush1.xpose.msra.mxu0 0.0
        %1933 = vmatprep.subr.mxu0 0.0
        %1934 = vmatpush1.xpose.msra.mxu0 0.0
        %1935 = vmatprep.subr.mxu0 0.0
        %1936 = vmatpush1.xpose.msra.mxu0 0.0
        %1937 = vmatprep.subr.mxu0 0.0
        %1938 = vmatpush1.xpose.msra.mxu0 0.0
        %1939 = vmatprep.subr.mxu0 0.0
        %1940 = vmatpush1.xpose.msra.mxu0 0.0
        %1941 = vmatprep.subr.mxu0 0.0
        %1942 = vmatpush1.xpose.msra.mxu0 0.0
        %1943 = vmatprep.subr.mxu0 0.0
        %1944 = vmatpush1.xpose.msra.mxu0 0.0
        %1945 = vmatprep.subr.mxu0 0.0
        %1946 = vmatpush1.xpose.msra.mxu0 0.0
        %1947 = vmatprep.subr.mxu0 0.0
        %1948 = vmatpush1.xpose.msra.mxu0 0.0
        %1949 = vmatprep.subr.mxu0 0.0
        %1950 = vmatpush1.xpose.msra.mxu0 0.0
        %1951 = vmatprep.subr.mxu0 0.0
        %1952 = vmatpush1.xpose.msra.mxu0 0.0
        %1953 = vmatprep.subr.mxu0 0.0
        %1954 = vmatpush1.xpose.msra.mxu0 0.0
        %1955 = vmatprep.subr.mxu0 0.0
        %1956 = vmatpush1.xpose.msra.mxu0 0.0
        %1957 = vmatprep.subr.mxu0 0.0
        %1958 = vmatpush1.xpose.msra.mxu0 0.0
        %1959 = vmatprep.subr.mxu0 0.0
        %1960 = vmatpush1.xpose.msra.mxu0 0.0
        %1961 = vmatprep.subr.mxu0 0.0
        %1962 = vmatpush1.xpose.msra.mxu0 0.0
        %1963 = vmatprep.subr.mxu0 0.0
        %1964 = vmatpush1.xpose.msra.mxu0 0.0
        %1965 = vmatprep.subr.mxu0 0.0
        %1966 = vmatpush1.xpose.msra.mxu0 0.0
        %1967 = vmatprep.subr.mxu0 0.0
        %1968 = vmatpush1.xpose.msra.mxu0 0.0
        %1969 = vmatprep.subr.mxu0 0.0
        %1970 = vmatpush1.xpose.msra.mxu0 0.0
        %1971 = vmatprep.subr.mxu0 0.0
        %1972 = vmatpush1.xpose.msra.mxu0 0.0
        %1973 = vmatprep.mubr.f32.mxu0 0.0
        %1974 = vmatmul.mubr.f32.gmra.mrb[0].mxu0 %v1897
        %v1975 = vpop.f32.mrb[0].mxu0
        %v1976 = vadd.f32 0.0, %v1975
        %v1977 = vpop.f32.mrb[0].mxu0
        %1978 = vmatprep.mubr.f32.mxu0 0.0
        %1979 = vmatmul.mubr.f32.gmra.mrb[0].mxu0 %v1899
        %v1980 = vpop.f32.mrb[0].mxu0
        %v1981 = vadd.f32 0.0, %v1980
        %v1982 = vpop.f32.mrb[0].mxu0
        %1983 = vmatprep.mubr.f32.mxu0 0.0
        %1984 = vmatmul.mubr.f32.gmra.mrb[0].mxu0 %v1901
        %v1985 = vpop.f32.mrb[0].mxu0
        %v1986 = vadd.f32 0.0, %v1985
        %v1987 = vpop.f32.mrb[0].mxu0
        %1988 = vdwg.mxu0
        %v1989 = vsel %vm811, %v1976, -inf
        %1990 = vmax.xlane.f32.xlu0 %v1989
        %v1991 = vpop.xlane.xlu0 %1990
        %v1992 = vsel %vm811, %v1981, -inf
        %1993 = vmax.xlane.f32.xlu0 %v1992
        %v1994 = vpop.xlane.xlu0 %1993
        %v1995 = vsel %vm818, %v1986, -inf
        %1996 = vmax.xlane.f32.xlu0 %v1995
        %v1997 = vpop.xlane.xlu0 %1996
        %v1998 = vsub.f32 %v1976, %v1991
        %v1999 = vsub.f32 %v1981, %v1994
        %v2000 = vsub.f32 %v1986, %v1997
        %v2001 = vmul.f32 %v1998, 1.442695
        %v2002 = vpow.pop %v2001
        %v2003 = vmul.f32 %v1999, 1.442695
        %v2004 = vpow.pop %v2003
        %v2005 = vmul.f32 %v2000, 1.442695
        %v2006 = vpow.pop %v2005
        %v2007 = vsel %vm811, %v2002, 0.0
        %2008 = vadd.xlane.f32.xlu0 %v2007
        %v2009 = vpop.xlane.xlu0 %2008
        %v2010 = vsel %vm811, %v2004, 0.0
        %2011 = vadd.xlane.f32.xlu0 %v2010
        %v2012 = vpop.xlane.xlu0 %2011
        %v2013 = vsel %vm818, %v2006, 0.0
        %2014 = vadd.xlane.f32.xlu0 %v2013
        %v2015 = vpop.xlane.xlu0 %2014
        %v2016 = vrcp.pop %v2009
        %v2017 = vrcp.pop %v2012
        %v2018 = vrcp.pop %v2015
        %v2019 = vmul.f32 %v2002, %v2016
        %v2020 = vmul.f32 %v2004, %v2017
        %v2021 = vmul.f32 %v2006, %v2018
        %2022 = vrot.lane.b32.xlu0 %v699, 48
        %v2023 = vpop.permute.xlu0 %2022
        %2024 = vrot.lane.b32.xlu0 %v704, 48
        %v2025 = vpop.permute.xlu0 %2024
        %2026 = vrot.lane.b32.xlu0 %v709, 48
        %v2027 = vpop.permute.xlu0 %2026
        %v2031 = vsel %vm811, %v2019, 0
        %v2034 = vsel %vm811, %v2020, 0
        %v2037 = vsel %vm811, %v2021, 0
        %v2039 = vsel %vm855, %v2027, 0
        %2041 = vmatprep.subr.mxu0 0.0
        %2042 = vmatpush1.msra.mxu0 %v2023
        %2043 = vmatprep.subr.mxu0 0.0
        %2044 = vmatpush1.msra.mxu0 %v2025
        %2045 = vmatprep.subr.mxu0 0.0
        %2046 = vmatpush1.msra.mxu0 %v2039
        %2047 = vmatprep.subr.mxu0 0.0
        %2048 = vmatpush1.msra.mxu0 0.0
        %2049 = vmatprep.subr.mxu0 0.0
        %2050 = vmatpush1.msra.mxu0 0.0
        %2051 = vmatprep.subr.mxu0 0.0
        %2052 = vmatpush1.msra.mxu0 0.0
        %2053 = vmatprep.subr.mxu0 0.0
        %2054 = vmatpush1.msra.mxu0 0.0
        %2055 = vmatprep.subr.mxu0 0.0
        %2056 = vmatpush1.msra.mxu0 0.0
        %2057 = vmatprep.subr.mxu0 0.0
        %2058 = vmatpush1.msra.mxu0 0.0
        %2059 = vmatprep.subr.mxu0 0.0
        %2060 = vmatpush1.msra.mxu0 0.0
        %2061 = vmatprep.subr.mxu0 0.0
        %2062 = vmatpush1.msra.mxu0 0.0
        %2063 = vmatprep.subr.mxu0 0.0
        %2064 = vmatpush1.msra.mxu0 0.0
        %2065 = vmatprep.subr.mxu0 0.0
        %2066 = vmatpush1.msra.mxu0 0.0
        %2067 = vmatprep.subr.mxu0 0.0
        %2068 = vmatpush1.msra.mxu0 0.0
        %2069 = vmatprep.subr.mxu0 0.0
        %2070 = vmatpush1.msra.mxu0 0.0
        %2071 = vmatprep.subr.mxu0 0.0
        %2072 = vmatpush1.msra.mxu0 0.0
        %2073 = vmatprep.subr.mxu0 0.0
        %2074 = vmatpush1.msra.mxu0 0.0
        %2075 = vmatprep.subr.mxu0 0.0
        %2076 = vmatpush1.msra.mxu0 0.0
        %2077 = vmatprep.subr.mxu0 0.0
        %2078 = vmatpush1.msra.mxu0 0.0
        %2079 = vmatprep.subr.mxu0 0.0
        %2080 = vmatpush1.msra.mxu0 0.0
        %2081 = vmatprep.subr.mxu0 0.0
        %2082 = vmatpush1.msra.mxu0 0.0
        %2083 = vmatprep.subr.mxu0 0.0
        %2084 = vmatpush1.msra.mxu0 0.0
        %2085 = vmatprep.subr.mxu0 0.0
        %2086 = vmatpush1.msra.mxu0 0.0
        %2087 = vmatprep.subr.mxu0 0.0
        %2088 = vmatpush1.msra.mxu0 0.0
        %2089 = vmatprep.subr.mxu0 0.0
        %2090 = vmatpush1.msra.mxu0 0.0
        %2091 = vmatprep.subr.mxu0 0.0
        %2092 = vmatpush1.msra.mxu0 0.0
        %2093 = vmatprep.subr.mxu0 0.0
        %2094 = vmatpush1.msra.mxu0 0.0
        %2095 = vmatprep.subr.mxu0 0.0
        %2096 = vmatpush1.msra.mxu0 0.0
        %2097 = vmatprep.subr.mxu0 0.0
        %2098 = vmatpush1.msra.mxu0 0.0
        %2099 = vmatprep.subr.mxu0 0.0
        %2100 = vmatpush1.msra.mxu0 0.0
        %2101 = vmatprep.subr.mxu0 0.0
        %2102 = vmatpush1.msra.mxu0 0.0
        %2103 = vmatprep.subr.mxu0 0.0
        %2104 = vmatpush1.msra.mxu0 0.0
        %2105 = vmatprep.mubr.f32.mxu0 0.0
        %2106 = vmatmul.mubr.f32.gmra.mrb[0].mxu0 %v2031
        %v2107 = vpop.f32.mrb[0].mxu0
        %v2108 = vadd.f32 0.0, %v2107
        %v2109 = vpop.f32.mrb[0].mxu0
        %2110 = vmatprep.mubr.f32.mxu0 0.0
        %2111 = vmatmul.mubr.f32.gmra.mrb[0].mxu0 %v2034
        %v2112 = vpop.f32.mrb[0].mxu0
        %v2113 = vadd.f32 0.0, %v2112
        %v2114 = vpop.f32.mrb[0].mxu0
        %2115 = vmatprep.mubr.f32.mxu0 0.0
        %2116 = vmatmul.mubr.f32.gmra.mrb[0].mxu0 %v2037
        %v2117 = vpop.f32.mrb[0].mxu0
        %v2118 = vadd.f32 0.0, %v2117
        %v2119 = vpop.f32.mrb[0].mxu0
        %2120 = vdwg.mxu0
        %2121 = vrot.lane.b32.xlu0 %v616, 32
        %v2122 = vpop.permute.xlu0 %2121
        %2123 = vrot.lane.b32.xlu0 %v622, 32
        %v2124 = vpop.permute.xlu0 %2123
        %2125 = vrot.lane.b32.xlu0 %v628, 32
        %v2126 = vpop.permute.xlu0 %2125
        %2127 = vrot.lane.b32.xlu0 %v618, 32
        %v2128 = vpop.permute.xlu0 %2127
        %2129 = vrot.lane.b32.xlu0 %v624, 32
        %v2130 = vpop.permute.xlu0 %2129
        %2131 = vrot.lane.b32.xlu0 %v630, 32
        %v2132 = vpop.permute.xlu0 %2131
        %v2133 = vsel %vm712, %v2122, 0
        %v2135 = vsel %vm712, %v2124, 0
        %v2137 = vsel %vm712, %v2126, 0
        %v2139 = vsel %vm712, %v2128, 0
        %v2141 = vsel %vm712, %v2130, 0
        %v2143 = vsel %vm712, %v2132, 0
        %2145 = vmatprep.subr.mxu0 0.0
        %2146 = vmatpush1.xpose.msra.mxu0 %v2139
        %2147 = vmatprep.subr.mxu0 0.0
        %2148 = vmatpush1.xpose.msra.mxu0 %v2141
        %2149 = vmatprep.subr.mxu0 0.0
        %2150 = vmatpush1.xpose.msra.mxu0 %v2143
        %2151 = vmatprep.subr.mxu0 0.0
        %2152 = vmatpush1.xpose.msra.mxu0 0.0
        %2153 = vmatprep.subr.mxu0 0.0
        %2154 = vmatpush1.xpose.msra.mxu0 0.0
        %2155 = vmatprep.subr.mxu0 0.0
        %2156 = vmatpush1.xpose.msra.mxu0 0.0
        %2157 = vmatprep.subr.mxu0 0.0
        %2158 = vmatpush1.xpose.msra.mxu0 0.0
        %2159 = vmatprep.subr.mxu0 0.0
        %2160 = vmatpush1.xpose.msra.mxu0 0.0
        %2161 = vmatprep.subr.mxu0 0.0
        %2162 = vmatpush1.xpose.msra.mxu0 0.0
        %2163 = vmatprep.subr.mxu0 0.0
        %2164 = vmatpush1.xpose.msra.mxu0 0.0
        %2165 = vmatprep.subr.mxu0 0.0
        %2166 = vmatpush1.xpose.msra.mxu0 0.0
        %2167 = vmatprep.subr.mxu0 0.0
        %2168 = vmatpush1.xpose.msra.mxu0 0.0
        %2169 = vmatprep.subr.mxu0 0.0
        %2170 = vmatpush1.xpose.msra.mxu0 0.0
        %2171 = vmatprep.subr.mxu0 0.0
        %2172 = vmatpush1.xpose.msra.mxu0 0.0
        %2173 = vmatprep.subr.mxu0 0.0
        %2174 = vmatpush1.xpose.msra.mxu0 0.0
        %2175 = vmatprep.subr.mxu0 0.0
        %2176 = vmatpush1.xpose.msra.mxu0 0.0
        %2177 = vmatprep.subr.mxu0 0.0
        %2178 = vmatpush1.xpose.msra.mxu0 0.0
        %2179 = vmatprep.subr.mxu0 0.0
        %2180 = vmatpush1.xpose.msra.mxu0 0.0
        %2181 = vmatprep.subr.mxu0 0.0
        %2182 = vmatpush1.xpose.msra.mxu0 0.0
        %2183 = vmatprep.subr.mxu0 0.0
        %2184 = vmatpush1.xpose.msra.mxu0 0.0
        %2185 = vmatprep.subr.mxu0 0.0
        %2186 = vmatpush1.xpose.msra.mxu0 0.0
        %2187 = vmatprep.subr.mxu0 0.0
        %2188 = vmatpush1.xpose.msra.mxu0 0.0
        %2189 = vmatprep.subr.mxu0 0.0
        %2190 = vmatpush1.xpose.msra.mxu0 0.0
        %2191 = vmatprep.subr.mxu0 0.0
        %2192 = vmatpush1.xpose.msra.mxu0 0.0
        %2193 = vmatprep.subr.mxu0 0.0
        %2194 = vmatpush1.xpose.msra.mxu0 0.0
        %2195 = vmatprep.subr.mxu0 0.0
        %2196 = vmatpush1.xpose.msra.mxu0 0.0
        %2197 = vmatprep.subr.mxu0 0.0
        %2198 = vmatpush1.xpose.msra.mxu0 0.0
        %2199 = vmatprep.subr.mxu0 0.0
        %2200 = vmatpush1.xpose.msra.mxu0 0.0
        %2201 = vmatprep.subr.mxu0 0.0
        %2202 = vmatpush1.xpose.msra.mxu0 0.0
        %2203 = vmatprep.subr.mxu0 0.0
        %2204 = vmatpush1.xpose.msra.mxu0 0.0
        %2205 = vmatprep.subr.mxu0 0.0
        %2206 = vmatpush1.xpose.msra.mxu0 0.0
        %2207 = vmatprep.subr.mxu0 0.0
        %2208 = vmatpush1.xpose.msra.mxu0 0.0
        %2209 = vmatprep.mubr.f32.mxu0 0.0
        %2210 = vmatmul.mubr.f32.gmra.mrb[0].mxu0 %v2133
        %v2211 = vpop.f32.mrb[0].mxu0
        %v2212 = vadd.f32 0.0, %v2211
        %v2213 = vpop.f32.mrb[0].mxu0
        %2214 = vmatprep.mubr.f32.mxu0 0.0
        %2215 = vmatmul.mubr.f32.gmra.mrb[0].mxu0 %v2135
        %v2216 = vpop.f32.mrb[0].mxu0
        %v2217 = vadd.f32 0.0, %v2216
        %v2218 = vpop.f32.mrb[0].mxu0
        %2219 = vmatprep.mubr.f32.mxu0 0.0
        %2220 = vmatmul.mubr.f32.gmra.mrb[0].mxu0 %v2137
        %v2221 = vpop.f32.mrb[0].mxu0
        %v2222 = vadd.f32 0.0, %v2221
        %v2223 = vpop.f32.mrb[0].mxu0
        %2224 = vdwg.mxu0
        %v2225 = vsel %vm811, %v2212, -inf
        %2226 = vmax.xlane.f32.xlu0 %v2225
        %v2227 = vpop.xlane.xlu0 %2226
        %v2228 = vsel %vm811, %v2217, -inf
        %2229 = vmax.xlane.f32.xlu0 %v2228
        %v2230 = vpop.xlane.xlu0 %2229
        %v2231 = vsel %vm818, %v2222, -inf
        %2232 = vmax.xlane.f32.xlu0 %v2231
        %v2233 = vpop.xlane.xlu0 %2232
        %v2234 = vsub.f32 %v2212, %v2227
        %v2235 = vsub.f32 %v2217, %v2230
        %v2236 = vsub.f32 %v2222, %v2233
        %v2237 = vmul.f32 %v2234, 1.442695
        %v2238 = vpow.pop %v2237
        %v2239 = vmul.f32 %v2235, 1.442695
        %v2240 = vpow.pop %v2239
        %v2241 = vmul.f32 %v2236, 1.442695
        %v2242 = vpow.pop %v2241
        %v2243 = vsel %vm811, %v2238, 0.0
        %2244 = vadd.xlane.f32.xlu0 %v2243
        %v2245 = vpop.xlane.xlu0 %2244
        %v2246 = vsel %vm811, %v2240, 0.0
        %2247 = vadd.xlane.f32.xlu0 %v2246
        %v2248 = vpop.xlane.xlu0 %2247
        %v2249 = vsel %vm818, %v2242, 0.0
        %2250 = vadd.xlane.f32.xlu0 %v2249
        %v2251 = vpop.xlane.xlu0 %2250
        %v2252 = vrcp.pop %v2245
        %v2253 = vrcp.pop %v2248
        %v2254 = vrcp.pop %v2251
        %v2255 = vmul.f32 %v2238, %v2252
        %v2256 = vmul.f32 %v2240, %v2253
        %v2257 = vmul.f32 %v2242, %v2254
        %2258 = vrot.lane.b32.xlu0 %v699, 32
        %v2259 = vpop.permute.xlu0 %2258
        %2260 = vrot.lane.b32.xlu0 %v704, 32
        %v2261 = vpop.permute.xlu0 %2260
        %2262 = vrot.lane.b32.xlu0 %v709, 32
        %v2263 = vpop.permute.xlu0 %2262
        %v2267 = vsel %vm811, %v2255, 0
        %v2270 = vsel %vm811, %v2256, 0
        %v2273 = vsel %vm811, %v2257, 0
        %v2275 = vsel %vm855, %v2263, 0
        %2277 = vmatprep.subr.mxu0 0.0
        %2278 = vmatpush1.msra.mxu0 %v2259
        %2279 = vmatprep.subr.mxu0 0.0
        %2280 = vmatpush1.msra.mxu0 %v2261
        %2281 = vmatprep.subr.mxu0 0.0
        %2282 = vmatpush1.msra.mxu0 %v2275
        %2283 = vmatprep.subr.mxu0 0.0
        %2284 = vmatpush1.msra.mxu0 0.0
        %2285 = vmatprep.subr.mxu0 0.0
        %2286 = vmatpush1.msra.mxu0 0.0
        %2287 = vmatprep.subr.mxu0 0.0
        %2288 = vmatpush1.msra.mxu0 0.0
        %2289 = vmatprep.subr.mxu0 0.0
        %2290 = vmatpush1.msra.mxu0 0.0
        %2291 = vmatprep.subr.mxu0 0.0
        %2292 = vmatpush1.msra.mxu0 0.0
        %2293 = vmatprep.subr.mxu0 0.0
        %2294 = vmatpush1.msra.mxu0 0.0
        %2295 = vmatprep.subr.mxu0 0.0
        %2296 = vmatpush1.msra.mxu0 0.0
        %2297 = vmatprep.subr.mxu0 0.0
        %2298 = vmatpush1.msra.mxu0 0.0
        %2299 = vmatprep.subr.mxu0 0.0
        %2300 = vmatpush1.msra.mxu0 0.0
        %2301 = vmatprep.subr.mxu0 0.0
        %2302 = vmatpush1.msra.mxu0 0.0
        %2303 = vmatprep.subr.mxu0 0.0
        %2304 = vmatpush1.msra.mxu0 0.0
        %2305 = vmatprep.subr.mxu0 0.0
        %2306 = vmatpush1.msra.mxu0 0.0
        %2307 = vmatprep.subr.mxu0 0.0
        %2308 = vmatpush1.msra.mxu0 0.0
        %2309 = vmatprep.subr.mxu0 0.0
        %2310 = vmatpush1.msra.mxu0 0.0
        %2311 = vmatprep.subr.mxu0 0.0
        %2312 = vmatpush1.msra.mxu0 0.0
        %2313 = vmatprep.subr.mxu0 0.0
        %2314 = vmatpush1.msra.mxu0 0.0
        %2315 = vmatprep.subr.mxu0 0.0
        %2316 = vmatpush1.msra.mxu0 0.0
        %2317 = vmatprep.subr.mxu0 0.0
        %2318 = vmatpush1.msra.mxu0 0.0
        %2319 = vmatprep.subr.mxu0 0.0
        %2320 = vmatpush1.msra.mxu0 0.0
        %2321 = vmatprep.subr.mxu0 0.0
        %2322 = vmatpush1.msra.mxu0 0.0
        %2323 = vmatprep.subr.mxu0 0.0
        %2324 = vmatpush1.msra.mxu0 0.0
        %2325 = vmatprep.subr.mxu0 0.0
        %2326 = vmatpush1.msra.mxu0 0.0
        %2327 = vmatprep.subr.mxu0 0.0
        %2328 = vmatpush1.msra.mxu0 0.0
        %2329 = vmatprep.subr.mxu0 0.0
        %2330 = vmatpush1.msra.mxu0 0.0
        %2331 = vmatprep.subr.mxu0 0.0
        %2332 = vmatpush1.msra.mxu0 0.0
        %2333 = vmatprep.subr.mxu0 0.0
        %2334 = vmatpush1.msra.mxu0 0.0
        %2335 = vmatprep.subr.mxu0 0.0
        %2336 = vmatpush1.msra.mxu0 0.0
        %2337 = vmatprep.subr.mxu0 0.0
        %2338 = vmatpush1.msra.mxu0 0.0
        %2339 = vmatprep.subr.mxu0 0.0
        %2340 = vmatpush1.msra.mxu0 0.0
        %2341 = vmatprep.mubr.f32.mxu0 0.0
        %2342 = vmatmul.mubr.f32.gmra.mrb[0].mxu0 %v2267
        %v2343 = vpop.f32.mrb[0].mxu0
        %v2344 = vadd.f32 0.0, %v2343
        %v2345 = vpop.f32.mrb[0].mxu0
        %2346 = vmatprep.mubr.f32.mxu0 0.0
        %2347 = vmatmul.mubr.f32.gmra.mrb[0].mxu0 %v2270
        %v2348 = vpop.f32.mrb[0].mxu0
        %v2349 = vadd.f32 0.0, %v2348
        %v2350 = vpop.f32.mrb[0].mxu0
        %2351 = vmatprep.mubr.f32.mxu0 0.0
        %2352 = vmatmul.mubr.f32.gmra.mrb[0].mxu0 %v2273
        %v2353 = vpop.f32.mrb[0].mxu0
        %v2354 = vadd.f32 0.0, %v2353
        %v2355 = vpop.f32.mrb[0].mxu0
        %2356 = vdwg.mxu0
        %2357 = vrot.lane.b32.xlu0 %v616, 16
        %v2358 = vpop.permute.xlu0 %2357
        %2359 = vrot.lane.b32.xlu0 %v622, 16
        %v2360 = vpop.permute.xlu0 %2359
        %2361 = vrot.lane.b32.xlu0 %v628, 16
        %v2362 = vpop.permute.xlu0 %2361
        %2363 = vrot.lane.b32.xlu0 %v618, 16
        %v2364 = vpop.permute.xlu0 %2363
        %2365 = vrot.lane.b32.xlu0 %v624, 16
        %v2366 = vpop.permute.xlu0 %2365
        %2367 = vrot.lane.b32.xlu0 %v630, 16
        %v2368 = vpop.permute.xlu0 %2367
        %v2369 = vsel %vm712, %v2358, 0
        %v2371 = vsel %vm712, %v2360, 0
        %v2373 = vsel %vm712, %v2362, 0
        %v2375 = vsel %vm712, %v2364, 0
        %v2377 = vsel %vm712, %v2366, 0
        %v2379 = vsel %vm712, %v2368, 0
        %2381 = vmatprep.subr.mxu0 0.0
        %2382 = vmatpush1.xpose.msra.mxu0 %v2375
        %2383 = vmatprep.subr.mxu0 0.0
        %2384 = vmatpush1.xpose.msra.mxu0 %v2377
        %2385 = vmatprep.subr.mxu0 0.0
        %2386 = vmatpush1.xpose.msra.mxu0 %v2379
        %2387 = vmatprep.subr.mxu0 0.0
        %2388 = vmatpush1.xpose.msra.mxu0 0.0
        %2389 = vmatprep.subr.mxu0 0.0
        %2390 = vmatpush1.xpose.msra.mxu0 0.0
        %2391 = vmatprep.subr.mxu0 0.0
        %2392 = vmatpush1.xpose.msra.mxu0 0.0
        %2393 = vmatprep.subr.mxu0 0.0
        %2394 = vmatpush1.xpose.msra.mxu0 0.0
        %2395 = vmatprep.subr.mxu0 0.0
        %2396 = vmatpush1.xpose.msra.mxu0 0.0
        %2397 = vmatprep.subr.mxu0 0.0
        %2398 = vmatpush1.xpose.msra.mxu0 0.0
        %2399 = vmatprep.subr.mxu0 0.0
        %2400 = vmatpush1.xpose.msra.mxu0 0.0
        %2401 = vmatprep.subr.mxu0 0.0
        %2402 = vmatpush1.xpose.msra.mxu0 0.0
        %2403 = vmatprep.subr.mxu0 0.0
        %2404 = vmatpush1.xpose.msra.mxu0 0.0
        %2405 = vmatprep.subr.mxu0 0.0
        %2406 = vmatpush1.xpose.msra.mxu0 0.0
        %2407 = vmatprep.subr.mxu0 0.0
        %2408 = vmatpush1.xpose.msra.mxu0 0.0
        %2409 = vmatprep.subr.mxu0 0.0
        %2410 = vmatpush1.xpose.msra.mxu0 0.0
        %2411 = vmatprep.subr.mxu0 0.0
        %2412 = vmatpush1.xpose.msra.mxu0 0.0
        %2413 = vmatprep.subr.mxu0 0.0
        %2414 = vmatpush1.xpose.msra.mxu0 0.0
        %2415 = vmatprep.subr.mxu0 0.0
        %2416 = vmatpush1.xpose.msra.mxu0 0.0
        %2417 = vmatprep.subr.mxu0 0.0
        %2418 = vmatpush1.xpose.msra.mxu0 0.0
        %2419 = vmatprep.subr.mxu0 0.0
        %2420 = vmatpush1.xpose.msra.mxu0 0.0
        %2421 = vmatprep.subr.mxu0 0.0
        %2422 = vmatpush1.xpose.msra.mxu0 0.0
        %2423 = vmatprep.subr.mxu0 0.0
        %2424 = vmatpush1.xpose.msra.mxu0 0.0
        %2425 = vmatprep.subr.mxu0 0.0
        %2426 = vmatpush1.xpose.msra.mxu0 0.0
        %2427 = vmatprep.subr.mxu0 0.0
        %2428 = vmatpush1.xpose.msra.mxu0 0.0
        %2429 = vmatprep.subr.mxu0 0.0
        %2430 = vmatpush1.xpose.msra.mxu0 0.0
        %2431 = vmatprep.subr.mxu0 0.0
        %2432 = vmatpush1.xpose.msra.mxu0 0.0
        %2433 = vmatprep.subr.mxu0 0.0
        %2434 = vmatpush1.xpose.msra.mxu0 0.0
        %2435 = vmatprep.subr.mxu0 0.0
        %2436 = vmatpush1.xpose.msra.mxu0 0.0
        %2437 = vmatprep.subr.mxu0 0.0
        %2438 = vmatpush1.xpose.msra.mxu0 0.0
        %2439 = vmatprep.subr.mxu0 0.0
        %2440 = vmatpush1.xpose.msra.mxu0 0.0
        %2441 = vmatprep.subr.mxu0 0.0
        %2442 = vmatpush1.xpose.msra.mxu0 0.0
        %2443 = vmatprep.subr.mxu0 0.0
        %2444 = vmatpush1.xpose.msra.mxu0 0.0
        %2445 = vmatprep.mubr.f32.mxu0 0.0
        %2446 = vmatmul.mubr.f32.gmra.mrb[0].mxu0 %v2369
        %v2447 = vpop.f32.mrb[0].mxu0
        %v2448 = vadd.f32 0.0, %v2447
        %v2449 = vpop.f32.mrb[0].mxu0
        %2450 = vmatprep.mubr.f32.mxu0 0.0
        %2451 = vmatmul.mubr.f32.gmra.mrb[0].mxu0 %v2371
        %v2452 = vpop.f32.mrb[0].mxu0
        %v2453 = vadd.f32 0.0, %v2452
        %v2454 = vpop.f32.mrb[0].mxu0
        %2455 = vmatprep.mubr.f32.mxu0 0.0
        %2456 = vmatmul.mubr.f32.gmra.mrb[0].mxu0 %v2373
        %v2457 = vpop.f32.mrb[0].mxu0
        %v2458 = vadd.f32 0.0, %v2457
        %v2459 = vpop.f32.mrb[0].mxu0
        %2460 = vdwg.mxu0
        %v2461 = vsel %vm811, %v2448, -inf
        %2462 = vmax.xlane.f32.xlu0 %v2461
        %v2463 = vpop.xlane.xlu0 %2462
        %v2464 = vsel %vm811, %v2453, -inf
        %2465 = vmax.xlane.f32.xlu0 %v2464
        %v2466 = vpop.xlane.xlu0 %2465
        %v2467 = vsel %vm818, %v2458, -inf
        %2468 = vmax.xlane.f32.xlu0 %v2467
        %v2469 = vpop.xlane.xlu0 %2468
        %v2470 = vsub.f32 %v2448, %v2463
        %v2471 = vsub.f32 %v2453, %v2466
        %v2472 = vsub.f32 %v2458, %v2469
        %v2473 = vmul.f32 %v2470, 1.442695
        %v2474 = vpow.pop %v2473
        %v2475 = vmul.f32 %v2471, 1.442695
        %v2476 = vpow.pop %v2475
        %v2477 = vmul.f32 %v2472, 1.442695
        %v2478 = vpow.pop %v2477
        %v2479 = vsel %vm811, %v2474, 0.0
        %2480 = vadd.xlane.f32.xlu0 %v2479
        %v2481 = vpop.xlane.xlu0 %2480
        %v2482 = vsel %vm811, %v2476, 0.0
        %2483 = vadd.xlane.f32.xlu0 %v2482
        %v2484 = vpop.xlane.xlu0 %2483
        %v2485 = vsel %vm818, %v2478, 0.0
        %2486 = vadd.xlane.f32.xlu0 %v2485
        %v2487 = vpop.xlane.xlu0 %2486
        %v2488 = vrcp.pop %v2481
        %v2489 = vrcp.pop %v2484
        %v2490 = vrcp.pop %v2487
        %v2491 = vmul.f32 %v2474, %v2488
        %v2492 = vmul.f32 %v2476, %v2489
        %v2493 = vmul.f32 %v2478, %v2490
        %2494 = vrot.lane.b32.xlu0 %v699, 16
        %v2495 = vpop.permute.xlu0 %2494
        %2496 = vrot.lane.b32.xlu0 %v704, 16
        %v2497 = vpop.permute.xlu0 %2496
        %2498 = vrot.lane.b32.xlu0 %v709, 16
        %v2499 = vpop.permute.xlu0 %2498
        %v2503 = vsel %vm811, %v2491, 0
        %v2506 = vsel %vm811, %v2492, 0
        %v2509 = vsel %vm811, %v2493, 0
        %v2511 = vsel %vm855, %v2499, 0
        %2513 = vmatprep.subr.mxu0 0.0
        %2514 = vmatpush1.msra.mxu0 %v2495
        %2515 = vmatprep.subr.mxu0 0.0
        %2516 = vmatpush1.msra.mxu0 %v2497
        %2517 = vmatprep.subr.mxu0 0.0
        %2518 = vmatpush1.msra.mxu0 %v2511
        %2519 = vmatprep.subr.mxu0 0.0
        %2520 = vmatpush1.msra.mxu0 0.0
        %2521 = vmatprep.subr.mxu0 0.0
        %2522 = vmatpush1.msra.mxu0 0.0
        %2523 = vmatprep.subr.mxu0 0.0
        %2524 = vmatpush1.msra.mxu0 0.0
        %2525 = vmatprep.subr.mxu0 0.0
        %2526 = vmatpush1.msra.mxu0 0.0
        %2527 = vmatprep.subr.mxu0 0.0
        %2528 = vmatpush1.msra.mxu0 0.0
        %2529 = vmatprep.subr.mxu0 0.0
        %2530 = vmatpush1.msra.mxu0 0.0
        %2531 = vmatprep.subr.mxu0 0.0
        %2532 = vmatpush1.msra.mxu0 0.0
        %2533 = vmatprep.subr.mxu0 0.0
        %2534 = vmatpush1.msra.mxu0 0.0
        %2535 = vmatprep.subr.mxu0 0.0
        %2536 = vmatpush1.msra.mxu0 0.0
        %2537 = vmatprep.subr.mxu0 0.0
        %2538 = vmatpush1.msra.mxu0 0.0
        %2539 = vmatprep.subr.mxu0 0.0
        %2540 = vmatpush1.msra.mxu0 0.0
        %2541 = vmatprep.subr.mxu0 0.0
        %2542 = vmatpush1.msra.mxu0 0.0
        %2543 = vmatprep.subr.mxu0 0.0
        %2544 = vmatpush1.msra.mxu0 0.0
        %2545 = vmatprep.subr.mxu0 0.0
        %2546 = vmatpush1.msra.mxu0 0.0
        %2547 = vmatprep.subr.mxu0 0.0
        %2548 = vmatpush1.msra.mxu0 0.0
        %2549 = vmatprep.subr.mxu0 0.0
        %2550 = vmatpush1.msra.mxu0 0.0
        %2551 = vmatprep.subr.mxu0 0.0
        %2552 = vmatpush1.msra.mxu0 0.0
        %2553 = vmatprep.subr.mxu0 0.0
        %2554 = vmatpush1.msra.mxu0 0.0
        %2555 = vmatprep.subr.mxu0 0.0
        %2556 = vmatpush1.msra.mxu0 0.0
        %2557 = vmatprep.subr.mxu0 0.0
        %2558 = vmatpush1.msra.mxu0 0.0
        %2559 = vmatprep.subr.mxu0 0.0
        %2560 = vmatpush1.msra.mxu0 0.0
        %2561 = vmatprep.subr.mxu0 0.0
        %2562 = vmatpush1.msra.mxu0 0.0
        %2563 = vmatprep.subr.mxu0 0.0
        %2564 = vmatpush1.msra.mxu0 0.0
        %2565 = vmatprep.subr.mxu0 0.0
        %2566 = vmatpush1.msra.mxu0 0.0
        %2567 = vmatprep.subr.mxu0 0.0
        %2568 = vmatpush1.msra.mxu0 0.0
        %2569 = vmatprep.subr.mxu0 0.0
        %2570 = vmatpush1.msra.mxu0 0.0
        %2571 = vmatprep.subr.mxu0 0.0
        %2572 = vmatpush1.msra.mxu0 0.0
        %2573 = vmatprep.subr.mxu0 0.0
        %2574 = vmatpush1.msra.mxu0 0.0
        %2575 = vmatprep.subr.mxu0 0.0
        %2576 = vmatpush1.msra.mxu0 0.0
        %2577 = vmatprep.mubr.f32.mxu0 0.0
        %2578 = vmatmul.mubr.f32.gmra.mrb[0].mxu0 %v2503
        %v2579 = vpop.f32.mrb[0].mxu0
        %v2580 = vadd.f32 0.0, %v2579
        %v2581 = vpop.f32.mrb[0].mxu0
        %2582 = vmatprep.mubr.f32.mxu0 0.0
        %2583 = vmatmul.mubr.f32.gmra.mrb[0].mxu0 %v2506
        %v2584 = vpop.f32.mrb[0].mxu0
        %v2585 = vadd.f32 0.0, %v2584
        %v2586 = vpop.f32.mrb[0].mxu0
        %2587 = vmatprep.mubr.f32.mxu0 0.0
        %2588 = vmatmul.mubr.f32.gmra.mrb[0].mxu0 %v2509
        %v2589 = vpop.f32.mrb[0].mxu0
        %v2590 = vadd.f32 0.0, %v2589
        %v2591 = vpop.f32.mrb[0].mxu0
        %2592 = vdwg.mxu0
        %2596 = vrot.lane.b32.xlu0 %v1164, 16
        %v2597 = vpop.permute.xlu0 %2596
        %2598 = vrot.lane.b32.xlu0 %v1169, 16
        %v2599 = vpop.permute.xlu0 %2598
        %2600 = vrot.lane.b32.xlu0 %v1174, 16
        %v2601 = vpop.permute.xlu0 %2600
        %2608 = vrot.lane.b32.xlu0 %v1400, 32
        %v2609 = vpop.permute.xlu0 %2608
        %2610 = vrot.lane.b32.xlu0 %v1405, 32
        %v2611 = vpop.permute.xlu0 %2610
        %2612 = vrot.lane.b32.xlu0 %v1410, 32
        %v2613 = vpop.permute.xlu0 %2612
        %2620 = vrot.lane.b32.xlu0 %v1636, 48
        %v2621 = vpop.permute.xlu0 %2620
        %2622 = vrot.lane.b32.xlu0 %v1641, 48
        %v2623 = vpop.permute.xlu0 %2622
        %2624 = vrot.lane.b32.xlu0 %v1646, 48
        %v2625 = vpop.permute.xlu0 %2624
        %2632 = vrot.lane.b32.xlu0 %v1872, 64
        %v2633 = vpop.permute.xlu0 %2632
        %2634 = vrot.lane.b32.xlu0 %v1877, 64
        %v2635 = vpop.permute.xlu0 %2634
        %2636 = vrot.lane.b32.xlu0 %v1882, 64
        %v2637 = vpop.permute.xlu0 %2636
        %2644 = vrot.lane.b32.xlu0 %v2108, 80
        %v2645 = vpop.permute.xlu0 %2644
        %2646 = vrot.lane.b32.xlu0 %v2113, 80
        %v2647 = vpop.permute.xlu0 %2646
        %2648 = vrot.lane.b32.xlu0 %v2118, 80
        %v2649 = vpop.permute.xlu0 %2648
        %2656 = vrot.lane.b32.xlu0 %v2344, 96
        %v2657 = vpop.permute.xlu0 %2656
        %2658 = vrot.lane.b32.xlu0 %v2349, 96
        %v2659 = vpop.permute.xlu0 %2658
        %2660 = vrot.lane.b32.xlu0 %v2354, 96
        %v2661 = vpop.permute.xlu0 %2660
        %2668 = vrot.lane.b32.xlu0 %v2580, 112
        %v2669 = vpop.permute.xlu0 %2668
        %2670 = vrot.lane.b32.xlu0 %v2585, 112
        %v2671 = vpop.permute.xlu0 %2670
        %2672 = vrot.lane.b32.xlu0 %v2590, 112
        %v2673 = vpop.permute.xlu0 %2672
        %v2677 = vsel %vm712, %v926, %v2597
        %v2678 = vsel %vm712, %v931, %v2599
        %v2679 = vsel %vm712, %v936, %v2601
        %vm2680 = vcmask 261120
        %v2681 = vsel %vm2680, %v2677, %v2609
        %v2682 = vsel %vm2680, %v2678, %v2611
        %v2683 = vsel %vm2680, %v2679, %v2613
        %vm2684 = vcmask 392192
        %v2685 = vsel %vm2684, %v2681, %v2621
        %v2686 = vsel %vm2684, %v2682, %v2623
        %v2687 = vsel %vm2684, %v2683, %v2625
        %vm2688 = vcmask 523264
        %v2689 = vsel %vm2688, %v2685, %v2633
        %v2690 = vsel %vm2688, %v2686, %v2635
        %v2691 = vsel %vm2688, %v2687, %v2637
        %vm2692 = vcmask 654336
        %v2693 = vsel %vm2692, %v2689, %v2645
        %v2694 = vsel %vm2692, %v2690, %v2647
        %v2695 = vsel %vm2692, %v2691, %v2649
        %vm2696 = vcmask 785408
        %v2697 = vsel %vm2696, %v2693, %v2657
        %v2698 = vsel %vm2696, %v2694, %v2659
        %v2699 = vsel %vm2696, %v2695, %v2661
        %vm2700 = vcmask 916480
        %v2701 = vsel %vm2700, %v2697, %v2669
        %v2702 = vsel %vm2700, %v2698, %v2671
        %v2703 = vsel %vm2700, %v2699, %v2673
        %v2704 = vld [vmem:[%s2] sm:$0xff]
        %v2705 = vld [vmem:[%s2 + $0x8] sm:$0xff]
        %v2706 = vld [vmem:[%s2 + $0x10] sm:$0xff]
        %v2707 = vld [vmem:[%s2 + $0x18] sm:$0xff]
        %v2708 = vld [vmem:[%s2 + $0x20] sm:$0xff]
        %v2709 = vld [vmem:[%s2 + $0x28] sm:$0xff]
        %v2710 = vld [vmem:[%s2 + $0x30] sm:$0xff]
        %v2711 = vld [vmem:[%s2 + $0x38] sm:$0xff]
        %v2712 = vld [vmem:[%s2 + $0x40] sm:$0xff]
        %v2713 = vld [vmem:[%s2 + $0x48] sm:$0xff]
        %v2714 = vld [vmem:[%s2 + $0x50] sm:$0xff]
        %v2715 = vld [vmem:[%s2 + $0x58] sm:$0xff]
        %v2716 = vld [vmem:[%s2 + $0x60] sm:$0xff]
        %v2717 = vld [vmem:[%s2 + $0x68] sm:$0xff]
        %v2718 = vld [vmem:[%s2 + $0x70] sm:$0xff]
        %v2719 = vld [vmem:[%s2 + $0x78] sm:$0xff]
        %v2720 = vld [vmem:[%s3] sm:$0x1]
        %v2722 = vlaneseq
        %v2723 = vshrl.u32 %v2722, 7
        %v2724 = vsub.s32 0, %v2723
        %v2725 = vrot.slane %v2720, %v2724
        %2727 = vmatprep.subr.mxu0 0.0
        %2728 = vmatpush1.msra.mxu0 %v2704
        %2729 = vmatprep.subr.mxu0 0.0
        %2730 = vmatpush1.msra.mxu0 %v2705
        %2731 = vmatprep.subr.mxu0 0.0
        %2732 = vmatpush1.msra.mxu0 %v2706
        %2733 = vmatprep.subr.mxu0 0.0
        %2734 = vmatpush1.msra.mxu0 %v2707
        %2735 = vmatprep.subr.mxu0 0.0
        %2736 = vmatpush1.msra.mxu0 %v2708
        %2737 = vmatprep.subr.mxu0 0.0
        %2738 = vmatpush1.msra.mxu0 %v2709
        %2739 = vmatprep.subr.mxu0 0.0
        %2740 = vmatpush1.msra.mxu0 %v2710
        %2741 = vmatprep.subr.mxu0 0.0
        %2742 = vmatpush1.msra.mxu0 %v2711
        %2743 = vmatprep.subr.mxu0 0.0
        %2744 = vmatpush1.msra.mxu0 %v2712
        %2745 = vmatprep.subr.mxu0 0.0
        %2746 = vmatpush1.msra.mxu0 %v2713
        %2747 = vmatprep.subr.mxu0 0.0
        %2748 = vmatpush1.msra.mxu0 %v2714
        %2749 = vmatprep.subr.mxu0 0.0
        %2750 = vmatpush1.msra.mxu0 %v2715
        %2751 = vmatprep.subr.mxu0 0.0
        %2752 = vmatpush1.msra.mxu0 %v2716
        %2753 = vmatprep.subr.mxu0 0.0
        %2754 = vmatpush1.msra.mxu0 %v2717
        %2755 = vmatprep.subr.mxu0 0.0
        %2756 = vmatpush1.msra.mxu0 %v2718
        %2757 = vmatprep.subr.mxu0 0.0
        %2758 = vmatpush1.msra.mxu0 %v2719
        %2759 = vmatprep.subr.mxu0 0.0
        %2760 = vmatpush1.msra.mxu0 0.0
        %2761 = vmatprep.subr.mxu0 0.0
        %2762 = vmatpush1.msra.mxu0 0.0
        %2763 = vmatprep.subr.mxu0 0.0
        %2764 = vmatpush1.msra.mxu0 0.0
        %2765 = vmatprep.subr.mxu0 0.0
        %2766 = vmatpush1.msra.mxu0 0.0
        %2767 = vmatprep.subr.mxu0 0.0
        %2768 = vmatpush1.msra.mxu0 0.0
        %2769 = vmatprep.subr.mxu0 0.0
        %2770 = vmatpush1.msra.mxu0 0.0
        %2771 = vmatprep.subr.mxu0 0.0
        %2772 = vmatpush1.msra.mxu0 0.0
        %2773 = vmatprep.subr.mxu0 0.0
        %2774 = vmatpush1.msra.mxu0 0.0
        %2775 = vmatprep.subr.mxu0 0.0
        %2776 = vmatpush1.msra.mxu0 0.0
        %2777 = vmatprep.subr.mxu0 0.0
        %2778 = vmatpush1.msra.mxu0 0.0
        %2779 = vmatprep.subr.mxu0 0.0
        %2780 = vmatpush1.msra.mxu0 0.0
        %2781 = vmatprep.subr.mxu0 0.0
        %2782 = vmatpush1.msra.mxu0 0.0
        %2783 = vmatprep.subr.mxu0 0.0
        %2784 = vmatpush1.msra.mxu0 0.0
        %2785 = vmatprep.subr.mxu0 0.0
        %2786 = vmatpush1.msra.mxu0 0.0
        %2787 = vmatprep.subr.mxu0 0.0
        %2788 = vmatpush1.msra.mxu0 0.0
        %2789 = vmatprep.subr.mxu0 0.0
        %2790 = vmatpush1.msra.mxu0 0.0
        %2791 = vmatprep.mubr.f32.mxu0 0.0
        %2792 = vmatmul.mubr.f32.gmra.mrb[0].mxu0 %v2701
        %v2793 = vpop.f32.mrb[0].mxu0
        %v2794 = vadd.f32 %v2725, %v2793
        %v2795 = vpop.f32.mrb[0].mxu0
        %2796 = vmatprep.mubr.f32.mxu0 0.0
        %2797 = vmatmul.mubr.f32.gmra.mrb[0].mxu0 %v2702
        %v2798 = vpop.f32.mrb[0].mxu0
        %v2799 = vadd.f32 %v2725, %v2798
        %v2800 = vpop.f32.mrb[0].mxu0
        %2801 = vmatprep.mubr.f32.mxu0 0.0
        %2802 = vmatmul.mubr.f32.gmra.mrb[0].mxu0 %v2703
        %v2803 = vpop.f32.mrb[0].mxu0
        %v2804 = vadd.f32 %v2725, %v2803
        %v2805 = vpop.f32.mrb[0].mxu0
        %2806 = vdwg.mxu0
        %2807 = vst [vmem:[%s497] sm:$0xff] %v2794
        %2808 = vst [vmem:[%s497 + $0x8] sm:$0xff] %v2799
        %2809 = vst [vmem:[%s497 + $0x10] sm:$0x1f] %v2804
        %v2810 = vld [vmem:[%s8] sm:$0x1]
        %v2811 = vld [vmem:[%s9] sm:$0x1]
        %v2812 = vadd.f32 %v498, %v2794
        %v2813 = vadd.f32 %v499, %v2799
        %v2814 = vadd.f32 %v500, %v2804
        %v2815 = vadd.f32 %v2812, %v2813
        %v2816 = vsel %vm855, %v2814, 0.0
        %v2817 = vadd.f32 %v2815, %v2816
        %v2818 = vrot.slane %v2817, 4
        %v2819 = vadd.f32 %v2817, %v2818
        %v2820 = vrot.slane %v2819, 2
        %v2821 = vadd.f32 %v2819, %v2820
        %v2822 = vrot.slane %v2821, 1
        %v2823 = vadd.f32 %v2821, %v2822
        %v2824 = vmul.f32 %v2823, 0.04761905
        %v2825 = vmul.f32 %v2812, %v2812
        %v2826 = vmul.f32 %v2813, %v2813
        %v2827 = vmul.f32 %v2814, %v2814
        %v2828 = vadd.f32 %v2825, %v2826
        %v2829 = vsel %vm855, %v2827, 0.0
        %v2830 = vadd.f32 %v2828, %v2829
        %v2831 = vrot.slane %v2830, 4
        %v2832 = vadd.f32 %v2830, %v2831
        %v2833 = vrot.slane %v2832, 2
        %v2834 = vadd.f32 %v2832, %v2833
        %v2835 = vrot.slane %v2834, 1
        %v2836 = vadd.f32 %v2834, %v2835
        %v2837 = vmul.f32 %v2836, 0.04761905
        %v2838 = vmul.f32 %v2824, %v2824
        %v2839 = vsub.f32 %v2837, %v2838
        %v2840 = vadd.f32 %v2839, 1e-05
        %v2841 = vrsqrt.pop %v2840
        %v2842 = vmul.f32 %v2841, %v2810
        %v2843 = vsub.f32 %v2812, %v2824
        %v2844 = vsub.f32 %v2813, %v2824
        %v2845 = vsub.f32 %v2814, %v2824
        %v2846 = vlaneseq
        %v2847 = vshrl.u32 %v2846, 7
        %v2848 = vsub.s32 0, %v2847
        %v2849 = vrot.slane %v2842, %v2848
        %v2850 = vmul.f32 %v2843, %v2849
        %v2851 = vmul.f32 %v2844, %v2849
        %v2852 = vmul.f32 %v2845, %v2849
        %v2854 = vlaneseq
        %v2855 = vshrl.u32 %v2854, 7
        %v2856 = vsub.s32 0, %v2855
        %v2857 = vrot.slane %v2811, %v2856
        %v2859 = vadd.f32 %v2850, %v2857
        %v2860 = vadd.f32 %v2851, %v2857
        %v2861 = vadd.f32 %v2852, %v2857
        %v2862 = vld [vmem:[#allocation4] sm:$0xff]
        %v2863 = vld [vmem:[#allocation4 + $0x8] sm:$0xff]
        %v2864 = vld [vmem:[#allocation4 + $0x10] sm:$0xff]
        %v2865 = vld [vmem:[#allocation4 + $0x18] sm:$0xff]
        %v2866 = vld [vmem:[#allocation4 + $0x20] sm:$0xff]
        %v2867 = vld [vmem:[#allocation4 + $0x28] sm:$0xff]
        %v2868 = vld [vmem:[#allocation4 + $0x30] sm:$0xff]
        %v2869 = vld [vmem:[#allocation4 + $0x38] sm:$0xff]
        %v2870 = vld [vmem:[#allocation4 + $0x40] sm:$0xff]
        %v2871 = vld [vmem:[#allocation4 + $0x48] sm:$0xff]
        %v2872 = vld [vmem:[#allocation4 + $0x50] sm:$0xff]
        %v2873 = vld [vmem:[#allocation4 + $0x58] sm:$0xff]
        %v2874 = vld [vmem:[#allocation4 + $0x60] sm:$0xff]
        %v2875 = vld [vmem:[#allocation4 + $0x68] sm:$0xff]
        %v2876 = vld [vmem:[#allocation4 + $0x70] sm:$0xff]
        %v2877 = vld [vmem:[#allocation4 + $0x78] sm:$0xff]
        %v2878 = vld [vmem:[#allocation4 + $0x80] sm:$0xff]
        %v2879 = vld [vmem:[#allocation4 + $0x88] sm:$0xff]
        %v2880 = vld [vmem:[#allocation4 + $0x90] sm:$0xff]
        %v2881 = vld [vmem:[#allocation4 + $0x98] sm:$0xff]
        %v2882 = vld [vmem:[#allocation4 + $0xa0] sm:$0xff]
        %v2883 = vld [vmem:[#allocation4 + $0xa8] sm:$0xff]
        %v2884 = vld [vmem:[#allocation4 + $0xb0] sm:$0xff]
        %v2885 = vld [vmem:[#allocation4 + $0xb8] sm:$0xff]
        %v2886 = vld [vmem:[#allocation4 + $0xc0] sm:$0xff]
        %v2887 = vld [vmem:[#allocation4 + $0xc8] sm:$0xff]
        %v2888 = vld [vmem:[#allocation4 + $0xd0] sm:$0xff]
        %v2889 = vld [vmem:[#allocation4 + $0xd8] sm:$0xff]
        %v2890 = vld [vmem:[#allocation4 + $0xe0] sm:$0xff]
        %v2891 = vld [vmem:[#allocation4 + $0xe8] sm:$0xff]
        %v2892 = vld [vmem:[#allocation4 + $0xf0] sm:$0xff]
        %v2893 = vld [vmem:[#allocation4 + $0xf8] sm:$0xff]
        %v2894 = vld [vmem:[#allocation4 + $0x100] sm:$0xff]
        %v2895 = vld [vmem:[#allocation4 + $0x108] sm:$0xff]
        %v2896 = vld [vmem:[#allocation4 + $0x110] sm:$0xff]
        %v2897 = vld [vmem:[#allocation4 + $0x118] sm:$0xff]
        %v2898 = vld [vmem:[#allocation4 + $0x120] sm:$0xff]
        %v2899 = vld [vmem:[#allocation4 + $0x128] sm:$0xff]
        %v2900 = vld [vmem:[#allocation4 + $0x130] sm:$0xff]
        %v2901 = vld [vmem:[#allocation4 + $0x138] sm:$0xff]
        %v2902 = vld [vmem:[#allocation4 + $0x140] sm:$0xff]
        %v2903 = vld [vmem:[#allocation4 + $0x148] sm:$0xff]
        %v2904 = vld [vmem:[#allocation4 + $0x150] sm:$0xff]
        %v2905 = vld [vmem:[#allocation4 + $0x158] sm:$0xff]
        %v2906 = vld [vmem:[#allocation4 + $0x160] sm:$0xff]
        %v2907 = vld [vmem:[#allocation4 + $0x168] sm:$0xff]
        %v2908 = vld [vmem:[#allocation4 + $0x170] sm:$0xff]
        %v2909 = vld [vmem:[#allocation4 + $0x178] sm:$0xff]
        %v2910 = vld [vmem:[#allocation4 + $0x180] sm:$0xff]
        %v2911 = vld [vmem:[#allocation4 + $0x188] sm:$0xff]
        %v2912 = vld [vmem:[#allocation4 + $0x190] sm:$0xff]
        %v2913 = vld [vmem:[#allocation4 + $0x198] sm:$0xff]
        %v2914 = vld [vmem:[#allocation4 + $0x1a0] sm:$0xff]
        %v2915 = vld [vmem:[#allocation4 + $0x1a8] sm:$0xff]
        %v2916 = vld [vmem:[#allocation4 + $0x1b0] sm:$0xff]
        %v2917 = vld [vmem:[#allocation4 + $0x1b8] sm:$0xff]
        %v2918 = vld [vmem:[#allocation4 + $0x1c0] sm:$0xff]
        %v2919 = vld [vmem:[#allocation4 + $0x1c8] sm:$0xff]
        %v2920 = vld [vmem:[#allocation4 + $0x1d0] sm:$0xff]
        %v2921 = vld [vmem:[#allocation4 + $0x1d8] sm:$0xff]
        %v2922 = vld [vmem:[#allocation4 + $0x1e0] sm:$0xff]
        %v2923 = vld [vmem:[#allocation4 + $0x1e8] sm:$0xff]
        %v2924 = vld [vmem:[#allocation4 + $0x1f0] sm:$0xff]
        %v2925 = vld [vmem:[#allocation4 + $0x1f8] sm:$0xff]
        %v2926 = vld [vmem:[%s5] sm:$0xf]
        %v2928 = vlaneseq
        %v2929 = vshrl.u32 %v2928, 7
        %v2930 = vsub.s32 0, %v2929
        %v2931 = vrot.slane %v2926, %v2930
        %v2932 = vlaneseq
        %v2933 = vshrl.u32 %v2932, 7
        %v2934 = vsub.s32 1, %v2933
        %v2935 = vrot.slane %v2926, %v2934
        %v2936 = vlaneseq
        %v2937 = vshrl.u32 %v2936, 7
        %v2938 = vsub.s32 2, %v2937
        %v2939 = vrot.slane %v2926, %v2938
        %v2940 = vlaneseq
        %v2941 = vshrl.u32 %v2940, 7
        %v2942 = vsub.s32 3, %v2941
        %v2943 = vrot.slane %v2926, %v2942
        %2948 = vmatprep.subr.mxu0 %v2863
        %2949 = vmatpush1.msra.mxu0 %v2862
        %2950 = vmatprep.subr.mxu0 %v2867
        %2951 = vmatpush1.msra.mxu0 %v2866
        %2952 = vmatprep.subr.mxu0 %v2871
        %2953 = vmatpush1.msra.mxu0 %v2870
        %2954 = vmatprep.subr.mxu0 %v2875
        %2955 = vmatpush1.msra.mxu0 %v2874
        %2956 = vmatprep.subr.mxu0 %v2879
        %2957 = vmatpush1.msra.mxu0 %v2878
        %2958 = vmatprep.subr.mxu0 %v2883
        %2959 = vmatpush1.msra.mxu0 %v2882
        %2960 = vmatprep.subr.mxu0 %v2887
        %2961 = vmatpush1.msra.mxu0 %v2886
        %2962 = vmatprep.subr.mxu0 %v2891
        %2963 = vmatpush1.msra.mxu0 %v2890
        %2964 = vmatprep.subr.mxu0 %v2895
        %2965 = vmatpush1.msra.mxu0 %v2894
        %2966 = vmatprep.subr.mxu0 %v2899
        %2967 = vmatpush1.msra.mxu0 %v2898
        %2968 = vmatprep.subr.mxu0 %v2903
        %2969 = vmatpush1.msra.mxu0 %v2902
        %2970 = vmatprep.subr.mxu0 %v2907
        %2971 = vmatpush1.msra.mxu0 %v2906
        %2972 = vmatprep.subr.mxu0 %v2911
        %2973 = vmatpush1.msra.mxu0 %v2910
        %2974 = vmatprep.subr.mxu0 %v2915
        %2975 = vmatpush1.msra.mxu0 %v2914
        %2976 = vmatprep.subr.mxu0 %v2919
        %2977 = vmatpush1.msra.mxu0 %v2918
        %2978 = vmatprep.subr.mxu0 %v2923
        %2979 = vmatpush1.msra.mxu0 %v2922
        %2980 = vmatprep.subr.mxu0 0.0
        %2981 = vmatpush1.msra.mxu0 0.0
        %2982 = vmatprep.subr.mxu0 0.0
        %2983 = vmatpush1.msra.mxu0 0.0
        %2984 = vmatprep.subr.mxu0 0.0
        %2985 = vmatpush1.msra.mxu0 0.0
        %2986 = vmatprep.subr.mxu0 0.0
        %2987 = vmatpush1.msra.mxu0 0.0
        %2988 = vmatprep.subr.mxu0 0.0
        %2989 = vmatpush1.msra.mxu0 0.0
        %2990 = vmatprep.subr.mxu0 0.0
        %2991 = vmatpush1.msra.mxu0 0.0
        %2992 = vmatprep.subr.mxu0 0.0
        %2993 = vmatpush1.msra.mxu0 0.0
        %2994 = vmatprep.subr.mxu0 0.0
        %2995 = vmatpush1.msra.mxu0 0.0
        %2996 = vmatprep.subr.mxu0 0.0
        %2997 = vmatpush1.msra.mxu0 0.0
        %2998 = vmatprep.subr.mxu0 0.0
        %2999 = vmatpush1.msra.mxu0 0.0
        %3000 = vmatprep.subr.mxu0 0.0
        %3001 = vmatpush1.msra.mxu0 0.0
        %3002 = vmatprep.subr.mxu0 0.0
        %3003 = vmatpush1.msra.mxu0 0.0
        %3004 = vmatprep.subr.mxu0 0.0
        %3005 = vmatpush1.msra.mxu0 0.0
        %3006 = vmatprep.subr.mxu0 0.0
        %3007 = vmatpush1.msra.mxu0 0.0
        %3008 = vmatprep.subr.mxu0 0.0
        %3009 = vmatpush1.msra.mxu0 0.0
        %3010 = vmatprep.subr.mxu0 0.0
        %3011 = vmatpush1.msra.mxu0 0.0
        %3012 = vmatprep.mubr.f32.mxu0 0.0
        %3013 = vmatmul.mubr.f32.gmra.mrb[0].mxu0 %v2859
        %v3014 = vpop.f32.mrb[0].mxu0
        %v3015 = vadd.f32 %v2931, %v3014
        %v3016 = vpop.f32.mrb[0].mxu0
        %v3017 = vadd.f32 %v2935, %v3016
        %3018 = vmatprep.mubr.f32.mxu0 0.0
        %3019 = vmatmul.mubr.f32.gmra.mrb[0].mxu0 %v2860
        %v3020 = vpop.f32.mrb[0].mxu0
        %v3021 = vadd.f32 %v2931, %v3020
        %v3022 = vpop.f32.mrb[0].mxu0
        %v3023 = vadd.f32 %v2935, %v3022
        %3024 = vmatprep.mubr.f32.mxu0 0.0
        %3025 = vmatmul.mubr.f32.gmra.mrb[0].mxu0 %v2861
        %v3026 = vpop.f32.mrb[0].mxu0
        %v3027 = vadd.f32 %v2931, %v3026
        %v3028 = vpop.f32.mrb[0].mxu0
        %v3029 = vadd.f32 %v2935, %v3028
        %3030 = vdwg.mxu0
        %3031 = vmatprep.subr.mxu0 %v2865
        %3032 = vmatpush1.msra.mxu0 %v2864
        %3033 = vmatprep.subr.mxu0 %v2869
        %3034 = vmatpush1.msra.mxu0 %v2868
        %3035 = vmatprep.subr.mxu0 %v2873
        %3036 = vmatpush1.msra.mxu0 %v2872
        %3037 = vmatprep.subr.mxu0 %v2877
        %3038 = vmatpush1.msra.mxu0 %v2876
        %3039 = vmatprep.subr.mxu0 %v2881
        %3040 = vmatpush1.msra.mxu0 %v2880
        %3041 = vmatprep.subr.mxu0 %v2885
        %3042 = vmatpush1.msra.mxu0 %v2884
        %3043 = vmatprep.subr.mxu0 %v2889
        %3044 = vmatpush1.msra.mxu0 %v2888
        %3045 = vmatprep.subr.mxu0 %v2893
        %3046 = vmatpush1.msra.mxu0 %v2892
        %3047 = vmatprep.subr.mxu0 %v2897
        %3048 = vmatpush1.msra.mxu0 %v2896
        %3049 = vmatprep.subr.mxu0 %v2901
        %3050 = vmatpush1.msra.mxu0 %v2900
        %3051 = vmatprep.subr.mxu0 %v2905
        %3052 = vmatpush1.msra.mxu0 %v2904
        %3053 = vmatprep.subr.mxu0 %v2909
        %3054 = vmatpush1.msra.mxu0 %v2908
        %3055 = vmatprep.subr.mxu0 %v2913
        %3056 = vmatpush1.msra.mxu0 %v2912
        %3057 = vmatprep.subr.mxu0 %v2917
        %3058 = vmatpush1.msra.mxu0 %v2916
        %3059 = vmatprep.subr.mxu0 %v2921
        %3060 = vmatpush1.msra.mxu0 %v2920
        %3061 = vmatprep.subr.mxu0 %v2925
        %3062 = vmatpush1.msra.mxu0 %v2924
        %3063 = vmatprep.subr.mxu0 0.0
        %3064 = vmatpush1.msra.mxu0 0.0
        %3065 = vmatprep.subr.mxu0 0.0
        %3066 = vmatpush1.msra.mxu0 0.0
        %3067 = vmatprep.subr.mxu0 0.0
        %3068 = vmatpush1.msra.mxu0 0.0
        %3069 = vmatprep.subr.mxu0 0.0
        %3070 = vmatpush1.msra.mxu0 0.0
        %3071 = vmatprep.subr.mxu0 0.0
        %3072 = vmatpush1.msra.mxu0 0.0
        %3073 = vmatprep.subr.mxu0 0.0
        %3074 = vmatpush1.msra.mxu0 0.0
        %3075 = vmatprep.subr.mxu0 0.0
        %3076 = vmatpush1.msra.mxu0 0.0
        %3077 = vmatprep.subr.mxu0 0.0
        %3078 = vmatpush1.msra.mxu0 0.0
        %3079 = vmatprep.subr.mxu0 0.0
        %3080 = vmatpush1.msra.mxu0 0.0
        %3081 = vmatprep.subr.mxu0 0.0
        %3082 = vmatpush1.msra.mxu0 0.0
        %3083 = vmatprep.subr.mxu0 0.0
        %3084 = vmatpush1.msra.mxu0 0.0
        %3085 = vmatprep.subr.mxu0 0.0
        %3086 = vmatpush1.msra.mxu0 0.0
        %3087 = vmatprep.subr.mxu0 0.0
        %3088 = vmatpush1.msra.mxu0 0.0
        %3089 = vmatprep.subr.mxu0 0.0
        %3090 = vmatpush1.msra.mxu0 0.0
        %3091 = vmatprep.subr.mxu0 0.0
        %3092 = vmatpush1.msra.mxu0 0.0
        %3093 = vmatprep.subr.mxu0 0.0
        %3094 = vmatpush1.msra.mxu0 0.0
        %3095 = vmatprep.mubr.f32.mxu0 0.0
        %3096 = vmatmul.mubr.f32.gmra.mrb[0].mxu0 %v2859
        %v3097 = vpop.f32.mrb[0].mxu0
        %v3098 = vadd.f32 %v2939, %v3097
        %v3099 = vpop.f32.mrb[0].mxu0
        %v3100 = vadd.f32 %v2943, %v3099
        %3101 = vmatprep.mubr.f32.mxu0 0.0
        %3102 = vmatmul.mubr.f32.gmra.mrb[0].mxu0 %v2860
        %v3103 = vpop.f32.mrb[0].mxu0
        %v3104 = vadd.f32 %v2939, %v3103
        %v3105 = vpop.f32.mrb[0].mxu0
        %v3106 = vadd.f32 %v2943, %v3105
        %3107 = vmatprep.mubr.f32.mxu0 0.0
        %3108 = vmatmul.mubr.f32.gmra.mrb[0].mxu0 %v2861
        %v3109 = vpop.f32.mrb[0].mxu0
        %v3110 = vadd.f32 %v2939, %v3109
        %v3111 = vpop.f32.mrb[0].mxu0
        %v3112 = vadd.f32 %v2943, %v3111
        %3113 = vdwg.mxu0
        %v3114 = vmax.f32 %v3015, 0.0
        %v3115 = vmax.f32 %v3017, 0.0
        %v3116 = vmax.f32 %v3098, 0.0
        %v3117 = vmax.f32 %v3100, 0.0
        %v3118 = vmax.f32 %v3021, 0.0
        %v3119 = vmax.f32 %v3023, 0.0
        %v3120 = vmax.f32 %v3104, 0.0
        %v3121 = vmax.f32 %v3106, 0.0
        %v3122 = vmax.f32 %v3027, 0.0
        %v3123 = vmax.f32 %v3029, 0.0
        %v3124 = vmax.f32 %v3110, 0.0
        %v3125 = vmax.f32 %v3112, 0.0
        %v3126 = vld [vmem:[#allocation6] sm:$0xff]
        %v3127 = vld [vmem:[#allocation6 + $0x8] sm:$0xff]
        %v3128 = vld [vmem:[#allocation6 + $0x10] sm:$0xff]
        %v3129 = vld [vmem:[#allocation6 + $0x18] sm:$0xff]
        %v3130 = vld [vmem:[#allocation6 + $0x20] sm:$0xff]
        %v3131 = vld [vmem:[#allocation6 + $0x28] sm:$0xff]
        %v3132 = vld [vmem:[#allocation6 + $0x30] sm:$0xff]
        %v3133 = vld [vmem:[#allocation6 + $0x38] sm:$0xff]
        %v3134 = vld [vmem:[#allocation6 + $0x40] sm:$0xff]
        %v3135 = vld [vmem:[#allocation6 + $0x48] sm:$0xff]
        %v3136 = vld [vmem:[#allocation6 + $0x50] sm:$0xff]
        %v3137 = vld [vmem:[#allocation6 + $0x58] sm:$0xff]
        %v3138 = vld [vmem:[#allocation6 + $0x60] sm:$0xff]
        %v3139 = vld [vmem:[#allocation6 + $0x68] sm:$0xff]
        %v3140 = vld [vmem:[#allocation6 + $0x70] sm:$0xff]
        %v3141 = vld [vmem:[#allocation6 + $0x78] sm:$0xff]
        %v3142 = vld [vmem:[#allocation6 + $0x80] sm:$0xff]
        %v3143 = vld [vmem:[#allocation6 + $0x88] sm:$0xff]
        %v3144 = vld [vmem:[#allocation6 + $0x90] sm:$0xff]
        %v3145 = vld [vmem:[#allocation6 + $0x98] sm:$0xff]
        %v3146 = vld [vmem:[#allocation6 + $0xa0] sm:$0xff]
        %v3147 = vld [vmem:[#allocation6 + $0xa8] sm:$0xff]
        %v3148 = vld [vmem:[#allocation6 + $0xb0] sm:$0xff]
        %v3149 = vld [vmem:[#allocation6 + $0xb8] sm:$0xff]
        %v3150 = vld [vmem:[#allocation6 + $0xc0] sm:$0xff]
        %v3151 = vld [vmem:[#allocation6 + $0xc8] sm:$0xff]
        %v3152 = vld [vmem:[#allocation6 + $0xd0] sm:$0xff]
        %v3153 = vld [vmem:[#allocation6 + $0xd8] sm:$0xff]
        %v3154 = vld [vmem:[#allocation6 + $0xe0] sm:$0xff]
        %v3155 = vld [vmem:[#allocation6 + $0xe8] sm:$0xff]
        %v3156 = vld [vmem:[#allocation6 + $0xf0] sm:$0xff]
        %v3157 = vld [vmem:[#allocation6 + $0xf8] sm:$0xff]
        %v3158 = vld [vmem:[#allocation6 + $0x100] sm:$0xff]
        %v3159 = vld [vmem:[#allocation6 + $0x108] sm:$0xff]
        %v3160 = vld [vmem:[#allocation6 + $0x110] sm:$0xff]
        %v3161 = vld [vmem:[#allocation6 + $0x118] sm:$0xff]
        %v3162 = vld [vmem:[#allocation6 + $0x120] sm:$0xff]
        %v3163 = vld [vmem:[#allocation6 + $0x128] sm:$0xff]
        %v3164 = vld [vmem:[#allocation6 + $0x130] sm:$0xff]
        %v3165 = vld [vmem:[#allocation6 + $0x138] sm:$0xff]
        %v3166 = vld [vmem:[#allocation6 + $0x140] sm:$0xff]
        %v3167 = vld [vmem:[#allocation6 + $0x148] sm:$0xff]
        %v3168 = vld [vmem:[#allocation6 + $0x150] sm:$0xff]
        %v3169 = vld [vmem:[#allocation6 + $0x158] sm:$0xff]
        %v3170 = vld [vmem:[#allocation6 + $0x160] sm:$0xff]
        %v3171 = vld [vmem:[#allocation6 + $0x168] sm:$0xff]
        %v3172 = vld [vmem:[#allocation6 + $0x170] sm:$0xff]
        %v3173 = vld [vmem:[#allocation6 + $0x178] sm:$0xff]
        %v3174 = vld [vmem:[#allocation6 + $0x180] sm:$0xff]
        %v3175 = vld [vmem:[#allocation6 + $0x188] sm:$0xff]
        %v3176 = vld [vmem:[#allocation6 + $0x190] sm:$0xff]
        %v3177 = vld [vmem:[#allocation6 + $0x198] sm:$0xff]
        %v3178 = vld [vmem:[#allocation6 + $0x1a0] sm:$0xff]
        %v3179 = vld [vmem:[#allocation6 + $0x1a8] sm:$0xff]
        %v3180 = vld [vmem:[#allocation6 + $0x1b0] sm:$0xff]
        %v3181 = vld [vmem:[#allocation6 + $0x1b8] sm:$0xff]
        %v3182 = vld [vmem:[#allocation6 + $0x1c0] sm:$0xff]
        %v3183 = vld [vmem:[#allocation6 + $0x1c8] sm:$0xff]
        %v3184 = vld [vmem:[#allocation6 + $0x1d0] sm:$0xff]
        %v3185 = vld [vmem:[#allocation6 + $0x1d8] sm:$0xff]
        %v3186 = vld [vmem:[#allocation6 + $0x1e0] sm:$0xff]
        %v3187 = vld [vmem:[#allocation6 + $0x1e8] sm:$0xff]
        %v3188 = vld [vmem:[#allocation6 + $0x1f0] sm:$0xff]
        %v3189 = vld [vmem:[#allocation6 + $0x1f8] sm:$0xff]
        %v3190 = vld [vmem:[%s7] sm:$0x1]
        %v3192 = vlaneseq
        %v3193 = vshrl.u32 %v3192, 7
        %v3194 = vsub.s32 0, %v3193
        %v3195 = vrot.slane %v3190, %v3194
        %3197 = vmatprep.subr.mxu0 0.0
        %3198 = vmatpush1.msra.mxu0 %v3126
        %3199 = vmatprep.subr.mxu0 0.0
        %3200 = vmatpush1.msra.mxu0 %v3127
        %3201 = vmatprep.subr.mxu0 0.0
        %3202 = vmatpush1.msra.mxu0 %v3128
        %3203 = vmatprep.subr.mxu0 0.0
        %3204 = vmatpush1.msra.mxu0 %v3129
        %3205 = vmatprep.subr.mxu0 0.0
        %3206 = vmatpush1.msra.mxu0 %v3130
        %3207 = vmatprep.subr.mxu0 0.0
        %3208 = vmatpush1.msra.mxu0 %v3131
        %3209 = vmatprep.subr.mxu0 0.0
        %3210 = vmatpush1.msra.mxu0 %v3132
        %3211 = vmatprep.subr.mxu0 0.0
        %3212 = vmatpush1.msra.mxu0 %v3133
        %3213 = vmatprep.subr.mxu0 0.0
        %3214 = vmatpush1.msra.mxu0 %v3134
        %3215 = vmatprep.subr.mxu0 0.0
        %3216 = vmatpush1.msra.mxu0 %v3135
        %3217 = vmatprep.subr.mxu0 0.0
        %3218 = vmatpush1.msra.mxu0 %v3136
        %3219 = vmatprep.subr.mxu0 0.0
        %3220 = vmatpush1.msra.mxu0 %v3137
        %3221 = vmatprep.subr.mxu0 0.0
        %3222 = vmatpush1.msra.mxu0 %v3138
        %3223 = vmatprep.subr.mxu0 0.0
        %3224 = vmatpush1.msra.mxu0 %v3139
        %3225 = vmatprep.subr.mxu0 0.0
        %3226 = vmatpush1.msra.mxu0 %v3140
        %3227 = vmatprep.subr.mxu0 0.0
        %3228 = vmatpush1.msra.mxu0 %v3141
        %3229 = vmatprep.subr.mxu0 0.0
        %3230 = vmatpush1.msra.mxu0 %v3142
        %3231 = vmatprep.subr.mxu0 0.0
        %3232 = vmatpush1.msra.mxu0 %v3143
        %3233 = vmatprep.subr.mxu0 0.0
        %3234 = vmatpush1.msra.mxu0 %v3144
        %3235 = vmatprep.subr.mxu0 0.0
        %3236 = vmatpush1.msra.mxu0 %v3145
        %3237 = vmatprep.subr.mxu0 0.0
        %3238 = vmatpush1.msra.mxu0 %v3146
        %3239 = vmatprep.subr.mxu0 0.0
        %3240 = vmatpush1.msra.mxu0 %v3147
        %3241 = vmatprep.subr.mxu0 0.0
        %3242 = vmatpush1.msra.mxu0 %v3148
        %3243 = vmatprep.subr.mxu0 0.0
        %3244 = vmatpush1.msra.mxu0 %v3149
        %3245 = vmatprep.subr.mxu0 0.0
        %3246 = vmatpush1.msra.mxu0 %v3150
        %3247 = vmatprep.subr.mxu0 0.0
        %3248 = vmatpush1.msra.mxu0 %v3151
        %3249 = vmatprep.subr.mxu0 0.0
        %3250 = vmatpush1.msra.mxu0 %v3152
        %3251 = vmatprep.subr.mxu0 0.0
        %3252 = vmatpush1.msra.mxu0 %v3153
        %3253 = vmatprep.subr.mxu0 0.0
        %3254 = vmatpush1.msra.mxu0 %v3154
        %3255 = vmatprep.subr.mxu0 0.0
        %3256 = vmatpush1.msra.mxu0 %v3155
        %3257 = vmatprep.subr.mxu0 0.0
        %3258 = vmatpush1.msra.mxu0 %v3156
        %3259 = vmatprep.subr.mxu0 0.0
        %3260 = vmatpush1.msra.mxu0 %v3157
        %3261 = vmatprep.mubr.f32.mxu0 %v3115
        %3262 = vmatmul.mubr.f32.gmra.mrb[0].mxu0 %v3114
        %v3263 = vpop.f32.mrb[0].mxu0
        %v3264 = vadd.f32 %v3195, %v3263
        %v3265 = vpop.f32.mrb[0].mxu0
        %3266 = vmatprep.mubr.f32.mxu0 %v3119
        %3267 = vmatmul.mubr.f32.gmra.mrb[0].mxu0 %v3118
        %v3268 = vpop.f32.mrb[0].mxu0
        %v3269 = vadd.f32 %v3195, %v3268
        %v3270 = vpop.f32.mrb[0].mxu0
        %3271 = vmatprep.mubr.f32.mxu0 %v3123
        %3272 = vmatmul.mubr.f32.gmra.mrb[0].mxu0 %v3122
        %v3273 = vpop.f32.mrb[0].mxu0
        %v3274 = vadd.f32 %v3195, %v3273
        %v3275 = vpop.f32.mrb[0].mxu0
        %3276 = vdwg.mxu0
        %3277 = vmatprep.subr.mxu0 0.0
        %3278 = vmatpush1.msra.mxu0 %v3158
        %3279 = vmatprep.subr.mxu0 0.0
        %3280 = vmatpush1.msra.mxu0 %v3159
        %3281 = vmatprep.subr.mxu0 0.0
        %3282 = vmatpush1.msra.mxu0 %v3160
        %3283 = vmatprep.subr.mxu0 0.0
        %3284 = vmatpush1.msra.mxu0 %v3161
        %3285 = vmatprep.subr.mxu0 0.0
        %3286 = vmatpush1.msra.mxu0 %v3162
        %3287 = vmatprep.subr.mxu0 0.0
        %3288 = vmatpush1.msra.mxu0 %v3163
        %3289 = vmatprep.subr.mxu0 0.0
        %3290 = vmatpush1.msra.mxu0 %v3164
        %3291 = vmatprep.subr.mxu0 0.0
        %3292 = vmatpush1.msra.mxu0 %v3165
        %3293 = vmatprep.subr.mxu0 0.0
        %3294 = vmatpush1.msra.mxu0 %v3166
        %3295 = vmatprep.subr.mxu0 0.0
        %3296 = vmatpush1.msra.mxu0 %v3167
        %3297 = vmatprep.subr.mxu0 0.0
        %3298 = vmatpush1.msra.mxu0 %v3168
        %3299 = vmatprep.subr.mxu0 0.0
        %3300 = vmatpush1.msra.mxu0 %v3169
        %3301 = vmatprep.subr.mxu0 0.0
        %3302 = vmatpush1.msra.mxu0 %v3170
        %3303 = vmatprep.subr.mxu0 0.0
        %3304 = vmatpush1.msra.mxu0 %v3171
        %3305 = vmatprep.subr.mxu0 0.0
        %3306 = vmatpush1.msra.mxu0 %v3172
        %3307 = vmatprep.subr.mxu0 0.0
        %3308 = vmatpush1.msra.mxu0 %v3173
        %3309 = vmatprep.subr.mxu0 0.0
        %3310 = vmatpush1.msra.mxu0 %v3174
        %3311 = vmatprep.subr.mxu0 0.0
        %3312 = vmatpush1.msra.mxu0 %v3175
        %3313 = vmatprep.subr.mxu0 0.0
        %3314 = vmatpush1.msra.mxu0 %v3176
        %3315 = vmatprep.subr.mxu0 0.0
        %3316 = vmatpush1.msra.mxu0 %v3177
        %3317 = vmatprep.subr.mxu0 0.0
        %3318 = vmatpush1.msra.mxu0 %v3178
        %3319 = vmatprep.subr.mxu0 0.0
        %3320 = vmatpush1.msra.mxu0 %v3179
        %3321 = vmatprep.subr.mxu0 0.0
        %3322 = vmatpush1.msra.mxu0 %v3180
        %3323 = vmatprep.subr.mxu0 0.0
        %3324 = vmatpush1.msra.mxu0 %v3181
        %3325 = vmatprep.subr.mxu0 0.0
        %3326 = vmatpush1.msra.mxu0 %v3182
        %3327 = vmatprep.subr.mxu0 0.0
        %3328 = vmatpush1.msra.mxu0 %v3183
        %3329 = vmatprep.subr.mxu0 0.0
        %3330 = vmatpush1.msra.mxu0 %v3184
        %3331 = vmatprep.subr.mxu0 0.0
        %3332 = vmatpush1.msra.mxu0 %v3185
        %3333 = vmatprep.subr.mxu0 0.0
        %3334 = vmatpush1.msra.mxu0 %v3186
        %3335 = vmatprep.subr.mxu0 0.0
        %3336 = vmatpush1.msra.mxu0 %v3187
        %3337 = vmatprep.subr.mxu0 0.0
        %3338 = vmatpush1.msra.mxu0 %v3188
        %3339 = vmatprep.subr.mxu0 0.0
        %3340 = vmatpush1.msra.mxu0 %v3189
        %3341 = vmatprep.mubr.f32.mxu0 %v3117
        %3342 = vmatmul.mubr.f32.gmra.mrb[0].mxu0 %v3116
        %v3343 = vpop.f32.mrb[0].mxu0
        %v3344 = vadd.f32 %v3264, %v3343
        %v3345 = vpop.f32.mrb[0].mxu0
        %3346 = vmatprep.mubr.f32.mxu0 %v3121
        %3347 = vmatmul.mubr.f32.gmra.mrb[0].mxu0 %v3120
        %v3348 = vpop.f32.mrb[0].mxu0
        %v3349 = vadd.f32 %v3269, %v3348
        %v3350 = vpop.f32.mrb[0].mxu0
        %3351 = vmatprep.mubr.f32.mxu0 %v3125
        %3352 = vmatmul.mubr.f32.gmra.mrb[0].mxu0 %v3124
        %v3353 = vpop.f32.mrb[0].mxu0
        %v3354 = vadd.f32 %v3274, %v3353
        %v3355 = vpop.f32.mrb[0].mxu0
        %3356 = vdwg.mxu0
        %v3357 = vld [vmem:[%s10] sm:$0x1]
        %v3358 = vld [vmem:[%s11] sm:$0x1]
        %v3359 = vadd.f32 %v2859, %v3344
        %v3360 = vadd.f32 %v2860, %v3349
        %v3361 = vadd.f32 %v2861, %v3354
        %v3362 = vadd.f32 %v3359, %v3360
        %v3363 = vsel %vm855, %v3361, 0.0
        %v3364 = vadd.f32 %v3362, %v3363
        %v3365 = vrot.slane %v3364, 4
        %v3366 = vadd.f32 %v3364, %v3365
        %v3367 = vrot.slane %v3366, 2
        %v3368 = vadd.f32 %v3366, %v3367
        %v3369 = vrot.slane %v3368, 1
        %v3370 = vadd.f32 %v3368, %v3369
        %v3371 = vmul.f32 %v3370, 0.04761905
        %v3372 = vmul.f32 %v3359, %v3359
        %v3373 = vmul.f32 %v3360, %v3360
        %v3374 = vmul.f32 %v3361, %v3361
        %v3375 = vadd.f32 %v3372, %v3373
        %v3376 = vsel %vm855, %v3374, 0.0
        %v3377 = vadd.f32 %v3375, %v3376
        %v3378 = vrot.slane %v3377, 4
        %v3379 = vadd.f32 %v3377, %v3378
        %v3380 = vrot.slane %v3379, 2
        %v3381 = vadd.f32 %v3379, %v3380
        %v3382 = vrot.slane %v3381, 1
        %v3383 = vadd.f32 %v3381, %v3382
        %v3384 = vmul.f32 %v3383, 0.04761905
        %v3385 = vmul.f32 %v3371, %v3371
        %v3386 = vsub.f32 %v3384, %v3385
        %v3387 = vadd.f32 %v3386, 1e-05
        %v3388 = vrsqrt.pop %v3387
        %v3389 = vmul.f32 %v3388, %v3357
        %v3390 = vsub.f32 %v3359, %v3371
        %v3391 = vsub.f32 %v3360, %v3371
        %v3392 = vsub.f32 %v3361, %v3371
        %v3393 = vlaneseq
        %v3394 = vshrl.u32 %v3393, 7
        %v3395 = vsub.s32 0, %v3394
        %v3396 = vrot.slane %v3389, %v3395
        %v3397 = vmul.f32 %v3390, %v3396
        %v3398 = vmul.f32 %v3391, %v3396
        %v3399 = vmul.f32 %v3392, %v3396
        %v3401 = vlaneseq
        %v3402 = vshrl.u32 %v3401, 7
        %v3403 = vsub.s32 0, %v3402
        %v3404 = vrot.slane %v3358, %v3403
        %v3406 = vadd.f32 %v3397, %v3404
        %v3407 = vadd.f32 %v3398, %v3404
        %v3408 = vadd.f32 %v3399, %v3404
        %3409 = vst [vmem:[%s492] sm:$0xff] %v3406
        %3410 = vst [vmem:[%s492 + $0x8] sm:$0xff] %v3407
        %3411 = vst [vmem:[%s492 + $0x10] sm:$0x1f] %v3408
        %p3412 = scmp.lt.s32.totalorder %s27, 1
        %s3413 = scalar_select %p3412, %s27, 1
        %s3414 = smul.addr %s3413, 3
        %s3415 = smul.addr %s3414, 8
        %s3416 = scalar_lea.vmem %s12, %s3415
        %p3417 = scmp.lt.s32.totalorder %s27, 1
        %s3418 = scalar_select %p3417, %s27, 1
        %s3419 = smul.addr %s3418, 3
        %s3420 = smul.addr %s3419, 8
        %s3421 = scalar_lea.vmem %s13, %s3420
        // Predicated region
        $region81: #{vrp_encoder_forward.2} parent=67 // pred_check
          %p3422 = pneg %p302
        $region82: #{vrp_encoder_forward.2} parent=67 // pred_check_branch
          %3424 = sbr.rel (%p3422) target = $region84
        $region83: #{vrp_encoder_forward.2} parent=67 // pred_region
          _
        $region84: #{vrp_encoder_forward.2} parent=67 // pred_fallthru
          _
        // Predicated region
        $region85: #{vrp_encoder_forward.2} parent=67 // pred_check
          %p3425 = pneg %p328
        $region86: #{vrp_encoder_forward.2} parent=67 // pred_check_branch
          %3427 = sbr.rel (%p3425) target = $region88
        $region87: #{vrp_encoder_forward.2} parent=67 // pred_region
          _
        $region88: #{vrp_encoder_forward.2} parent=67 // pred_fallthru
          _
      $region68: #{vrp_encoder_forward.2} parent=5 // pred_fallthru
        _
      %p3428 = scmp.le.s32.totalorder 2, %s22
      // Predicated region
      $region89: #{vrp_encoder_forward.2} parent=5 // pred_check
        %p3429 = pneg %p3428
      $region90: #{vrp_encoder_forward.2} parent=5 // pred_check_branch
        %3431 = sbr.rel (%p3429) target = $region92
      $region91: #{vrp_encoder_forward.2} parent=5 // pred_region
        %s3432 = ssub.s32 %s22, 2
        // Predicated region
        $region93: #{vrp_encoder_forward.2} parent=91 // pred_check
          %p3433 = pneg %p308
        $region94: #{vrp_encoder_forward.2} parent=91 // pred_check_branch
          %3435 = sbr.rel (%p3433) target = $region96
        $region95: #{vrp_encoder_forward.2} parent=91 // pred_region
          %p3436 = scmp.lt.s32.totalorder %s28, 1
          %s3437 = scalar_select %p3436, %s28, 1
          %s3438 = smul.addr %s3437, 3
          %s3439 = smul.addr %s3438, 8
          %s3440 = scalar_lea.vmem %s12, %s3439
        $region96: #{vrp_encoder_forward.2} parent=91 // pred_fallthru
          _
        // Predicated region
        $region97: #{vrp_encoder_forward.2} parent=91 // pred_check
          %p3441 = pneg %p334
        $region98: #{vrp_encoder_forward.2} parent=91 // pred_check_branch
          %3443 = sbr.rel (%p3441) target = $region100
        $region99: #{vrp_encoder_forward.2} parent=91 // pred_region
          %p3444 = scmp.lt.s32.totalorder %s28, 1
          %s3445 = scalar_select %p3444, %s28, 1
          %s3446 = smul.addr %s3445, 3
          %s3447 = smul.addr %s3446, 8
          %s3448 = scalar_lea.vmem %s13, %s3447
        $region100: #{vrp_encoder_forward.2} parent=91 // pred_fallthru
          _
      $region92: #{vrp_encoder_forward.2} parent=5 // pred_fallthru
        _
    $region6: #{vrp_encoder_forward.2} parent=1 // loop_footer
      %s26 = sadd.s32 1, %s22
    $region7: #{vrp_encoder_forward.2} parent=1 // loop_footer_branch
      %21 = sbr.rel target = $region3
    $region8: #{vrp_encoder_forward.2} parent=1 // loop_exit
      _
    %3449 = vsyncpa [#allocation3], 1
    %s3450 = scalar_lea.sflag [#allocation3], 1
    %3451 = vsyncpa %s3450, 1
    %3452 = vsyncpa [#allocation5], 1

</llo_original>
